<compile_context>
chip_gen: v7x
topology: tpu7x:2x2x1
jax: 0.10.0
libtpu: 0.0.40
codegen_flags: <defaults>
</compile_context>

<pallas_src>
import math

import jax
import jax.numpy as jnp
from jax.experimental import pallas as pl
from jax.experimental.pallas import tpu as pltpu

FEATS = 768                    # backbone feature dim
EMBED = 256                    # encoder / SelfAttentionPooling dim
N_ATTN_HEADS = 8
DH = EMBED // N_ATTN_HEADS     # 32
FFN_DIM = 512
PATCH = 4                      # synthetic backbone patch size
N_IMAGE_HEADS = 25             # the module builds 25 image heads
N_HEAD = 25                    # must be 25 so `image_logits[i]` writes are consistent
IMG_PAD = 128                  # image-head lanes padded to one full vreg width
COMB = IMG_PAD + EMBED         # fused [image heads | Project] matmul width (384)
VOL_PAD = 128                  # lane-dense volume-logit slab width (75 valid)


# ------------------------------ fused kernel -------------------------------
# One grid step == one batch element.  Per step:
#   3x { mean-pool raw patches, /255, patch-embed matmul, fused img|proj matmul }
#   -> lane-dense image-logit store, sequence build (+pos emb)
#   -> one post-norm transformer encoder layer (fused QKV, single Wo matmul)
#   -> 25 volume heads (attention-pool + packed head matmul) -> lane-dense row.

def _fused_forward_kernel(patches_ref, pw_ref, pb_ref, cw_ref, cb_ref,
                          pos_ref, wqkv_ref, bqkv_ref, wo_ref, bo_ref,
                          ln1g_ref, ln1b_ref, w1_ref, b1_ref, w2_ref, b2_ref,
                          ln2g_ref, ln2b_ref, watt_ref, wbig_ref, bvol_ref,
                          img_ref, vol_ref):
    scale = 1.0 / math.sqrt(DH)

    # ---- per-view backbone + fused [25 image heads | Project] matmul ----
    # Pool-first rewrite: the synthetic backbone is purely linear, so the mean
    # over patches commutes with the patch-embed matmul.
    comb_views = []
    for view in range(3):                                         # static unroll
        patches = patches_ref[0, view].astype(jnp.float32)        # (n, NP, KD)
        pooled = jnp.mean(patches, axis=1) * (1.0 / 255.0)        # (n, KD), /255 fused
        feats = jnp.dot(pooled.astype(jnp.bfloat16), pw_ref[view],
                        preferred_element_type=jnp.float32) + pb_ref[view]   # (n, 768)
        comb_views.append(
            jnp.dot(feats.astype(jnp.bfloat16), cw_ref[view],
                    preferred_element_type=jnp.float32) + cb_ref[view])      # (n, 384)
    comb = jnp.concatenate(comb_views, axis=0)                    # (S, 384)

    img_ref[0] = comb[:, :IMG_PAD]                  # lane-dense 128-wide store
    x = comb[:, IMG_PAD:] + pos_ref[...]            # (S, 256): Project + pos emb

    def layer_norm(z, g, b):
        mu = jnp.mean(z, axis=-1, keepdims=True)
        var = jnp.mean(jnp.square(z - mu), axis=-1, keepdims=True)
        return (z - mu) * jax.lax.rsqrt(var + 1e-5) * g + b

    # ---- post-norm transformer encoder layer ----
    qkv = jnp.dot(x.astype(jnp.bfloat16), wqkv_ref[...],
                  preferred_element_type=jnp.float32) + bqkv_ref[...]        # (S, 3C)
    q = qkv[:, :EMBED]
    k = qkv[:, EMBED:2 * EMBED]
    v = qkv[:, 2 * EMBED:]

    heads = []
    for h in range(N_ATTN_HEADS):                    # static unroll (S is tiny)
        sl = slice(h * DH, (h + 1) * DH)
        qh = q[:, sl].astype(jnp.bfloat16)
        kh = k[:, sl].astype(jnp.bfloat16)
        vh = v[:, sl].astype(jnp.bfloat16)
        s = jax.lax.dot_general(qh, kh, (((1,), (1,)), ((), ())),
                                preferred_element_type=jnp.float32) * scale  # (S, S)
        s = s - jnp.max(s, axis=-1, keepdims=True)
        pmat = jnp.exp(s)
        pmat = pmat * pl.reciprocal(jnp.sum(pmat, axis=-1, keepdims=True),
                                    approx=True)
        heads.append(jnp.dot(pmat.astype(jnp.bfloat16), vh,
                             preferred_element_type=jnp.float32))            # (S, DH)
    attn_cat = jnp.concatenate(heads, axis=-1)                               # (S, C)
    attn = jnp.dot(attn_cat.astype(jnp.bfloat16), wo_ref[...],
                   preferred_element_type=jnp.float32) + bo_ref[...]         # single K=256 Wo

    h1 = layer_norm(x + attn, ln1g_ref[...], ln1b_ref[...])
    f = jnp.dot(h1.astype(jnp.bfloat16), w1_ref[...],
                preferred_element_type=jnp.float32) + b1_ref[...]
    f = jnp.maximum(f, 0.0)
    f = jnp.dot(f.astype(jnp.bfloat16), w2_ref[...],
                preferred_element_type=jnp.float32) + b2_ref[...]
    out = layer_norm(h1 + f, ln2g_ref[...], ln2b_ref[...])                   # (S, C)

    # ---- 25 volume heads: attention-pool + packed per-head Linear(256,3) ----
    scores = jnp.dot(out.astype(jnp.bfloat16), watt_ref[...],
                     preferred_element_type=jnp.float32)                     # (S, 25)
    scores = scores - jnp.max(scores, axis=0, keepdims=True)
    a = jnp.exp(scores)
    a = a * pl.reciprocal(jnp.sum(a, axis=0, keepdims=True), approx=True)
    pooled = jax.lax.dot_general(a.astype(jnp.bfloat16), out.astype(jnp.bfloat16),
                                 (((0,), (0,)), ((), ())),
                                 preferred_element_type=jnp.float32)         # (25, C)
    vol_full = jnp.dot(pooled.astype(jnp.bfloat16), wbig_ref[...],
                       preferred_element_type=jnp.float32)                   # (25, 128)
    # block-diagonal extraction: vol_row[h*3+d] = pooled[h] . w_head[h, d]
    row_i = jax.lax.broadcasted_iota(jnp.int32, (N_HEAD, VOL_PAD), 0)
    col_i = jax.lax.broadcasted_iota(jnp.int32, (N_HEAD, VOL_PAD), 1)
    diag = jnp.logical_and(col_i >= 3 * row_i, col_i < 3 * row_i + 3)
    vol_row = jnp.sum(jnp.where(diag, vol_full, 0.0), axis=0, keepdims=True)  # (1, 128)
    vol_row = vol_row + bvol_ref[...]
    vol_ref[0] = jnp.broadcast_to(vol_row, (8, VOL_PAD))          # lane-dense slab


def fused_forward(patches, p):
    """patches: (bs, 3, n, NP, PATCH*PATCH*3) bf16 raw pixel patch vectors."""
    bs, V, n, NP, KD = patches.shape
    S = V * n

    def const_spec(shape):
        zeros = (0,) * len(shape)
        return pl.BlockSpec(shape, lambda b: zeros)

    return pl.pallas_call(
        _fused_forward_kernel,
        out_shape=(jax.ShapeDtypeStruct((bs, S, IMG_PAD), jnp.float32),
                   jax.ShapeDtypeStruct((bs, 8, VOL_PAD), jnp.float32)),
        grid=(bs,),
        in_specs=[
            pl.BlockSpec((1, V, n, NP, KD), lambda b: (b, 0, 0, 0, 0)),  # patches
            const_spec((V, KD, FEATS)), const_spec((V, 1, FEATS)),       # patch embed
            const_spec((V, FEATS, COMB)), const_spec((V, 1, COMB)),      # img|proj fused
            const_spec((S, EMBED)),                                      # pos emb
            const_spec((EMBED, 3 * EMBED)), const_spec((1, 3 * EMBED)),  # wqkv / bqkv
            const_spec((EMBED, EMBED)), const_spec((1, EMBED)),          # wo / bo
            const_spec((1, EMBED)), const_spec((1, EMBED)),              # ln1 g/b
            const_spec((EMBED, FFN_DIM)), const_spec((1, FFN_DIM)),      # ffn w1/b1
            const_spec((FFN_DIM, EMBED)), const_spec((1, EMBED)),        # ffn w2/b2
            const_spec((1, EMBED)), const_spec((1, EMBED)),              # ln2 g/b
            const_spec((EMBED, N_HEAD)),                                 # w_att (25 packed)
            const_spec((EMBED, VOL_PAD)), const_spec((1, VOL_PAD)),      # w_big / b_vol
        ],
        out_specs=(pl.BlockSpec((1, S, IMG_PAD), lambda b: (b, 0, 0)),
                   pl.BlockSpec((1, 8, VOL_PAD), lambda b: (b, 0, 0))),
        compiler_params=pltpu.CompilerParams(
            dimension_semantics=("parallel",),
            vmem_limit_bytes=64 << 20),
    )(patches, p['patch_w'], p['patch_b'], p['comb_w'], p['comb_b'],
      p['pos_emb'], p['wqkv'], p['bqkv'], p['wo'], p['bo'],
      p['ln1_g'], p['ln1_b'], p['ffn_w1'], p['ffn_b1'], p['ffn_w2'], p['ffn_b2'],
      p['ln2_g'], p['ln2_b'], p['w_att'], p['w_big'], p['b_vol'])


# ------------------------------ params / glue -------------------------------

def init_params(key, n_slice):
    ks = iter(jax.random.split(key, 16))

    def normal(shape, dtype=jnp.bfloat16, scale=0.02):
        return (scale * jax.random.normal(next(ks), shape)).astype(dtype)

    kdim = PATCH * PATCH * 3
    p = {}
    p['patch_w'] = normal((3, kdim, FEATS))                       # per-view patch embed
    p['patch_b'] = jnp.zeros((3, 1, FEATS), jnp.float32)

    # fused [25 image heads (padded to 128) | per-view Project(768->256)] weight
    img_w = normal((FEATS, N_IMAGE_HEADS), dtype=jnp.float32)     # 25 x Linear(768,1)
    img_b = jnp.zeros((N_IMAGE_HEADS,), jnp.float32)
    proj_w = normal((3, FEATS, EMBED), dtype=jnp.float32)
    proj_b = jnp.zeros((3, EMBED), jnp.float32)
    img_w_pad = jnp.pad(img_w, ((0, 0), (0, IMG_PAD - N_IMAGE_HEADS)))   # zero pad lanes
    comb_w = jnp.concatenate(
        [jnp.broadcast_to(img_w_pad[None], (3, FEATS, IMG_PAD)), proj_w], axis=-1)
    p['comb_w'] = comb_w.astype(jnp.bfloat16)                     # (3, 768, 384)
    img_b_pad = jnp.pad(img_b, (0, IMG_PAD - N_IMAGE_HEADS))
    comb_b = jnp.concatenate(
        [jnp.broadcast_to(img_b_pad[None], (3, IMG_PAD)), proj_b], axis=-1)
    p['comb_b'] = comb_b[:, None, :].astype(jnp.float32)          # (3, 1, 384)

    p['pos_emb'] = normal((n_slice, EMBED), dtype=jnp.float32)
    p['wqkv'] = normal((EMBED, 3 * EMBED))                        # wq|wk|wv fused
    p['bqkv'] = jnp.zeros((1, 3 * EMBED), jnp.float32)
    p['wo'] = normal((EMBED, EMBED))
    p['bo'] = jnp.zeros((1, EMBED), jnp.float32)
    p['ffn_w1'] = normal((EMBED, FFN_DIM))
    p['ffn_b1'] = jnp.zeros((1, FFN_DIM), jnp.float32)
    p['ffn_w2'] = normal((FFN_DIM, EMBED))
    p['ffn_b2'] = jnp.zeros((1, EMBED), jnp.float32)
    p['ln1_g'] = jnp.ones((1, EMBED), jnp.float32)
    p['ln1_b'] = jnp.zeros((1, EMBED), jnp.float32)
    p['ln2_g'] = jnp.ones((1, EMBED), jnp.float32)
    p['ln2_b'] = jnp.zeros((1, EMBED), jnp.float32)
    p['w_att'] = normal((EMBED, N_HEAD))                          # 25 pooling vectors

    # 25 volume heads Linear(256,3), block-packed: w_big[:, h*3+d] = w_head[h, d, :]
    w_head = normal((N_HEAD, 3, EMBED), dtype=jnp.float32)
    b_head = jnp.zeros((N_HEAD, 3), jnp.float32)
    w_big = jnp.pad(w_head.reshape(N_HEAD * 3, EMBED).T,
                    ((0, 0), (0, VOL_PAD - N_HEAD * 3)))
    p['w_big'] = w_big.astype(jnp.bfloat16)                       # (256, 128)
    p['b_vol'] = jnp.pad(b_head.reshape(N_HEAD * 3),
                         (0, VOL_PAD - N_HEAD * 3))[None, :].astype(jnp.float32)
    return p


def _extract_patches(x):
    """(bs, n, H, W, C) -> (bs, n, hp*wp, PATCH*PATCH*C)  (layout plumbing only)."""
    bs, n, H, W, C = x.shape
    hp, wp = H // PATCH, W // PATCH
    pat = x.reshape(bs, n, hp, PATCH, wp, PATCH, C)
    pat = pat.transpose(0, 1, 2, 4, 3, 5, 6).reshape(bs, n, hp * wp, PATCH * PATCH * C)
    return pat


def forward(params, x0, x1, x2):
    bs, n = x0.shape[0], x0.shape[1]
    assert x1.shape[1] == n and x2.shape[1] == n
    n_slice = 3 * n

    patches = jnp.stack([_extract_patches(x0), _extract_patches(x1),
                         _extract_patches(x2)], axis=1)           # (bs, 3, n, NP, 48)
    patches = patches.astype(jnp.bfloat16)                        # halve HBM->VMEM DMA

    img_slab, vol_slab = fused_forward(patches, params)           # lane-dense slabs

    # volume logits: (bs, 8, 128) slab -> (25, bs, 3)
    vol = vol_slab[:, 0, :N_HEAD * 3].reshape(bs, N_HEAD, 3)
    volume_logits = jnp.transpose(vol, (1, 0, 2))

    # image logits: (bs, 3n, 128) slab -> (25, bs*3n, 3) (PyTorch broadcast of (M,1))
    img = img_slab[:, :, :N_IMAGE_HEADS].reshape(bs * n_slice, N_IMAGE_HEADS)
    image_logits = jnp.broadcast_to(img.T[:, :, None],
                                    (N_IMAGE_HEADS, bs * n_slice, 3))
    return volume_logits, image_logits


if __name__ == "__main__":
    key = jax.random.PRNGKey(0)
    k0, k1, k2, kp = jax.random.split(key, 4)
    bs, n_eval, H, W, C = 2, 8, 16, 16, 3
    x0 = jax.random.uniform(k0, (bs, n_eval, H, W, C), minval=0.0, maxval=255.0)
    x1 = jax.random.uniform(k1, (bs, n_eval, H, W, C), minval=0.0, maxval=255.0)
    x2 = jax.random.uniform(k2, (bs, n_eval, H, W, C), minval=0.0, maxval=255.0)
    params = init_params(kp, n_slice=3 * n_eval)

    vol, img = jax.jit(forward)(params, x0, x1, x2)
    jax.block_until_ready((vol, img))

    assert vol.shape == (N_HEAD, bs, 3)
    assert img.shape == (N_IMAGE_HEADS, bs * 3 * n_eval, 3)
    assert bool(jnp.all(jnp.isfinite(vol))) and bool(jnp.all(jnp.isfinite(img)))
    print("KERNEL_OK")
</pallas_src>

<mosaic_0001>
module attributes {stable_mosaic.version = 11 : i64} {
  func.func @_fused_forward_kernel(%arg0: i32, %arg1: memref<1x3x8x16x48xbf16, #tpu.memory_space<vmem>>, %arg2: memref<3x48x768xbf16, #tpu.memory_space<vmem>>, %arg3: memref<3x1x768xf32, #tpu.memory_space<vmem>>, %arg4: memref<3x768x384xbf16, #tpu.memory_space<vmem>>, %arg5: memref<3x1x384xf32, #tpu.memory_space<vmem>>, %arg6: memref<24x256xf32, #tpu.memory_space<vmem>>, %arg7: memref<256x768xbf16, #tpu.memory_space<vmem>>, %arg8: memref<1x768xf32, #tpu.memory_space<vmem>>, %arg9: memref<256x256xbf16, #tpu.memory_space<vmem>>, %arg10: memref<1x256xf32, #tpu.memory_space<vmem>>, %arg11: memref<1x256xf32, #tpu.memory_space<vmem>>, %arg12: memref<1x256xf32, #tpu.memory_space<vmem>>, %arg13: memref<256x512xbf16, #tpu.memory_space<vmem>>, %arg14: memref<1x512xf32, #tpu.memory_space<vmem>>, %arg15: memref<512x256xbf16, #tpu.memory_space<vmem>>, %arg16: memref<1x256xf32, #tpu.memory_space<vmem>>, %arg17: memref<1x256xf32, #tpu.memory_space<vmem>>, %arg18: memref<1x256xf32, #tpu.memory_space<vmem>>, %arg19: memref<256x25xbf16, #tpu.memory_space<vmem>>, %arg20: memref<256x128xbf16, #tpu.memory_space<vmem>>, %arg21: memref<1x128xf32, #tpu.memory_space<vmem>>, %arg22: memref<1x24x128xf32, #tpu.memory_space<vmem>>, %arg23: memref<1x8x128xf32, #tpu.memory_space<vmem>>) attributes {dimension_semantics = [#tpu.dimension_semantics<parallel>], iteration_bounds = array<i64: 2>, scalar_prefetch = 0 : i64, scratch_operands = 0 : i64, tpu.core_type = #tpu.core_type<tc>, window_params = [{transform_indices = @transform_0, window_bounds = array<i64: 1, 3, 8, 16, 48>}, {pipeline_mode = #tpu.pipeline_mode<synchronous>, transform_indices = @transform_1, window_bounds = array<i64: 3, 48, 768>}, {pipeline_mode = #tpu.pipeline_mode<synchronous>, transform_indices = @transform_2, window_bounds = array<i64: 3, 1, 768>}, {pipeline_mode = #tpu.pipeline_mode<synchronous>, transform_indices = @transform_3, window_bounds = array<i64: 3, 768, 384>}, {pipeline_mode = #tpu.pipeline_mode<synchronous>, transform_indices = @transform_4, window_bounds = array<i64: 3, 1, 384>}, {pipeline_mode = #tpu.pipeline_mode<synchronous>, transform_indices = @transform_5, window_bounds = array<i64: 24, 256>}, {pipeline_mode = #tpu.pipeline_mode<synchronous>, transform_indices = @transform_6, window_bounds = array<i64: 256, 768>}, {pipeline_mode = #tpu.pipeline_mode<synchronous>, transform_indices = @transform_7, window_bounds = array<i64: 1, 768>}, {pipeline_mode = #tpu.pipeline_mode<synchronous>, transform_indices = @transform_8, window_bounds = array<i64: 256, 256>}, {pipeline_mode = #tpu.pipeline_mode<synchronous>, transform_indices = @transform_9, window_bounds = array<i64: 1, 256>}, {pipeline_mode = #tpu.pipeline_mode<synchronous>, transform_indices = @transform_10, window_bounds = array<i64: 1, 256>}, {pipeline_mode = #tpu.pipeline_mode<synchronous>, transform_indices = @transform_11, window_bounds = array<i64: 1, 256>}, {pipeline_mode = #tpu.pipeline_mode<synchronous>, transform_indices = @transform_12, window_bounds = array<i64: 256, 512>}, {pipeline_mode = #tpu.pipeline_mode<synchronous>, transform_indices = @transform_13, window_bounds = array<i64: 1, 512>}, {pipeline_mode = #tpu.pipeline_mode<synchronous>, transform_indices = @transform_14, window_bounds = array<i64: 512, 256>}, {pipeline_mode = #tpu.pipeline_mode<synchronous>, transform_indices = @transform_15, window_bounds = array<i64: 1, 256>}, {pipeline_mode = #tpu.pipeline_mode<synchronous>, transform_indices = @transform_16, window_bounds = array<i64: 1, 256>}, {pipeline_mode = #tpu.pipeline_mode<synchronous>, transform_indices = @transform_17, window_bounds = array<i64: 1, 256>}, {pipeline_mode = #tpu.pipeline_mode<synchronous>, transform_indices = @transform_18, window_bounds = array<i64: 256, 25>}, {pipeline_mode = #tpu.pipeline_mode<synchronous>, transform_indices = @transform_19, window_bounds = array<i64: 256, 128>}, {pipeline_mode = #tpu.pipeline_mode<synchronous>, transform_indices = @transform_20, window_bounds = array<i64: 1, 128>}, {transform_indices = @transform_21, window_bounds = array<i64: 1, 24, 128>}, {transform_indices = @transform_22, window_bounds = array<i64: 1, 8, 128>}]} {
    %c0 = arith.constant 0 : index
    %c0_0 = arith.constant 0 : index
    %c0_1 = arith.constant 0 : index
    %c0_2 = arith.constant 0 : index
    %c0_3 = arith.constant 0 : index
    %0 = vector.load %arg1[%c0, %c0_0, %c0_1, %c0_2, %c0_3] : memref<1x3x8x16x48xbf16, #tpu.memory_space<vmem>>, vector<1x1x8x16x48xbf16>
    %1 = vector.shape_cast %0 : vector<1x1x8x16x48xbf16> to vector<8x16x48xbf16>
    %2 = arith.extf %1 : vector<8x16x48xbf16> to vector<8x16x48xf32>
    %cst = arith.constant dense<0.000000e+00> : vector<8x48xf32>
    %3 = vector.multi_reduction <add>, %2, %cst [1] : vector<8x16x48xf32> to vector<8x48xf32>
    %cst_4 = arith.constant 1.600000e+01 : f32
    %4 = vector.broadcast %cst_4 : f32 to vector<8x48xf32>
    %5 = arith.divf %3, %4 : vector<8x48xf32>
    %cst_5 = arith.constant 0.00392156886 : f32
    %6 = vector.broadcast %cst_5 : f32 to vector<8x48xf32>
    %7 = arith.mulf %5, %6 : vector<8x48xf32>
    %8 = arith.truncf %7 : vector<8x48xf32> to vector<8x48xbf16>
    %c0_6 = arith.constant 0 : index
    %c0_7 = arith.constant 0 : index
    %c0_8 = arith.constant 0 : index
    %9 = vector.load %arg2[%c0_6, %c0_7, %c0_8] : memref<3x48x768xbf16, #tpu.memory_space<vmem>>, vector<1x48x768xbf16>
    %10 = vector.shape_cast %9 : vector<1x48x768xbf16> to vector<48x768xbf16>
    %cst_9 = arith.constant dense<0.000000e+00> : vector<8x768xf32>
    %11 = tpu.matmul %8, %10, %cst_9 {dimension_numbers = #tpu.dot_dimension_numbers<[1], [0], [0], [1], [0, 0, 1, 1], [], []>} : vector<8x48xbf16>, vector<48x768xbf16>, vector<8x768xf32> -> vector<8x768xf32>
    %c0_10 = arith.constant 0 : index
    %c0_11 = arith.constant 0 : index
    %c0_12 = arith.constant 0 : index
    %12 = vector.load %arg3[%c0_10, %c0_11, %c0_12] : memref<3x1x768xf32, #tpu.memory_space<vmem>>, vector<1x1x768xf32>
    %13 = vector.shape_cast %12 : vector<1x1x768xf32> to vector<1x768xf32>
    %14 = vector.broadcast %13 : vector<1x768xf32> to vector<8x768xf32>
    %15 = arith.addf %11, %14 : vector<8x768xf32>
    %16 = arith.truncf %15 : vector<8x768xf32> to vector<8x768xbf16>
    %c0_13 = arith.constant 0 : index
    %c0_14 = arith.constant 0 : index
    %c0_15 = arith.constant 0 : index
    %17 = vector.load %arg4[%c0_13, %c0_14, %c0_15] : memref<3x768x384xbf16, #tpu.memory_space<vmem>>, vector<1x768x384xbf16>
    %18 = vector.shape_cast %17 : vector<1x768x384xbf16> to vector<768x384xbf16>
    %cst_16 = arith.constant dense<0.000000e+00> : vector<8x384xf32>
    %19 = tpu.matmul %16, %18, %cst_16 {dimension_numbers = #tpu.dot_dimension_numbers<[1], [0], [0], [1], [0, 0, 1, 1], [], []>} : vector<8x768xbf16>, vector<768x384xbf16>, vector<8x384xf32> -> vector<8x384xf32>
    %c0_17 = arith.constant 0 : index
    %c0_18 = arith.constant 0 : index
    %c0_19 = arith.constant 0 : index
    %20 = vector.load %arg5[%c0_17, %c0_18, %c0_19] : memref<3x1x384xf32, #tpu.memory_space<vmem>>, vector<1x1x384xf32>
    %21 = vector.shape_cast %20 : vector<1x1x384xf32> to vector<1x384xf32>
    %22 = vector.broadcast %21 : vector<1x384xf32> to vector<8x384xf32>
    %23 = arith.addf %19, %22 : vector<8x384xf32>
    %c0_20 = arith.constant 0 : index
    %c1 = arith.constant 1 : index
    %c0_21 = arith.constant 0 : index
    %c0_22 = arith.constant 0 : index
    %c0_23 = arith.constant 0 : index
    %24 = vector.load %arg1[%c0_20, %c1, %c0_21, %c0_22, %c0_23] : memref<1x3x8x16x48xbf16, #tpu.memory_space<vmem>>, vector<1x1x8x16x48xbf16>
    %25 = vector.shape_cast %24 : vector<1x1x8x16x48xbf16> to vector<8x16x48xbf16>
    %26 = arith.extf %25 : vector<8x16x48xbf16> to vector<8x16x48xf32>
    %cst_24 = arith.constant dense<0.000000e+00> : vector<8x48xf32>
    %27 = vector.multi_reduction <add>, %26, %cst_24 [1] : vector<8x16x48xf32> to vector<8x48xf32>
    %cst_25 = arith.constant 1.600000e+01 : f32
    %28 = vector.broadcast %cst_25 : f32 to vector<8x48xf32>
    %29 = arith.divf %27, %28 : vector<8x48xf32>
    %cst_26 = arith.constant 0.00392156886 : f32
    %30 = vector.broadcast %cst_26 : f32 to vector<8x48xf32>
    %31 = arith.mulf %29, %30 : vector<8x48xf32>
    %32 = arith.truncf %31 : vector<8x48xf32> to vector<8x48xbf16>
    %c1_27 = arith.constant 1 : index
    %c0_28 = arith.constant 0 : index
    %c0_29 = arith.constant 0 : index
    %33 = vector.load %arg2[%c1_27, %c0_28, %c0_29] : memref<3x48x768xbf16, #tpu.memory_space<vmem>>, vector<1x48x768xbf16>
    %34 = vector.shape_cast %33 : vector<1x48x768xbf16> to vector<48x768xbf16>
    %cst_30 = arith.constant dense<0.000000e+00> : vector<8x768xf32>
    %35 = tpu.matmul %32, %34, %cst_30 {dimension_numbers = #tpu.dot_dimension_numbers<[1], [0], [0], [1], [0, 0, 1, 1], [], []>} : vector<8x48xbf16>, vector<48x768xbf16>, vector<8x768xf32> -> vector<8x768xf32>
    %c1_31 = arith.constant 1 : index
    %c0_32 = arith.constant 0 : index
    %c0_33 = arith.constant 0 : index
    %36 = vector.load %arg3[%c1_31, %c0_32, %c0_33] : memref<3x1x768xf32, #tpu.memory_space<vmem>>, vector<1x1x768xf32>
    %37 = vector.shape_cast %36 : vector<1x1x768xf32> to vector<1x768xf32>
    %38 = vector.broadcast %37 : vector<1x768xf32> to vector<8x768xf32>
    %39 = arith.addf %35, %38 : vector<8x768xf32>
    %40 = arith.truncf %39 : vector<8x768xf32> to vector<8x768xbf16>
    %c1_34 = arith.constant 1 : index
    %c0_35 = arith.constant 0 : index
    %c0_36 = arith.constant 0 : index
    %41 = vector.load %arg4[%c1_34, %c0_35, %c0_36] : memref<3x768x384xbf16, #tpu.memory_space<vmem>>, vector<1x768x384xbf16>
    %42 = vector.shape_cast %41 : vector<1x768x384xbf16> to vector<768x384xbf16>
    %cst_37 = arith.constant dense<0.000000e+00> : vector<8x384xf32>
    %43 = tpu.matmul %40, %42, %cst_37 {dimension_numbers = #tpu.dot_dimension_numbers<[1], [0], [0], [1], [0, 0, 1, 1], [], []>} : vector<8x768xbf16>, vector<768x384xbf16>, vector<8x384xf32> -> vector<8x384xf32>
    %c1_38 = arith.constant 1 : index
    %c0_39 = arith.constant 0 : index
    %c0_40 = arith.constant 0 : index
    %44 = vector.load %arg5[%c1_38, %c0_39, %c0_40] : memref<3x1x384xf32, #tpu.memory_space<vmem>>, vector<1x1x384xf32>
    %45 = vector.shape_cast %44 : vector<1x1x384xf32> to vector<1x384xf32>
    %46 = vector.broadcast %45 : vector<1x384xf32> to vector<8x384xf32>
    %47 = arith.addf %43, %46 : vector<8x384xf32>
    %c0_41 = arith.constant 0 : index
    %c2 = arith.constant 2 : index
    %c0_42 = arith.constant 0 : index
    %c0_43 = arith.constant 0 : index
    %c0_44 = arith.constant 0 : index
    %48 = vector.load %arg1[%c0_41, %c2, %c0_42, %c0_43, %c0_44] : memref<1x3x8x16x48xbf16, #tpu.memory_space<vmem>>, vector<1x1x8x16x48xbf16>
    %49 = vector.shape_cast %48 : vector<1x1x8x16x48xbf16> to vector<8x16x48xbf16>
    %50 = arith.extf %49 : vector<8x16x48xbf16> to vector<8x16x48xf32>
    %cst_45 = arith.constant dense<0.000000e+00> : vector<8x48xf32>
    %51 = vector.multi_reduction <add>, %50, %cst_45 [1] : vector<8x16x48xf32> to vector<8x48xf32>
    %cst_46 = arith.constant 1.600000e+01 : f32
    %52 = vector.broadcast %cst_46 : f32 to vector<8x48xf32>
    %53 = arith.divf %51, %52 : vector<8x48xf32>
    %cst_47 = arith.constant 0.00392156886 : f32
    %54 = vector.broadcast %cst_47 : f32 to vector<8x48xf32>
    %55 = arith.mulf %53, %54 : vector<8x48xf32>
    %56 = arith.truncf %55 : vector<8x48xf32> to vector<8x48xbf16>
    %c2_48 = arith.constant 2 : index
    %c0_49 = arith.constant 0 : index
    %c0_50 = arith.constant 0 : index
    %57 = vector.load %arg2[%c2_48, %c0_49, %c0_50] : memref<3x48x768xbf16, #tpu.memory_space<vmem>>, vector<1x48x768xbf16>
    %58 = vector.shape_cast %57 : vector<1x48x768xbf16> to vector<48x768xbf16>
    %cst_51 = arith.constant dense<0.000000e+00> : vector<8x768xf32>
    %59 = tpu.matmul %56, %58, %cst_51 {dimension_numbers = #tpu.dot_dimension_numbers<[1], [0], [0], [1], [0, 0, 1, 1], [], []>} : vector<8x48xbf16>, vector<48x768xbf16>, vector<8x768xf32> -> vector<8x768xf32>
    %c2_52 = arith.constant 2 : index
    %c0_53 = arith.constant 0 : index
    %c0_54 = arith.constant 0 : index
    %60 = vector.load %arg3[%c2_52, %c0_53, %c0_54] : memref<3x1x768xf32, #tpu.memory_space<vmem>>, vector<1x1x768xf32>
    %61 = vector.shape_cast %60 : vector<1x1x768xf32> to vector<1x768xf32>
    %62 = vector.broadcast %61 : vector<1x768xf32> to vector<8x768xf32>
    %63 = arith.addf %59, %62 : vector<8x768xf32>
    %64 = arith.truncf %63 : vector<8x768xf32> to vector<8x768xbf16>
    %c2_55 = arith.constant 2 : index
    %c0_56 = arith.constant 0 : index
    %c0_57 = arith.constant 0 : index
    %65 = vector.load %arg4[%c2_55, %c0_56, %c0_57] : memref<3x768x384xbf16, #tpu.memory_space<vmem>>, vector<1x768x384xbf16>
    %66 = vector.shape_cast %65 : vector<1x768x384xbf16> to vector<768x384xbf16>
    %cst_58 = arith.constant dense<0.000000e+00> : vector<8x384xf32>
    %67 = tpu.matmul %64, %66, %cst_58 {dimension_numbers = #tpu.dot_dimension_numbers<[1], [0], [0], [1], [0, 0, 1, 1], [], []>} : vector<8x768xbf16>, vector<768x384xbf16>, vector<8x384xf32> -> vector<8x384xf32>
    %c2_59 = arith.constant 2 : index
    %c0_60 = arith.constant 0 : index
    %c0_61 = arith.constant 0 : index
    %68 = vector.load %arg5[%c2_59, %c0_60, %c0_61] : memref<3x1x384xf32, #tpu.memory_space<vmem>>, vector<1x1x384xf32>
    %69 = vector.shape_cast %68 : vector<1x1x384xf32> to vector<1x384xf32>
    %70 = vector.broadcast %69 : vector<1x384xf32> to vector<8x384xf32>
    %71 = arith.addf %67, %70 : vector<8x384xf32>
    %72 = tpu.concatenate %23, %47, %71 in 0 : vector<8x384xf32>, vector<8x384xf32>, vector<8x384xf32> -> vector<24x384xf32>
    %73 = vector.extract_strided_slice %72 {offsets = [0, 0], sizes = [24, 128], strides = [1, 1]} : vector<24x384xf32> to vector<24x128xf32>
    %c0_62 = arith.constant 0 : index
    %c0_63 = arith.constant 0 : index
    %c0_64 = arith.constant 0 : index
    %74 = vector.load %arg22[%c0_62, %c0_63, %c0_64] : memref<1x24x128xf32, #tpu.memory_space<vmem>>, vector<1x24x128xf32>
    %75 = vector.shape_cast %74 : vector<1x24x128xf32> to vector<24x128xf32>
    %76 = vector.shape_cast %73 : vector<24x128xf32> to vector<1x24x128xf32>
    tpu.vector_store %arg22[%c0_62, %c0_63, %c0_64], %76 {strides = array<i32>} : memref<1x24x128xf32, #tpu.memory_space<vmem>>, vector<1x24x128xf32>,
    %77 = vector.extract_strided_slice %72 {offsets = [0, 128], sizes = [24, 256], strides = [1, 1]} : vector<24x384xf32> to vector<24x256xf32>
    %c0_65 = arith.constant 0 : index
    %c0_66 = arith.constant 0 : index
    %78 = vector.load %arg6[%c0_65, %c0_66] : memref<24x256xf32, #tpu.memory_space<vmem>>, vector<24x256xf32>
    %79 = arith.addf %77, %78 : vector<24x256xf32>
    %80 = arith.truncf %79 : vector<24x256xf32> to vector<24x256xbf16>
    %c0_67 = arith.constant 0 : index
    %c0_68 = arith.constant 0 : index
    %81 = vector.load %arg7[%c0_67, %c0_68] : memref<256x768xbf16, #tpu.memory_space<vmem>>, vector<256x768xbf16>
    %cst_69 = arith.constant dense<0.000000e+00> : vector<24x768xf32>
    %82 = tpu.matmul %80, %81, %cst_69 {dimension_numbers = #tpu.dot_dimension_numbers<[1], [0], [0], [1], [0, 0, 1, 1], [], []>} : vector<24x256xbf16>, vector<256x768xbf16>, vector<24x768xf32> -> vector<24x768xf32>
    %c0_70 = arith.constant 0 : index
    %c0_71 = arith.constant 0 : index
    %83 = vector.load %arg8[%c0_70, %c0_71] : memref<1x768xf32, #tpu.memory_space<vmem>>, vector<1x768xf32>
    %84 = vector.broadcast %83 : vector<1x768xf32> to vector<24x768xf32>
    %85 = arith.addf %82, %84 : vector<24x768xf32>
    %86 = vector.extract_strided_slice %85 {offsets = [0, 0], sizes = [24, 256], strides = [1, 1]} : vector<24x768xf32> to vector<24x256xf32>
    %87 = vector.extract_strided_slice %85 {offsets = [0, 256], sizes = [24, 256], strides = [1, 1]} : vector<24x768xf32> to vector<24x256xf32>
    %88 = vector.extract_strided_slice %85 {offsets = [0, 512], sizes = [24, 256], strides = [1, 1]} : vector<24x768xf32> to vector<24x256xf32>
    %89 = vector.extract_strided_slice %86 {offsets = [0, 0], sizes = [24, 32], strides = [1, 1]} : vector<24x256xf32> to vector<24x32xf32>
    %90 = arith.truncf %89 : vector<24x32xf32> to vector<24x32xbf16>
    %91 = vector.extract_strided_slice %87 {offsets = [0, 0], sizes = [24, 32], strides = [1, 1]} : vector<24x256xf32> to vector<24x32xf32>
    %92 = arith.truncf %91 : vector<24x32xf32> to vector<24x32xbf16>
    %93 = vector.extract_strided_slice %88 {offsets = [0, 0], sizes = [24, 32], strides = [1, 1]} : vector<24x256xf32> to vector<24x32xf32>
    %94 = arith.truncf %93 : vector<24x32xf32> to vector<24x32xbf16>
    %cst_72 = arith.constant dense<0.000000e+00> : vector<24x24xf32>
    %95 = tpu.matmul %90, %92, %cst_72 {dimension_numbers = #tpu.dot_dimension_numbers<[1], [1], [0], [0], [0, 0, 1, 0], [], []>} : vector<24x32xbf16>, vector<24x32xbf16>, vector<24x24xf32> -> vector<24x24xf32>
    %cst_73 = arith.constant 0.176776692 : f32
    %96 = vector.broadcast %cst_73 : f32 to vector<24x24xf32>
    %97 = arith.mulf %95, %96 : vector<24x24xf32>
    %cst_74 = arith.constant dense<0xFF800000> : vector<24xf32>
    %98 = vector.multi_reduction <maximumf>, %97, %cst_74 [1] : vector<24x24xf32> to vector<24xf32>
    %99 = vector.shape_cast %98 : vector<24xf32> to vector<24x1xf32>
    %100 = vector.broadcast %99 : vector<24x1xf32> to vector<24x24xf32>
    %101 = arith.subf %97, %100 : vector<24x24xf32>
    %102 = math.exp %101 : vector<24x24xf32>
    %cst_75 = arith.constant dense<0.000000e+00> : vector<24xf32>
    %103 = vector.multi_reduction <add>, %102, %cst_75 [1] : vector<24x24xf32> to vector<24xf32>
    %104 = vector.shape_cast %103 : vector<24xf32> to vector<24x1xf32>
    %105 = tpu.reciprocal %104 {approx = true} : vector<24x1xf32> -> vector<24x1xf32>
    %106 = vector.broadcast %105 : vector<24x1xf32> to vector<24x24xf32>
    %107 = arith.mulf %102, %106 : vector<24x24xf32>
    %108 = arith.truncf %107 : vector<24x24xf32> to vector<24x24xbf16>
    %cst_76 = arith.constant dense<0.000000e+00> : vector<24x32xf32>
    %109 = tpu.matmul %108, %94, %cst_76 {dimension_numbers = #tpu.dot_dimension_numbers<[1], [0], [0], [1], [0, 0, 1, 1], [], []>} : vector<24x24xbf16>, vector<24x32xbf16>, vector<24x32xf32> -> vector<24x32xf32>
    %110 = vector.extract_strided_slice %86 {offsets = [0, 32], sizes = [24, 32], strides = [1, 1]} : vector<24x256xf32> to vector<24x32xf32>
    %111 = arith.truncf %110 : vector<24x32xf32> to vector<24x32xbf16>
    %112 = vector.extract_strided_slice %87 {offsets = [0, 32], sizes = [24, 32], strides = [1, 1]} : vector<24x256xf32> to vector<24x32xf32>
    %113 = arith.truncf %112 : vector<24x32xf32> to vector<24x32xbf16>
    %114 = vector.extract_strided_slice %88 {offsets = [0, 32], sizes = [24, 32], strides = [1, 1]} : vector<24x256xf32> to vector<24x32xf32>
    %115 = arith.truncf %114 : vector<24x32xf32> to vector<24x32xbf16>
    %cst_77 = arith.constant dense<0.000000e+00> : vector<24x24xf32>
    %116 = tpu.matmul %111, %113, %cst_77 {dimension_numbers = #tpu.dot_dimension_numbers<[1], [1], [0], [0], [0, 0, 1, 0], [], []>} : vector<24x32xbf16>, vector<24x32xbf16>, vector<24x24xf32> -> vector<24x24xf32>
    %cst_78 = arith.constant 0.176776692 : f32
    %117 = vector.broadcast %cst_78 : f32 to vector<24x24xf32>
    %118 = arith.mulf %116, %117 : vector<24x24xf32>
    %cst_79 = arith.constant dense<0xFF800000> : vector<24xf32>
    %119 = vector.multi_reduction <maximumf>, %118, %cst_79 [1] : vector<24x24xf32> to vector<24xf32>
    %120 = vector.shape_cast %119 : vector<24xf32> to vector<24x1xf32>
    %121 = vector.broadcast %120 : vector<24x1xf32> to vector<24x24xf32>
    %122 = arith.subf %118, %121 : vector<24x24xf32>
    %123 = math.exp %122 : vector<24x24xf32>
    %cst_80 = arith.constant dense<0.000000e+00> : vector<24xf32>
    %124 = vector.multi_reduction <add>, %123, %cst_80 [1] : vector<24x24xf32> to vector<24xf32>
    %125 = vector.shape_cast %124 : vector<24xf32> to vector<24x1xf32>
    %126 = tpu.reciprocal %125 {approx = true} : vector<24x1xf32> -> vector<24x1xf32>
    %127 = vector.broadcast %126 : vector<24x1xf32> to vector<24x24xf32>
    %128 = arith.mulf %123, %127 : vector<24x24xf32>
    %129 = arith.truncf %128 : vector<24x24xf32> to vector<24x24xbf16>
    %cst_81 = arith.constant dense<0.000000e+00> : vector<24x32xf32>
    %130 = tpu.matmul %129, %115, %cst_81 {dimension_numbers = #tpu.dot_dimension_numbers<[1], [0], [0], [1], [0, 0, 1, 1], [], []>} : vector<24x24xbf16>, vector<24x32xbf16>, vector<24x32xf32> -> vector<24x32xf32>
    %131 = vector.extract_strided_slice %86 {offsets = [0, 64], sizes = [24, 32], strides = [1, 1]} : vector<24x256xf32> to vector<24x32xf32>
    %132 = arith.truncf %131 : vector<24x32xf32> to vector<24x32xbf16>
    %133 = vector.extract_strided_slice %87 {offsets = [0, 64], sizes = [24, 32], strides = [1, 1]} : vector<24x256xf32> to vector<24x32xf32>
    %134 = arith.truncf %133 : vector<24x32xf32> to vector<24x32xbf16>
    %135 = vector.extract_strided_slice %88 {offsets = [0, 64], sizes = [24, 32], strides = [1, 1]} : vector<24x256xf32> to vector<24x32xf32>
    %136 = arith.truncf %135 : vector<24x32xf32> to vector<24x32xbf16>
    %cst_82 = arith.constant dense<0.000000e+00> : vector<24x24xf32>
    %137 = tpu.matmul %132, %134, %cst_82 {dimension_numbers = #tpu.dot_dimension_numbers<[1], [1], [0], [0], [0, 0, 1, 0], [], []>} : vector<24x32xbf16>, vector<24x32xbf16>, vector<24x24xf32> -> vector<24x24xf32>
    %cst_83 = arith.constant 0.176776692 : f32
    %138 = vector.broadcast %cst_83 : f32 to vector<24x24xf32>
    %139 = arith.mulf %137, %138 : vector<24x24xf32>
    %cst_84 = arith.constant dense<0xFF800000> : vector<24xf32>
    %140 = vector.multi_reduction <maximumf>, %139, %cst_84 [1] : vector<24x24xf32> to vector<24xf32>
    %141 = vector.shape_cast %140 : vector<24xf32> to vector<24x1xf32>
    %142 = vector.broadcast %141 : vector<24x1xf32> to vector<24x24xf32>
    %143 = arith.subf %139, %142 : vector<24x24xf32>
    %144 = math.exp %143 : vector<24x24xf32>
    %cst_85 = arith.constant dense<0.000000e+00> : vector<24xf32>
    %145 = vector.multi_reduction <add>, %144, %cst_85 [1] : vector<24x24xf32> to vector<24xf32>
    %146 = vector.shape_cast %145 : vector<24xf32> to vector<24x1xf32>
    %147 = tpu.reciprocal %146 {approx = true} : vector<24x1xf32> -> vector<24x1xf32>
    %148 = vector.broadcast %147 : vector<24x1xf32> to vector<24x24xf32>
    %149 = arith.mulf %144, %148 : vector<24x24xf32>
    %150 = arith.truncf %149 : vector<24x24xf32> to vector<24x24xbf16>
    %cst_86 = arith.constant dense<0.000000e+00> : vector<24x32xf32>
    %151 = tpu.matmul %150, %136, %cst_86 {dimension_numbers = #tpu.dot_dimension_numbers<[1], [0], [0], [1], [0, 0, 1, 1], [], []>} : vector<24x24xbf16>, vector<24x32xbf16>, vector<24x32xf32> -> vector<24x32xf32>
    %152 = vector.extract_strided_slice %86 {offsets = [0, 96], sizes = [24, 32], strides = [1, 1]} : vector<24x256xf32> to vector<24x32xf32>
    %153 = arith.truncf %152 : vector<24x32xf32> to vector<24x32xbf16>
    %154 = vector.extract_strided_slice %87 {offsets = [0, 96], sizes = [24, 32], strides = [1, 1]} : vector<24x256xf32> to vector<24x32xf32>
    %155 = arith.truncf %154 : vector<24x32xf32> to vector<24x32xbf16>
    %156 = vector.extract_strided_slice %88 {offsets = [0, 96], sizes = [24, 32], strides = [1, 1]} : vector<24x256xf32> to vector<24x32xf32>
    %157 = arith.truncf %156 : vector<24x32xf32> to vector<24x32xbf16>
    %cst_87 = arith.constant dense<0.000000e+00> : vector<24x24xf32>
    %158 = tpu.matmul %153, %155, %cst_87 {dimension_numbers = #tpu.dot_dimension_numbers<[1], [1], [0], [0], [0, 0, 1, 0], [], []>} : vector<24x32xbf16>, vector<24x32xbf16>, vector<24x24xf32> -> vector<24x24xf32>
    %cst_88 = arith.constant 0.176776692 : f32
    %159 = vector.broadcast %cst_88 : f32 to vector<24x24xf32>
    %160 = arith.mulf %158, %159 : vector<24x24xf32>
    %cst_89 = arith.constant dense<0xFF800000> : vector<24xf32>
    %161 = vector.multi_reduction <maximumf>, %160, %cst_89 [1] : vector<24x24xf32> to vector<24xf32>
    %162 = vector.shape_cast %161 : vector<24xf32> to vector<24x1xf32>
    %163 = vector.broadcast %162 : vector<24x1xf32> to vector<24x24xf32>
    %164 = arith.subf %160, %163 : vector<24x24xf32>
    %165 = math.exp %164 : vector<24x24xf32>
    %cst_90 = arith.constant dense<0.000000e+00> : vector<24xf32>
    %166 = vector.multi_reduction <add>, %165, %cst_90 [1] : vector<24x24xf32> to vector<24xf32>
    %167 = vector.shape_cast %166 : vector<24xf32> to vector<24x1xf32>
    %168 = tpu.reciprocal %167 {approx = true} : vector<24x1xf32> -> vector<24x1xf32>
    %169 = vector.broadcast %168 : vector<24x1xf32> to vector<24x24xf32>
    %170 = arith.mulf %165, %169 : vector<24x24xf32>
    %171 = arith.truncf %170 : vector<24x24xf32> to vector<24x24xbf16>
    %cst_91 = arith.constant dense<0.000000e+00> : vector<24x32xf32>
    %172 = tpu.matmul %171, %157, %cst_91 {dimension_numbers = #tpu.dot_dimension_numbers<[1], [0], [0], [1], [0, 0, 1, 1], [], []>} : vector<24x24xbf16>, vector<24x32xbf16>, vector<24x32xf32> -> vector<24x32xf32>
    %173 = vector.extract_strided_slice %86 {offsets = [0, 128], sizes = [24, 32], strides = [1, 1]} : vector<24x256xf32> to vector<24x32xf32>
    %174 = arith.truncf %173 : vector<24x32xf32> to vector<24x32xbf16>
    %175 = vector.extract_strided_slice %87 {offsets = [0, 128], sizes = [24, 32], strides = [1, 1]} : vector<24x256xf32> to vector<24x32xf32>
    %176 = arith.truncf %175 : vector<24x32xf32> to vector<24x32xbf16>
    %177 = vector.extract_strided_slice %88 {offsets = [0, 128], sizes = [24, 32], strides = [1, 1]} : vector<24x256xf32> to vector<24x32xf32>
    %178 = arith.truncf %177 : vector<24x32xf32> to vector<24x32xbf16>
    %cst_92 = arith.constant dense<0.000000e+00> : vector<24x24xf32>
    %179 = tpu.matmul %174, %176, %cst_92 {dimension_numbers = #tpu.dot_dimension_numbers<[1], [1], [0], [0], [0, 0, 1, 0], [], []>} : vector<24x32xbf16>, vector<24x32xbf16>, vector<24x24xf32> -> vector<24x24xf32>
    %cst_93 = arith.constant 0.176776692 : f32
    %180 = vector.broadcast %cst_93 : f32 to vector<24x24xf32>
    %181 = arith.mulf %179, %180 : vector<24x24xf32>
    %cst_94 = arith.constant dense<0xFF800000> : vector<24xf32>
    %182 = vector.multi_reduction <maximumf>, %181, %cst_94 [1] : vector<24x24xf32> to vector<24xf32>
    %183 = vector.shape_cast %182 : vector<24xf32> to vector<24x1xf32>
    %184 = vector.broadcast %183 : vector<24x1xf32> to vector<24x24xf32>
    %185 = arith.subf %181, %184 : vector<24x24xf32>
    %186 = math.exp %185 : vector<24x24xf32>
    %cst_95 = arith.constant dense<0.000000e+00> : vector<24xf32>
    %187 = vector.multi_reduction <add>, %186, %cst_95 [1] : vector<24x24xf32> to vector<24xf32>
    %188 = vector.shape_cast %187 : vector<24xf32> to vector<24x1xf32>
    %189 = tpu.reciprocal %188 {approx = true} : vector<24x1xf32> -> vector<24x1xf32>
    %190 = vector.broadcast %189 : vector<24x1xf32> to vector<24x24xf32>
    %191 = arith.mulf %186, %190 : vector<24x24xf32>
    %192 = arith.truncf %191 : vector<24x24xf32> to vector<24x24xbf16>
    %cst_96 = arith.constant dense<0.000000e+00> : vector<24x32xf32>
    %193 = tpu.matmul %192, %178, %cst_96 {dimension_numbers = #tpu.dot_dimension_numbers<[1], [0], [0], [1], [0, 0, 1, 1], [], []>} : vector<24x24xbf16>, vector<24x32xbf16>, vector<24x32xf32> -> vector<24x32xf32>
    %194 = vector.extract_strided_slice %86 {offsets = [0, 160], sizes = [24, 32], strides = [1, 1]} : vector<24x256xf32> to vector<24x32xf32>
    %195 = arith.truncf %194 : vector<24x32xf32> to vector<24x32xbf16>
    %196 = vector.extract_strided_slice %87 {offsets = [0, 160], sizes = [24, 32], strides = [1, 1]} : vector<24x256xf32> to vector<24x32xf32>
    %197 = arith.truncf %196 : vector<24x32xf32> to vector<24x32xbf16>
    %198 = vector.extract_strided_slice %88 {offsets = [0, 160], sizes = [24, 32], strides = [1, 1]} : vector<24x256xf32> to vector<24x32xf32>
    %199 = arith.truncf %198 : vector<24x32xf32> to vector<24x32xbf16>
    %cst_97 = arith.constant dense<0.000000e+00> : vector<24x24xf32>
    %200 = tpu.matmul %195, %197, %cst_97 {dimension_numbers = #tpu.dot_dimension_numbers<[1], [1], [0], [0], [0, 0, 1, 0], [], []>} : vector<24x32xbf16>, vector<24x32xbf16>, vector<24x24xf32> -> vector<24x24xf32>
    %cst_98 = arith.constant 0.176776692 : f32
    %201 = vector.broadcast %cst_98 : f32 to vector<24x24xf32>
    %202 = arith.mulf %200, %201 : vector<24x24xf32>
    %cst_99 = arith.constant dense<0xFF800000> : vector<24xf32>
    %203 = vector.multi_reduction <maximumf>, %202, %cst_99 [1] : vector<24x24xf32> to vector<24xf32>
    %204 = vector.shape_cast %203 : vector<24xf32> to vector<24x1xf32>
    %205 = vector.broadcast %204 : vector<24x1xf32> to vector<24x24xf32>
    %206 = arith.subf %202, %205 : vector<24x24xf32>
    %207 = math.exp %206 : vector<24x24xf32>
    %cst_100 = arith.constant dense<0.000000e+00> : vector<24xf32>
    %208 = vector.multi_reduction <add>, %207, %cst_100 [1] : vector<24x24xf32> to vector<24xf32>
    %209 = vector.shape_cast %208 : vector<24xf32> to vector<24x1xf32>
    %210 = tpu.reciprocal %209 {approx = true} : vector<24x1xf32> -> vector<24x1xf32>
    %211 = vector.broadcast %210 : vector<24x1xf32> to vector<24x24xf32>
    %212 = arith.mulf %207, %211 : vector<24x24xf32>
    %213 = arith.truncf %212 : vector<24x24xf32> to vector<24x24xbf16>
    %cst_101 = arith.constant dense<0.000000e+00> : vector<24x32xf32>
    %214 = tpu.matmul %213, %199, %cst_101 {dimension_numbers = #tpu.dot_dimension_numbers<[1], [0], [0], [1], [0, 0, 1, 1], [], []>} : vector<24x24xbf16>, vector<24x32xbf16>, vector<24x32xf32> -> vector<24x32xf32>
    %215 = vector.extract_strided_slice %86 {offsets = [0, 192], sizes = [24, 32], strides = [1, 1]} : vector<24x256xf32> to vector<24x32xf32>
    %216 = arith.truncf %215 : vector<24x32xf32> to vector<24x32xbf16>
    %217 = vector.extract_strided_slice %87 {offsets = [0, 192], sizes = [24, 32], strides = [1, 1]} : vector<24x256xf32> to vector<24x32xf32>
    %218 = arith.truncf %217 : vector<24x32xf32> to vector<24x32xbf16>
    %219 = vector.extract_strided_slice %88 {offsets = [0, 192], sizes = [24, 32], strides = [1, 1]} : vector<24x256xf32> to vector<24x32xf32>
    %220 = arith.truncf %219 : vector<24x32xf32> to vector<24x32xbf16>
    %cst_102 = arith.constant dense<0.000000e+00> : vector<24x24xf32>
    %221 = tpu.matmul %216, %218, %cst_102 {dimension_numbers = #tpu.dot_dimension_numbers<[1], [1], [0], [0], [0, 0, 1, 0], [], []>} : vector<24x32xbf16>, vector<24x32xbf16>, vector<24x24xf32> -> vector<24x24xf32>
    %cst_103 = arith.constant 0.176776692 : f32
    %222 = vector.broadcast %cst_103 : f32 to vector<24x24xf32>
    %223 = arith.mulf %221, %222 : vector<24x24xf32>
    %cst_104 = arith.constant dense<0xFF800000> : vector<24xf32>
    %224 = vector.multi_reduction <maximumf>, %223, %cst_104 [1] : vector<24x24xf32> to vector<24xf32>
    %225 = vector.shape_cast %224 : vector<24xf32> to vector<24x1xf32>
    %226 = vector.broadcast %225 : vector<24x1xf32> to vector<24x24xf32>
    %227 = arith.subf %223, %226 : vector<24x24xf32>
    %228 = math.exp %227 : vector<24x24xf32>
    %cst_105 = arith.constant dense<0.000000e+00> : vector<24xf32>
    %229 = vector.multi_reduction <add>, %228, %cst_105 [1] : vector<24x24xf32> to vector<24xf32>
    %230 = vector.shape_cast %229 : vector<24xf32> to vector<24x1xf32>
    %231 = tpu.reciprocal %230 {approx = true} : vector<24x1xf32> -> vector<24x1xf32>
    %232 = vector.broadcast %231 : vector<24x1xf32> to vector<24x24xf32>
    %233 = arith.mulf %228, %232 : vector<24x24xf32>
    %234 = arith.truncf %233 : vector<24x24xf32> to vector<24x24xbf16>
    %cst_106 = arith.constant dense<0.000000e+00> : vector<24x32xf32>
    %235 = tpu.matmul %234, %220, %cst_106 {dimension_numbers = #tpu.dot_dimension_numbers<[1], [0], [0], [1], [0, 0, 1, 1], [], []>} : vector<24x24xbf16>, vector<24x32xbf16>, vector<24x32xf32> -> vector<24x32xf32>
    %236 = vector.extract_strided_slice %86 {offsets = [0, 224], sizes = [24, 32], strides = [1, 1]} : vector<24x256xf32> to vector<24x32xf32>
    %237 = arith.truncf %236 : vector<24x32xf32> to vector<24x32xbf16>
    %238 = vector.extract_strided_slice %87 {offsets = [0, 224], sizes = [24, 32], strides = [1, 1]} : vector<24x256xf32> to vector<24x32xf32>
    %239 = arith.truncf %238 : vector<24x32xf32> to vector<24x32xbf16>
    %240 = vector.extract_strided_slice %88 {offsets = [0, 224], sizes = [24, 32], strides = [1, 1]} : vector<24x256xf32> to vector<24x32xf32>
    %241 = arith.truncf %240 : vector<24x32xf32> to vector<24x32xbf16>
    %cst_107 = arith.constant dense<0.000000e+00> : vector<24x24xf32>
    %242 = tpu.matmul %237, %239, %cst_107 {dimension_numbers = #tpu.dot_dimension_numbers<[1], [1], [0], [0], [0, 0, 1, 0], [], []>} : vector<24x32xbf16>, vector<24x32xbf16>, vector<24x24xf32> -> vector<24x24xf32>
    %cst_108 = arith.constant 0.176776692 : f32
    %243 = vector.broadcast %cst_108 : f32 to vector<24x24xf32>
    %244 = arith.mulf %242, %243 : vector<24x24xf32>
    %cst_109 = arith.constant dense<0xFF800000> : vector<24xf32>
    %245 = vector.multi_reduction <maximumf>, %244, %cst_109 [1] : vector<24x24xf32> to vector<24xf32>
    %246 = vector.shape_cast %245 : vector<24xf32> to vector<24x1xf32>
    %247 = vector.broadcast %246 : vector<24x1xf32> to vector<24x24xf32>
    %248 = arith.subf %244, %247 : vector<24x24xf32>
    %249 = math.exp %248 : vector<24x24xf32>
    %cst_110 = arith.constant dense<0.000000e+00> : vector<24xf32>
    %250 = vector.multi_reduction <add>, %249, %cst_110 [1] : vector<24x24xf32> to vector<24xf32>
    %251 = vector.shape_cast %250 : vector<24xf32> to vector<24x1xf32>
    %252 = tpu.reciprocal %251 {approx = true} : vector<24x1xf32> -> vector<24x1xf32>
    %253 = vector.broadcast %252 : vector<24x1xf32> to vector<24x24xf32>
    %254 = arith.mulf %249, %253 : vector<24x24xf32>
    %255 = arith.truncf %254 : vector<24x24xf32> to vector<24x24xbf16>
    %cst_111 = arith.constant dense<0.000000e+00> : vector<24x32xf32>
    %256 = tpu.matmul %255, %241, %cst_111 {dimension_numbers = #tpu.dot_dimension_numbers<[1], [0], [0], [1], [0, 0, 1, 1], [], []>} : vector<24x24xbf16>, vector<24x32xbf16>, vector<24x32xf32> -> vector<24x32xf32>
    %257 = tpu.concatenate %109, %130, %151, %172, %193, %214, %235, %256 in 1 : vector<24x32xf32>, vector<24x32xf32>, vector<24x32xf32>, vector<24x32xf32>, vector<24x32xf32>, vector<24x32xf32>, vector<24x32xf32>, vector<24x32xf32> -> vector<24x256xf32>
    %258 = arith.truncf %257 : vector<24x256xf32> to vector<24x256xbf16>
    %c0_112 = arith.constant 0 : index
    %c0_113 = arith.constant 0 : index
    %259 = vector.load %arg9[%c0_112, %c0_113] : memref<256x256xbf16, #tpu.memory_space<vmem>>, vector<256x256xbf16>
    %cst_114 = arith.constant dense<0.000000e+00> : vector<24x256xf32>
    %260 = tpu.matmul %258, %259, %cst_114 {dimension_numbers = #tpu.dot_dimension_numbers<[1], [0], [0], [1], [0, 0, 1, 1], [], []>} : vector<24x256xbf16>, vector<256x256xbf16>, vector<24x256xf32> -> vector<24x256xf32>
    %c0_115 = arith.constant 0 : index
    %c0_116 = arith.constant 0 : index
    %261 = vector.load %arg10[%c0_115, %c0_116] : memref<1x256xf32, #tpu.memory_space<vmem>>, vector<1x256xf32>
    %262 = vector.broadcast %261 : vector<1x256xf32> to vector<24x256xf32>
    %263 = arith.addf %260, %262 : vector<24x256xf32>
    %264 = arith.addf %79, %263 : vector<24x256xf32>
    %c0_117 = arith.constant 0 : index
    %c0_118 = arith.constant 0 : index
    %265 = vector.load %arg11[%c0_117, %c0_118] : memref<1x256xf32, #tpu.memory_space<vmem>>, vector<1x256xf32>
    %c0_119 = arith.constant 0 : index
    %c0_120 = arith.constant 0 : index
    %266 = vector.load %arg12[%c0_119, %c0_120] : memref<1x256xf32, #tpu.memory_space<vmem>>, vector<1x256xf32>
    %cst_121 = arith.constant dense<0.000000e+00> : vector<24xf32>
    %267 = vector.multi_reduction <add>, %264, %cst_121 [1] : vector<24x256xf32> to vector<24xf32>
    %268 = vector.shape_cast %267 : vector<24xf32> to vector<24x1xf32>
    %cst_122 = arith.constant 2.560000e+02 : f32
    %269 = vector.broadcast %cst_122 : f32 to vector<24x1xf32>
    %270 = arith.divf %268, %269 : vector<24x1xf32>
    %271 = vector.broadcast %270 : vector<24x1xf32> to vector<24x256xf32>
    %272 = arith.subf %264, %271 : vector<24x256xf32>
    %273 = arith.mulf %272, %272 : vector<24x256xf32>
    %cst_123 = arith.constant dense<0.000000e+00> : vector<24xf32>
    %274 = vector.multi_reduction <add>, %273, %cst_123 [1] : vector<24x256xf32> to vector<24xf32>
    %275 = vector.shape_cast %274 : vector<24xf32> to vector<24x1xf32>
    %cst_124 = arith.constant 2.560000e+02 : f32
    %276 = vector.broadcast %cst_124 : f32 to vector<24x1xf32>
    %277 = arith.divf %275, %276 : vector<24x1xf32>
    %278 = vector.broadcast %270 : vector<24x1xf32> to vector<24x256xf32>
    %279 = arith.subf %264, %278 : vector<24x256xf32>
    %cst_125 = arith.constant 9.99999974E-6 : f32
    %280 = vector.broadcast %cst_125 : f32 to vector<24x1xf32>
    %281 = arith.addf %277, %280 : vector<24x1xf32>
    %282 = math.rsqrt %281 : vector<24x1xf32>
    %283 = vector.broadcast %282 : vector<24x1xf32> to vector<24x256xf32>
    %284 = arith.mulf %279, %283 : vector<24x256xf32>
    %285 = vector.broadcast %265 : vector<1x256xf32> to vector<24x256xf32>
    %286 = arith.mulf %284, %285 : vector<24x256xf32>
    %287 = vector.broadcast %266 : vector<1x256xf32> to vector<24x256xf32>
    %288 = arith.addf %286, %287 : vector<24x256xf32>
    %289 = arith.truncf %288 : vector<24x256xf32> to vector<24x256xbf16>
    %c0_126 = arith.constant 0 : index
    %c0_127 = arith.constant 0 : index
    %290 = vector.load %arg13[%c0_126, %c0_127] : memref<256x512xbf16, #tpu.memory_space<vmem>>, vector<256x512xbf16>
    %cst_128 = arith.constant dense<0.000000e+00> : vector<24x512xf32>
    %291 = tpu.matmul %289, %290, %cst_128 {dimension_numbers = #tpu.dot_dimension_numbers<[1], [0], [0], [1], [0, 0, 1, 1], [], []>} : vector<24x256xbf16>, vector<256x512xbf16>, vector<24x512xf32> -> vector<24x512xf32>
    %c0_129 = arith.constant 0 : index
    %c0_130 = arith.constant 0 : index
    %292 = vector.load %arg14[%c0_129, %c0_130] : memref<1x512xf32, #tpu.memory_space<vmem>>, vector<1x512xf32>
    %293 = vector.broadcast %292 : vector<1x512xf32> to vector<24x512xf32>
    %294 = arith.addf %291, %293 : vector<24x512xf32>
    %cst_131 = arith.constant 0.000000e+00 : f32
    %295 = vector.broadcast %cst_131 : f32 to vector<24x512xf32>
    %296 = arith.maximumf %294, %295 : vector<24x512xf32>
    %297 = arith.truncf %296 : vector<24x512xf32> to vector<24x512xbf16>
    %c0_132 = arith.constant 0 : index
    %c0_133 = arith.constant 0 : index
    %298 = vector.load %arg15[%c0_132, %c0_133] : memref<512x256xbf16, #tpu.memory_space<vmem>>, vector<512x256xbf16>
    %cst_134 = arith.constant dense<0.000000e+00> : vector<24x256xf32>
    %299 = tpu.matmul %297, %298, %cst_134 {dimension_numbers = #tpu.dot_dimension_numbers<[1], [0], [0], [1], [0, 0, 1, 1], [], []>} : vector<24x512xbf16>, vector<512x256xbf16>, vector<24x256xf32> -> vector<24x256xf32>
    %c0_135 = arith.constant 0 : index
    %c0_136 = arith.constant 0 : index
    %300 = vector.load %arg16[%c0_135, %c0_136] : memref<1x256xf32, #tpu.memory_space<vmem>>, vector<1x256xf32>
    %301 = vector.broadcast %300 : vector<1x256xf32> to vector<24x256xf32>
    %302 = arith.addf %299, %301 : vector<24x256xf32>
    %303 = arith.addf %288, %302 : vector<24x256xf32>
    %c0_137 = arith.constant 0 : index
    %c0_138 = arith.constant 0 : index
    %304 = vector.load %arg17[%c0_137, %c0_138] : memref<1x256xf32, #tpu.memory_space<vmem>>, vector<1x256xf32>
    %c0_139 = arith.constant 0 : index
    %c0_140 = arith.constant 0 : index
    %305 = vector.load %arg18[%c0_139, %c0_140] : memref<1x256xf32, #tpu.memory_space<vmem>>, vector<1x256xf32>
    %cst_141 = arith.constant dense<0.000000e+00> : vector<24xf32>
    %306 = vector.multi_reduction <add>, %303, %cst_141 [1] : vector<24x256xf32> to vector<24xf32>
    %307 = vector.shape_cast %306 : vector<24xf32> to vector<24x1xf32>
    %cst_142 = arith.constant 2.560000e+02 : f32
    %308 = vector.broadcast %cst_142 : f32 to vector<24x1xf32>
    %309 = arith.divf %307, %308 : vector<24x1xf32>
    %310 = vector.broadcast %309 : vector<24x1xf32> to vector<24x256xf32>
    %311 = arith.subf %303, %310 : vector<24x256xf32>
    %312 = arith.mulf %311, %311 : vector<24x256xf32>
    %cst_143 = arith.constant dense<0.000000e+00> : vector<24xf32>
    %313 = vector.multi_reduction <add>, %312, %cst_143 [1] : vector<24x256xf32> to vector<24xf32>
    %314 = vector.shape_cast %313 : vector<24xf32> to vector<24x1xf32>
    %cst_144 = arith.constant 2.560000e+02 : f32
    %315 = vector.broadcast %cst_144 : f32 to vector<24x1xf32>
    %316 = arith.divf %314, %315 : vector<24x1xf32>
    %317 = vector.broadcast %309 : vector<24x1xf32> to vector<24x256xf32>
    %318 = arith.subf %303, %317 : vector<24x256xf32>
    %cst_145 = arith.constant 9.99999974E-6 : f32
    %319 = vector.broadcast %cst_145 : f32 to vector<24x1xf32>
    %320 = arith.addf %316, %319 : vector<24x1xf32>
    %321 = math.rsqrt %320 : vector<24x1xf32>
    %322 = vector.broadcast %321 : vector<24x1xf32> to vector<24x256xf32>
    %323 = arith.mulf %318, %322 : vector<24x256xf32>
    %324 = vector.broadcast %304 : vector<1x256xf32> to vector<24x256xf32>
    %325 = arith.mulf %323, %324 : vector<24x256xf32>
    %326 = vector.broadcast %305 : vector<1x256xf32> to vector<24x256xf32>
    %327 = arith.addf %325, %326 : vector<24x256xf32>
    %328 = arith.truncf %327 : vector<24x256xf32> to vector<24x256xbf16>
    %c0_146 = arith.constant 0 : index
    %c0_147 = arith.constant 0 : index
    %329 = vector.load %arg19[%c0_146, %c0_147] : memref<256x25xbf16, #tpu.memory_space<vmem>>, vector<256x25xbf16>
    %cst_148 = arith.constant dense<0.000000e+00> : vector<24x25xf32>
    %330 = tpu.matmul %328, %329, %cst_148 {dimension_numbers = #tpu.dot_dimension_numbers<[1], [0], [0], [1], [0, 0, 1, 1], [], []>} : vector<24x256xbf16>, vector<256x25xbf16>, vector<24x25xf32> -> vector<24x25xf32>
    %cst_149 = arith.constant dense<0xFF800000> : vector<25xf32>
    %331 = vector.multi_reduction <maximumf>, %330, %cst_149 [0] : vector<24x25xf32> to vector<25xf32>
    %332 = vector.shape_cast %331 : vector<25xf32> to vector<1x25xf32>
    %333 = vector.broadcast %332 : vector<1x25xf32> to vector<24x25xf32>
    %334 = arith.subf %330, %333 : vector<24x25xf32>
    %335 = math.exp %334 : vector<24x25xf32>
    %cst_150 = arith.constant dense<0.000000e+00> : vector<25xf32>
    %336 = vector.multi_reduction <add>, %335, %cst_150 [0] : vector<24x25xf32> to vector<25xf32>
    %337 = vector.shape_cast %336 : vector<25xf32> to vector<1x25xf32>
    %338 = tpu.reciprocal %337 {approx = true} : vector<1x25xf32> -> vector<1x25xf32>
    %339 = vector.broadcast %338 : vector<1x25xf32> to vector<24x25xf32>
    %340 = arith.mulf %335, %339 : vector<24x25xf32>
    %341 = arith.truncf %340 : vector<24x25xf32> to vector<24x25xbf16>
    %342 = arith.truncf %327 : vector<24x256xf32> to vector<24x256xbf16>
    %cst_151 = arith.constant dense<0.000000e+00> : vector<25x256xf32>
    %343 = tpu.matmul %341, %342, %cst_151 {dimension_numbers = #tpu.dot_dimension_numbers<[0], [0], [1], [1], [0, 1, 1, 1], [], []>} : vector<24x25xbf16>, vector<24x256xbf16>, vector<25x256xf32> -> vector<25x256xf32>
    %344 = arith.truncf %343 : vector<25x256xf32> to vector<25x256xbf16>
    %c0_152 = arith.constant 0 : index
    %c0_153 = arith.constant 0 : index
    %345 = vector.load %arg20[%c0_152, %c0_153] : memref<256x128xbf16, #tpu.memory_space<vmem>>, vector<256x128xbf16>
    %cst_154 = arith.constant dense<0.000000e+00> : vector<25x128xf32>
    %346 = tpu.matmul %344, %345, %cst_154 {dimension_numbers = #tpu.dot_dimension_numbers<[1], [0], [0], [1], [0, 0, 1, 1], [], []>} : vector<25x256xbf16>, vector<256x128xbf16>, vector<25x128xf32> -> vector<25x128xf32>
    %347 = tpu.iota {dimensions = array<i32: 0>} : vector<25x128xi32>
    %348 = tpu.iota {dimensions = array<i32: 1>} : vector<25x128xi32>
    %c3_i32 = arith.constant 3 : i32
    %349 = vector.broadcast %c3_i32 : i32 to vector<25x128xi32>
    %350 = arith.muli %349, %347 : vector<25x128xi32>
    %351 = arith.cmpi sge, %348, %350 : vector<25x128xi32>
    %c3_i32_155 = arith.constant 3 : i32
    %352 = vector.broadcast %c3_i32_155 : i32 to vector<25x128xi32>
    %353 = arith.muli %352, %347 : vector<25x128xi32>
    %c3_i32_156 = arith.constant 3 : i32
    %354 = vector.broadcast %c3_i32_156 : i32 to vector<25x128xi32>
    %355 = arith.addi %353, %354 : vector<25x128xi32>
    %356 = arith.cmpi slt, %348, %355 : vector<25x128xi32>
    %357 = arith.andi %351, %356 : vector<25x128xi1>
    %cst_157 = arith.constant 0.000000e+00 : f32
    %358 = vector.broadcast %cst_157 : f32 to vector<25x128xf32>
    %359 = arith.select %357, %346, %358 : vector<25x128xi1>, vector<25x128xf32>
    %cst_158 = arith.constant dense<0.000000e+00> : vector<128xf32>
    %360 = vector.multi_reduction <add>, %359, %cst_158 [0] : vector<25x128xf32> to vector<128xf32>
    %361 = vector.shape_cast %360 : vector<128xf32> to vector<1x128xf32>
    %c0_159 = arith.constant 0 : index
    %c0_160 = arith.constant 0 : index
    %362 = vector.load %arg21[%c0_159, %c0_160] : memref<1x128xf32, #tpu.memory_space<vmem>>, vector<1x128xf32>
    %363 = arith.addf %361, %362 : vector<1x128xf32>
    %364 = vector.shape_cast %363 : vector<1x128xf32> to vector<1x128xf32>
    %365 = vector.broadcast %364 : vector<1x128xf32> to vector<8x128xf32>
    %c0_161 = arith.constant 0 : index
    %c0_162 = arith.constant 0 : index
    %c0_163 = arith.constant 0 : index
    %366 = vector.load %arg23[%c0_161, %c0_162, %c0_163] : memref<1x8x128xf32, #tpu.memory_space<vmem>>, vector<1x8x128xf32>
    %367 = vector.shape_cast %366 : vector<1x8x128xf32> to vector<8x128xf32>
    %368 = vector.shape_cast %365 : vector<8x128xf32> to vector<1x8x128xf32>
    tpu.vector_store %arg23[%c0_161, %c0_162, %c0_163], %368 {strides = array<i32>} : memref<1x8x128xf32, #tpu.memory_space<vmem>>, vector<1x8x128xf32>,
    return
  }
  func.func @transform_0(%arg0: i32) -> (i32, i32, i32, i32, i32) {
    %c0_i32 = arith.constant 0 : i32
    %c0_i32_0 = arith.constant 0 : i32
    %c0_i32_1 = arith.constant 0 : i32
    %c0_i32_2 = arith.constant 0 : i32
    %c0_i32_3 = arith.constant 0 : i32
    return %arg0, %c0_i32, %c0_i32_0, %c0_i32_1, %c0_i32_2 : i32, i32, i32, i32, i32
  }
  func.func @transform_1(%arg0: i32) -> (i32, i32, i32) {
    %c0_i32 = arith.constant 0 : i32
    %c0_i32_0 = arith.constant 0 : i32
    %c0_i32_1 = arith.constant 0 : i32
    %c0_i32_2 = arith.constant 0 : i32
    return %c0_i32, %c0_i32_0, %c0_i32_1 : i32, i32, i32
  }
  func.func @transform_2(%arg0: i32) -> (i32, i32, i32) {
    %c0_i32 = arith.constant 0 : i32
    %c0_i32_0 = arith.constant 0 : i32
    %c0_i32_1 = arith.constant 0 : i32
    %c0_i32_2 = arith.constant 0 : i32
    return %c0_i32, %c0_i32_0, %c0_i32_1 : i32, i32, i32
  }
  func.func @transform_3(%arg0: i32) -> (i32, i32, i32) {
    %c0_i32 = arith.constant 0 : i32
    %c0_i32_0 = arith.constant 0 : i32
    %c0_i32_1 = arith.constant 0 : i32
    %c0_i32_2 = arith.constant 0 : i32
    return %c0_i32, %c0_i32_0, %c0_i32_1 : i32, i32, i32
  }
  func.func @transform_4(%arg0: i32) -> (i32, i32, i32) {
    %c0_i32 = arith.constant 0 : i32
    %c0_i32_0 = arith.constant 0 : i32
    %c0_i32_1 = arith.constant 0 : i32
    %c0_i32_2 = arith.constant 0 : i32
    return %c0_i32, %c0_i32_0, %c0_i32_1 : i32, i32, i32
  }
  func.func @transform_5(%arg0: i32) -> (i32, i32) {
    %c0_i32 = arith.constant 0 : i32
    %c0_i32_0 = arith.constant 0 : i32
    %c0_i32_1 = arith.constant 0 : i32
    return %c0_i32, %c0_i32_0 : i32, i32
  }
  func.func @transform_6(%arg0: i32) -> (i32, i32) {
    %c0_i32 = arith.constant 0 : i32
    %c0_i32_0 = arith.constant 0 : i32
    %c0_i32_1 = arith.constant 0 : i32
    return %c0_i32, %c0_i32_0 : i32, i32
  }
  func.func @transform_7(%arg0: i32) -> (i32, i32) {
    %c0_i32 = arith.constant 0 : i32
    %c0_i32_0 = arith.constant 0 : i32
    %c0_i32_1 = arith.constant 0 : i32
    return %c0_i32, %c0_i32_0 : i32, i32
  }
  func.func @transform_8(%arg0: i32) -> (i32, i32) {
    %c0_i32 = arith.constant 0 : i32
    %c0_i32_0 = arith.constant 0 : i32
    %c0_i32_1 = arith.constant 0 : i32
    return %c0_i32, %c0_i32_0 : i32, i32
  }
  func.func @transform_9(%arg0: i32) -> (i32, i32) {
    %c0_i32 = arith.constant 0 : i32
    %c0_i32_0 = arith.constant 0 : i32
    %c0_i32_1 = arith.constant 0 : i32
    return %c0_i32, %c0_i32_0 : i32, i32
  }
  func.func @transform_10(%arg0: i32) -> (i32, i32) {
    %c0_i32 = arith.constant 0 : i32
    %c0_i32_0 = arith.constant 0 : i32
    %c0_i32_1 = arith.constant 0 : i32
    return %c0_i32, %c0_i32_0 : i32, i32
  }
  func.func @transform_11(%arg0: i32) -> (i32, i32) {
    %c0_i32 = arith.constant 0 : i32
    %c0_i32_0 = arith.constant 0 : i32
    %c0_i32_1 = arith.constant 0 : i32
    return %c0_i32, %c0_i32_0 : i32, i32
  }
  func.func @transform_12(%arg0: i32) -> (i32, i32) {
    %c0_i32 = arith.constant 0 : i32
    %c0_i32_0 = arith.constant 0 : i32
    %c0_i32_1 = arith.constant 0 : i32
    return %c0_i32, %c0_i32_0 : i32, i32
  }
  func.func @transform_13(%arg0: i32) -> (i32, i32) {
    %c0_i32 = arith.constant 0 : i32
    %c0_i32_0 = arith.constant 0 : i32
    %c0_i32_1 = arith.constant 0 : i32
    return %c0_i32, %c0_i32_0 : i32, i32
  }
  func.func @transform_14(%arg0: i32) -> (i32, i32) {
    %c0_i32 = arith.constant 0 : i32
    %c0_i32_0 = arith.constant 0 : i32
    %c0_i32_1 = arith.constant 0 : i32
    return %c0_i32, %c0_i32_0 : i32, i32
  }
  func.func @transform_15(%arg0: i32) -> (i32, i32) {
    %c0_i32 = arith.constant 0 : i32
    %c0_i32_0 = arith.constant 0 : i32
    %c0_i32_1 = arith.constant 0 : i32
    return %c0_i32, %c0_i32_0 : i32, i32
  }
  func.func @transform_16(%arg0: i32) -> (i32, i32) {
    %c0_i32 = arith.constant 0 : i32
    %c0_i32_0 = arith.constant 0 : i32
    %c0_i32_1 = arith.constant 0 : i32
    return %c0_i32, %c0_i32_0 : i32, i32
  }
  func.func @transform_17(%arg0: i32) -> (i32, i32) {
    %c0_i32 = arith.constant 0 : i32
    %c0_i32_0 = arith.constant 0 : i32
    %c0_i32_1 = arith.constant 0 : i32
    return %c0_i32, %c0_i32_0 : i32, i32
  }
  func.func @transform_18(%arg0: i32) -> (i32, i32) {
    %c0_i32 = arith.constant 0 : i32
    %c0_i32_0 = arith.constant 0 : i32
    %c0_i32_1 = arith.constant 0 : i32
    return %c0_i32, %c0_i32_0 : i32, i32
  }
  func.func @transform_19(%arg0: i32) -> (i32, i32) {
    %c0_i32 = arith.constant 0 : i32
    %c0_i32_0 = arith.constant 0 : i32
    %c0_i32_1 = arith.constant 0 : i32
    return %c0_i32, %c0_i32_0 : i32, i32
  }
  func.func @transform_20(%arg0: i32) -> (i32, i32) {
    %c0_i32 = arith.constant 0 : i32
    %c0_i32_0 = arith.constant 0 : i32
    %c0_i32_1 = arith.constant 0 : i32
    return %c0_i32, %c0_i32_0 : i32, i32
  }
  func.func @transform_21(%arg0: i32) -> (i32, i32, i32) {
    %c0_i32 = arith.constant 0 : i32
    %c0_i32_0 = arith.constant 0 : i32
    %c0_i32_1 = arith.constant 0 : i32
    return %arg0, %c0_i32, %c0_i32_0 : i32, i32, i32
  }
  func.func @transform_22(%arg0: i32) -> (i32, i32, i32) {
    %c0_i32 = arith.constant 0 : i32
    %c0_i32_0 = arith.constant 0 : i32
    %c0_i32_1 = arith.constant 0 : i32
    return %arg0, %c0_i32, %c0_i32_0 : i32, i32, i32
  }
}

</mosaic_0001>

<llo_original>
// kernel: squeeze.1
$region0: #{squeeze.1}
  %s0 = inlined_call_operand.vmem [shape: f32[2,75], index: 0, kind: input, shape index: {}]
  %s1 = inlined_call_operand.vmem [shape: f32[2,25,3], index: 1, kind: output, shape index: {}]
  $region1: #{squeeze.1} parent=0
    #allocation0 [shape = 'u8[4096]{0}', space=vmem, size = 0x1000, scoped, tag = 'scoped mem for input reshape']
    %s3 = sshllo.u32 0, 2
    %v4 = vld [vmem:[%s0] sm:%s3]
    %5 = vst [vmem:[#allocation0] sm:%s3] %v4
    %v6 = vld [vmem:[#allocation0] sm:$0x3]
    %vm7 = vcmask 23552
    %8 = vst.msk [vmem:[%s1] sm:$0x1] %vm7, %v6
    %s9 = scalar_lea.vmem %s1, 31
    %10 = vst.msk [vmem:[%s9] sm:$0x2] %vm7, %v6
    %v11 = vld [vmem:[#allocation0] sm:$0x3]
    %12 = vrot.lane.b32.xlu0 %v11, 125
    %v13 = vpop.permute.xlu0 %12
    %vm14 = vcmask 23552
    %s15 = scalar_lea.vmem %s1, 1
    %16 = vst.msk [vmem:[%s15] sm:$0x1] %vm14, %v13
    %s17 = scalar_lea.vmem %s1, 32
    %18 = vst.msk [vmem:[%s17] sm:$0x2] %vm14, %v13
    %v19 = vld [vmem:[#allocation0] sm:$0x3]
    %20 = vrot.lane.b32.xlu0 %v19, 122
    %v21 = vpop.permute.xlu0 %20
    %vm22 = vcmask 23552
    %s23 = scalar_lea.vmem %s1, 2
    %24 = vst.msk [vmem:[%s23] sm:$0x1] %vm22, %v21
    %s25 = scalar_lea.vmem %s1, 33
    %26 = vst.msk [vmem:[%s25] sm:$0x2] %vm22, %v21
    %v27 = vld [vmem:[#allocation0] sm:$0x3]
    %28 = vrot.lane.b32.xlu0 %v27, 119
    %v29 = vpop.permute.xlu0 %28
    %vm30 = vcmask 23552
    %s31 = scalar_lea.vmem %s1, 3
    %32 = vst.msk [vmem:[%s31] sm:$0x1] %vm30, %v29
    %s33 = scalar_lea.vmem %s1, 34
    %34 = vst.msk [vmem:[%s33] sm:$0x2] %vm30, %v29
    %v35 = vld [vmem:[#allocation0] sm:$0x3]
    %36 = vrot.lane.b32.xlu0 %v35, 116
    %v37 = vpop.permute.xlu0 %36
    %vm38 = vcmask 23552
    %s39 = scalar_lea.vmem %s1, 4
    %40 = vst.msk [vmem:[%s39] sm:$0x1] %vm38, %v37
    %s41 = scalar_lea.vmem %s1, 35
    %42 = vst.msk [vmem:[%s41] sm:$0x2] %vm38, %v37
    %v43 = vld [vmem:[#allocation0] sm:$0x3]
    %44 = vrot.lane.b32.xlu0 %v43, 113
    %v45 = vpop.permute.xlu0 %44
    %vm46 = vcmask 23552
    %s47 = scalar_lea.vmem %s1, 5
    %48 = vst.msk [vmem:[%s47] sm:$0x1] %vm46, %v45
    %s49 = scalar_lea.vmem %s1, 36
    %50 = vst.msk [vmem:[%s49] sm:$0x2] %vm46, %v45
    %v51 = vld [vmem:[#allocation0] sm:$0x3]
    %52 = vrot.lane.b32.xlu0 %v51, 110
    %v53 = vpop.permute.xlu0 %52
    %vm54 = vcmask 23552
    %s55 = scalar_lea.vmem %s1, 6
    %56 = vst.msk [vmem:[%s55] sm:$0x1] %vm54, %v53
    %s57 = scalar_lea.vmem %s1, 37
    %58 = vst.msk [vmem:[%s57] sm:$0x2] %vm54, %v53
    %v59 = vld [vmem:[#allocation0] sm:$0x3]
    %60 = vrot.lane.b32.xlu0 %v59, 107
    %v61 = vpop.permute.xlu0 %60
    %vm62 = vcmask 23552
    %s63 = scalar_lea.vmem %s1, 7
    %64 = vst.msk [vmem:[%s63] sm:$0x1] %vm62, %v61
    %s65 = scalar_lea.vmem %s1, 38
    %66 = vst.msk [vmem:[%s65] sm:$0x2] %vm62, %v61
    %v67 = vld [vmem:[#allocation0] sm:$0x3]
    %68 = vrot.lane.b32.xlu0 %v67, 104
    %v69 = vpop.permute.xlu0 %68
    %vm70 = vcmask 23552
    %s71 = scalar_lea.vmem %s1, 8
    %72 = vst.msk [vmem:[%s71] sm:$0x1] %vm70, %v69
    %s73 = scalar_lea.vmem %s1, 39
    %74 = vst.msk [vmem:[%s73] sm:$0x2] %vm70, %v69
    %v75 = vld [vmem:[#allocation0] sm:$0x3]
    %76 = vrot.lane.b32.xlu0 %v75, 101
    %v77 = vpop.permute.xlu0 %76
    %vm78 = vcmask 23552
    %s79 = scalar_lea.vmem %s1, 9
    %80 = vst.msk [vmem:[%s79] sm:$0x1] %vm78, %v77
    %s81 = scalar_lea.vmem %s1, 40
    %82 = vst.msk [vmem:[%s81] sm:$0x2] %vm78, %v77
    %v83 = vld [vmem:[#allocation0] sm:$0x3]
    %84 = vrot.lane.b32.xlu0 %v83, 98
    %v85 = vpop.permute.xlu0 %84
    %vm86 = vcmask 23552
    %s87 = scalar_lea.vmem %s1, 10
    %88 = vst.msk [vmem:[%s87] sm:$0x1] %vm86, %v85
    %s89 = scalar_lea.vmem %s1, 41
    %90 = vst.msk [vmem:[%s89] sm:$0x2] %vm86, %v85
    %v91 = vld [vmem:[#allocation0] sm:$0x3]
    %92 = vrot.lane.b32.xlu0 %v91, 95
    %v93 = vpop.permute.xlu0 %92
    %vm94 = vcmask 23552
    %s95 = scalar_lea.vmem %s1, 11
    %96 = vst.msk [vmem:[%s95] sm:$0x1] %vm94, %v93
    %s97 = scalar_lea.vmem %s1, 42
    %98 = vst.msk [vmem:[%s97] sm:$0x2] %vm94, %v93
    %v99 = vld [vmem:[#allocation0] sm:$0x3]
    %100 = vrot.lane.b32.xlu0 %v99, 92
    %v101 = vpop.permute.xlu0 %100
    %vm102 = vcmask 23552
    %s103 = scalar_lea.vmem %s1, 12
    %104 = vst.msk [vmem:[%s103] sm:$0x1] %vm102, %v101
    %s105 = scalar_lea.vmem %s1, 43
    %106 = vst.msk [vmem:[%s105] sm:$0x2] %vm102, %v101
    %v107 = vld [vmem:[#allocation0] sm:$0x3]
    %108 = vrot.lane.b32.xlu0 %v107, 89
    %v109 = vpop.permute.xlu0 %108
    %vm110 = vcmask 23552
    %s111 = scalar_lea.vmem %s1, 13
    %112 = vst.msk [vmem:[%s111] sm:$0x1] %vm110, %v109
    %s113 = scalar_lea.vmem %s1, 44
    %114 = vst.msk [vmem:[%s113] sm:$0x2] %vm110, %v109
    %v115 = vld [vmem:[#allocation0] sm:$0x3]
    %116 = vrot.lane.b32.xlu0 %v115, 86
    %v117 = vpop.permute.xlu0 %116
    %vm118 = vcmask 23552
    %s119 = scalar_lea.vmem %s1, 14
    %120 = vst.msk [vmem:[%s119] sm:$0x1] %vm118, %v117
    %s121 = scalar_lea.vmem %s1, 45
    %122 = vst.msk [vmem:[%s121] sm:$0x2] %vm118, %v117
    %v123 = vld [vmem:[#allocation0] sm:$0x3]
    %124 = vrot.lane.b32.xlu0 %v123, 83
    %v125 = vpop.permute.xlu0 %124
    %vm126 = vcmask 23552
    %s127 = scalar_lea.vmem %s1, 15
    %128 = vst.msk [vmem:[%s127] sm:$0x1] %vm126, %v125
    %s129 = scalar_lea.vmem %s1, 46
    %130 = vst.msk [vmem:[%s129] sm:$0x2] %vm126, %v125
    %v131 = vld [vmem:[#allocation0] sm:$0x3]
    %132 = vrot.lane.b32.xlu0 %v131, 80
    %v133 = vpop.permute.xlu0 %132
    %vm134 = vcmask 23552
    %s135 = scalar_lea.vmem %s1, 16
    %136 = vst.msk [vmem:[%s135] sm:$0x1] %vm134, %v133
    %s137 = scalar_lea.vmem %s1, 47
    %138 = vst.msk [vmem:[%s137] sm:$0x2] %vm134, %v133
    %v139 = vld [vmem:[#allocation0] sm:$0x3]
    %140 = vrot.lane.b32.xlu0 %v139, 77
    %v141 = vpop.permute.xlu0 %140
    %vm142 = vcmask 23552
    %s143 = scalar_lea.vmem %s1, 17
    %144 = vst.msk [vmem:[%s143] sm:$0x1] %vm142, %v141
    %s145 = scalar_lea.vmem %s1, 48
    %146 = vst.msk [vmem:[%s145] sm:$0x2] %vm142, %v141
    %v147 = vld [vmem:[#allocation0] sm:$0x3]
    %148 = vrot.lane.b32.xlu0 %v147, 74
    %v149 = vpop.permute.xlu0 %148
    %vm150 = vcmask 23552
    %s151 = scalar_lea.vmem %s1, 18
    %152 = vst.msk [vmem:[%s151] sm:$0x1] %vm150, %v149
    %s153 = scalar_lea.vmem %s1, 49
    %154 = vst.msk [vmem:[%s153] sm:$0x2] %vm150, %v149
    %v155 = vld [vmem:[#allocation0] sm:$0x3]
    %156 = vrot.lane.b32.xlu0 %v155, 71
    %v157 = vpop.permute.xlu0 %156
    %vm158 = vcmask 23552
    %s159 = scalar_lea.vmem %s1, 19
    %160 = vst.msk [vmem:[%s159] sm:$0x1] %vm158, %v157
    %s161 = scalar_lea.vmem %s1, 50
    %162 = vst.msk [vmem:[%s161] sm:$0x2] %vm158, %v157
    %v163 = vld [vmem:[#allocation0] sm:$0x3]
    %164 = vrot.lane.b32.xlu0 %v163, 68
    %v165 = vpop.permute.xlu0 %164
    %vm166 = vcmask 23552
    %s167 = scalar_lea.vmem %s1, 20
    %168 = vst.msk [vmem:[%s167] sm:$0x1] %vm166, %v165
    %s169 = scalar_lea.vmem %s1, 51
    %170 = vst.msk [vmem:[%s169] sm:$0x2] %vm166, %v165
    %v171 = vld [vmem:[#allocation0] sm:$0x3]
    %172 = vrot.lane.b32.xlu0 %v171, 65
    %v173 = vpop.permute.xlu0 %172
    %vm174 = vcmask 23552
    %s175 = scalar_lea.vmem %s1, 21
    %176 = vst.msk [vmem:[%s175] sm:$0x1] %vm174, %v173
    %s177 = scalar_lea.vmem %s1, 52
    %178 = vst.msk [vmem:[%s177] sm:$0x2] %vm174, %v173
    %v179 = vld [vmem:[#allocation0] sm:$0x3]
    %180 = vrot.lane.b32.xlu0 %v179, 62
    %v181 = vpop.permute.xlu0 %180
    %vm182 = vcmask 23552
    %s183 = scalar_lea.vmem %s1, 22
    %184 = vst.msk [vmem:[%s183] sm:$0x1] %vm182, %v181
    %s185 = scalar_lea.vmem %s1, 53
    %186 = vst.msk [vmem:[%s185] sm:$0x2] %vm182, %v181
    %v187 = vld [vmem:[#allocation0] sm:$0x3]
    %188 = vrot.lane.b32.xlu0 %v187, 59
    %v189 = vpop.permute.xlu0 %188
    %vm190 = vcmask 23552
    %s191 = scalar_lea.vmem %s1, 23
    %192 = vst.msk [vmem:[%s191] sm:$0x1] %vm190, %v189
    %s193 = scalar_lea.vmem %s1, 54
    %194 = vst.msk [vmem:[%s193] sm:$0x2] %vm190, %v189
    %v195 = vld [vmem:[#allocation0] sm:$0x3]
    %196 = vrot.lane.b32.xlu0 %v195, 56
    %v197 = vpop.permute.xlu0 %196
    %vm198 = vcmask 23552
    %s199 = scalar_lea.vmem %s1, 24
    %200 = vst.msk [vmem:[%s199] sm:$0x1] %vm198, %v197
    %s201 = scalar_lea.vmem %s1, 55
    %202 = vst.msk [vmem:[%s201] sm:$0x2] %vm198, %v197

// kernel: forward.1
$region0: #{forward.1}
  #allocation0 [shape = 'u32[]', space=smem, size = 0x4, offset = 0x4, fixed_abs, tag = 'smem constant byte address 0x4 - core index']
  #allocation1 [shape = 'u32[144,128]{1,0:T(1,128)}', space=vmem, size = 0x12000, scoped, tag = 'internal scratch']
  %s0 = inlined_call_operand.hbm [shape: bf16[2,3,8,16,48], index: 0, kind: input, shape index: {}]
  %s1 = inlined_call_operand.hbm [shape: bf16[3,48,768], index: 1, kind: input, shape index: {}]
  %s2 = inlined_call_operand.hbm [shape: f32[3,1,768], index: 2, kind: input, shape index: {}]
  %s3 = inlined_call_operand.hbm [shape: bf16[3,768,384], index: 3, kind: input, shape index: {}]
  %s4 = inlined_call_operand.hbm [shape: f32[3,1,384], index: 4, kind: input, shape index: {}]
  %s5 = inlined_call_operand.hbm [shape: f32[24,256], index: 5, kind: input, shape index: {}]
  %s6 = inlined_call_operand.hbm [shape: bf16[256,768], index: 6, kind: input, shape index: {}]
  %s7 = inlined_call_operand.hbm [shape: f32[1,768], index: 7, kind: input, shape index: {}]
  %s8 = inlined_call_operand.hbm [shape: bf16[256,256], index: 8, kind: input, shape index: {}]
  %s9 = inlined_call_operand.hbm [shape: f32[1,256], index: 9, kind: input, shape index: {}]
  %s10 = inlined_call_operand.hbm [shape: f32[1,256], index: 10, kind: input, shape index: {}]
  %s11 = inlined_call_operand.hbm [shape: f32[1,256], index: 11, kind: input, shape index: {}]
  %s12 = inlined_call_operand.hbm [shape: bf16[256,512], index: 12, kind: input, shape index: {}]
  %s13 = inlined_call_operand.hbm [shape: f32[1,512], index: 13, kind: input, shape index: {}]
  %s14 = inlined_call_operand.hbm [shape: bf16[512,256], index: 14, kind: input, shape index: {}]
  %s15 = inlined_call_operand.hbm [shape: f32[1,256], index: 15, kind: input, shape index: {}]
  %s16 = inlined_call_operand.hbm [shape: f32[1,256], index: 16, kind: input, shape index: {}]
  %s17 = inlined_call_operand.hbm [shape: f32[1,256], index: 17, kind: input, shape index: {}]
  %s18 = inlined_call_operand.hbm [shape: bf16[256,25], index: 18, kind: input, shape index: {}]
  %s19 = inlined_call_operand.hbm [shape: bf16[256,128], index: 19, kind: input, shape index: {}]
  %s20 = inlined_call_operand.hbm [shape: f32[1,128], index: 20, kind: input, shape index: {}]
  %s21 = inlined_call_operand.hbm [shape: f32[2,24,128], index: 21, kind: output, shape index: {0}]
  %s22 = inlined_call_operand.hbm [shape: f32[2,8,128], index: 22, kind: output, shape index: {1}]
  %23 = xla_tuple %s21, %s22
  %s24 = sld [smem:[#allocation0]]
  $region209: #{forward.1} parent=0
    _
  %s26 = ssub.s32 1, %s24
  %s27 = scalar_select 0, %s26, %s24
  $region1: #{forward.1} parent=0
    #allocation2 [shape = 'u8[196608]{0}', space=vmem, size = 0x30000, scoped, tag = 'input window, operand 0']
    #allocation3 [shape = 's32[2]{0}', space=sflag, size = 0x8, scoped, tag = 'scoped memory for forward.1']
    #allocation4 [shape = 's32[2]{0}', space=sflag, size = 0x8, scoped, tag = 'scoped memory for forward.1']
    #allocation5 [shape = 'u8[221184]{0}', space=vmem, size = 0x36000, scoped, tag = 'input window, operand 1, single buffered']
    #allocation6 [shape = 's32[1]{0}', space=sflag, size = 0x4, scoped, tag = 'scoped memory for forward.1']
    #allocation7 [shape = 'u8[9216]{0}', space=vmem, size = 0x2400, scoped, tag = 'input window, operand 2, single buffered']
    #allocation8 [shape = 'u8[1769472]{0}', space=vmem, size = 0x1b0000, scoped, tag = 'input window, operand 3, single buffered']
    #allocation9 [shape = 's32[1]{0}', space=sflag, size = 0x4, scoped, tag = 'scoped memory for forward.1']
    #allocation10 [shape = 'u8[4608]{0}', space=vmem, size = 0x1400, scoped, tag = 'input window, operand 4, single buffered']
    #allocation11 [shape = 'u8[24576]{0}', space=vmem, size = 0x6000, scoped, tag = 'input window, operand 5, single buffered']
    #allocation12 [shape = 's32[1]{0}', space=sflag, size = 0x4, scoped, tag = 'scoped memory for forward.1']
    #allocation13 [shape = 'u8[393216]{0}', space=vmem, size = 0x60000, scoped, tag = 'input window, operand 6, single buffered']
    #allocation14 [shape = 'u8[3072]{0}', space=vmem, size = 0xc00, scoped, tag = 'input window, operand 7, single buffered']
    #allocation15 [shape = 's32[1]{0}', space=sflag, size = 0x4, scoped, tag = 'scoped memory for forward.1']
    #allocation16 [shape = 'u8[131072]{0}', space=vmem, size = 0x20000, scoped, tag = 'input window, operand 8, single buffered']
    #allocation17 [shape = 'u8[1024]{0}', space=vmem, size = 0x400, scoped, tag = 'input window, operand 9, single buffered']
    #allocation18 [shape = 's32[1]{0}', space=sflag, size = 0x4, scoped, tag = 'scoped memory for forward.1']
    #allocation19 [shape = 'u8[1024]{0}', space=vmem, size = 0x400, scoped, tag = 'input window, operand 10, single buffered']
    #allocation20 [shape = 'u8[1024]{0}', space=vmem, size = 0x400, scoped, tag = 'input window, operand 11, single buffered']
    #allocation21 [shape = 's32[1]{0}', space=sflag, size = 0x4, scoped, tag = 'scoped memory for forward.1']
    #allocation22 [shape = 'u8[262144]{0}', space=vmem, size = 0x40000, scoped, tag = 'input window, operand 12, single buffered']
    #allocation23 [shape = 'u8[2048]{0}', space=vmem, size = 0x800, scoped, tag = 'input window, operand 13, single buffered']
    #allocation24 [shape = 's32[1]{0}', space=sflag, size = 0x4, scoped, tag = 'scoped memory for forward.1']
    #allocation25 [shape = 'u8[262144]{0}', space=vmem, size = 0x40000, scoped, tag = 'input window, operand 14, single buffered']
    #allocation26 [shape = 'u8[1024]{0}', space=vmem, size = 0x400, scoped, tag = 'input window, operand 15, single buffered']
    #allocation27 [shape = 's32[1]{0}', space=sflag, size = 0x4, scoped, tag = 'scoped memory for forward.1']
    #allocation28 [shape = 'u8[1024]{0}', space=vmem, size = 0x400, scoped, tag = 'input window, operand 16, single buffered']
    #allocation29 [shape = 'u8[1024]{0}', space=vmem, size = 0x400, scoped, tag = 'input window, operand 17, single buffered']
    #allocation30 [shape = 's32[1]{0}', space=sflag, size = 0x4, scoped, tag = 'scoped memory for forward.1']
    #allocation31 [shape = 'u8[65536]{0}', space=vmem, size = 0x10000, scoped, tag = 'input window, operand 18, single buffered']
    #allocation32 [shape = 'u8[65536]{0}', space=vmem, size = 0x10000, scoped, tag = 'input window, operand 19, single buffered']
    #allocation33 [shape = 's32[1]{0}', space=sflag, size = 0x4, scoped, tag = 'scoped memory for forward.1']
    #allocation34 [shape = 'u8[512]{0}', space=vmem, size = 0x400, scoped, tag = 'input window, operand 20, single buffered']
    #allocation35 [shape = 'u8[24576]{0}', space=vmem, size = 0x6000, scoped, tag = 'output window, operand 0']
    #allocation36 [shape = 'u8[8192]{0}', space=vmem, size = 0x2000, scoped, tag = 'output window, operand 1']
    #allocation37 [shape = 's32[2]{0}', space=sflag, size = 0x8, scoped, tag = 'scoped memory for forward.1']
    %28 = vsyncpa [#allocation3], 0
    %s29 = scalar_lea.sflag [#allocation3], 1
    %30 = vsyncpa %s29, 0
    %31 = vsyncpa [#allocation6], 0
    %32 = vsyncpa [#allocation9], 0
    %33 = vsyncpa [#allocation12], 0
    %34 = vsyncpa [#allocation15], 0
    %35 = vsyncpa [#allocation18], 0
    %36 = vsyncpa [#allocation21], 0
    %37 = vsyncpa [#allocation24], 0
    %38 = vsyncpa [#allocation27], 0
    %39 = vsyncpa [#allocation30], 0
    %40 = vsyncpa [#allocation33], 0
    %41 = vsyncpa [#allocation4], 0
    %s42 = scalar_lea.sflag [#allocation4], 1
    %43 = vsyncpa %s42, 0
    %44 = vsyncpa [#allocation37], 0
    %s45 = scalar_lea.sflag [#allocation37], 1
    %46 = vsyncpa %s45, 0
    loop: start=0, step=1, limit=4
    $region2: #{forward.1} parent=1 // loop_pre_header
      _
    $region3: #{forward.1} parent=1 // loop_header
      %s48 = sphi 0, %s52
      %p49 = scmp.ge.s32.totalorder %s48, 4
      %s58 = sphi 0, %s60
      %s61 = sphi 0, %s58
      %s62 = sphi 0, %s61
      %s78 = sphi 0, %s62
      %s82 = sphi 0, %s82
      %s84 = sphi 0, %s82
      %s85 = sphi 0, %s84
      %s99 = sphi 0, %s85
      %s103 = sphi 0, %s103
      %s105 = sphi 0, %s103
      %s106 = sphi 0, %s105
      %s120 = sphi 0, %s106
      %s124 = sphi 0, %s124
      %s126 = sphi 0, %s124
      %s127 = sphi 0, %s126
      %s141 = sphi 0, %s127
      %s145 = sphi 0, %s145
      %s147 = sphi 0, %s145
      %s148 = sphi 0, %s147
      %s162 = sphi 0, %s148
      %s166 = sphi 0, %s166
      %s168 = sphi 0, %s166
      %s169 = sphi 0, %s168
      %s183 = sphi 0, %s169
      %s187 = sphi 0, %s187
      %s189 = sphi 0, %s187
      %s190 = sphi 0, %s189
      %s204 = sphi 0, %s190
      %s208 = sphi 0, %s208
      %s210 = sphi 0, %s208
      %s211 = sphi 0, %s210
      %s225 = sphi 0, %s211
      %s229 = sphi 0, %s229
      %s231 = sphi 0, %s229
      %s232 = sphi 0, %s231
      %s246 = sphi 0, %s232
      %s250 = sphi 0, %s250
      %s252 = sphi 0, %s250
      %s253 = sphi 0, %s252
      %s267 = sphi 0, %s253
      %s271 = sphi 0, %s271
      %s273 = sphi 0, %s271
      %s274 = sphi 0, %s273
      %s288 = sphi 0, %s274
      %s292 = sphi 0, %s292
      %s294 = sphi 0, %s292
      %s295 = sphi 0, %s294
      %s309 = sphi 0, %s295
      %s313 = sphi 0, %s313
      %s315 = sphi 0, %s313
      %s316 = sphi 0, %s315
      %s330 = sphi 0, %s316
      %s334 = sphi 0, %s334
      %s336 = sphi 0, %s334
      %s337 = sphi 0, %s336
      %s351 = sphi 0, %s337
      %s355 = sphi 0, %s355
      %s357 = sphi 0, %s355
      %s358 = sphi 0, %s357
      %s372 = sphi 0, %s358
      %s376 = sphi 0, %s376
      %s378 = sphi 0, %s376
      %s379 = sphi 0, %s378
      %s393 = sphi 0, %s379
      %s397 = sphi 0, %s397
      %s399 = sphi 0, %s397
      %s400 = sphi 0, %s399
      %s414 = sphi 0, %s400
      %s418 = sphi 0, %s418
      %s420 = sphi 0, %s418
      %s421 = sphi 0, %s420
      %s435 = sphi 0, %s421
      %s439 = sphi 0, %s439
      %s441 = sphi 0, %s439
      %s442 = sphi 0, %s441
      %s456 = sphi 0, %s442
      %s460 = sphi 0, %s460
      %s462 = sphi 0, %s460
      %s463 = sphi 0, %s462
      %s477 = sphi 0, %s463
      %s481 = sphi 0, %s481
      %s483 = sphi 0, %s481
      %s484 = sphi 0, %s483
      %s498 = sphi 0, %s484
      %s504 = sphi 0, %s506
      %s507 = sphi 0, %s504
      %s508 = sphi 0, %s507
      %s524 = sphi 0, %s508
      %s530 = sphi 0, %s532
      %s533 = sphi 0, %s530
      %s534 = sphi 0, %s533
      %s550 = sphi 0, %s534
    $region4: #{forward.1} parent=1 // loop_header_branch
      %51 = sbr.rel (%p49) target = $region8
    $region5: #{forward.1} parent=1 // loop_body
      %s53 = ssub.s32 %s48, 1
      %s54 = ssub.s32 %s48, 2
      %s55 = sadd.s32 %s48, 1
      %s56 = ssub.s32 %s48, %s55
      %p57 = scmp.eq.s32.totalorder %s56, 0
      %s59 = sadd.s32 %s58, 1
      %s60 = scalar_select %p57, %s58, %s59
      %p63 = pneg %p57
      %p64 = scmp.eq.s32.totalorder %s48, 1
      %p65 = por %p63, %p64
      %p66 = scmp.ne.s32.totalorder %s58, %s61
      %p67 = scmp.eq.s32.totalorder %s48, 0
      %p68 = por %p66, %p67
      %p69 = scmp.ne.s32.totalorder %s58, %s61
      %p70 = scmp.eq.s32.totalorder %s53, 1
      %p71 = por %p69, %p70
      %p72 = scmp.ne.s32.totalorder %s61, %s62
      %p73 = scmp.eq.s32.totalorder %s53, 0
      %p74 = por %p72, %p73
      %p75 = scmp.ne.s32.totalorder %s61, %s62
      %p76 = scmp.eq.s32.totalorder %s54, 1
      %p77 = por %p75, %p76
      %p79 = scmp.ne.s32.totalorder %s62, %s78
      %p80 = scmp.eq.s32.totalorder %s54, 0
      %p81 = por %p79, %p80
      %s83 = sadd.s32 %s82, 1
      %p86 = scmp.eq.s32.totalorder %s48, 1
      %p87 = scmp.ne.s32.totalorder %s82, %s84
      %p88 = scmp.eq.s32.totalorder %s48, 0
      %p89 = por %p87, %p88
      %p90 = scmp.ne.s32.totalorder %s82, %s84
      %p91 = scmp.eq.s32.totalorder %s53, 1
      %p92 = por %p90, %p91
      %p93 = scmp.ne.s32.totalorder %s84, %s85
      %p94 = scmp.eq.s32.totalorder %s53, 0
      %p95 = por %p93, %p94
      %p96 = scmp.ne.s32.totalorder %s84, %s85
      %p97 = scmp.eq.s32.totalorder %s54, 1
      %p98 = por %p96, %p97
      %p100 = scmp.ne.s32.totalorder %s85, %s99
      %p101 = scmp.eq.s32.totalorder %s54, 0
      %p102 = por %p100, %p101
      %s104 = sadd.s32 %s103, 1
      %p107 = scmp.eq.s32.totalorder %s48, 1
      %p108 = scmp.ne.s32.totalorder %s103, %s105
      %p109 = scmp.eq.s32.totalorder %s48, 0
      %p110 = por %p108, %p109
      %p111 = scmp.ne.s32.totalorder %s103, %s105
      %p112 = scmp.eq.s32.totalorder %s53, 1
      %p113 = por %p111, %p112
      %p114 = scmp.ne.s32.totalorder %s105, %s106
      %p115 = scmp.eq.s32.totalorder %s53, 0
      %p116 = por %p114, %p115
      %p117 = scmp.ne.s32.totalorder %s105, %s106
      %p118 = scmp.eq.s32.totalorder %s54, 1
      %p119 = por %p117, %p118
      %p121 = scmp.ne.s32.totalorder %s106, %s120
      %p122 = scmp.eq.s32.totalorder %s54, 0
      %p123 = por %p121, %p122
      %s125 = sadd.s32 %s124, 1
      %p128 = scmp.eq.s32.totalorder %s48, 1
      %p129 = scmp.ne.s32.totalorder %s124, %s126
      %p130 = scmp.eq.s32.totalorder %s48, 0
      %p131 = por %p129, %p130
      %p132 = scmp.ne.s32.totalorder %s124, %s126
      %p133 = scmp.eq.s32.totalorder %s53, 1
      %p134 = por %p132, %p133
      %p135 = scmp.ne.s32.totalorder %s126, %s127
      %p136 = scmp.eq.s32.totalorder %s53, 0
      %p137 = por %p135, %p136
      %p138 = scmp.ne.s32.totalorder %s126, %s127
      %p139 = scmp.eq.s32.totalorder %s54, 1
      %p140 = por %p138, %p139
      %p142 = scmp.ne.s32.totalorder %s127, %s141
      %p143 = scmp.eq.s32.totalorder %s54, 0
      %p144 = por %p142, %p143
      %s146 = sadd.s32 %s145, 1
      %p149 = scmp.eq.s32.totalorder %s48, 1
      %p150 = scmp.ne.s32.totalorder %s145, %s147
      %p151 = scmp.eq.s32.totalorder %s48, 0
      %p152 = por %p150, %p151
      %p153 = scmp.ne.s32.totalorder %s145, %s147
      %p154 = scmp.eq.s32.totalorder %s53, 1
      %p155 = por %p153, %p154
      %p156 = scmp.ne.s32.totalorder %s147, %s148
      %p157 = scmp.eq.s32.totalorder %s53, 0
      %p158 = por %p156, %p157
      %p159 = scmp.ne.s32.totalorder %s147, %s148
      %p160 = scmp.eq.s32.totalorder %s54, 1
      %p161 = por %p159, %p160
      %p163 = scmp.ne.s32.totalorder %s148, %s162
      %p164 = scmp.eq.s32.totalorder %s54, 0
      %p165 = por %p163, %p164
      %s167 = sadd.s32 %s166, 1
      %p170 = scmp.eq.s32.totalorder %s48, 1
      %p171 = scmp.ne.s32.totalorder %s166, %s168
      %p172 = scmp.eq.s32.totalorder %s48, 0
      %p173 = por %p171, %p172
      %p174 = scmp.ne.s32.totalorder %s166, %s168
      %p175 = scmp.eq.s32.totalorder %s53, 1
      %p176 = por %p174, %p175
      %p177 = scmp.ne.s32.totalorder %s168, %s169
      %p178 = scmp.eq.s32.totalorder %s53, 0
      %p179 = por %p177, %p178
      %p180 = scmp.ne.s32.totalorder %s168, %s169
      %p181 = scmp.eq.s32.totalorder %s54, 1
      %p182 = por %p180, %p181
      %p184 = scmp.ne.s32.totalorder %s169, %s183
      %p185 = scmp.eq.s32.totalorder %s54, 0
      %p186 = por %p184, %p185
      %s188 = sadd.s32 %s187, 1
      %p191 = scmp.eq.s32.totalorder %s48, 1
      %p192 = scmp.ne.s32.totalorder %s187, %s189
      %p193 = scmp.eq.s32.totalorder %s48, 0
      %p194 = por %p192, %p193
      %p195 = scmp.ne.s32.totalorder %s187, %s189
      %p196 = scmp.eq.s32.totalorder %s53, 1
      %p197 = por %p195, %p196
      %p198 = scmp.ne.s32.totalorder %s189, %s190
      %p199 = scmp.eq.s32.totalorder %s53, 0
      %p200 = por %p198, %p199
      %p201 = scmp.ne.s32.totalorder %s189, %s190
      %p202 = scmp.eq.s32.totalorder %s54, 1
      %p203 = por %p201, %p202
      %p205 = scmp.ne.s32.totalorder %s190, %s204
      %p206 = scmp.eq.s32.totalorder %s54, 0
      %p207 = por %p205, %p206
      %s209 = sadd.s32 %s208, 1
      %p212 = scmp.eq.s32.totalorder %s48, 1
      %p213 = scmp.ne.s32.totalorder %s208, %s210
      %p214 = scmp.eq.s32.totalorder %s48, 0
      %p215 = por %p213, %p214
      %p216 = scmp.ne.s32.totalorder %s208, %s210
      %p217 = scmp.eq.s32.totalorder %s53, 1
      %p218 = por %p216, %p217
      %p219 = scmp.ne.s32.totalorder %s210, %s211
      %p220 = scmp.eq.s32.totalorder %s53, 0
      %p221 = por %p219, %p220
      %p222 = scmp.ne.s32.totalorder %s210, %s211
      %p223 = scmp.eq.s32.totalorder %s54, 1
      %p224 = por %p222, %p223
      %p226 = scmp.ne.s32.totalorder %s211, %s225
      %p227 = scmp.eq.s32.totalorder %s54, 0
      %p228 = por %p226, %p227
      %s230 = sadd.s32 %s229, 1
      %p233 = scmp.eq.s32.totalorder %s48, 1
      %p234 = scmp.ne.s32.totalorder %s229, %s231
      %p235 = scmp.eq.s32.totalorder %s48, 0
      %p236 = por %p234, %p235
      %p237 = scmp.ne.s32.totalorder %s229, %s231
      %p238 = scmp.eq.s32.totalorder %s53, 1
      %p239 = por %p237, %p238
      %p240 = scmp.ne.s32.totalorder %s231, %s232
      %p241 = scmp.eq.s32.totalorder %s53, 0
      %p242 = por %p240, %p241
      %p243 = scmp.ne.s32.totalorder %s231, %s232
      %p244 = scmp.eq.s32.totalorder %s54, 1
      %p245 = por %p243, %p244
      %p247 = scmp.ne.s32.totalorder %s232, %s246
      %p248 = scmp.eq.s32.totalorder %s54, 0
      %p249 = por %p247, %p248
      %s251 = sadd.s32 %s250, 1
      %p254 = scmp.eq.s32.totalorder %s48, 1
      %p255 = scmp.ne.s32.totalorder %s250, %s252
      %p256 = scmp.eq.s32.totalorder %s48, 0
      %p257 = por %p255, %p256
      %p258 = scmp.ne.s32.totalorder %s250, %s252
      %p259 = scmp.eq.s32.totalorder %s53, 1
      %p260 = por %p258, %p259
      %p261 = scmp.ne.s32.totalorder %s252, %s253
      %p262 = scmp.eq.s32.totalorder %s53, 0
      %p263 = por %p261, %p262
      %p264 = scmp.ne.s32.totalorder %s252, %s253
      %p265 = scmp.eq.s32.totalorder %s54, 1
      %p266 = por %p264, %p265
      %p268 = scmp.ne.s32.totalorder %s253, %s267
      %p269 = scmp.eq.s32.totalorder %s54, 0
      %p270 = por %p268, %p269
      %s272 = sadd.s32 %s271, 1
      %p275 = scmp.eq.s32.totalorder %s48, 1
      %p276 = scmp.ne.s32.totalorder %s271, %s273
      %p277 = scmp.eq.s32.totalorder %s48, 0
      %p278 = por %p276, %p277
      %p279 = scmp.ne.s32.totalorder %s271, %s273
      %p280 = scmp.eq.s32.totalorder %s53, 1
      %p281 = por %p279, %p280
      %p282 = scmp.ne.s32.totalorder %s273, %s274
      %p283 = scmp.eq.s32.totalorder %s53, 0
      %p284 = por %p282, %p283
      %p285 = scmp.ne.s32.totalorder %s273, %s274
      %p286 = scmp.eq.s32.totalorder %s54, 1
      %p287 = por %p285, %p286
      %p289 = scmp.ne.s32.totalorder %s274, %s288
      %p290 = scmp.eq.s32.totalorder %s54, 0
      %p291 = por %p289, %p290
      %s293 = sadd.s32 %s292, 1
      %p296 = scmp.eq.s32.totalorder %s48, 1
      %p297 = scmp.ne.s32.totalorder %s292, %s294
      %p298 = scmp.eq.s32.totalorder %s48, 0
      %p299 = por %p297, %p298
      %p300 = scmp.ne.s32.totalorder %s292, %s294
      %p301 = scmp.eq.s32.totalorder %s53, 1
      %p302 = por %p300, %p301
      %p303 = scmp.ne.s32.totalorder %s294, %s295
      %p304 = scmp.eq.s32.totalorder %s53, 0
      %p305 = por %p303, %p304
      %p306 = scmp.ne.s32.totalorder %s294, %s295
      %p307 = scmp.eq.s32.totalorder %s54, 1
      %p308 = por %p306, %p307
      %p310 = scmp.ne.s32.totalorder %s295, %s309
      %p311 = scmp.eq.s32.totalorder %s54, 0
      %p312 = por %p310, %p311
      %s314 = sadd.s32 %s313, 1
      %p317 = scmp.eq.s32.totalorder %s48, 1
      %p318 = scmp.ne.s32.totalorder %s313, %s315
      %p319 = scmp.eq.s32.totalorder %s48, 0
      %p320 = por %p318, %p319
      %p321 = scmp.ne.s32.totalorder %s313, %s315
      %p322 = scmp.eq.s32.totalorder %s53, 1
      %p323 = por %p321, %p322
      %p324 = scmp.ne.s32.totalorder %s315, %s316
      %p325 = scmp.eq.s32.totalorder %s53, 0
      %p326 = por %p324, %p325
      %p327 = scmp.ne.s32.totalorder %s315, %s316
      %p328 = scmp.eq.s32.totalorder %s54, 1
      %p329 = por %p327, %p328
      %p331 = scmp.ne.s32.totalorder %s316, %s330
      %p332 = scmp.eq.s32.totalorder %s54, 0
      %p333 = por %p331, %p332
      %s335 = sadd.s32 %s334, 1
      %p338 = scmp.eq.s32.totalorder %s48, 1
      %p339 = scmp.ne.s32.totalorder %s334, %s336
      %p340 = scmp.eq.s32.totalorder %s48, 0
      %p341 = por %p339, %p340
      %p342 = scmp.ne.s32.totalorder %s334, %s336
      %p343 = scmp.eq.s32.totalorder %s53, 1
      %p344 = por %p342, %p343
      %p345 = scmp.ne.s32.totalorder %s336, %s337
      %p346 = scmp.eq.s32.totalorder %s53, 0
      %p347 = por %p345, %p346
      %p348 = scmp.ne.s32.totalorder %s336, %s337
      %p349 = scmp.eq.s32.totalorder %s54, 1
      %p350 = por %p348, %p349
      %p352 = scmp.ne.s32.totalorder %s337, %s351
      %p353 = scmp.eq.s32.totalorder %s54, 0
      %p354 = por %p352, %p353
      %s356 = sadd.s32 %s355, 1
      %p359 = scmp.eq.s32.totalorder %s48, 1
      %p360 = scmp.ne.s32.totalorder %s355, %s357
      %p361 = scmp.eq.s32.totalorder %s48, 0
      %p362 = por %p360, %p361
      %p363 = scmp.ne.s32.totalorder %s355, %s357
      %p364 = scmp.eq.s32.totalorder %s53, 1
      %p365 = por %p363, %p364
      %p366 = scmp.ne.s32.totalorder %s357, %s358
      %p367 = scmp.eq.s32.totalorder %s53, 0
      %p368 = por %p366, %p367
      %p369 = scmp.ne.s32.totalorder %s357, %s358
      %p370 = scmp.eq.s32.totalorder %s54, 1
      %p371 = por %p369, %p370
      %p373 = scmp.ne.s32.totalorder %s358, %s372
      %p374 = scmp.eq.s32.totalorder %s54, 0
      %p375 = por %p373, %p374
      %s377 = sadd.s32 %s376, 1
      %p380 = scmp.eq.s32.totalorder %s48, 1
      %p381 = scmp.ne.s32.totalorder %s376, %s378
      %p382 = scmp.eq.s32.totalorder %s48, 0
      %p383 = por %p381, %p382
      %p384 = scmp.ne.s32.totalorder %s376, %s378
      %p385 = scmp.eq.s32.totalorder %s53, 1
      %p386 = por %p384, %p385
      %p387 = scmp.ne.s32.totalorder %s378, %s379
      %p388 = scmp.eq.s32.totalorder %s53, 0
      %p389 = por %p387, %p388
      %p390 = scmp.ne.s32.totalorder %s378, %s379
      %p391 = scmp.eq.s32.totalorder %s54, 1
      %p392 = por %p390, %p391
      %p394 = scmp.ne.s32.totalorder %s379, %s393
      %p395 = scmp.eq.s32.totalorder %s54, 0
      %p396 = por %p394, %p395
      %s398 = sadd.s32 %s397, 1
      %p401 = scmp.eq.s32.totalorder %s48, 1
      %p402 = scmp.ne.s32.totalorder %s397, %s399
      %p403 = scmp.eq.s32.totalorder %s48, 0
      %p404 = por %p402, %p403
      %p405 = scmp.ne.s32.totalorder %s397, %s399
      %p406 = scmp.eq.s32.totalorder %s53, 1
      %p407 = por %p405, %p406
      %p408 = scmp.ne.s32.totalorder %s399, %s400
      %p409 = scmp.eq.s32.totalorder %s53, 0
      %p410 = por %p408, %p409
      %p411 = scmp.ne.s32.totalorder %s399, %s400
      %p412 = scmp.eq.s32.totalorder %s54, 1
      %p413 = por %p411, %p412
      %p415 = scmp.ne.s32.totalorder %s400, %s414
      %p416 = scmp.eq.s32.totalorder %s54, 0
      %p417 = por %p415, %p416
      %s419 = sadd.s32 %s418, 1
      %p422 = scmp.eq.s32.totalorder %s48, 1
      %p423 = scmp.ne.s32.totalorder %s418, %s420
      %p424 = scmp.eq.s32.totalorder %s48, 0
      %p425 = por %p423, %p424
      %p426 = scmp.ne.s32.totalorder %s418, %s420
      %p427 = scmp.eq.s32.totalorder %s53, 1
      %p428 = por %p426, %p427
      %p429 = scmp.ne.s32.totalorder %s420, %s421
      %p430 = scmp.eq.s32.totalorder %s53, 0
      %p431 = por %p429, %p430
      %p432 = scmp.ne.s32.totalorder %s420, %s421
      %p433 = scmp.eq.s32.totalorder %s54, 1
      %p434 = por %p432, %p433
      %p436 = scmp.ne.s32.totalorder %s421, %s435
      %p437 = scmp.eq.s32.totalorder %s54, 0
      %p438 = por %p436, %p437
      %s440 = sadd.s32 %s439, 1
      %p443 = scmp.eq.s32.totalorder %s48, 1
      %p444 = scmp.ne.s32.totalorder %s439, %s441
      %p445 = scmp.eq.s32.totalorder %s48, 0
      %p446 = por %p444, %p445
      %p447 = scmp.ne.s32.totalorder %s439, %s441
      %p448 = scmp.eq.s32.totalorder %s53, 1
      %p449 = por %p447, %p448
      %p450 = scmp.ne.s32.totalorder %s441, %s442
      %p451 = scmp.eq.s32.totalorder %s53, 0
      %p452 = por %p450, %p451
      %p453 = scmp.ne.s32.totalorder %s441, %s442
      %p454 = scmp.eq.s32.totalorder %s54, 1
      %p455 = por %p453, %p454
      %p457 = scmp.ne.s32.totalorder %s442, %s456
      %p458 = scmp.eq.s32.totalorder %s54, 0
      %p459 = por %p457, %p458
      %s461 = sadd.s32 %s460, 1
      %p464 = scmp.eq.s32.totalorder %s48, 1
      %p465 = scmp.ne.s32.totalorder %s460, %s462
      %p466 = scmp.eq.s32.totalorder %s48, 0
      %p467 = por %p465, %p466
      %p468 = scmp.ne.s32.totalorder %s460, %s462
      %p469 = scmp.eq.s32.totalorder %s53, 1
      %p470 = por %p468, %p469
      %p471 = scmp.ne.s32.totalorder %s462, %s463
      %p472 = scmp.eq.s32.totalorder %s53, 0
      %p473 = por %p471, %p472
      %p474 = scmp.ne.s32.totalorder %s462, %s463
      %p475 = scmp.eq.s32.totalorder %s54, 1
      %p476 = por %p474, %p475
      %p478 = scmp.ne.s32.totalorder %s463, %s477
      %p479 = scmp.eq.s32.totalorder %s54, 0
      %p480 = por %p478, %p479
      %s482 = sadd.s32 %s481, 1
      %p485 = scmp.eq.s32.totalorder %s48, 1
      %p486 = scmp.ne.s32.totalorder %s481, %s483
      %p487 = scmp.eq.s32.totalorder %s48, 0
      %p488 = por %p486, %p487
      %p489 = scmp.ne.s32.totalorder %s481, %s483
      %p490 = scmp.eq.s32.totalorder %s53, 1
      %p491 = por %p489, %p490
      %p492 = scmp.ne.s32.totalorder %s483, %s484
      %p493 = scmp.eq.s32.totalorder %s53, 0
      %p494 = por %p492, %p493
      %p495 = scmp.ne.s32.totalorder %s483, %s484
      %p496 = scmp.eq.s32.totalorder %s54, 1
      %p497 = por %p495, %p496
      %p499 = scmp.ne.s32.totalorder %s484, %s498
      %p500 = scmp.eq.s32.totalorder %s54, 0
      %p501 = por %p499, %p500
      %s502 = ssub.s32 %s48, %s55
      %p503 = scmp.eq.s32.totalorder %s502, 0
      %s505 = sadd.s32 %s504, 1
      %s506 = scalar_select %p503, %s504, %s505
      %p509 = pneg %p503
      %p510 = scmp.eq.s32.totalorder %s48, 1
      %p511 = por %p509, %p510
      %p512 = scmp.ne.s32.totalorder %s504, %s507
      %p513 = scmp.eq.s32.totalorder %s48, 0
      %p514 = por %p512, %p513
      %p515 = scmp.ne.s32.totalorder %s504, %s507
      %p516 = scmp.eq.s32.totalorder %s53, 1
      %p517 = por %p515, %p516
      %p518 = scmp.ne.s32.totalorder %s507, %s508
      %p519 = scmp.eq.s32.totalorder %s53, 0
      %p520 = por %p518, %p519
      %p521 = scmp.ne.s32.totalorder %s507, %s508
      %p522 = scmp.eq.s32.totalorder %s54, 1
      %p523 = por %p521, %p522
      %p525 = scmp.ne.s32.totalorder %s508, %s524
      %p526 = scmp.eq.s32.totalorder %s54, 0
      %p527 = por %p525, %p526
      %s528 = ssub.s32 %s48, %s55
      %p529 = scmp.eq.s32.totalorder %s528, 0
      %s531 = sadd.s32 %s530, 1
      %s532 = scalar_select %p529, %s530, %s531
      %p535 = pneg %p529
      %p536 = scmp.eq.s32.totalorder %s48, 1
      %p537 = por %p535, %p536
      %p538 = scmp.ne.s32.totalorder %s530, %s533
      %p539 = scmp.eq.s32.totalorder %s48, 0
      %p540 = por %p538, %p539
      %p541 = scmp.ne.s32.totalorder %s530, %s533
      %p542 = scmp.eq.s32.totalorder %s53, 1
      %p543 = por %p541, %p542
      %p544 = scmp.ne.s32.totalorder %s533, %s534
      %p545 = scmp.eq.s32.totalorder %s53, 0
      %p546 = por %p544, %p545
      %p547 = scmp.ne.s32.totalorder %s533, %s534
      %p548 = scmp.eq.s32.totalorder %s54, 1
      %p549 = por %p547, %p548
      %p551 = scmp.ne.s32.totalorder %s534, %s550
      %p552 = scmp.eq.s32.totalorder %s54, 0
      %p553 = por %p551, %p552
      %p554 = scmp.le.s32.totalorder 1, %s48
      %p555 = scmp.lt.s32.totalorder %s48, 3
      %p556 = pnand %p554, %p555
      %p557 = pneg %p556
      // Predicated region
      $region9: #{forward.1} parent=5 // pred_check
        _
      $region10: #{forward.1} parent=5 // pred_check_branch
        %559 = sbr.rel (%p556) target = $region12
      $region11: #{forward.1} parent=5 // pred_region
        %s560 = ssub.s32 %s48, 1
        // Predicated region
        $region13: #{forward.1} parent=11 // pred_check
          %p561 = pneg %p95
        $region14: #{forward.1} parent=11 // pred_check_branch
          %563 = sbr.rel (%p561) target = $region16
        $region15: #{forward.1} parent=11 // pred_region
          %s565 = ssub.s32 6912, 6912
          %566 = vsyncadd [#allocation6], %s565
          %s567 = sshll.u32 [#allocation5], 4
          %s568 = int_to_ptr.vmem [resolvable:$true] %s567
          %573 = dma.hbm_to_vmem [thread:$0]  %s1, 6912, %s568, [#allocation6], 384, 384, 24
        $region16: #{forward.1} parent=11 // pred_fallthru
          _
        // Predicated region
        $region17: #{forward.1} parent=11 // pred_check
          %p574 = pneg %p116
        $region18: #{forward.1} parent=11 // pred_check_branch
          %576 = sbr.rel (%p574) target = $region20
        $region19: #{forward.1} parent=11 // pred_region
          %s578 = ssub.s32 288, 288
          %579 = vsyncadd [#allocation6], %s578
          %s580 = sshll.u32 [#allocation7], 4
          %s581 = int_to_ptr.vmem [resolvable:$true] %s580
          %586 = dma.hbm_to_vmem [thread:$0]  %s2, 288, %s581, [#allocation6], 96, 96, 6
        $region20: #{forward.1} parent=11 // pred_fallthru
          _
        // Predicated region
        $region21: #{forward.1} parent=11 // pred_check
          %p587 = pneg %p137
        $region22: #{forward.1} parent=11 // pred_check_branch
          %589 = sbr.rel (%p587) target = $region24
        $region23: #{forward.1} parent=11 // pred_region
          %s591 = ssub.s32 55296, 55296
          %592 = vsyncadd [#allocation9], %s591
          %s593 = sshll.u32 [#allocation8], 4
          %s594 = int_to_ptr.vmem [resolvable:$true] %s593
          %599 = dma.hbm_to_vmem [thread:$0]  %s3, 55296, %s594, [#allocation9], 192, 192, 12
        $region24: #{forward.1} parent=11 // pred_fallthru
          _
        // Predicated region
        $region25: #{forward.1} parent=11 // pred_check
          %p600 = pneg %p158
        $region26: #{forward.1} parent=11 // pred_check_branch
          %602 = sbr.rel (%p600) target = $region28
        $region27: #{forward.1} parent=11 // pred_region
          %s604 = ssub.s32 144, 144
          %605 = vsyncadd [#allocation9], %s604
          %s606 = sshll.u32 [#allocation10], 4
          %s607 = int_to_ptr.vmem [resolvable:$true] %s606
          %612 = dma.hbm_to_vmem [thread:$0]  %s4, 144, %s607, [#allocation9], 48, 48, 3
        $region28: #{forward.1} parent=11 // pred_fallthru
          _
        // Predicated region
        $region29: #{forward.1} parent=11 // pred_check
          %p613 = pneg %p179
        $region30: #{forward.1} parent=11 // pred_check_branch
          %615 = sbr.rel (%p613) target = $region32
        $region31: #{forward.1} parent=11 // pred_region
          %s617 = ssub.s32 768, 768
          %618 = vsyncadd [#allocation12], %s617
          %s619 = sshll.u32 [#allocation11], 4
          %s620 = int_to_ptr.vmem [resolvable:$true] %s619
          %625 = dma.hbm_to_vmem [thread:$0]  %s5, 768, %s620, [#allocation12], 256, 256, 16
        $region32: #{forward.1} parent=11 // pred_fallthru
          _
        // Predicated region
        $region33: #{forward.1} parent=11 // pred_check
          %p626 = pneg %p200
        $region34: #{forward.1} parent=11 // pred_check_branch
          %628 = sbr.rel (%p626) target = $region36
        $region35: #{forward.1} parent=11 // pred_region
          %s630 = ssub.s32 12288, 12288
          %631 = vsyncadd [#allocation12], %s630
          %s632 = sshll.u32 [#allocation13], 4
          %s633 = int_to_ptr.vmem [resolvable:$true] %s632
          %638 = dma.hbm_to_vmem [thread:$0]  %s6, 12288, %s633, [#allocation12], 384, 384, 24
        $region36: #{forward.1} parent=11 // pred_fallthru
          _
        // Predicated region
        $region37: #{forward.1} parent=11 // pred_check
          %p639 = pneg %p221
        $region38: #{forward.1} parent=11 // pred_check_branch
          %641 = sbr.rel (%p639) target = $region40
        $region39: #{forward.1} parent=11 // pred_region
          %s643 = ssub.s32 96, 96
          %644 = vsyncadd [#allocation15], %s643
          %s646 = sshll.u32 [#allocation14], 4
          %s647 = int_to_ptr.vmem [resolvable:$true] %s646
          %649 = dma.hbm_to_vmem [thread:$0]  %s7, 96, %s647, [#allocation15]
        $region40: #{forward.1} parent=11 // pred_fallthru
          _
        // Predicated region
        $region41: #{forward.1} parent=11 // pred_check
          %p650 = pneg %p242
        $region42: #{forward.1} parent=11 // pred_check_branch
          %652 = sbr.rel (%p650) target = $region44
        $region43: #{forward.1} parent=11 // pred_region
          %s654 = ssub.s32 4096, 4096
          %655 = vsyncadd [#allocation15], %s654
          %s656 = sshll.u32 [#allocation16], 4
          %s657 = int_to_ptr.vmem [resolvable:$true] %s656
          %662 = dma.hbm_to_vmem [thread:$0]  %s8, 4096, %s657, [#allocation15], 128, 128, 8
        $region44: #{forward.1} parent=11 // pred_fallthru
          _
        // Predicated region
        $region45: #{forward.1} parent=11 // pred_check
          %p663 = pneg %p263
        $region46: #{forward.1} parent=11 // pred_check_branch
          %665 = sbr.rel (%p663) target = $region48
        $region47: #{forward.1} parent=11 // pred_region
          %s667 = ssub.s32 32, 32
          %668 = vsyncadd [#allocation18], %s667
          %s670 = sshll.u32 [#allocation17], 4
          %s671 = int_to_ptr.vmem [resolvable:$true] %s670
          %673 = dma.hbm_to_vmem [thread:$0]  %s9, 32, %s671, [#allocation18]
        $region48: #{forward.1} parent=11 // pred_fallthru
          _
        // Predicated region
        $region49: #{forward.1} parent=11 // pred_check
          %p674 = pneg %p284
        $region50: #{forward.1} parent=11 // pred_check_branch
          %676 = sbr.rel (%p674) target = $region52
        $region51: #{forward.1} parent=11 // pred_region
          %s678 = ssub.s32 32, 32
          %679 = vsyncadd [#allocation18], %s678
          %s681 = sshll.u32 [#allocation19], 4
          %s682 = int_to_ptr.vmem [resolvable:$true] %s681
          %684 = dma.hbm_to_vmem [thread:$0]  %s10, 32, %s682, [#allocation18]
        $region52: #{forward.1} parent=11 // pred_fallthru
          _
        // Predicated region
        $region53: #{forward.1} parent=11 // pred_check
          %p685 = pneg %p305
        $region54: #{forward.1} parent=11 // pred_check_branch
          %687 = sbr.rel (%p685) target = $region56
        $region55: #{forward.1} parent=11 // pred_region
          %s689 = ssub.s32 32, 32
          %690 = vsyncadd [#allocation21], %s689
          %s692 = sshll.u32 [#allocation20], 4
          %s693 = int_to_ptr.vmem [resolvable:$true] %s692
          %695 = dma.hbm_to_vmem [thread:$0]  %s11, 32, %s693, [#allocation21]
        $region56: #{forward.1} parent=11 // pred_fallthru
          _
        // Predicated region
        $region57: #{forward.1} parent=11 // pred_check
          %p696 = pneg %p326
        $region58: #{forward.1} parent=11 // pred_check_branch
          %698 = sbr.rel (%p696) target = $region60
        $region59: #{forward.1} parent=11 // pred_region
          %s700 = ssub.s32 8192, 8192
          %701 = vsyncadd [#allocation21], %s700
          %s702 = sshll.u32 [#allocation22], 4
          %s703 = int_to_ptr.vmem [resolvable:$true] %s702
          %708 = dma.hbm_to_vmem [thread:$0]  %s12, 8192, %s703, [#allocation21], 256, 256, 16
        $region60: #{forward.1} parent=11 // pred_fallthru
          _
        // Predicated region
        $region61: #{forward.1} parent=11 // pred_check
          %p709 = pneg %p347
        $region62: #{forward.1} parent=11 // pred_check_branch
          %711 = sbr.rel (%p709) target = $region64
        $region63: #{forward.1} parent=11 // pred_region
          %s713 = ssub.s32 64, 64
          %714 = vsyncadd [#allocation24], %s713
          %s716 = sshll.u32 [#allocation23], 4
          %s717 = int_to_ptr.vmem [resolvable:$true] %s716
          %719 = dma.hbm_to_vmem [thread:$0]  %s13, 64, %s717, [#allocation24]
        $region64: #{forward.1} parent=11 // pred_fallthru
          _
        // Predicated region
        $region65: #{forward.1} parent=11 // pred_check
          %p720 = pneg %p368
        $region66: #{forward.1} parent=11 // pred_check_branch
          %722 = sbr.rel (%p720) target = $region68
        $region67: #{forward.1} parent=11 // pred_region
          %s724 = ssub.s32 8192, 8192
          %725 = vsyncadd [#allocation24], %s724
          %s726 = sshll.u32 [#allocation25], 4
          %s727 = int_to_ptr.vmem [resolvable:$true] %s726
          %732 = dma.hbm_to_vmem [thread:$0]  %s14, 8192, %s727, [#allocation24], 128, 128, 8
        $region68: #{forward.1} parent=11 // pred_fallthru
          _
        // Predicated region
        $region69: #{forward.1} parent=11 // pred_check
          %p733 = pneg %p389
        $region70: #{forward.1} parent=11 // pred_check_branch
          %735 = sbr.rel (%p733) target = $region72
        $region71: #{forward.1} parent=11 // pred_region
          %s737 = ssub.s32 32, 32
          %738 = vsyncadd [#allocation27], %s737
          %s740 = sshll.u32 [#allocation26], 4
          %s741 = int_to_ptr.vmem [resolvable:$true] %s740
          %743 = dma.hbm_to_vmem [thread:$0]  %s15, 32, %s741, [#allocation27]
        $region72: #{forward.1} parent=11 // pred_fallthru
          _
        // Predicated region
        $region73: #{forward.1} parent=11 // pred_check
          %p744 = pneg %p410
        $region74: #{forward.1} parent=11 // pred_check_branch
          %746 = sbr.rel (%p744) target = $region76
        $region75: #{forward.1} parent=11 // pred_region
          %s748 = ssub.s32 32, 32
          %749 = vsyncadd [#allocation27], %s748
          %s751 = sshll.u32 [#allocation28], 4
          %s752 = int_to_ptr.vmem [resolvable:$true] %s751
          %754 = dma.hbm_to_vmem [thread:$0]  %s16, 32, %s752, [#allocation27]
        $region76: #{forward.1} parent=11 // pred_fallthru
          _
        // Predicated region
        $region77: #{forward.1} parent=11 // pred_check
          %p755 = pneg %p431
        $region78: #{forward.1} parent=11 // pred_check_branch
          %757 = sbr.rel (%p755) target = $region80
        $region79: #{forward.1} parent=11 // pred_region
          %s759 = ssub.s32 32, 32
          %760 = vsyncadd [#allocation30], %s759
          %s762 = sshll.u32 [#allocation29], 4
          %s763 = int_to_ptr.vmem [resolvable:$true] %s762
          %765 = dma.hbm_to_vmem [thread:$0]  %s17, 32, %s763, [#allocation30]
        $region80: #{forward.1} parent=11 // pred_fallthru
          _
        // Predicated region
        $region81: #{forward.1} parent=11 // pred_check
          %p766 = pneg %p452
        $region82: #{forward.1} parent=11 // pred_check_branch
          %768 = sbr.rel (%p766) target = $region84
        $region83: #{forward.1} parent=11 // pred_region
          %s770 = ssub.s32 2048, 2048
          %771 = vsyncadd [#allocation30], %s770
          %s772 = sshll.u32 [#allocation31], 4
          %s773 = int_to_ptr.vmem [resolvable:$true] %s772
          %778 = dma.hbm_to_vmem [thread:$0]  %s18, 2048, %s773, [#allocation30], 64, 64, 4
        $region84: #{forward.1} parent=11 // pred_fallthru
          _
        // Predicated region
        $region85: #{forward.1} parent=11 // pred_check
          %p779 = pneg %p473
        $region86: #{forward.1} parent=11 // pred_check_branch
          %781 = sbr.rel (%p779) target = $region88
        $region87: #{forward.1} parent=11 // pred_region
          %s783 = ssub.s32 2048, 2048
          %784 = vsyncadd [#allocation33], %s783
          %s785 = sshll.u32 [#allocation32], 4
          %s786 = int_to_ptr.vmem [resolvable:$true] %s785
          %791 = dma.hbm_to_vmem [thread:$0]  %s19, 2048, %s786, [#allocation33], 64, 64, 4
        $region88: #{forward.1} parent=11 // pred_fallthru
          _
        // Predicated region
        $region89: #{forward.1} parent=11 // pred_check
          %p792 = pneg %p494
        $region90: #{forward.1} parent=11 // pred_check_branch
          %794 = sbr.rel (%p792) target = $region92
        $region91: #{forward.1} parent=11 // pred_region
          %s796 = ssub.s32 16, 16
          %797 = vsyncadd [#allocation33], %s796
          %s799 = sshll.u32 [#allocation34], 4
          %s800 = int_to_ptr.vmem [resolvable:$true] %s799
          %802 = dma.hbm_to_vmem [thread:$0]  %s20, 16, %s800, [#allocation33]
        $region92: #{forward.1} parent=11 // pred_fallthru
          _
      $region12: #{forward.1} parent=5 // pred_fallthru
        _
      %p803 = scmp.lt.s32.totalorder %s48, 2
      // Predicated region
      $region93: #{forward.1} parent=5 // pred_check
        %p804 = pneg %p803
      $region94: #{forward.1} parent=5 // pred_check_branch
        %806 = sbr.rel (%p804) target = $region96
      $region95: #{forward.1} parent=5 // pred_region
        // Predicated region
        $region97: #{forward.1} parent=95 // pred_check
          %p807 = pneg %p68
        $region98: #{forward.1} parent=95 // pred_check_branch
          %809 = sbr.rel (%p807) target = $region100
        $region99: #{forward.1} parent=95 // pred_region
          %s810 = sand.u32 %s58, 1
          %s811 = scalar_lea.sflag [#allocation3], %s810
          %s812 = sand.u32 %s58, 1
          %s813 = smul.addr %s812, 192
          %s814 = scalar_lea.vmem [#allocation2], %s813
          %s816 = ssub.s32 3072, 3072
          %817 = vsyncadd %s811, %s816
          %s818 = smul.addr %s48, 48
          %s819 = smul.addr %s818, 64
          %s820 = scalar_lea.hbm %s0, %s819
          %s821 = sshll.u32 %s814, 4
          %s822 = int_to_ptr.vmem [resolvable:$true] %s821
          %827 = dma.hbm_to_vmem [thread:$0]  %s820, 3072, %s822, %s811, 64, 64, 4
        $region100: #{forward.1} parent=95 // pred_fallthru
          _
      $region96: #{forward.1} parent=5 // pred_fallthru
        _
      %p828 = scmp.le.s32.totalorder 1, %s48
      %p829 = scmp.lt.s32.totalorder %s48, 3
      %p830 = pnand %p828, %p829
      %p831 = pneg %p830
      // Predicated region
      $region101: #{forward.1} parent=5 // pred_check
        _
      $region102: #{forward.1} parent=5 // pred_check_branch
        %833 = sbr.rel (%p830) target = $region104
      $region103: #{forward.1} parent=5 // pred_region
        %s834 = ssub.s32 %s48, 1
        %s835 = sand.u32 %s61, 1
        %s836 = scalar_lea.sflag [#allocation3], %s835
        %s837 = sand.u32 %s61, 1
        %s838 = smul.addr %s837, 192
        %s839 = scalar_lea.vmem [#allocation2], %s838
        // Predicated region
        $region105: #{forward.1} parent=103 // pred_check
          %p840 = pneg %p74
        $region106: #{forward.1} parent=103 // pred_check_branch
          %842 = sbr.rel (%p840) target = $region108
        $region107: #{forward.1} parent=103 // pred_region
          %843 = dma.done %s836, 3072
        $region108: #{forward.1} parent=103 // pred_fallthru
          _
        // Predicated region
        $region109: #{forward.1} parent=103 // pred_check
          %p844 = pneg %p95
        $region110: #{forward.1} parent=103 // pred_check_branch
          %846 = sbr.rel (%p844) target = $region112
        $region111: #{forward.1} parent=103 // pred_region
          %847 = dma.done [#allocation6], 6912
        $region112: #{forward.1} parent=103 // pred_fallthru
          _
        // Predicated region
        $region113: #{forward.1} parent=103 // pred_check
          %p848 = pneg %p116
        $region114: #{forward.1} parent=103 // pred_check_branch
          %850 = sbr.rel (%p848) target = $region116
        $region115: #{forward.1} parent=103 // pred_region
          %851 = dma.done [#allocation6], 288
        $region116: #{forward.1} parent=103 // pred_fallthru
          _
        // Predicated region
        $region117: #{forward.1} parent=103 // pred_check
          %p852 = pneg %p137
        $region118: #{forward.1} parent=103 // pred_check_branch
          %854 = sbr.rel (%p852) target = $region120
        $region119: #{forward.1} parent=103 // pred_region
          %855 = dma.done [#allocation9], 55296
        $region120: #{forward.1} parent=103 // pred_fallthru
          _
        // Predicated region
        $region121: #{forward.1} parent=103 // pred_check
          %p856 = pneg %p158
        $region122: #{forward.1} parent=103 // pred_check_branch
          %858 = sbr.rel (%p856) target = $region124
        $region123: #{forward.1} parent=103 // pred_region
          %859 = dma.done [#allocation9], 144
        $region124: #{forward.1} parent=103 // pred_fallthru
          _
        // Predicated region
        $region125: #{forward.1} parent=103 // pred_check
          %p860 = pneg %p179
        $region126: #{forward.1} parent=103 // pred_check_branch
          %862 = sbr.rel (%p860) target = $region128
        $region127: #{forward.1} parent=103 // pred_region
          %863 = dma.done [#allocation12], 768
        $region128: #{forward.1} parent=103 // pred_fallthru
          _
        // Predicated region
        $region129: #{forward.1} parent=103 // pred_check
          %p864 = pneg %p200
        $region130: #{forward.1} parent=103 // pred_check_branch
          %866 = sbr.rel (%p864) target = $region132
        $region131: #{forward.1} parent=103 // pred_region
          %867 = dma.done [#allocation12], 12288
        $region132: #{forward.1} parent=103 // pred_fallthru
          _
        // Predicated region
        $region133: #{forward.1} parent=103 // pred_check
          %p868 = pneg %p221
        $region134: #{forward.1} parent=103 // pred_check_branch
          %870 = sbr.rel (%p868) target = $region136
        $region135: #{forward.1} parent=103 // pred_region
          %871 = dma.done [#allocation15], 96
        $region136: #{forward.1} parent=103 // pred_fallthru
          _
        // Predicated region
        $region137: #{forward.1} parent=103 // pred_check
          %p872 = pneg %p242
        $region138: #{forward.1} parent=103 // pred_check_branch
          %874 = sbr.rel (%p872) target = $region140
        $region139: #{forward.1} parent=103 // pred_region
          %875 = dma.done [#allocation15], 4096
        $region140: #{forward.1} parent=103 // pred_fallthru
          _
        // Predicated region
        $region141: #{forward.1} parent=103 // pred_check
          %p876 = pneg %p263
        $region142: #{forward.1} parent=103 // pred_check_branch
          %878 = sbr.rel (%p876) target = $region144
        $region143: #{forward.1} parent=103 // pred_region
          %879 = dma.done [#allocation18], 32
        $region144: #{forward.1} parent=103 // pred_fallthru
          _
        // Predicated region
        $region145: #{forward.1} parent=103 // pred_check
          %p880 = pneg %p284
        $region146: #{forward.1} parent=103 // pred_check_branch
          %882 = sbr.rel (%p880) target = $region148
        $region147: #{forward.1} parent=103 // pred_region
          %883 = dma.done [#allocation18], 32
        $region148: #{forward.1} parent=103 // pred_fallthru
          _
        // Predicated region
        $region149: #{forward.1} parent=103 // pred_check
          %p884 = pneg %p305
        $region150: #{forward.1} parent=103 // pred_check_branch
          %886 = sbr.rel (%p884) target = $region152
        $region151: #{forward.1} parent=103 // pred_region
          %887 = dma.done [#allocation21], 32
        $region152: #{forward.1} parent=103 // pred_fallthru
          _
        // Predicated region
        $region153: #{forward.1} parent=103 // pred_check
          %p888 = pneg %p326
        $region154: #{forward.1} parent=103 // pred_check_branch
          %890 = sbr.rel (%p888) target = $region156
        $region155: #{forward.1} parent=103 // pred_region
          %891 = dma.done [#allocation21], 8192
        $region156: #{forward.1} parent=103 // pred_fallthru
          _
        // Predicated region
        $region157: #{forward.1} parent=103 // pred_check
          %p892 = pneg %p347
        $region158: #{forward.1} parent=103 // pred_check_branch
          %894 = sbr.rel (%p892) target = $region160
        $region159: #{forward.1} parent=103 // pred_region
          %895 = dma.done [#allocation24], 64
        $region160: #{forward.1} parent=103 // pred_fallthru
          _
        // Predicated region
        $region161: #{forward.1} parent=103 // pred_check
          %p896 = pneg %p368
        $region162: #{forward.1} parent=103 // pred_check_branch
          %898 = sbr.rel (%p896) target = $region164
        $region163: #{forward.1} parent=103 // pred_region
          %899 = dma.done [#allocation24], 8192
        $region164: #{forward.1} parent=103 // pred_fallthru
          _
        // Predicated region
        $region165: #{forward.1} parent=103 // pred_check
          %p900 = pneg %p389
        $region166: #{forward.1} parent=103 // pred_check_branch
          %902 = sbr.rel (%p900) target = $region168
        $region167: #{forward.1} parent=103 // pred_region
          %903 = dma.done [#allocation27], 32
        $region168: #{forward.1} parent=103 // pred_fallthru
          _
        // Predicated region
        $region169: #{forward.1} parent=103 // pred_check
          %p904 = pneg %p410
        $region170: #{forward.1} parent=103 // pred_check_branch
          %906 = sbr.rel (%p904) target = $region172
        $region171: #{forward.1} parent=103 // pred_region
          %907 = dma.done [#allocation27], 32
        $region172: #{forward.1} parent=103 // pred_fallthru
          _
        // Predicated region
        $region173: #{forward.1} parent=103 // pred_check
          %p908 = pneg %p431
        $region174: #{forward.1} parent=103 // pred_check_branch
          %910 = sbr.rel (%p908) target = $region176
        $region175: #{forward.1} parent=103 // pred_region
          %911 = dma.done [#allocation30], 32
        $region176: #{forward.1} parent=103 // pred_fallthru
          _
        // Predicated region
        $region177: #{forward.1} parent=103 // pred_check
          %p912 = pneg %p452
        $region178: #{forward.1} parent=103 // pred_check_branch
          %914 = sbr.rel (%p912) target = $region180
        $region179: #{forward.1} parent=103 // pred_region
          %915 = dma.done [#allocation30], 2048
        $region180: #{forward.1} parent=103 // pred_fallthru
          _
        // Predicated region
        $region181: #{forward.1} parent=103 // pred_check
          %p916 = pneg %p473
        $region182: #{forward.1} parent=103 // pred_check_branch
          %918 = sbr.rel (%p916) target = $region184
        $region183: #{forward.1} parent=103 // pred_region
          %919 = dma.done [#allocation33], 2048
        $region184: #{forward.1} parent=103 // pred_fallthru
          _
        // Predicated region
        $region185: #{forward.1} parent=103 // pred_check
          %p920 = pneg %p494
        $region186: #{forward.1} parent=103 // pred_check_branch
          %922 = sbr.rel (%p920) target = $region188
        $region187: #{forward.1} parent=103 // pred_region
          %923 = dma.done [#allocation33], 16
        $region188: #{forward.1} parent=103 // pred_fallthru
          _
        %s924 = sand.u32 %s61, 1
        %s925 = scalar_lea.sflag [#allocation3], %s924
        %s926 = sand.u32 %s61, 1
        %s927 = smul.addr %s926, 192
        %s928 = scalar_lea.vmem [#allocation2], %s927
        %p929 = pneg %p74
        %p930 = pneg %p71
        %p931 = pneg %p95
        %p932 = pneg %p92
        %p933 = pneg %p116
        %p934 = pneg %p113
        %p935 = pneg %p137
        %p936 = pneg %p134
        %p937 = pneg %p158
        %p938 = pneg %p155
        %p939 = pneg %p179
        %p940 = pneg %p176
        %p941 = pneg %p200
        %p942 = pneg %p197
        %p943 = pneg %p221
        %p944 = pneg %p218
        %p945 = pneg %p242
        %p946 = pneg %p239
        %p947 = pneg %p263
        %p948 = pneg %p260
        %p949 = pneg %p284
        %p950 = pneg %p281
        %p951 = pneg %p305
        %p952 = pneg %p302
        %p953 = pneg %p326
        %p954 = pneg %p323
        %p955 = pneg %p347
        %p956 = pneg %p344
        %p957 = pneg %p368
        %p958 = pneg %p365
        %p959 = pneg %p389
        %p960 = pneg %p386
        %p961 = pneg %p410
        %p962 = pneg %p407
        %p963 = pneg %p431
        %p964 = pneg %p428
        %p965 = pneg %p452
        %p966 = pneg %p449
        %p967 = pneg %p473
        %p968 = pneg %p470
        %p969 = pneg %p494
        %p970 = pneg %p491
        %p971 = pneg %p520
        %p972 = pneg %p517
        %s973 = sand.u32 %s507, 1
        %s974 = scalar_lea.sflag [#allocation4], %s973
        %s975 = sand.u32 %s507, 1
        %s976 = smul.addr %s975, 24
        %s977 = scalar_lea.vmem [#allocation35], %s976
        %p978 = pneg %p546
        %p979 = pneg %p543
        %s980 = sand.u32 %s533, 1
        %s981 = scalar_lea.sflag [#allocation37], %s980
        %s982 = sand.u32 %s533, 1
        %s983 = smul.addr %s982, 8
        %s984 = scalar_lea.vmem [#allocation36], %s983
        %v986 = vld [vmem:[%s839] sm:$0xf]
        %v987 = vld [vmem:[%s839 + $0x4] sm:$0xf]
        %v988 = vld [vmem:[%s839 + $0x8] sm:$0xf]
        %v989 = vld [vmem:[%s839 + $0xc] sm:$0xf]
        %v990 = vld [vmem:[%s839 + $0x10] sm:$0xf]
        %v991 = vld [vmem:[%s839 + $0x14] sm:$0xf]
        %v992 = vld [vmem:[%s839 + $0x18] sm:$0xf]
        %v993 = vld [vmem:[%s839 + $0x1c] sm:$0xf]
        %v994 = vld [vmem:[%s839 + $0x20] sm:$0xf]
        %v995 = vld [vmem:[%s839 + $0x24] sm:$0xf]
        %v996 = vld [vmem:[%s839 + $0x28] sm:$0xf]
        %v997 = vld [vmem:[%s839 + $0x2c] sm:$0xf]
        %v998 = vld [vmem:[%s839 + $0x30] sm:$0xf]
        %v999 = vld [vmem:[%s839 + $0x34] sm:$0xf]
        %v1000 = vld [vmem:[%s839 + $0x38] sm:$0xf]
        %v1001 = vld [vmem:[%s839 + $0x3c] sm:$0xf]
        %v1002 = vunpack.c.l.bf16 %v986
        %v1003 = vunpack.c.l.bf16 %v987
        %v1004 = vunpack.c.l.bf16 %v988
        %v1005 = vunpack.c.l.bf16 %v989
        %v1006 = vunpack.c.l.bf16 %v990
        %v1007 = vunpack.c.l.bf16 %v991
        %v1008 = vunpack.c.l.bf16 %v992
        %v1009 = vunpack.c.l.bf16 %v993
        %v1010 = vunpack.c.l.bf16 %v994
        %v1011 = vunpack.c.l.bf16 %v995
        %v1012 = vunpack.c.l.bf16 %v996
        %v1013 = vunpack.c.l.bf16 %v997
        %v1014 = vunpack.c.l.bf16 %v998
        %v1015 = vunpack.c.l.bf16 %v999
        %v1016 = vunpack.c.l.bf16 %v1000
        %v1017 = vunpack.c.l.bf16 %v1001
        %vm1018 = vcmask 392192
        %v1019 = vsel %vm1018, %v1002, 0.0
        %v1020 = vsel %vm1018, %v1003, 0.0
        %v1021 = vadd.f32 %v1019, %v1020
        %v1022 = vrot.slane %v1021, 4
        %v1023 = vadd.f32 %v1021, %v1022
        %v1024 = vrot.slane %v1023, 2
        %v1025 = vadd.f32 %v1023, %v1024
        %v1026 = vrot.slane %v1025, 1
        %v1027 = vadd.f32 %v1025, %v1026
        %v1028 = vsel %vm1018, %v1004, 0.0
        %v1029 = vsel %vm1018, %v1005, 0.0
        %v1030 = vadd.f32 %v1028, %v1029
        %v1031 = vrot.slane %v1030, 4
        %v1032 = vadd.f32 %v1030, %v1031
        %v1033 = vrot.slane %v1032, 2
        %v1034 = vadd.f32 %v1032, %v1033
        %v1035 = vrot.slane %v1034, 1
        %v1036 = vadd.f32 %v1034, %v1035
        %v1037 = vsel %vm1018, %v1006, 0.0
        %v1038 = vsel %vm1018, %v1007, 0.0
        %v1039 = vadd.f32 %v1037, %v1038
        %v1040 = vrot.slane %v1039, 4
        %v1041 = vadd.f32 %v1039, %v1040
        %v1042 = vrot.slane %v1041, 2
        %v1043 = vadd.f32 %v1041, %v1042
        %v1044 = vrot.slane %v1043, 1
        %v1045 = vadd.f32 %v1043, %v1044
        %v1046 = vsel %vm1018, %v1008, 0.0
        %v1047 = vsel %vm1018, %v1009, 0.0
        %v1048 = vadd.f32 %v1046, %v1047
        %v1049 = vrot.slane %v1048, 4
        %v1050 = vadd.f32 %v1048, %v1049
        %v1051 = vrot.slane %v1050, 2
        %v1052 = vadd.f32 %v1050, %v1051
        %v1053 = vrot.slane %v1052, 1
        %v1054 = vadd.f32 %v1052, %v1053
        %v1055 = vsel %vm1018, %v1010, 0.0
        %v1056 = vsel %vm1018, %v1011, 0.0
        %v1057 = vadd.f32 %v1055, %v1056
        %v1058 = vrot.slane %v1057, 4
        %v1059 = vadd.f32 %v1057, %v1058
        %v1060 = vrot.slane %v1059, 2
        %v1061 = vadd.f32 %v1059, %v1060
        %v1062 = vrot.slane %v1061, 1
        %v1063 = vadd.f32 %v1061, %v1062
        %v1064 = vsel %vm1018, %v1012, 0.0
        %v1065 = vsel %vm1018, %v1013, 0.0
        %v1066 = vadd.f32 %v1064, %v1065
        %v1067 = vrot.slane %v1066, 4
        %v1068 = vadd.f32 %v1066, %v1067
        %v1069 = vrot.slane %v1068, 2
        %v1070 = vadd.f32 %v1068, %v1069
        %v1071 = vrot.slane %v1070, 1
        %v1072 = vadd.f32 %v1070, %v1071
        %v1073 = vsel %vm1018, %v1014, 0.0
        %v1074 = vsel %vm1018, %v1015, 0.0
        %v1075 = vadd.f32 %v1073, %v1074
        %v1076 = vrot.slane %v1075, 4
        %v1077 = vadd.f32 %v1075, %v1076
        %v1078 = vrot.slane %v1077, 2
        %v1079 = vadd.f32 %v1077, %v1078
        %v1080 = vrot.slane %v1079, 1
        %v1081 = vadd.f32 %v1079, %v1080
        %v1082 = vsel %vm1018, %v1016, 0.0
        %v1083 = vsel %vm1018, %v1017, 0.0
        %v1084 = vadd.f32 %v1082, %v1083
        %v1085 = vrot.slane %v1084, 4
        %v1086 = vadd.f32 %v1084, %v1085
        %v1087 = vrot.slane %v1086, 2
        %v1088 = vadd.f32 %v1086, %v1087
        %v1089 = vrot.slane %v1088, 1
        %v1090 = vadd.f32 %v1088, %v1089
        %v1091 = vrcp.pop 16.0
        %v1092 = vmul.f32 %v1027, %v1091
        %v1093 = vmul.f32 %v1036, %v1091
        %v1094 = vmul.f32 %v1045, %v1091
        %v1095 = vmul.f32 %v1054, %v1091
        %v1096 = vmul.f32 %v1063, %v1091
        %v1097 = vmul.f32 %v1072, %v1091
        %v1098 = vmul.f32 %v1081, %v1091
        %v1099 = vmul.f32 %v1090, %v1091
        %v1100 = vmul.f32 %v1092, 0.003921569
        %v1101 = vmul.f32 %v1093, 0.003921569
        %v1102 = vmul.f32 %v1094, 0.003921569
        %v1103 = vmul.f32 %v1095, 0.003921569
        %v1104 = vmul.f32 %v1096, 0.003921569
        %v1105 = vmul.f32 %v1097, 0.003921569
        %v1106 = vmul.f32 %v1098, 0.003921569
        %v1107 = vmul.f32 %v1099, 0.003921569
        %v1108 = vpack.c.bf16 %v1100, %v1100
        %v1109 = vpack.c.bf16 %v1101, %v1101
        %v1110 = vpack.c.bf16 %v1102, %v1102
        %v1111 = vpack.c.bf16 %v1103, %v1103
        %v1112 = vpack.c.bf16 %v1104, %v1104
        %v1113 = vpack.c.bf16 %v1105, %v1105
        %v1114 = vpack.c.bf16 %v1106, %v1106
        %v1115 = vpack.c.bf16 %v1107, %v1107
        %v1116 = vld [vmem:[#allocation5] sm:$0xff]
        %v1117 = vld [vmem:[#allocation5 + $0x8] sm:$0xff]
        %v1118 = vld [vmem:[#allocation5 + $0x10] sm:$0xff]
        %v1119 = vld [vmem:[#allocation5 + $0x18] sm:$0xff]
        %v1120 = vld [vmem:[#allocation5 + $0x20] sm:$0xff]
        %v1121 = vld [vmem:[#allocation5 + $0x28] sm:$0xff]
        %v1122 = vld [vmem:[#allocation5 + $0x30] sm:$0xff]
        %v1123 = vld [vmem:[#allocation5 + $0x38] sm:$0xff]
        %v1124 = vld [vmem:[#allocation5 + $0x40] sm:$0xff]
        %v1125 = vld [vmem:[#allocation5 + $0x48] sm:$0xff]
        %v1126 = vld [vmem:[#allocation5 + $0x50] sm:$0xff]
        %v1127 = vld [vmem:[#allocation5 + $0x58] sm:$0xff]
        %v1128 = vld [vmem:[#allocation5 + $0x60] sm:$0xff]
        %v1129 = vld [vmem:[#allocation5 + $0x68] sm:$0xff]
        %v1130 = vld [vmem:[#allocation5 + $0x70] sm:$0xff]
        %v1131 = vld [vmem:[#allocation5 + $0x78] sm:$0xff]
        %v1132 = vld [vmem:[#allocation5 + $0x80] sm:$0xff]
        %v1133 = vld [vmem:[#allocation5 + $0x88] sm:$0xff]
        %v1134 = vld [vmem:[#allocation7] sm:$0x3f]
        %v1136 = vlaneseq
        %v1137 = vshrl.u32 %v1136, 7
        %v1138 = vsub.s32 0, %v1137
        %v1139 = vrot.slane %v1134, %v1138
        %v1140 = vlaneseq
        %v1141 = vshrl.u32 %v1140, 7
        %v1142 = vsub.s32 1, %v1141
        %v1143 = vrot.slane %v1134, %v1142
        %v1144 = vlaneseq
        %v1145 = vshrl.u32 %v1144, 7
        %v1146 = vsub.s32 2, %v1145
        %v1147 = vrot.slane %v1134, %v1146
        %v1148 = vlaneseq
        %v1149 = vshrl.u32 %v1148, 7
        %v1150 = vsub.s32 3, %v1149
        %v1151 = vrot.slane %v1134, %v1150
        %v1152 = vlaneseq
        %v1153 = vshrl.u32 %v1152, 7
        %v1154 = vsub.s32 4, %v1153
        %v1155 = vrot.slane %v1134, %v1154
        %v1156 = vlaneseq
        %v1157 = vshrl.u32 %v1156, 7
        %v1158 = vsub.s32 5, %v1157
        %v1159 = vrot.slane %v1134, %v1158
        %v1174 = vunpack.c.l.b16 %v1108
        %v1175 = vunpack.c.l.b16 %v1109
        %v1176 = vunpack.c.l.b16 %v1110
        %v1177 = vunpack.c.l.b16 %v1111
        %v1178 = vunpack.c.l.b16 %v1112
        %v1179 = vunpack.c.l.b16 %v1113
        %v1180 = vunpack.c.l.b16 %v1114
        %v1181 = vunpack.c.l.b16 %v1115
        %vm1182 = vcmask 1041409
        %v1183 = vsel %vm1182, %v1175, %v1174
        %vm1184 = vcmask 1042434
        %v1185 = vsel %vm1184, %v1176, %v1183
        %vm1186 = vcmask 1043459
        %v1187 = vsel %vm1186, %v1177, %v1185
        %vm1188 = vcmask 1044484
        %v1189 = vsel %vm1188, %v1178, %v1187
        %vm1190 = vcmask 1045509
        %v1191 = vsel %vm1190, %v1179, %v1189
        %vm1192 = vcmask 1046534
        %v1193 = vsel %vm1192, %v1180, %v1191
        %vm1194 = vcmask 1047559
        %v1195 = vsel %vm1194, %v1181, %v1193
        %v1196 = vpack.c.b16 %v1195, %v1195
        %v1215 = vunpack.c.l.b16 %v1116
        %v1216 = vunpack.c.h.b16 %v1116
        %v1217 = vunpack.c.l.b16 %v1117
        %v1218 = vunpack.c.h.b16 %v1117
        %v1219 = vunpack.c.l.b16 %v1118
        %v1220 = vunpack.c.h.b16 %v1118
        %v1221 = vunpack.c.l.b16 %v1119
        %v1222 = vunpack.c.h.b16 %v1119
        %v1223 = vunpack.c.l.b16 %v1120
        %v1224 = vunpack.c.h.b16 %v1120
        %v1225 = vunpack.c.l.b16 %v1121
        %v1226 = vunpack.c.h.b16 %v1121
        %v1227 = vunpack.c.l.b16 %v1122
        %v1228 = vunpack.c.h.b16 %v1122
        %v1229 = vunpack.c.l.b16 %v1123
        %v1230 = vunpack.c.h.b16 %v1123
        %v1231 = vunpack.c.l.b16 %v1124
        %v1232 = vunpack.c.h.b16 %v1124
        %v1233 = vunpack.c.l.b16 %v1125
        %v1234 = vunpack.c.h.b16 %v1125
        %v1235 = vunpack.c.l.b16 %v1126
        %v1236 = vunpack.c.h.b16 %v1126
        %v1237 = vunpack.c.l.b16 %v1127
        %v1238 = vunpack.c.h.b16 %v1127
        %v1239 = vunpack.c.l.b16 %v1128
        %v1240 = vunpack.c.h.b16 %v1128
        %v1241 = vunpack.c.l.b16 %v1129
        %v1242 = vunpack.c.h.b16 %v1129
        %v1243 = vunpack.c.l.b16 %v1130
        %v1244 = vunpack.c.h.b16 %v1130
        %v1245 = vunpack.c.l.b16 %v1131
        %v1246 = vunpack.c.h.b16 %v1131
        %v1247 = vunpack.c.l.b16 %v1132
        %v1248 = vunpack.c.h.b16 %v1132
        %v1249 = vunpack.c.l.b16 %v1133
        %v1250 = vunpack.c.h.b16 %v1133
        %v1251 = vpack.c.b16 %v1221, %v1215
        %v1252 = vpack.c.b16 %v1222, %v1216
        %v1253 = vpack.c.b16 %v1223, %v1217
        %v1254 = vpack.c.b16 %v1224, %v1218
        %v1255 = vpack.c.b16 %v1225, %v1219
        %v1256 = vpack.c.b16 %v1226, %v1220
        %v1257 = vpack.c.b16 %v1233, %v1227
        %v1258 = vpack.c.b16 %v1234, %v1228
        %v1259 = vpack.c.b16 %v1235, %v1229
        %v1260 = vpack.c.b16 %v1236, %v1230
        %v1261 = vpack.c.b16 %v1237, %v1231
        %v1262 = vpack.c.b16 %v1238, %v1232
        %v1263 = vpack.c.b16 %v1245, %v1239
        %v1264 = vpack.c.b16 %v1246, %v1240
        %v1265 = vpack.c.b16 %v1247, %v1241
        %v1266 = vpack.c.b16 %v1248, %v1242
        %v1267 = vpack.c.b16 %v1249, %v1243
        %v1268 = vpack.c.b16 %v1250, %v1244
        %v1288 = vsel %vm1018, %v1196, 0
        %1290 = vmatprep.subr.bf16.mxu0 %v1252
        %1291 = vmatpush1.bf16.msra.mxu0 %v1251
        %1292 = vmatprep.subr.bf16.mxu0 %v1258
        %1293 = vmatpush1.bf16.msra.mxu0 %v1257
        %1294 = vmatprep.subr.bf16.mxu0 %v1264
        %1295 = vmatpush1.bf16.msra.mxu0 %v1263
        %1296 = vmatprep.subr.bf16.mxu0 0
        %1297 = vmatpush1.bf16.msra.mxu0 0
        %1298 = vmatprep.subr.bf16.mxu0 0
        %1299 = vmatpush1.bf16.msra.mxu0 0
        %1300 = vmatprep.subr.bf16.mxu0 0
        %1301 = vmatpush1.bf16.msra.mxu0 0
        %1302 = vmatprep.subr.bf16.mxu0 0
        %1303 = vmatpush1.bf16.msra.mxu0 0
        %1304 = vmatprep.subr.bf16.mxu0 0
        %1305 = vmatpush1.bf16.msra.mxu0 0
        %1306 = vmatprep.subr.bf16.mxu0 0
        %1307 = vmatpush1.bf16.msra.mxu0 0
        %1308 = vmatprep.subr.bf16.mxu0 0
        %1309 = vmatpush1.bf16.msra.mxu0 0
        %1310 = vmatprep.subr.bf16.mxu0 0
        %1311 = vmatpush1.bf16.msra.mxu0 0
        %1312 = vmatprep.subr.bf16.mxu0 0
        %1313 = vmatpush1.bf16.msra.mxu0 0
        %1314 = vmatprep.subr.bf16.mxu0 0
        %1315 = vmatpush1.bf16.msra.mxu0 0
        %1316 = vmatprep.subr.bf16.mxu0 0
        %1317 = vmatpush1.bf16.msra.mxu0 0
        %1318 = vmatprep.subr.bf16.mxu0 0
        %1319 = vmatpush1.bf16.msra.mxu0 0
        %1320 = vmatprep.subr.bf16.mxu0 0
        %1321 = vmatpush1.bf16.msra.mxu0 0
        %1322 = vmatprep.mubr.bf16.mxu0 0
        %1323 = vmatmul.mubr.bf16.gmra.mrb[0].mxu0 %v1288
        %v1324 = vpop.f32.mrb[0].mxu0
        %v1325 = vadd.f32 %v1139, %v1324
        %v1326 = vpop.f32.mrb[0].mxu0
        %v1327 = vadd.f32 %v1143, %v1326
        %v1328 = vpop.f32.mrb[0].mxu0
        %v1329 = vpop.f32.mrb[0].mxu0
        %1330 = vdwg.mxu0
        %1331 = vmatprep.subr.bf16.mxu0 %v1254
        %1332 = vmatpush1.bf16.msra.mxu0 %v1253
        %1333 = vmatprep.subr.bf16.mxu0 %v1260
        %1334 = vmatpush1.bf16.msra.mxu0 %v1259
        %1335 = vmatprep.subr.bf16.mxu0 %v1266
        %1336 = vmatpush1.bf16.msra.mxu0 %v1265
        %1337 = vmatprep.subr.bf16.mxu0 0
        %1338 = vmatpush1.bf16.msra.mxu0 0
        %1339 = vmatprep.subr.bf16.mxu0 0
        %1340 = vmatpush1.bf16.msra.mxu0 0
        %1341 = vmatprep.subr.bf16.mxu0 0
        %1342 = vmatpush1.bf16.msra.mxu0 0
        %1343 = vmatprep.subr.bf16.mxu0 0
        %1344 = vmatpush1.bf16.msra.mxu0 0
        %1345 = vmatprep.subr.bf16.mxu0 0
        %1346 = vmatpush1.bf16.msra.mxu0 0
        %1347 = vmatprep.subr.bf16.mxu0 0
        %1348 = vmatpush1.bf16.msra.mxu0 0
        %1349 = vmatprep.subr.bf16.mxu0 0
        %1350 = vmatpush1.bf16.msra.mxu0 0
        %1351 = vmatprep.subr.bf16.mxu0 0
        %1352 = vmatpush1.bf16.msra.mxu0 0
        %1353 = vmatprep.subr.bf16.mxu0 0
        %1354 = vmatpush1.bf16.msra.mxu0 0
        %1355 = vmatprep.subr.bf16.mxu0 0
        %1356 = vmatpush1.bf16.msra.mxu0 0
        %1357 = vmatprep.subr.bf16.mxu0 0
        %1358 = vmatpush1.bf16.msra.mxu0 0
        %1359 = vmatprep.subr.bf16.mxu0 0
        %1360 = vmatpush1.bf16.msra.mxu0 0
        %1361 = vmatprep.subr.bf16.mxu0 0
        %1362 = vmatpush1.bf16.msra.mxu0 0
        %1363 = vmatprep.mubr.bf16.mxu0 0
        %1364 = vmatmul.mubr.bf16.gmra.mrb[0].mxu0 %v1288
        %v1365 = vpop.f32.mrb[0].mxu0
        %v1366 = vadd.f32 %v1147, %v1365
        %v1367 = vpop.f32.mrb[0].mxu0
        %v1368 = vadd.f32 %v1151, %v1367
        %v1369 = vpop.f32.mrb[0].mxu0
        %v1370 = vpop.f32.mrb[0].mxu0
        %1371 = vdwg.mxu0
        %1372 = vmatprep.subr.bf16.mxu0 %v1256
        %1373 = vmatpush1.bf16.msra.mxu0 %v1255
        %1374 = vmatprep.subr.bf16.mxu0 %v1262
        %1375 = vmatpush1.bf16.msra.mxu0 %v1261
        %1376 = vmatprep.subr.bf16.mxu0 %v1268
        %1377 = vmatpush1.bf16.msra.mxu0 %v1267
        %1378 = vmatprep.subr.bf16.mxu0 0
        %1379 = vmatpush1.bf16.msra.mxu0 0
        %1380 = vmatprep.subr.bf16.mxu0 0
        %1381 = vmatpush1.bf16.msra.mxu0 0
        %1382 = vmatprep.subr.bf16.mxu0 0
        %1383 = vmatpush1.bf16.msra.mxu0 0
        %1384 = vmatprep.subr.bf16.mxu0 0
        %1385 = vmatpush1.bf16.msra.mxu0 0
        %1386 = vmatprep.subr.bf16.mxu0 0
        %1387 = vmatpush1.bf16.msra.mxu0 0
        %1388 = vmatprep.subr.bf16.mxu0 0
        %1389 = vmatpush1.bf16.msra.mxu0 0
        %1390 = vmatprep.subr.bf16.mxu0 0
        %1391 = vmatpush1.bf16.msra.mxu0 0
        %1392 = vmatprep.subr.bf16.mxu0 0
        %1393 = vmatpush1.bf16.msra.mxu0 0
        %1394 = vmatprep.subr.bf16.mxu0 0
        %1395 = vmatpush1.bf16.msra.mxu0 0
        %1396 = vmatprep.subr.bf16.mxu0 0
        %1397 = vmatpush1.bf16.msra.mxu0 0
        %1398 = vmatprep.subr.bf16.mxu0 0
        %1399 = vmatpush1.bf16.msra.mxu0 0
        %1400 = vmatprep.subr.bf16.mxu0 0
        %1401 = vmatpush1.bf16.msra.mxu0 0
        %1402 = vmatprep.subr.bf16.mxu0 0
        %1403 = vmatpush1.bf16.msra.mxu0 0
        %1404 = vmatprep.mubr.bf16.mxu0 0
        %1405 = vmatmul.mubr.bf16.gmra.mrb[0].mxu0 %v1288
        %v1406 = vpop.f32.mrb[0].mxu0
        %v1407 = vadd.f32 %v1155, %v1406
        %v1408 = vpop.f32.mrb[0].mxu0
        %v1409 = vadd.f32 %v1159, %v1408
        %v1410 = vpop.f32.mrb[0].mxu0
        %v1411 = vpop.f32.mrb[0].mxu0
        %1412 = vdwg.mxu0
        %v1413 = vpack.c.bf16 %v1325, %v1325
        %v1414 = vpack.c.bf16 %v1327, %v1327
        %v1415 = vpack.c.bf16 %v1366, %v1366
        %v1416 = vpack.c.bf16 %v1368, %v1368
        %v1417 = vpack.c.bf16 %v1407, %v1407
        %v1418 = vpack.c.bf16 %v1409, %v1409
        %v1419 = vld [vmem:[#allocation8] sm:$0xff]
        %v1420 = vld [vmem:[#allocation8 + $0x8] sm:$0xf]
        %v1421 = vld [vmem:[#allocation8 + $0xc] sm:$0xff]
        %v1422 = vld [vmem:[#allocation8 + $0x14] sm:$0xf]
        %v1423 = vld [vmem:[#allocation8 + $0x18] sm:$0xff]
        %v1424 = vld [vmem:[#allocation8 + $0x20] sm:$0xf]
        %v1425 = vld [vmem:[#allocation8 + $0x24] sm:$0xff]
        %v1426 = vld [vmem:[#allocation8 + $0x2c] sm:$0xf]
        %v1427 = vld [vmem:[#allocation8 + $0x30] sm:$0xff]
        %v1428 = vld [vmem:[#allocation8 + $0x38] sm:$0xf]
        %v1429 = vld [vmem:[#allocation8 + $0x3c] sm:$0xff]
        %v1430 = vld [vmem:[#allocation8 + $0x44] sm:$0xf]
        %v1431 = vld [vmem:[#allocation8 + $0x48] sm:$0xff]
        %v1432 = vld [vmem:[#allocation8 + $0x50] sm:$0xf]
        %v1433 = vld [vmem:[#allocation8 + $0x54] sm:$0xff]
        %v1434 = vld [vmem:[#allocation8 + $0x5c] sm:$0xf]
        %v1435 = vld [vmem:[#allocation8 + $0x60] sm:$0xff]
        %v1436 = vld [vmem:[#allocation8 + $0x68] sm:$0xf]
        %v1437 = vld [vmem:[#allocation8 + $0x6c] sm:$0xff]
        %v1438 = vld [vmem:[#allocation8 + $0x74] sm:$0xf]
        %v1439 = vld [vmem:[#allocation8 + $0x78] sm:$0xff]
        %v1440 = vld [vmem:[#allocation8 + $0x80] sm:$0xf]
        %v1441 = vld [vmem:[#allocation8 + $0x84] sm:$0xff]
        %v1442 = vld [vmem:[#allocation8 + $0x8c] sm:$0xf]
        %v1443 = vld [vmem:[#allocation8 + $0x90] sm:$0xff]
        %v1444 = vld [vmem:[#allocation8 + $0x98] sm:$0xf]
        %v1445 = vld [vmem:[#allocation8 + $0x9c] sm:$0xff]
        %v1446 = vld [vmem:[#allocation8 + $0xa4] sm:$0xf]
        %v1447 = vld [vmem:[#allocation8 + $0xa8] sm:$0xff]
        %v1448 = vld [vmem:[#allocation8 + $0xb0] sm:$0xf]
        %v1449 = vld [vmem:[#allocation8 + $0xb4] sm:$0xff]
        %v1450 = vld [vmem:[#allocation8 + $0xbc] sm:$0xf]
        %v1451 = vld [vmem:[#allocation8 + $0xc0] sm:$0xff]
        %v1452 = vld [vmem:[#allocation8 + $0xc8] sm:$0xf]
        %v1453 = vld [vmem:[#allocation8 + $0xcc] sm:$0xff]
        %v1454 = vld [vmem:[#allocation8 + $0xd4] sm:$0xf]
        %v1455 = vld [vmem:[#allocation8 + $0xd8] sm:$0xff]
        %v1456 = vld [vmem:[#allocation8 + $0xe0] sm:$0xf]
        %v1457 = vld [vmem:[#allocation8 + $0xe4] sm:$0xff]
        %v1458 = vld [vmem:[#allocation8 + $0xec] sm:$0xf]
        %v1459 = vld [vmem:[#allocation8 + $0xf0] sm:$0xff]
        %v1460 = vld [vmem:[#allocation8 + $0xf8] sm:$0xf]
        %v1461 = vld [vmem:[#allocation8 + $0xfc] sm:$0xff]
        %v1462 = vld [vmem:[#allocation8 + $0x104] sm:$0xf]
        %v1463 = vld [vmem:[#allocation8 + $0x108] sm:$0xff]
        %v1464 = vld [vmem:[#allocation8 + $0x110] sm:$0xf]
        %v1465 = vld [vmem:[#allocation8 + $0x114] sm:$0xff]
        %v1466 = vld [vmem:[#allocation8 + $0x11c] sm:$0xf]
        %v1467 = vld [vmem:[#allocation8 + $0x120] sm:$0xff]
        %v1468 = vld [vmem:[#allocation8 + $0x128] sm:$0xf]
        %v1469 = vld [vmem:[#allocation8 + $0x12c] sm:$0xff]
        %v1470 = vld [vmem:[#allocation8 + $0x134] sm:$0xf]
        %v1471 = vld [vmem:[#allocation8 + $0x138] sm:$0xff]
        %v1472 = vld [vmem:[#allocation8 + $0x140] sm:$0xf]
        %v1473 = vld [vmem:[#allocation8 + $0x144] sm:$0xff]
        %v1474 = vld [vmem:[#allocation8 + $0x14c] sm:$0xf]
        %v1475 = vld [vmem:[#allocation8 + $0x150] sm:$0xff]
        %v1476 = vld [vmem:[#allocation8 + $0x158] sm:$0xf]
        %v1477 = vld [vmem:[#allocation8 + $0x15c] sm:$0xff]
        %v1478 = vld [vmem:[#allocation8 + $0x164] sm:$0xf]
        %v1479 = vld [vmem:[#allocation8 + $0x168] sm:$0xff]
        %v1480 = vld [vmem:[#allocation8 + $0x170] sm:$0xf]
        %v1481 = vld [vmem:[#allocation8 + $0x174] sm:$0xff]
        %v1482 = vld [vmem:[#allocation8 + $0x17c] sm:$0xf]
        %v1483 = vld [vmem:[#allocation8 + $0x180] sm:$0xff]
        %v1484 = vld [vmem:[#allocation8 + $0x188] sm:$0xf]
        %v1485 = vld [vmem:[#allocation8 + $0x18c] sm:$0xff]
        %v1486 = vld [vmem:[#allocation8 + $0x194] sm:$0xf]
        %v1487 = vld [vmem:[#allocation8 + $0x198] sm:$0xff]
        %v1488 = vld [vmem:[#allocation8 + $0x1a0] sm:$0xf]
        %v1489 = vld [vmem:[#allocation8 + $0x1a4] sm:$0xff]
        %v1490 = vld [vmem:[#allocation8 + $0x1ac] sm:$0xf]
        %v1491 = vld [vmem:[#allocation8 + $0x1b0] sm:$0xff]
        %v1492 = vld [vmem:[#allocation8 + $0x1b8] sm:$0xf]
        %v1493 = vld [vmem:[#allocation8 + $0x1bc] sm:$0xff]
        %v1494 = vld [vmem:[#allocation8 + $0x1c4] sm:$0xf]
        %v1495 = vld [vmem:[#allocation8 + $0x1c8] sm:$0xff]
        %v1496 = vld [vmem:[#allocation8 + $0x1d0] sm:$0xf]
        %v1497 = vld [vmem:[#allocation8 + $0x1d4] sm:$0xff]
        %v1498 = vld [vmem:[#allocation8 + $0x1dc] sm:$0xf]
        %v1499 = vld [vmem:[#allocation8 + $0x1e0] sm:$0xff]
        %v1500 = vld [vmem:[#allocation8 + $0x1e8] sm:$0xf]
        %v1501 = vld [vmem:[#allocation8 + $0x1ec] sm:$0xff]
        %v1502 = vld [vmem:[#allocation8 + $0x1f4] sm:$0xf]
        %v1503 = vld [vmem:[#allocation8 + $0x1f8] sm:$0xff]
        %v1504 = vld [vmem:[#allocation8 + $0x200] sm:$0xf]
        %v1505 = vld [vmem:[#allocation8 + $0x204] sm:$0xff]
        %v1506 = vld [vmem:[#allocation8 + $0x20c] sm:$0xf]
        %v1507 = vld [vmem:[#allocation8 + $0x210] sm:$0xff]
        %v1508 = vld [vmem:[#allocation8 + $0x218] sm:$0xf]
        %v1509 = vld [vmem:[#allocation8 + $0x21c] sm:$0xff]
        %v1510 = vld [vmem:[#allocation8 + $0x224] sm:$0xf]
        %v1511 = vld [vmem:[#allocation8 + $0x228] sm:$0xff]
        %v1512 = vld [vmem:[#allocation8 + $0x230] sm:$0xf]
        %v1513 = vld [vmem:[#allocation8 + $0x234] sm:$0xff]
        %v1514 = vld [vmem:[#allocation8 + $0x23c] sm:$0xf]
        %v1515 = vld [vmem:[#allocation8 + $0x240] sm:$0xff]
        %v1516 = vld [vmem:[#allocation8 + $0x248] sm:$0xf]
        %v1517 = vld [vmem:[#allocation8 + $0x24c] sm:$0xff]
        %v1518 = vld [vmem:[#allocation8 + $0x254] sm:$0xf]
        %v1519 = vld [vmem:[#allocation8 + $0x258] sm:$0xff]
        %v1520 = vld [vmem:[#allocation8 + $0x260] sm:$0xf]
        %v1521 = vld [vmem:[#allocation8 + $0x264] sm:$0xff]
        %v1522 = vld [vmem:[#allocation8 + $0x26c] sm:$0xf]
        %v1523 = vld [vmem:[#allocation8 + $0x270] sm:$0xff]
        %v1524 = vld [vmem:[#allocation8 + $0x278] sm:$0xf]
        %v1525 = vld [vmem:[#allocation8 + $0x27c] sm:$0xff]
        %v1526 = vld [vmem:[#allocation8 + $0x284] sm:$0xf]
        %v1527 = vld [vmem:[#allocation8 + $0x288] sm:$0xff]
        %v1528 = vld [vmem:[#allocation8 + $0x290] sm:$0xf]
        %v1529 = vld [vmem:[#allocation8 + $0x294] sm:$0xff]
        %v1530 = vld [vmem:[#allocation8 + $0x29c] sm:$0xf]
        %v1531 = vld [vmem:[#allocation8 + $0x2a0] sm:$0xff]
        %v1532 = vld [vmem:[#allocation8 + $0x2a8] sm:$0xf]
        %v1533 = vld [vmem:[#allocation8 + $0x2ac] sm:$0xff]
        %v1534 = vld [vmem:[#allocation8 + $0x2b4] sm:$0xf]
        %v1535 = vld [vmem:[#allocation8 + $0x2b8] sm:$0xff]
        %v1536 = vld [vmem:[#allocation8 + $0x2c0] sm:$0xf]
        %v1537 = vld [vmem:[#allocation8 + $0x2c4] sm:$0xff]
        %v1538 = vld [vmem:[#allocation8 + $0x2cc] sm:$0xf]
        %v1539 = vld [vmem:[#allocation8 + $0x2d0] sm:$0xff]
        %v1540 = vld [vmem:[#allocation8 + $0x2d8] sm:$0xf]
        %v1541 = vld [vmem:[#allocation8 + $0x2dc] sm:$0xff]
        %v1542 = vld [vmem:[#allocation8 + $0x2e4] sm:$0xf]
        %v1543 = vld [vmem:[#allocation8 + $0x2e8] sm:$0xff]
        %v1544 = vld [vmem:[#allocation8 + $0x2f0] sm:$0xf]
        %v1545 = vld [vmem:[#allocation8 + $0x2f4] sm:$0xff]
        %v1546 = vld [vmem:[#allocation8 + $0x2fc] sm:$0xf]
        %v1547 = vld [vmem:[#allocation8 + $0x300] sm:$0xff]
        %v1548 = vld [vmem:[#allocation8 + $0x308] sm:$0xf]
        %v1549 = vld [vmem:[#allocation8 + $0x30c] sm:$0xff]
        %v1550 = vld [vmem:[#allocation8 + $0x314] sm:$0xf]
        %v1551 = vld [vmem:[#allocation8 + $0x318] sm:$0xff]
        %v1552 = vld [vmem:[#allocation8 + $0x320] sm:$0xf]
        %v1553 = vld [vmem:[#allocation8 + $0x324] sm:$0xff]
        %v1554 = vld [vmem:[#allocation8 + $0x32c] sm:$0xf]
        %v1555 = vld [vmem:[#allocation8 + $0x330] sm:$0xff]
        %v1556 = vld [vmem:[#allocation8 + $0x338] sm:$0xf]
        %v1557 = vld [vmem:[#allocation8 + $0x33c] sm:$0xff]
        %v1558 = vld [vmem:[#allocation8 + $0x344] sm:$0xf]
        %v1559 = vld [vmem:[#allocation8 + $0x348] sm:$0xff]
        %v1560 = vld [vmem:[#allocation8 + $0x350] sm:$0xf]
        %v1561 = vld [vmem:[#allocation8 + $0x354] sm:$0xff]
        %v1562 = vld [vmem:[#allocation8 + $0x35c] sm:$0xf]
        %v1563 = vld [vmem:[#allocation8 + $0x360] sm:$0xff]
        %v1564 = vld [vmem:[#allocation8 + $0x368] sm:$0xf]
        %v1565 = vld [vmem:[#allocation8 + $0x36c] sm:$0xff]
        %v1566 = vld [vmem:[#allocation8 + $0x374] sm:$0xf]
        %v1567 = vld [vmem:[#allocation8 + $0x378] sm:$0xff]
        %v1568 = vld [vmem:[#allocation8 + $0x380] sm:$0xf]
        %v1569 = vld [vmem:[#allocation8 + $0x384] sm:$0xff]
        %v1570 = vld [vmem:[#allocation8 + $0x38c] sm:$0xf]
        %v1571 = vld [vmem:[#allocation8 + $0x390] sm:$0xff]
        %v1572 = vld [vmem:[#allocation8 + $0x398] sm:$0xf]
        %v1573 = vld [vmem:[#allocation8 + $0x39c] sm:$0xff]
        %v1574 = vld [vmem:[#allocation8 + $0x3a4] sm:$0xf]
        %v1575 = vld [vmem:[#allocation8 + $0x3a8] sm:$0xff]
        %v1576 = vld [vmem:[#allocation8 + $0x3b0] sm:$0xf]
        %v1577 = vld [vmem:[#allocation8 + $0x3b4] sm:$0xff]
        %v1578 = vld [vmem:[#allocation8 + $0x3bc] sm:$0xf]
        %v1579 = vld [vmem:[#allocation8 + $0x3c0] sm:$0xff]
        %v1580 = vld [vmem:[#allocation8 + $0x3c8] sm:$0xf]
        %v1581 = vld [vmem:[#allocation8 + $0x3cc] sm:$0xff]
        %v1582 = vld [vmem:[#allocation8 + $0x3d4] sm:$0xf]
        %v1583 = vld [vmem:[#allocation8 + $0x3d8] sm:$0xff]
        %v1584 = vld [vmem:[#allocation8 + $0x3e0] sm:$0xf]
        %v1585 = vld [vmem:[#allocation8 + $0x3e4] sm:$0xff]
        %v1586 = vld [vmem:[#allocation8 + $0x3ec] sm:$0xf]
        %v1587 = vld [vmem:[#allocation8 + $0x3f0] sm:$0xff]
        %v1588 = vld [vmem:[#allocation8 + $0x3f8] sm:$0xf]
        %v1589 = vld [vmem:[#allocation8 + $0x3fc] sm:$0xff]
        %v1590 = vld [vmem:[#allocation8 + $0x404] sm:$0xf]
        %v1591 = vld [vmem:[#allocation8 + $0x408] sm:$0xff]
        %v1592 = vld [vmem:[#allocation8 + $0x410] sm:$0xf]
        %v1593 = vld [vmem:[#allocation8 + $0x414] sm:$0xff]
        %v1594 = vld [vmem:[#allocation8 + $0x41c] sm:$0xf]
        %v1595 = vld [vmem:[#allocation8 + $0x420] sm:$0xff]
        %v1596 = vld [vmem:[#allocation8 + $0x428] sm:$0xf]
        %v1597 = vld [vmem:[#allocation8 + $0x42c] sm:$0xff]
        %v1598 = vld [vmem:[#allocation8 + $0x434] sm:$0xf]
        %v1599 = vld [vmem:[#allocation8 + $0x438] sm:$0xff]
        %v1600 = vld [vmem:[#allocation8 + $0x440] sm:$0xf]
        %v1601 = vld [vmem:[#allocation8 + $0x444] sm:$0xff]
        %v1602 = vld [vmem:[#allocation8 + $0x44c] sm:$0xf]
        %v1603 = vld [vmem:[#allocation8 + $0x450] sm:$0xff]
        %v1604 = vld [vmem:[#allocation8 + $0x458] sm:$0xf]
        %v1605 = vld [vmem:[#allocation8 + $0x45c] sm:$0xff]
        %v1606 = vld [vmem:[#allocation8 + $0x464] sm:$0xf]
        %v1607 = vld [vmem:[#allocation8 + $0x468] sm:$0xff]
        %v1608 = vld [vmem:[#allocation8 + $0x470] sm:$0xf]
        %v1609 = vld [vmem:[#allocation8 + $0x474] sm:$0xff]
        %v1610 = vld [vmem:[#allocation8 + $0x47c] sm:$0xf]
        %v1611 = vld [vmem:[#allocation10] sm:$0x7]
        %v1613 = vlaneseq
        %v1614 = vshrl.u32 %v1613, 7
        %v1615 = vsub.s32 0, %v1614
        %v1616 = vrot.slane %v1611, %v1615
        %v1617 = vlaneseq
        %v1618 = vshrl.u32 %v1617, 7
        %v1619 = vsub.s32 1, %v1618
        %v1620 = vrot.slane %v1611, %v1619
        %v1621 = vlaneseq
        %v1622 = vshrl.u32 %v1621, 7
        %v1623 = vsub.s32 2, %v1622
        %v1624 = vrot.slane %v1611, %v1623
        %v1820 = vunpack.c.l.b16 %v1419
        %v1821 = vunpack.c.h.b16 %v1419
        %v1822 = vunpack.c.l.b16 %v1420
        %v1823 = vunpack.c.l.b16 %v1421
        %v1824 = vunpack.c.h.b16 %v1421
        %v1825 = vunpack.c.l.b16 %v1422
        %v1826 = vunpack.c.l.b16 %v1423
        %v1827 = vunpack.c.h.b16 %v1423
        %v1828 = vunpack.c.l.b16 %v1424
        %v1829 = vunpack.c.l.b16 %v1425
        %v1830 = vunpack.c.h.b16 %v1425
        %v1831 = vunpack.c.l.b16 %v1426
        %v1832 = vunpack.c.l.b16 %v1427
        %v1833 = vunpack.c.h.b16 %v1427
        %v1834 = vunpack.c.l.b16 %v1428
        %v1835 = vunpack.c.l.b16 %v1429
        %v1836 = vunpack.c.h.b16 %v1429
        %v1837 = vunpack.c.l.b16 %v1430
        %v1838 = vunpack.c.l.b16 %v1431
        %v1839 = vunpack.c.h.b16 %v1431
        %v1840 = vunpack.c.l.b16 %v1432
        %v1841 = vunpack.c.l.b16 %v1433
        %v1842 = vunpack.c.h.b16 %v1433
        %v1843 = vunpack.c.l.b16 %v1434
        %v1844 = vunpack.c.l.b16 %v1435
        %v1845 = vunpack.c.h.b16 %v1435
        %v1846 = vunpack.c.l.b16 %v1436
        %v1847 = vunpack.c.l.b16 %v1437
        %v1848 = vunpack.c.h.b16 %v1437
        %v1849 = vunpack.c.l.b16 %v1438
        %v1850 = vunpack.c.l.b16 %v1439
        %v1851 = vunpack.c.h.b16 %v1439
        %v1852 = vunpack.c.l.b16 %v1440
        %v1853 = vunpack.c.l.b16 %v1441
        %v1854 = vunpack.c.h.b16 %v1441
        %v1855 = vunpack.c.l.b16 %v1442
        %v1856 = vunpack.c.l.b16 %v1443
        %v1857 = vunpack.c.h.b16 %v1443
        %v1858 = vunpack.c.l.b16 %v1444
        %v1859 = vunpack.c.l.b16 %v1445
        %v1860 = vunpack.c.h.b16 %v1445
        %v1861 = vunpack.c.l.b16 %v1446
        %v1862 = vunpack.c.l.b16 %v1447
        %v1863 = vunpack.c.h.b16 %v1447
        %v1864 = vunpack.c.l.b16 %v1448
        %v1865 = vunpack.c.l.b16 %v1449
        %v1866 = vunpack.c.h.b16 %v1449
        %v1867 = vunpack.c.l.b16 %v1450
        %v1868 = vunpack.c.l.b16 %v1451
        %v1869 = vunpack.c.h.b16 %v1451
        %v1870 = vunpack.c.l.b16 %v1452
        %v1871 = vunpack.c.l.b16 %v1453
        %v1872 = vunpack.c.h.b16 %v1453
        %v1873 = vunpack.c.l.b16 %v1454
        %v1874 = vunpack.c.l.b16 %v1455
        %v1875 = vunpack.c.h.b16 %v1455
        %v1876 = vunpack.c.l.b16 %v1456
        %v1877 = vunpack.c.l.b16 %v1457
        %v1878 = vunpack.c.h.b16 %v1457
        %v1879 = vunpack.c.l.b16 %v1458
        %v1880 = vunpack.c.l.b16 %v1459
        %v1881 = vunpack.c.h.b16 %v1459
        %v1882 = vunpack.c.l.b16 %v1460
        %v1883 = vunpack.c.l.b16 %v1461
        %v1884 = vunpack.c.h.b16 %v1461
        %v1885 = vunpack.c.l.b16 %v1462
        %v1886 = vunpack.c.l.b16 %v1463
        %v1887 = vunpack.c.h.b16 %v1463
        %v1888 = vunpack.c.l.b16 %v1464
        %v1889 = vunpack.c.l.b16 %v1465
        %v1890 = vunpack.c.h.b16 %v1465
        %v1891 = vunpack.c.l.b16 %v1466
        %v1892 = vunpack.c.l.b16 %v1467
        %v1893 = vunpack.c.h.b16 %v1467
        %v1894 = vunpack.c.l.b16 %v1468
        %v1895 = vunpack.c.l.b16 %v1469
        %v1896 = vunpack.c.h.b16 %v1469
        %v1897 = vunpack.c.l.b16 %v1470
        %v1898 = vunpack.c.l.b16 %v1471
        %v1899 = vunpack.c.h.b16 %v1471
        %v1900 = vunpack.c.l.b16 %v1472
        %v1901 = vunpack.c.l.b16 %v1473
        %v1902 = vunpack.c.h.b16 %v1473
        %v1903 = vunpack.c.l.b16 %v1474
        %v1904 = vunpack.c.l.b16 %v1475
        %v1905 = vunpack.c.h.b16 %v1475
        %v1906 = vunpack.c.l.b16 %v1476
        %v1907 = vunpack.c.l.b16 %v1477
        %v1908 = vunpack.c.h.b16 %v1477
        %v1909 = vunpack.c.l.b16 %v1478
        %v1910 = vunpack.c.l.b16 %v1479
        %v1911 = vunpack.c.h.b16 %v1479
        %v1912 = vunpack.c.l.b16 %v1480
        %v1913 = vunpack.c.l.b16 %v1481
        %v1914 = vunpack.c.h.b16 %v1481
        %v1915 = vunpack.c.l.b16 %v1482
        %v1916 = vunpack.c.l.b16 %v1483
        %v1917 = vunpack.c.h.b16 %v1483
        %v1918 = vunpack.c.l.b16 %v1484
        %v1919 = vunpack.c.l.b16 %v1485
        %v1920 = vunpack.c.h.b16 %v1485
        %v1921 = vunpack.c.l.b16 %v1486
        %v1922 = vunpack.c.l.b16 %v1487
        %v1923 = vunpack.c.h.b16 %v1487
        %v1924 = vunpack.c.l.b16 %v1488
        %v1925 = vunpack.c.l.b16 %v1489
        %v1926 = vunpack.c.h.b16 %v1489
        %v1927 = vunpack.c.l.b16 %v1490
        %v1928 = vunpack.c.l.b16 %v1491
        %v1929 = vunpack.c.h.b16 %v1491
        %v1930 = vunpack.c.l.b16 %v1492
        %v1931 = vunpack.c.l.b16 %v1493
        %v1932 = vunpack.c.h.b16 %v1493
        %v1933 = vunpack.c.l.b16 %v1494
        %v1934 = vunpack.c.l.b16 %v1495
        %v1935 = vunpack.c.h.b16 %v1495
        %v1936 = vunpack.c.l.b16 %v1496
        %v1937 = vunpack.c.l.b16 %v1497
        %v1938 = vunpack.c.h.b16 %v1497
        %v1939 = vunpack.c.l.b16 %v1498
        %v1940 = vunpack.c.l.b16 %v1499
        %v1941 = vunpack.c.h.b16 %v1499
        %v1942 = vunpack.c.l.b16 %v1500
        %v1943 = vunpack.c.l.b16 %v1501
        %v1944 = vunpack.c.h.b16 %v1501
        %v1945 = vunpack.c.l.b16 %v1502
        %v1946 = vunpack.c.l.b16 %v1503
        %v1947 = vunpack.c.h.b16 %v1503
        %v1948 = vunpack.c.l.b16 %v1504
        %v1949 = vunpack.c.l.b16 %v1505
        %v1950 = vunpack.c.h.b16 %v1505
        %v1951 = vunpack.c.l.b16 %v1506
        %v1952 = vunpack.c.l.b16 %v1507
        %v1953 = vunpack.c.h.b16 %v1507
        %v1954 = vunpack.c.l.b16 %v1508
        %v1955 = vunpack.c.l.b16 %v1509
        %v1956 = vunpack.c.h.b16 %v1509
        %v1957 = vunpack.c.l.b16 %v1510
        %v1958 = vunpack.c.l.b16 %v1511
        %v1959 = vunpack.c.h.b16 %v1511
        %v1960 = vunpack.c.l.b16 %v1512
        %v1961 = vunpack.c.l.b16 %v1513
        %v1962 = vunpack.c.h.b16 %v1513
        %v1963 = vunpack.c.l.b16 %v1514
        %v1964 = vunpack.c.l.b16 %v1515
        %v1965 = vunpack.c.h.b16 %v1515
        %v1966 = vunpack.c.l.b16 %v1516
        %v1967 = vunpack.c.l.b16 %v1517
        %v1968 = vunpack.c.h.b16 %v1517
        %v1969 = vunpack.c.l.b16 %v1518
        %v1970 = vunpack.c.l.b16 %v1519
        %v1971 = vunpack.c.h.b16 %v1519
        %v1972 = vunpack.c.l.b16 %v1520
        %v1973 = vunpack.c.l.b16 %v1521
        %v1974 = vunpack.c.h.b16 %v1521
        %v1975 = vunpack.c.l.b16 %v1522
        %v1976 = vunpack.c.l.b16 %v1523
        %v1977 = vunpack.c.h.b16 %v1523
        %v1978 = vunpack.c.l.b16 %v1524
        %v1979 = vunpack.c.l.b16 %v1525
        %v1980 = vunpack.c.h.b16 %v1525
        %v1981 = vunpack.c.l.b16 %v1526
        %v1982 = vunpack.c.l.b16 %v1527
        %v1983 = vunpack.c.h.b16 %v1527
        %v1984 = vunpack.c.l.b16 %v1528
        %v1985 = vunpack.c.l.b16 %v1529
        %v1986 = vunpack.c.h.b16 %v1529
        %v1987 = vunpack.c.l.b16 %v1530
        %v1988 = vunpack.c.l.b16 %v1531
        %v1989 = vunpack.c.h.b16 %v1531
        %v1990 = vunpack.c.l.b16 %v1532
        %v1991 = vunpack.c.l.b16 %v1533
        %v1992 = vunpack.c.h.b16 %v1533
        %v1993 = vunpack.c.l.b16 %v1534
        %v1994 = vunpack.c.l.b16 %v1535
        %v1995 = vunpack.c.h.b16 %v1535
        %v1996 = vunpack.c.l.b16 %v1536
        %v1997 = vunpack.c.l.b16 %v1537
        %v1998 = vunpack.c.h.b16 %v1537
        %v1999 = vunpack.c.l.b16 %v1538
        %v2000 = vunpack.c.l.b16 %v1539
        %v2001 = vunpack.c.h.b16 %v1539
        %v2002 = vunpack.c.l.b16 %v1540
        %v2003 = vunpack.c.l.b16 %v1541
        %v2004 = vunpack.c.h.b16 %v1541
        %v2005 = vunpack.c.l.b16 %v1542
        %v2006 = vunpack.c.l.b16 %v1543
        %v2007 = vunpack.c.h.b16 %v1543
        %v2008 = vunpack.c.l.b16 %v1544
        %v2009 = vunpack.c.l.b16 %v1545
        %v2010 = vunpack.c.h.b16 %v1545
        %v2011 = vunpack.c.l.b16 %v1546
        %v2012 = vunpack.c.l.b16 %v1547
        %v2013 = vunpack.c.h.b16 %v1547
        %v2014 = vunpack.c.l.b16 %v1548
        %v2015 = vunpack.c.l.b16 %v1549
        %v2016 = vunpack.c.h.b16 %v1549
        %v2017 = vunpack.c.l.b16 %v1550
        %v2018 = vunpack.c.l.b16 %v1551
        %v2019 = vunpack.c.h.b16 %v1551
        %v2020 = vunpack.c.l.b16 %v1552
        %v2021 = vunpack.c.l.b16 %v1553
        %v2022 = vunpack.c.h.b16 %v1553
        %v2023 = vunpack.c.l.b16 %v1554
        %v2024 = vunpack.c.l.b16 %v1555
        %v2025 = vunpack.c.h.b16 %v1555
        %v2026 = vunpack.c.l.b16 %v1556
        %v2027 = vunpack.c.l.b16 %v1557
        %v2028 = vunpack.c.h.b16 %v1557
        %v2029 = vunpack.c.l.b16 %v1558
        %v2030 = vunpack.c.l.b16 %v1559
        %v2031 = vunpack.c.h.b16 %v1559
        %v2032 = vunpack.c.l.b16 %v1560
        %v2033 = vunpack.c.l.b16 %v1561
        %v2034 = vunpack.c.h.b16 %v1561
        %v2035 = vunpack.c.l.b16 %v1562
        %v2036 = vunpack.c.l.b16 %v1563
        %v2037 = vunpack.c.h.b16 %v1563
        %v2038 = vunpack.c.l.b16 %v1564
        %v2039 = vunpack.c.l.b16 %v1565
        %v2040 = vunpack.c.h.b16 %v1565
        %v2041 = vunpack.c.l.b16 %v1566
        %v2042 = vunpack.c.l.b16 %v1567
        %v2043 = vunpack.c.h.b16 %v1567
        %v2044 = vunpack.c.l.b16 %v1568
        %v2045 = vunpack.c.l.b16 %v1569
        %v2046 = vunpack.c.h.b16 %v1569
        %v2047 = vunpack.c.l.b16 %v1570
        %v2048 = vunpack.c.l.b16 %v1571
        %v2049 = vunpack.c.h.b16 %v1571
        %v2050 = vunpack.c.l.b16 %v1572
        %v2051 = vunpack.c.l.b16 %v1573
        %v2052 = vunpack.c.h.b16 %v1573
        %v2053 = vunpack.c.l.b16 %v1574
        %v2054 = vunpack.c.l.b16 %v1575
        %v2055 = vunpack.c.h.b16 %v1575
        %v2056 = vunpack.c.l.b16 %v1576
        %v2057 = vunpack.c.l.b16 %v1577
        %v2058 = vunpack.c.h.b16 %v1577
        %v2059 = vunpack.c.l.b16 %v1578
        %v2060 = vunpack.c.l.b16 %v1579
        %v2061 = vunpack.c.h.b16 %v1579
        %v2062 = vunpack.c.l.b16 %v1580
        %v2063 = vunpack.c.l.b16 %v1581
        %v2064 = vunpack.c.h.b16 %v1581
        %v2065 = vunpack.c.l.b16 %v1582
        %v2066 = vunpack.c.l.b16 %v1583
        %v2067 = vunpack.c.h.b16 %v1583
        %v2068 = vunpack.c.l.b16 %v1584
        %v2069 = vunpack.c.l.b16 %v1585
        %v2070 = vunpack.c.h.b16 %v1585
        %v2071 = vunpack.c.l.b16 %v1586
        %v2072 = vunpack.c.l.b16 %v1587
        %v2073 = vunpack.c.h.b16 %v1587
        %v2074 = vunpack.c.l.b16 %v1588
        %v2075 = vunpack.c.l.b16 %v1589
        %v2076 = vunpack.c.h.b16 %v1589
        %v2077 = vunpack.c.l.b16 %v1590
        %v2078 = vunpack.c.l.b16 %v1591
        %v2079 = vunpack.c.h.b16 %v1591
        %v2080 = vunpack.c.l.b16 %v1592
        %v2081 = vunpack.c.l.b16 %v1593
        %v2082 = vunpack.c.h.b16 %v1593
        %v2083 = vunpack.c.l.b16 %v1594
        %v2084 = vunpack.c.l.b16 %v1595
        %v2085 = vunpack.c.h.b16 %v1595
        %v2086 = vunpack.c.l.b16 %v1596
        %v2087 = vunpack.c.l.b16 %v1597
        %v2088 = vunpack.c.h.b16 %v1597
        %v2089 = vunpack.c.l.b16 %v1598
        %v2090 = vunpack.c.l.b16 %v1599
        %v2091 = vunpack.c.h.b16 %v1599
        %v2092 = vunpack.c.l.b16 %v1600
        %v2093 = vunpack.c.l.b16 %v1601
        %v2094 = vunpack.c.h.b16 %v1601
        %v2095 = vunpack.c.l.b16 %v1602
        %v2096 = vunpack.c.l.b16 %v1603
        %v2097 = vunpack.c.h.b16 %v1603
        %v2098 = vunpack.c.l.b16 %v1604
        %v2099 = vunpack.c.l.b16 %v1605
        %v2100 = vunpack.c.h.b16 %v1605
        %v2101 = vunpack.c.l.b16 %v1606
        %v2102 = vunpack.c.l.b16 %v1607
        %v2103 = vunpack.c.h.b16 %v1607
        %v2104 = vunpack.c.l.b16 %v1608
        %v2105 = vunpack.c.l.b16 %v1609
        %v2106 = vunpack.c.h.b16 %v1609
        %v2107 = vunpack.c.l.b16 %v1610
        %v2108 = vpack.c.b16 %v1823, %v1820
        %v2109 = vpack.c.b16 %v1824, %v1821
        %v2110 = vpack.c.b16 %v1825, %v1822
        %v2111 = vpack.c.b16 %v1829, %v1826
        %v2112 = vpack.c.b16 %v1830, %v1827
        %v2113 = vpack.c.b16 %v1831, %v1828
        %v2114 = vpack.c.b16 %v1835, %v1832
        %v2115 = vpack.c.b16 %v1836, %v1833
        %v2116 = vpack.c.b16 %v1837, %v1834
        %v2117 = vpack.c.b16 %v1841, %v1838
        %v2118 = vpack.c.b16 %v1842, %v1839
        %v2119 = vpack.c.b16 %v1843, %v1840
        %v2120 = vpack.c.b16 %v1847, %v1844
        %v2121 = vpack.c.b16 %v1848, %v1845
        %v2122 = vpack.c.b16 %v1849, %v1846
        %v2123 = vpack.c.b16 %v1853, %v1850
        %v2124 = vpack.c.b16 %v1854, %v1851
        %v2125 = vpack.c.b16 %v1855, %v1852
        %v2126 = vpack.c.b16 %v1859, %v1856
        %v2127 = vpack.c.b16 %v1860, %v1857
        %v2128 = vpack.c.b16 %v1861, %v1858
        %v2129 = vpack.c.b16 %v1865, %v1862
        %v2130 = vpack.c.b16 %v1866, %v1863
        %v2131 = vpack.c.b16 %v1867, %v1864
        %v2132 = vpack.c.b16 %v1871, %v1868
        %v2133 = vpack.c.b16 %v1872, %v1869
        %v2134 = vpack.c.b16 %v1873, %v1870
        %v2135 = vpack.c.b16 %v1877, %v1874
        %v2136 = vpack.c.b16 %v1878, %v1875
        %v2137 = vpack.c.b16 %v1879, %v1876
        %v2138 = vpack.c.b16 %v1883, %v1880
        %v2139 = vpack.c.b16 %v1884, %v1881
        %v2140 = vpack.c.b16 %v1885, %v1882
        %v2141 = vpack.c.b16 %v1889, %v1886
        %v2142 = vpack.c.b16 %v1890, %v1887
        %v2143 = vpack.c.b16 %v1891, %v1888
        %v2144 = vpack.c.b16 %v1895, %v1892
        %v2145 = vpack.c.b16 %v1896, %v1893
        %v2146 = vpack.c.b16 %v1897, %v1894
        %v2147 = vpack.c.b16 %v1901, %v1898
        %v2148 = vpack.c.b16 %v1902, %v1899
        %v2149 = vpack.c.b16 %v1903, %v1900
        %v2150 = vpack.c.b16 %v1907, %v1904
        %v2151 = vpack.c.b16 %v1908, %v1905
        %v2152 = vpack.c.b16 %v1909, %v1906
        %v2153 = vpack.c.b16 %v1913, %v1910
        %v2154 = vpack.c.b16 %v1914, %v1911
        %v2155 = vpack.c.b16 %v1915, %v1912
        %v2156 = vpack.c.b16 %v1919, %v1916
        %v2157 = vpack.c.b16 %v1920, %v1917
        %v2158 = vpack.c.b16 %v1921, %v1918
        %v2159 = vpack.c.b16 %v1925, %v1922
        %v2160 = vpack.c.b16 %v1926, %v1923
        %v2161 = vpack.c.b16 %v1927, %v1924
        %v2162 = vpack.c.b16 %v1931, %v1928
        %v2163 = vpack.c.b16 %v1932, %v1929
        %v2164 = vpack.c.b16 %v1933, %v1930
        %v2165 = vpack.c.b16 %v1937, %v1934
        %v2166 = vpack.c.b16 %v1938, %v1935
        %v2167 = vpack.c.b16 %v1939, %v1936
        %v2168 = vpack.c.b16 %v1943, %v1940
        %v2169 = vpack.c.b16 %v1944, %v1941
        %v2170 = vpack.c.b16 %v1945, %v1942
        %v2171 = vpack.c.b16 %v1949, %v1946
        %v2172 = vpack.c.b16 %v1950, %v1947
        %v2173 = vpack.c.b16 %v1951, %v1948
        %v2174 = vpack.c.b16 %v1955, %v1952
        %v2175 = vpack.c.b16 %v1956, %v1953
        %v2176 = vpack.c.b16 %v1957, %v1954
        %v2177 = vpack.c.b16 %v1961, %v1958
        %v2178 = vpack.c.b16 %v1962, %v1959
        %v2179 = vpack.c.b16 %v1963, %v1960
        %v2180 = vpack.c.b16 %v1967, %v1964
        %v2181 = vpack.c.b16 %v1968, %v1965
        %v2182 = vpack.c.b16 %v1969, %v1966
        %v2183 = vpack.c.b16 %v1973, %v1970
        %v2184 = vpack.c.b16 %v1974, %v1971
        %v2185 = vpack.c.b16 %v1975, %v1972
        %v2186 = vpack.c.b16 %v1979, %v1976
        %v2187 = vpack.c.b16 %v1980, %v1977
        %v2188 = vpack.c.b16 %v1981, %v1978
        %v2189 = vpack.c.b16 %v1985, %v1982
        %v2190 = vpack.c.b16 %v1986, %v1983
        %v2191 = vpack.c.b16 %v1987, %v1984
        %v2192 = vpack.c.b16 %v1991, %v1988
        %v2193 = vpack.c.b16 %v1992, %v1989
        %v2194 = vpack.c.b16 %v1993, %v1990
        %v2195 = vpack.c.b16 %v1997, %v1994
        %v2196 = vpack.c.b16 %v1998, %v1995
        %v2197 = vpack.c.b16 %v1999, %v1996
        %v2198 = vpack.c.b16 %v2003, %v2000
        %v2199 = vpack.c.b16 %v2004, %v2001
        %v2200 = vpack.c.b16 %v2005, %v2002
        %v2201 = vpack.c.b16 %v2009, %v2006
        %v2202 = vpack.c.b16 %v2010, %v2007
        %v2203 = vpack.c.b16 %v2011, %v2008
        %v2204 = vpack.c.b16 %v2015, %v2012
        %v2205 = vpack.c.b16 %v2016, %v2013
        %v2206 = vpack.c.b16 %v2017, %v2014
        %v2207 = vpack.c.b16 %v2021, %v2018
        %v2208 = vpack.c.b16 %v2022, %v2019
        %v2209 = vpack.c.b16 %v2023, %v2020
        %v2210 = vpack.c.b16 %v2027, %v2024
        %v2211 = vpack.c.b16 %v2028, %v2025
        %v2212 = vpack.c.b16 %v2029, %v2026
        %v2213 = vpack.c.b16 %v2033, %v2030
        %v2214 = vpack.c.b16 %v2034, %v2031
        %v2215 = vpack.c.b16 %v2035, %v2032
        %v2216 = vpack.c.b16 %v2039, %v2036
        %v2217 = vpack.c.b16 %v2040, %v2037
        %v2218 = vpack.c.b16 %v2041, %v2038
        %v2219 = vpack.c.b16 %v2045, %v2042
        %v2220 = vpack.c.b16 %v2046, %v2043
        %v2221 = vpack.c.b16 %v2047, %v2044
        %v2222 = vpack.c.b16 %v2051, %v2048
        %v2223 = vpack.c.b16 %v2052, %v2049
        %v2224 = vpack.c.b16 %v2053, %v2050
        %v2225 = vpack.c.b16 %v2057, %v2054
        %v2226 = vpack.c.b16 %v2058, %v2055
        %v2227 = vpack.c.b16 %v2059, %v2056
        %v2228 = vpack.c.b16 %v2063, %v2060
        %v2229 = vpack.c.b16 %v2064, %v2061
        %v2230 = vpack.c.b16 %v2065, %v2062
        %v2231 = vpack.c.b16 %v2069, %v2066
        %v2232 = vpack.c.b16 %v2070, %v2067
        %v2233 = vpack.c.b16 %v2071, %v2068
        %v2234 = vpack.c.b16 %v2075, %v2072
        %v2235 = vpack.c.b16 %v2076, %v2073
        %v2236 = vpack.c.b16 %v2077, %v2074
        %v2237 = vpack.c.b16 %v2081, %v2078
        %v2238 = vpack.c.b16 %v2082, %v2079
        %v2239 = vpack.c.b16 %v2083, %v2080
        %v2240 = vpack.c.b16 %v2087, %v2084
        %v2241 = vpack.c.b16 %v2088, %v2085
        %v2242 = vpack.c.b16 %v2089, %v2086
        %v2243 = vpack.c.b16 %v2093, %v2090
        %v2244 = vpack.c.b16 %v2094, %v2091
        %v2245 = vpack.c.b16 %v2095, %v2092
        %v2246 = vpack.c.b16 %v2099, %v2096
        %v2247 = vpack.c.b16 %v2100, %v2097
        %v2248 = vpack.c.b16 %v2101, %v2098
        %v2249 = vpack.c.b16 %v2105, %v2102
        %v2250 = vpack.c.b16 %v2106, %v2103
        %v2251 = vpack.c.b16 %v2107, %v2104
        %2396 = vmatprep.subr.bf16.mxu0 %v2109
        %2397 = vmatpush1.bf16.msra.mxu0 %v2108
        %2398 = vmatprep.subr.bf16.mxu0 %v2112
        %2399 = vmatpush1.bf16.msra.mxu0 %v2111
        %2400 = vmatprep.subr.bf16.mxu0 %v2115
        %2401 = vmatpush1.bf16.msra.mxu0 %v2114
        %2402 = vmatprep.subr.bf16.mxu0 %v2118
        %2403 = vmatpush1.bf16.msra.mxu0 %v2117
        %2404 = vmatprep.subr.bf16.mxu0 %v2121
        %2405 = vmatpush1.bf16.msra.mxu0 %v2120
        %2406 = vmatprep.subr.bf16.mxu0 %v2124
        %2407 = vmatpush1.bf16.msra.mxu0 %v2123
        %2408 = vmatprep.subr.bf16.mxu0 %v2127
        %2409 = vmatpush1.bf16.msra.mxu0 %v2126
        %2410 = vmatprep.subr.bf16.mxu0 %v2130
        %2411 = vmatpush1.bf16.msra.mxu0 %v2129
        %2412 = vmatprep.subr.bf16.mxu0 %v2133
        %2413 = vmatpush1.bf16.msra.mxu0 %v2132
        %2414 = vmatprep.subr.bf16.mxu0 %v2136
        %2415 = vmatpush1.bf16.msra.mxu0 %v2135
        %2416 = vmatprep.subr.bf16.mxu0 %v2139
        %2417 = vmatpush1.bf16.msra.mxu0 %v2138
        %2418 = vmatprep.subr.bf16.mxu0 %v2142
        %2419 = vmatpush1.bf16.msra.mxu0 %v2141
        %2420 = vmatprep.subr.bf16.mxu0 %v2145
        %2421 = vmatpush1.bf16.msra.mxu0 %v2144
        %2422 = vmatprep.subr.bf16.mxu0 %v2148
        %2423 = vmatpush1.bf16.msra.mxu0 %v2147
        %2424 = vmatprep.subr.bf16.mxu0 %v2151
        %2425 = vmatpush1.bf16.msra.mxu0 %v2150
        %2426 = vmatprep.subr.bf16.mxu0 %v2154
        %2427 = vmatpush1.bf16.msra.mxu0 %v2153
        %2428 = vmatprep.mubr.bf16.mxu0 %v1414
        %2429 = vmatmul.mubr.bf16.gmra.mrb[0].mxu0 %v1413
        %v2430 = vpop.f32.mrb[0].mxu0
        %v2431 = vadd.f32 %v1616, %v2430
        %v2432 = vpop.f32.mrb[0].mxu0
        %v2433 = vadd.f32 %v1620, %v2432
        %v2434 = vpop.f32.mrb[0].mxu0
        %v2435 = vpop.f32.mrb[0].mxu0
        %2436 = vdwg.mxu0
        %2437 = vmatprep.subr.bf16.mxu0 %v2157
        %2438 = vmatpush1.bf16.msra.mxu0 %v2156
        %2439 = vmatprep.subr.bf16.mxu0 %v2160
        %2440 = vmatpush1.bf16.msra.mxu0 %v2159
        %2441 = vmatprep.subr.bf16.mxu0 %v2163
        %2442 = vmatpush1.bf16.msra.mxu0 %v2162
        %2443 = vmatprep.subr.bf16.mxu0 %v2166
        %2444 = vmatpush1.bf16.msra.mxu0 %v2165
        %2445 = vmatprep.subr.bf16.mxu0 %v2169
        %2446 = vmatpush1.bf16.msra.mxu0 %v2168
        %2447 = vmatprep.subr.bf16.mxu0 %v2172
        %2448 = vmatpush1.bf16.msra.mxu0 %v2171
        %2449 = vmatprep.subr.bf16.mxu0 %v2175
        %2450 = vmatpush1.bf16.msra.mxu0 %v2174
        %2451 = vmatprep.subr.bf16.mxu0 %v2178
        %2452 = vmatpush1.bf16.msra.mxu0 %v2177
        %2453 = vmatprep.subr.bf16.mxu0 %v2181
        %2454 = vmatpush1.bf16.msra.mxu0 %v2180
        %2455 = vmatprep.subr.bf16.mxu0 %v2184
        %2456 = vmatpush1.bf16.msra.mxu0 %v2183
        %2457 = vmatprep.subr.bf16.mxu0 %v2187
        %2458 = vmatpush1.bf16.msra.mxu0 %v2186
        %2459 = vmatprep.subr.bf16.mxu0 %v2190
        %2460 = vmatpush1.bf16.msra.mxu0 %v2189
        %2461 = vmatprep.subr.bf16.mxu0 %v2193
        %2462 = vmatpush1.bf16.msra.mxu0 %v2192
        %2463 = vmatprep.subr.bf16.mxu0 %v2196
        %2464 = vmatpush1.bf16.msra.mxu0 %v2195
        %2465 = vmatprep.subr.bf16.mxu0 %v2199
        %2466 = vmatpush1.bf16.msra.mxu0 %v2198
        %2467 = vmatprep.subr.bf16.mxu0 %v2202
        %2468 = vmatpush1.bf16.msra.mxu0 %v2201
        %2469 = vmatprep.mubr.bf16.mxu0 %v1416
        %2470 = vmatmul.mubr.bf16.gmra.mrb[0].mxu0 %v1415
        %v2471 = vpop.f32.mrb[0].mxu0
        %v2472 = vadd.f32 %v2431, %v2471
        %v2473 = vpop.f32.mrb[0].mxu0
        %v2474 = vadd.f32 %v2433, %v2473
        %v2475 = vpop.f32.mrb[0].mxu0
        %v2476 = vpop.f32.mrb[0].mxu0
        %2477 = vdwg.mxu0
        %2478 = vmatprep.subr.bf16.mxu0 %v2205
        %2479 = vmatpush1.bf16.msra.mxu0 %v2204
        %2480 = vmatprep.subr.bf16.mxu0 %v2208
        %2481 = vmatpush1.bf16.msra.mxu0 %v2207
        %2482 = vmatprep.subr.bf16.mxu0 %v2211
        %2483 = vmatpush1.bf16.msra.mxu0 %v2210
        %2484 = vmatprep.subr.bf16.mxu0 %v2214
        %2485 = vmatpush1.bf16.msra.mxu0 %v2213
        %2486 = vmatprep.subr.bf16.mxu0 %v2217
        %2487 = vmatpush1.bf16.msra.mxu0 %v2216
        %2488 = vmatprep.subr.bf16.mxu0 %v2220
        %2489 = vmatpush1.bf16.msra.mxu0 %v2219
        %2490 = vmatprep.subr.bf16.mxu0 %v2223
        %2491 = vmatpush1.bf16.msra.mxu0 %v2222
        %2492 = vmatprep.subr.bf16.mxu0 %v2226
        %2493 = vmatpush1.bf16.msra.mxu0 %v2225
        %2494 = vmatprep.subr.bf16.mxu0 %v2229
        %2495 = vmatpush1.bf16.msra.mxu0 %v2228
        %2496 = vmatprep.subr.bf16.mxu0 %v2232
        %2497 = vmatpush1.bf16.msra.mxu0 %v2231
        %2498 = vmatprep.subr.bf16.mxu0 %v2235
        %2499 = vmatpush1.bf16.msra.mxu0 %v2234
        %2500 = vmatprep.subr.bf16.mxu0 %v2238
        %2501 = vmatpush1.bf16.msra.mxu0 %v2237
        %2502 = vmatprep.subr.bf16.mxu0 %v2241
        %2503 = vmatpush1.bf16.msra.mxu0 %v2240
        %2504 = vmatprep.subr.bf16.mxu0 %v2244
        %2505 = vmatpush1.bf16.msra.mxu0 %v2243
        %2506 = vmatprep.subr.bf16.mxu0 %v2247
        %2507 = vmatpush1.bf16.msra.mxu0 %v2246
        %2508 = vmatprep.subr.bf16.mxu0 %v2250
        %2509 = vmatpush1.bf16.msra.mxu0 %v2249
        %2510 = vmatprep.mubr.bf16.mxu0 %v1418
        %2511 = vmatmul.mubr.bf16.gmra.mrb[0].mxu0 %v1417
        %v2512 = vpop.f32.mrb[0].mxu0
        %v2513 = vadd.f32 %v2472, %v2512
        %v2514 = vpop.f32.mrb[0].mxu0
        %v2515 = vadd.f32 %v2474, %v2514
        %v2516 = vpop.f32.mrb[0].mxu0
        %v2517 = vpop.f32.mrb[0].mxu0
        %2518 = vdwg.mxu0
        %2519 = vmatprep.subr.bf16.mxu0 0
        %2520 = vmatpush1.bf16.msra.mxu0 %v2110
        %2521 = vmatprep.subr.bf16.mxu0 0
        %2522 = vmatpush1.bf16.msra.mxu0 %v2113
        %2523 = vmatprep.subr.bf16.mxu0 0
        %2524 = vmatpush1.bf16.msra.mxu0 %v2116
        %2525 = vmatprep.subr.bf16.mxu0 0
        %2526 = vmatpush1.bf16.msra.mxu0 %v2119
        %2527 = vmatprep.subr.bf16.mxu0 0
        %2528 = vmatpush1.bf16.msra.mxu0 %v2122
        %2529 = vmatprep.subr.bf16.mxu0 0
        %2530 = vmatpush1.bf16.msra.mxu0 %v2125
        %2531 = vmatprep.subr.bf16.mxu0 0
        %2532 = vmatpush1.bf16.msra.mxu0 %v2128
        %2533 = vmatprep.subr.bf16.mxu0 0
        %2534 = vmatpush1.bf16.msra.mxu0 %v2131
        %2535 = vmatprep.subr.bf16.mxu0 0
        %2536 = vmatpush1.bf16.msra.mxu0 %v2134
        %2537 = vmatprep.subr.bf16.mxu0 0
        %2538 = vmatpush1.bf16.msra.mxu0 %v2137
        %2539 = vmatprep.subr.bf16.mxu0 0
        %2540 = vmatpush1.bf16.msra.mxu0 %v2140
        %2541 = vmatprep.subr.bf16.mxu0 0
        %2542 = vmatpush1.bf16.msra.mxu0 %v2143
        %2543 = vmatprep.subr.bf16.mxu0 0
        %2544 = vmatpush1.bf16.msra.mxu0 %v2146
        %2545 = vmatprep.subr.bf16.mxu0 0
        %2546 = vmatpush1.bf16.msra.mxu0 %v2149
        %2547 = vmatprep.subr.bf16.mxu0 0
        %2548 = vmatpush1.bf16.msra.mxu0 %v2152
        %2549 = vmatprep.subr.bf16.mxu0 0
        %2550 = vmatpush1.bf16.msra.mxu0 %v2155
        %2551 = vmatprep.mubr.bf16.mxu0 %v1414
        %2552 = vmatmul.mubr.bf16.gmra.mrb[0].mxu0 %v1413
        %v2553 = vpop.f32.mrb[0].mxu0
        %v2554 = vadd.f32 %v1624, %v2553
        %v2555 = vpop.f32.mrb[0].mxu0
        %v2556 = vpop.f32.mrb[0].mxu0
        %v2557 = vpop.f32.mrb[0].mxu0
        %2558 = vdwg.mxu0
        %2559 = vmatprep.subr.bf16.mxu0 0
        %2560 = vmatpush1.bf16.msra.mxu0 %v2158
        %2561 = vmatprep.subr.bf16.mxu0 0
        %2562 = vmatpush1.bf16.msra.mxu0 %v2161
        %2563 = vmatprep.subr.bf16.mxu0 0
        %2564 = vmatpush1.bf16.msra.mxu0 %v2164
        %2565 = vmatprep.subr.bf16.mxu0 0
        %2566 = vmatpush1.bf16.msra.mxu0 %v2167
        %2567 = vmatprep.subr.bf16.mxu0 0
        %2568 = vmatpush1.bf16.msra.mxu0 %v2170
        %2569 = vmatprep.subr.bf16.mxu0 0
        %2570 = vmatpush1.bf16.msra.mxu0 %v2173
        %2571 = vmatprep.subr.bf16.mxu0 0
        %2572 = vmatpush1.bf16.msra.mxu0 %v2176
        %2573 = vmatprep.subr.bf16.mxu0 0
        %2574 = vmatpush1.bf16.msra.mxu0 %v2179
        %2575 = vmatprep.subr.bf16.mxu0 0
        %2576 = vmatpush1.bf16.msra.mxu0 %v2182
        %2577 = vmatprep.subr.bf16.mxu0 0
        %2578 = vmatpush1.bf16.msra.mxu0 %v2185
        %2579 = vmatprep.subr.bf16.mxu0 0
        %2580 = vmatpush1.bf16.msra.mxu0 %v2188
        %2581 = vmatprep.subr.bf16.mxu0 0
        %2582 = vmatpush1.bf16.msra.mxu0 %v2191
        %2583 = vmatprep.subr.bf16.mxu0 0
        %2584 = vmatpush1.bf16.msra.mxu0 %v2194
        %2585 = vmatprep.subr.bf16.mxu0 0
        %2586 = vmatpush1.bf16.msra.mxu0 %v2197
        %2587 = vmatprep.subr.bf16.mxu0 0
        %2588 = vmatpush1.bf16.msra.mxu0 %v2200
        %2589 = vmatprep.subr.bf16.mxu0 0
        %2590 = vmatpush1.bf16.msra.mxu0 %v2203
        %2591 = vmatprep.mubr.bf16.mxu0 %v1416
        %2592 = vmatmul.mubr.bf16.gmra.mrb[0].mxu0 %v1415
        %v2593 = vpop.f32.mrb[0].mxu0
        %v2594 = vadd.f32 %v2554, %v2593
        %v2595 = vpop.f32.mrb[0].mxu0
        %v2596 = vpop.f32.mrb[0].mxu0
        %v2597 = vpop.f32.mrb[0].mxu0
        %2598 = vdwg.mxu0
        %2599 = vmatprep.subr.bf16.mxu0 0
        %2600 = vmatpush1.bf16.msra.mxu0 %v2206
        %2601 = vmatprep.subr.bf16.mxu0 0
        %2602 = vmatpush1.bf16.msra.mxu0 %v2209
        %2603 = vmatprep.subr.bf16.mxu0 0
        %2604 = vmatpush1.bf16.msra.mxu0 %v2212
        %2605 = vmatprep.subr.bf16.mxu0 0
        %2606 = vmatpush1.bf16.msra.mxu0 %v2215
        %2607 = vmatprep.subr.bf16.mxu0 0
        %2608 = vmatpush1.bf16.msra.mxu0 %v2218
        %2609 = vmatprep.subr.bf16.mxu0 0
        %2610 = vmatpush1.bf16.msra.mxu0 %v2221
        %2611 = vmatprep.subr.bf16.mxu0 0
        %2612 = vmatpush1.bf16.msra.mxu0 %v2224
        %2613 = vmatprep.subr.bf16.mxu0 0
        %2614 = vmatpush1.bf16.msra.mxu0 %v2227
        %2615 = vmatprep.subr.bf16.mxu0 0
        %2616 = vmatpush1.bf16.msra.mxu0 %v2230
        %2617 = vmatprep.subr.bf16.mxu0 0
        %2618 = vmatpush1.bf16.msra.mxu0 %v2233
        %2619 = vmatprep.subr.bf16.mxu0 0
        %2620 = vmatpush1.bf16.msra.mxu0 %v2236
        %2621 = vmatprep.subr.bf16.mxu0 0
        %2622 = vmatpush1.bf16.msra.mxu0 %v2239
        %2623 = vmatprep.subr.bf16.mxu0 0
        %2624 = vmatpush1.bf16.msra.mxu0 %v2242
        %2625 = vmatprep.subr.bf16.mxu0 0
        %2626 = vmatpush1.bf16.msra.mxu0 %v2245
        %2627 = vmatprep.subr.bf16.mxu0 0
        %2628 = vmatpush1.bf16.msra.mxu0 %v2248
        %2629 = vmatprep.subr.bf16.mxu0 0
        %2630 = vmatpush1.bf16.msra.mxu0 %v2251
        %2631 = vmatprep.mubr.bf16.mxu0 %v1418
        %2632 = vmatmul.mubr.bf16.gmra.mrb[0].mxu0 %v1417
        %v2633 = vpop.f32.mrb[0].mxu0
        %v2634 = vadd.f32 %v2594, %v2633
        %v2635 = vpop.f32.mrb[0].mxu0
        %v2636 = vpop.f32.mrb[0].mxu0
        %v2637 = vpop.f32.mrb[0].mxu0
        %2638 = vdwg.mxu0
        %s2639 = scalar_lea.vmem %s839, 64 [#allocation2]
        %v2640 = vld [vmem:[%s2639] sm:$0xf]
        %v2641 = vld [vmem:[%s2639 + $0x4] sm:$0xf]
        %v2642 = vld [vmem:[%s2639 + $0x8] sm:$0xf]
        %v2643 = vld [vmem:[%s2639 + $0xc] sm:$0xf]
        %v2644 = vld [vmem:[%s2639 + $0x10] sm:$0xf]
        %v2645 = vld [vmem:[%s2639 + $0x14] sm:$0xf]
        %v2646 = vld [vmem:[%s2639 + $0x18] sm:$0xf]
        %v2647 = vld [vmem:[%s2639 + $0x1c] sm:$0xf]
        %v2648 = vld [vmem:[%s2639 + $0x20] sm:$0xf]
        %v2649 = vld [vmem:[%s2639 + $0x24] sm:$0xf]
        %v2650 = vld [vmem:[%s2639 + $0x28] sm:$0xf]
        %v2651 = vld [vmem:[%s2639 + $0x2c] sm:$0xf]
        %v2652 = vld [vmem:[%s2639 + $0x30] sm:$0xf]
        %v2653 = vld [vmem:[%s2639 + $0x34] sm:$0xf]
        %v2654 = vld [vmem:[%s2639 + $0x38] sm:$0xf]
        %v2655 = vld [vmem:[%s2639 + $0x3c] sm:$0xf]
        %v2656 = vunpack.c.l.bf16 %v2640
        %v2657 = vunpack.c.l.bf16 %v2641
        %v2658 = vunpack.c.l.bf16 %v2642
        %v2659 = vunpack.c.l.bf16 %v2643
        %v2660 = vunpack.c.l.bf16 %v2644
        %v2661 = vunpack.c.l.bf16 %v2645
        %v2662 = vunpack.c.l.bf16 %v2646
        %v2663 = vunpack.c.l.bf16 %v2647
        %v2664 = vunpack.c.l.bf16 %v2648
        %v2665 = vunpack.c.l.bf16 %v2649
        %v2666 = vunpack.c.l.bf16 %v2650
        %v2667 = vunpack.c.l.bf16 %v2651
        %v2668 = vunpack.c.l.bf16 %v2652
        %v2669 = vunpack.c.l.bf16 %v2653
        %v2670 = vunpack.c.l.bf16 %v2654
        %v2671 = vunpack.c.l.bf16 %v2655
        %v2672 = vsel %vm1018, %v2656, 0.0
        %v2673 = vsel %vm1018, %v2657, 0.0
        %v2674 = vadd.f32 %v2672, %v2673
        %v2675 = vrot.slane %v2674, 4
        %v2676 = vadd.f32 %v2674, %v2675
        %v2677 = vrot.slane %v2676, 2
        %v2678 = vadd.f32 %v2676, %v2677
        %v2679 = vrot.slane %v2678, 1
        %v2680 = vadd.f32 %v2678, %v2679
        %v2681 = vsel %vm1018, %v2658, 0.0
        %v2682 = vsel %vm1018, %v2659, 0.0
        %v2683 = vadd.f32 %v2681, %v2682
        %v2684 = vrot.slane %v2683, 4
        %v2685 = vadd.f32 %v2683, %v2684
        %v2686 = vrot.slane %v2685, 2
        %v2687 = vadd.f32 %v2685, %v2686
        %v2688 = vrot.slane %v2687, 1
        %v2689 = vadd.f32 %v2687, %v2688
        %v2690 = vsel %vm1018, %v2660, 0.0
        %v2691 = vsel %vm1018, %v2661, 0.0
        %v2692 = vadd.f32 %v2690, %v2691
        %v2693 = vrot.slane %v2692, 4
        %v2694 = vadd.f32 %v2692, %v2693
        %v2695 = vrot.slane %v2694, 2
        %v2696 = vadd.f32 %v2694, %v2695
        %v2697 = vrot.slane %v2696, 1
        %v2698 = vadd.f32 %v2696, %v2697
        %v2699 = vsel %vm1018, %v2662, 0.0
        %v2700 = vsel %vm1018, %v2663, 0.0
        %v2701 = vadd.f32 %v2699, %v2700
        %v2702 = vrot.slane %v2701, 4
        %v2703 = vadd.f32 %v2701, %v2702
        %v2704 = vrot.slane %v2703, 2
        %v2705 = vadd.f32 %v2703, %v2704
        %v2706 = vrot.slane %v2705, 1
        %v2707 = vadd.f32 %v2705, %v2706
        %v2708 = vsel %vm1018, %v2664, 0.0
        %v2709 = vsel %vm1018, %v2665, 0.0
        %v2710 = vadd.f32 %v2708, %v2709
        %v2711 = vrot.slane %v2710, 4
        %v2712 = vadd.f32 %v2710, %v2711
        %v2713 = vrot.slane %v2712, 2
        %v2714 = vadd.f32 %v2712, %v2713
        %v2715 = vrot.slane %v2714, 1
        %v2716 = vadd.f32 %v2714, %v2715
        %v2717 = vsel %vm1018, %v2666, 0.0
        %v2718 = vsel %vm1018, %v2667, 0.0
        %v2719 = vadd.f32 %v2717, %v2718
        %v2720 = vrot.slane %v2719, 4
        %v2721 = vadd.f32 %v2719, %v2720
        %v2722 = vrot.slane %v2721, 2
        %v2723 = vadd.f32 %v2721, %v2722
        %v2724 = vrot.slane %v2723, 1
        %v2725 = vadd.f32 %v2723, %v2724
        %v2726 = vsel %vm1018, %v2668, 0.0
        %v2727 = vsel %vm1018, %v2669, 0.0
        %v2728 = vadd.f32 %v2726, %v2727
        %v2729 = vrot.slane %v2728, 4
        %v2730 = vadd.f32 %v2728, %v2729
        %v2731 = vrot.slane %v2730, 2
        %v2732 = vadd.f32 %v2730, %v2731
        %v2733 = vrot.slane %v2732, 1
        %v2734 = vadd.f32 %v2732, %v2733
        %v2735 = vsel %vm1018, %v2670, 0.0
        %v2736 = vsel %vm1018, %v2671, 0.0
        %v2737 = vadd.f32 %v2735, %v2736
        %v2738 = vrot.slane %v2737, 4
        %v2739 = vadd.f32 %v2737, %v2738
        %v2740 = vrot.slane %v2739, 2
        %v2741 = vadd.f32 %v2739, %v2740
        %v2742 = vrot.slane %v2741, 1
        %v2743 = vadd.f32 %v2741, %v2742
        %v2744 = vmul.f32 %v2680, %v1091
        %v2745 = vmul.f32 %v2689, %v1091
        %v2746 = vmul.f32 %v2698, %v1091
        %v2747 = vmul.f32 %v2707, %v1091
        %v2748 = vmul.f32 %v2716, %v1091
        %v2749 = vmul.f32 %v2725, %v1091
        %v2750 = vmul.f32 %v2734, %v1091
        %v2751 = vmul.f32 %v2743, %v1091
        %v2752 = vmul.f32 %v2744, 0.003921569
        %v2753 = vmul.f32 %v2745, 0.003921569
        %v2754 = vmul.f32 %v2746, 0.003921569
        %v2755 = vmul.f32 %v2747, 0.003921569
        %v2756 = vmul.f32 %v2748, 0.003921569
        %v2757 = vmul.f32 %v2749, 0.003921569
        %v2758 = vmul.f32 %v2750, 0.003921569
        %v2759 = vmul.f32 %v2751, 0.003921569
        %v2760 = vpack.c.bf16 %v2752, %v2752
        %v2761 = vpack.c.bf16 %v2753, %v2753
        %v2762 = vpack.c.bf16 %v2754, %v2754
        %v2763 = vpack.c.bf16 %v2755, %v2755
        %v2764 = vpack.c.bf16 %v2756, %v2756
        %v2765 = vpack.c.bf16 %v2757, %v2757
        %v2766 = vpack.c.bf16 %v2758, %v2758
        %v2767 = vpack.c.bf16 %v2759, %v2759
        %s2768 = scalar_lea.vmem [#allocation5], 144
        %v2769 = vld [vmem:[%s2768] sm:$0xff]
        %v2770 = vld [vmem:[%s2768 + $0x8] sm:$0xff]
        %v2771 = vld [vmem:[%s2768 + $0x10] sm:$0xff]
        %v2772 = vld [vmem:[%s2768 + $0x18] sm:$0xff]
        %v2773 = vld [vmem:[%s2768 + $0x20] sm:$0xff]
        %v2774 = vld [vmem:[%s2768 + $0x28] sm:$0xff]
        %v2775 = vld [vmem:[%s2768 + $0x30] sm:$0xff]
        %v2776 = vld [vmem:[%s2768 + $0x38] sm:$0xff]
        %v2777 = vld [vmem:[%s2768 + $0x40] sm:$0xff]
        %v2778 = vld [vmem:[%s2768 + $0x48] sm:$0xff]
        %v2779 = vld [vmem:[%s2768 + $0x50] sm:$0xff]
        %v2780 = vld [vmem:[%s2768 + $0x58] sm:$0xff]
        %v2781 = vld [vmem:[%s2768 + $0x60] sm:$0xff]
        %v2782 = vld [vmem:[%s2768 + $0x68] sm:$0xff]
        %v2783 = vld [vmem:[%s2768 + $0x70] sm:$0xff]
        %v2784 = vld [vmem:[%s2768 + $0x78] sm:$0xff]
        %v2785 = vld [vmem:[%s2768 + $0x80] sm:$0xff]
        %v2786 = vld [vmem:[%s2768 + $0x88] sm:$0xff]
        %s2787 = scalar_lea.vmem [#allocation7], 6
        %v2788 = vld [vmem:[%s2787] sm:$0x3f]
        %v2790 = vlaneseq
        %v2791 = vshrl.u32 %v2790, 7
        %v2792 = vsub.s32 0, %v2791
        %v2793 = vrot.slane %v2788, %v2792
        %v2794 = vlaneseq
        %v2795 = vshrl.u32 %v2794, 7
        %v2796 = vsub.s32 1, %v2795
        %v2797 = vrot.slane %v2788, %v2796
        %v2798 = vlaneseq
        %v2799 = vshrl.u32 %v2798, 7
        %v2800 = vsub.s32 2, %v2799
        %v2801 = vrot.slane %v2788, %v2800
        %v2802 = vlaneseq
        %v2803 = vshrl.u32 %v2802, 7
        %v2804 = vsub.s32 3, %v2803
        %v2805 = vrot.slane %v2788, %v2804
        %v2806 = vlaneseq
        %v2807 = vshrl.u32 %v2806, 7
        %v2808 = vsub.s32 4, %v2807
        %v2809 = vrot.slane %v2788, %v2808
        %v2810 = vlaneseq
        %v2811 = vshrl.u32 %v2810, 7
        %v2812 = vsub.s32 5, %v2811
        %v2813 = vrot.slane %v2788, %v2812
        %v2828 = vunpack.c.l.b16 %v2760
        %v2829 = vunpack.c.l.b16 %v2761
        %v2830 = vunpack.c.l.b16 %v2762
        %v2831 = vunpack.c.l.b16 %v2763
        %v2832 = vunpack.c.l.b16 %v2764
        %v2833 = vunpack.c.l.b16 %v2765
        %v2834 = vunpack.c.l.b16 %v2766
        %v2835 = vunpack.c.l.b16 %v2767
        %v2836 = vsel %vm1182, %v2829, %v2828
        %v2837 = vsel %vm1184, %v2830, %v2836
        %v2838 = vsel %vm1186, %v2831, %v2837
        %v2839 = vsel %vm1188, %v2832, %v2838
        %v2840 = vsel %vm1190, %v2833, %v2839
        %v2841 = vsel %vm1192, %v2834, %v2840
        %v2842 = vsel %vm1194, %v2835, %v2841
        %v2843 = vpack.c.b16 %v2842, %v2842
        %v2862 = vunpack.c.l.b16 %v2769
        %v2863 = vunpack.c.h.b16 %v2769
        %v2864 = vunpack.c.l.b16 %v2770
        %v2865 = vunpack.c.h.b16 %v2770
        %v2866 = vunpack.c.l.b16 %v2771
        %v2867 = vunpack.c.h.b16 %v2771
        %v2868 = vunpack.c.l.b16 %v2772
        %v2869 = vunpack.c.h.b16 %v2772
        %v2870 = vunpack.c.l.b16 %v2773
        %v2871 = vunpack.c.h.b16 %v2773
        %v2872 = vunpack.c.l.b16 %v2774
        %v2873 = vunpack.c.h.b16 %v2774
        %v2874 = vunpack.c.l.b16 %v2775
        %v2875 = vunpack.c.h.b16 %v2775
        %v2876 = vunpack.c.l.b16 %v2776
        %v2877 = vunpack.c.h.b16 %v2776
        %v2878 = vunpack.c.l.b16 %v2777
        %v2879 = vunpack.c.h.b16 %v2777
        %v2880 = vunpack.c.l.b16 %v2778
        %v2881 = vunpack.c.h.b16 %v2778
        %v2882 = vunpack.c.l.b16 %v2779
        %v2883 = vunpack.c.h.b16 %v2779
        %v2884 = vunpack.c.l.b16 %v2780
        %v2885 = vunpack.c.h.b16 %v2780
        %v2886 = vunpack.c.l.b16 %v2781
        %v2887 = vunpack.c.h.b16 %v2781
        %v2888 = vunpack.c.l.b16 %v2782
        %v2889 = vunpack.c.h.b16 %v2782
        %v2890 = vunpack.c.l.b16 %v2783
        %v2891 = vunpack.c.h.b16 %v2783
        %v2892 = vunpack.c.l.b16 %v2784
        %v2893 = vunpack.c.h.b16 %v2784
        %v2894 = vunpack.c.l.b16 %v2785
        %v2895 = vunpack.c.h.b16 %v2785
        %v2896 = vunpack.c.l.b16 %v2786
        %v2897 = vunpack.c.h.b16 %v2786
        %v2898 = vpack.c.b16 %v2868, %v2862
        %v2899 = vpack.c.b16 %v2869, %v2863
        %v2900 = vpack.c.b16 %v2870, %v2864
        %v2901 = vpack.c.b16 %v2871, %v2865
        %v2902 = vpack.c.b16 %v2872, %v2866
        %v2903 = vpack.c.b16 %v2873, %v2867
        %v2904 = vpack.c.b16 %v2880, %v2874
        %v2905 = vpack.c.b16 %v2881, %v2875
        %v2906 = vpack.c.b16 %v2882, %v2876
        %v2907 = vpack.c.b16 %v2883, %v2877
        %v2908 = vpack.c.b16 %v2884, %v2878
        %v2909 = vpack.c.b16 %v2885, %v2879
        %v2910 = vpack.c.b16 %v2892, %v2886
        %v2911 = vpack.c.b16 %v2893, %v2887
        %v2912 = vpack.c.b16 %v2894, %v2888
        %v2913 = vpack.c.b16 %v2895, %v2889
        %v2914 = vpack.c.b16 %v2896, %v2890
        %v2915 = vpack.c.b16 %v2897, %v2891
        %v2935 = vsel %vm1018, %v2843, 0
        %2937 = vmatprep.subr.bf16.mxu0 %v2899
        %2938 = vmatpush1.bf16.msra.mxu0 %v2898
        %2939 = vmatprep.subr.bf16.mxu0 %v2905
        %2940 = vmatpush1.bf16.msra.mxu0 %v2904
        %2941 = vmatprep.subr.bf16.mxu0 %v2911
        %2942 = vmatpush1.bf16.msra.mxu0 %v2910
        %2943 = vmatprep.subr.bf16.mxu0 0
        %2944 = vmatpush1.bf16.msra.mxu0 0
        %2945 = vmatprep.subr.bf16.mxu0 0
        %2946 = vmatpush1.bf16.msra.mxu0 0
        %2947 = vmatprep.subr.bf16.mxu0 0
        %2948 = vmatpush1.bf16.msra.mxu0 0
        %2949 = vmatprep.subr.bf16.mxu0 0
        %2950 = vmatpush1.bf16.msra.mxu0 0
        %2951 = vmatprep.subr.bf16.mxu0 0
        %2952 = vmatpush1.bf16.msra.mxu0 0
        %2953 = vmatprep.subr.bf16.mxu0 0
        %2954 = vmatpush1.bf16.msra.mxu0 0
        %2955 = vmatprep.subr.bf16.mxu0 0
        %2956 = vmatpush1.bf16.msra.mxu0 0
        %2957 = vmatprep.subr.bf16.mxu0 0
        %2958 = vmatpush1.bf16.msra.mxu0 0
        %2959 = vmatprep.subr.bf16.mxu0 0
        %2960 = vmatpush1.bf16.msra.mxu0 0
        %2961 = vmatprep.subr.bf16.mxu0 0
        %2962 = vmatpush1.bf16.msra.mxu0 0
        %2963 = vmatprep.subr.bf16.mxu0 0
        %2964 = vmatpush1.bf16.msra.mxu0 0
        %2965 = vmatprep.subr.bf16.mxu0 0
        %2966 = vmatpush1.bf16.msra.mxu0 0
        %2967 = vmatprep.subr.bf16.mxu0 0
        %2968 = vmatpush1.bf16.msra.mxu0 0
        %2969 = vmatprep.mubr.bf16.mxu0 0
        %2970 = vmatmul.mubr.bf16.gmra.mrb[0].mxu0 %v2935
        %v2971 = vpop.f32.mrb[0].mxu0
        %v2972 = vadd.f32 %v2793, %v2971
        %v2973 = vpop.f32.mrb[0].mxu0
        %v2974 = vadd.f32 %v2797, %v2973
        %v2975 = vpop.f32.mrb[0].mxu0
        %v2976 = vpop.f32.mrb[0].mxu0
        %2977 = vdwg.mxu0
        %2978 = vmatprep.subr.bf16.mxu0 %v2901
        %2979 = vmatpush1.bf16.msra.mxu0 %v2900
        %2980 = vmatprep.subr.bf16.mxu0 %v2907
        %2981 = vmatpush1.bf16.msra.mxu0 %v2906
        %2982 = vmatprep.subr.bf16.mxu0 %v2913
        %2983 = vmatpush1.bf16.msra.mxu0 %v2912
        %2984 = vmatprep.subr.bf16.mxu0 0
        %2985 = vmatpush1.bf16.msra.mxu0 0
        %2986 = vmatprep.subr.bf16.mxu0 0
        %2987 = vmatpush1.bf16.msra.mxu0 0
        %2988 = vmatprep.subr.bf16.mxu0 0
        %2989 = vmatpush1.bf16.msra.mxu0 0
        %2990 = vmatprep.subr.bf16.mxu0 0
        %2991 = vmatpush1.bf16.msra.mxu0 0
        %2992 = vmatprep.subr.bf16.mxu0 0
        %2993 = vmatpush1.bf16.msra.mxu0 0
        %2994 = vmatprep.subr.bf16.mxu0 0
        %2995 = vmatpush1.bf16.msra.mxu0 0
        %2996 = vmatprep.subr.bf16.mxu0 0
        %2997 = vmatpush1.bf16.msra.mxu0 0
        %2998 = vmatprep.subr.bf16.mxu0 0
        %2999 = vmatpush1.bf16.msra.mxu0 0
        %3000 = vmatprep.subr.bf16.mxu0 0
        %3001 = vmatpush1.bf16.msra.mxu0 0
        %3002 = vmatprep.subr.bf16.mxu0 0
        %3003 = vmatpush1.bf16.msra.mxu0 0
        %3004 = vmatprep.subr.bf16.mxu0 0
        %3005 = vmatpush1.bf16.msra.mxu0 0
        %3006 = vmatprep.subr.bf16.mxu0 0
        %3007 = vmatpush1.bf16.msra.mxu0 0
        %3008 = vmatprep.subr.bf16.mxu0 0
        %3009 = vmatpush1.bf16.msra.mxu0 0
        %3010 = vmatprep.mubr.bf16.mxu0 0
        %3011 = vmatmul.mubr.bf16.gmra.mrb[0].mxu0 %v2935
        %v3012 = vpop.f32.mrb[0].mxu0
        %v3013 = vadd.f32 %v2801, %v3012
        %v3014 = vpop.f32.mrb[0].mxu0
        %v3015 = vadd.f32 %v2805, %v3014
        %v3016 = vpop.f32.mrb[0].mxu0
        %v3017 = vpop.f32.mrb[0].mxu0
        %3018 = vdwg.mxu0
        %3019 = vmatprep.subr.bf16.mxu0 %v2903
        %3020 = vmatpush1.bf16.msra.mxu0 %v2902
        %3021 = vmatprep.subr.bf16.mxu0 %v2909
        %3022 = vmatpush1.bf16.msra.mxu0 %v2908
        %3023 = vmatprep.subr.bf16.mxu0 %v2915
        %3024 = vmatpush1.bf16.msra.mxu0 %v2914
        %3025 = vmatprep.subr.bf16.mxu0 0
        %3026 = vmatpush1.bf16.msra.mxu0 0
        %3027 = vmatprep.subr.bf16.mxu0 0
        %3028 = vmatpush1.bf16.msra.mxu0 0
        %3029 = vmatprep.subr.bf16.mxu0 0
        %3030 = vmatpush1.bf16.msra.mxu0 0
        %3031 = vmatprep.subr.bf16.mxu0 0
        %3032 = vmatpush1.bf16.msra.mxu0 0
        %3033 = vmatprep.subr.bf16.mxu0 0
        %3034 = vmatpush1.bf16.msra.mxu0 0
        %3035 = vmatprep.subr.bf16.mxu0 0
        %3036 = vmatpush1.bf16.msra.mxu0 0
        %3037 = vmatprep.subr.bf16.mxu0 0
        %3038 = vmatpush1.bf16.msra.mxu0 0
        %3039 = vmatprep.subr.bf16.mxu0 0
        %3040 = vmatpush1.bf16.msra.mxu0 0
        %3041 = vmatprep.subr.bf16.mxu0 0
        %3042 = vmatpush1.bf16.msra.mxu0 0
        %3043 = vmatprep.subr.bf16.mxu0 0
        %3044 = vmatpush1.bf16.msra.mxu0 0
        %3045 = vmatprep.subr.bf16.mxu0 0
        %3046 = vmatpush1.bf16.msra.mxu0 0
        %3047 = vmatprep.subr.bf16.mxu0 0
        %3048 = vmatpush1.bf16.msra.mxu0 0
        %3049 = vmatprep.subr.bf16.mxu0 0
        %3050 = vmatpush1.bf16.msra.mxu0 0
        %3051 = vmatprep.mubr.bf16.mxu0 0
        %3052 = vmatmul.mubr.bf16.gmra.mrb[0].mxu0 %v2935
        %v3053 = vpop.f32.mrb[0].mxu0
        %v3054 = vadd.f32 %v2809, %v3053
        %v3055 = vpop.f32.mrb[0].mxu0
        %v3056 = vadd.f32 %v2813, %v3055
        %v3057 = vpop.f32.mrb[0].mxu0
        %v3058 = vpop.f32.mrb[0].mxu0
        %3059 = vdwg.mxu0
        %v3060 = vpack.c.bf16 %v2972, %v2972
        %v3061 = vpack.c.bf16 %v2974, %v2974
        %v3062 = vpack.c.bf16 %v3013, %v3013
        %v3063 = vpack.c.bf16 %v3015, %v3015
        %v3064 = vpack.c.bf16 %v3054, %v3054
        %v3065 = vpack.c.bf16 %v3056, %v3056
        %s3066 = scalar_lea.vmem [#allocation8], 1152
        %v3067 = vld [vmem:[%s3066] sm:$0xff]
        %v3068 = vld [vmem:[%s3066 + $0x8] sm:$0xf]
        %v3069 = vld [vmem:[%s3066 + $0xc] sm:$0xff]
        %v3070 = vld [vmem:[%s3066 + $0x14] sm:$0xf]
        %v3071 = vld [vmem:[%s3066 + $0x18] sm:$0xff]
        %v3072 = vld [vmem:[%s3066 + $0x20] sm:$0xf]
        %v3073 = vld [vmem:[%s3066 + $0x24] sm:$0xff]
        %v3074 = vld [vmem:[%s3066 + $0x2c] sm:$0xf]
        %v3075 = vld [vmem:[%s3066 + $0x30] sm:$0xff]
        %v3076 = vld [vmem:[%s3066 + $0x38] sm:$0xf]
        %v3077 = vld [vmem:[%s3066 + $0x3c] sm:$0xff]
        %v3078 = vld [vmem:[%s3066 + $0x44] sm:$0xf]
        %v3079 = vld [vmem:[%s3066 + $0x48] sm:$0xff]
        %v3080 = vld [vmem:[%s3066 + $0x50] sm:$0xf]
        %v3081 = vld [vmem:[%s3066 + $0x54] sm:$0xff]
        %v3082 = vld [vmem:[%s3066 + $0x5c] sm:$0xf]
        %v3083 = vld [vmem:[%s3066 + $0x60] sm:$0xff]
        %v3084 = vld [vmem:[%s3066 + $0x68] sm:$0xf]
        %v3085 = vld [vmem:[%s3066 + $0x6c] sm:$0xff]
        %v3086 = vld [vmem:[%s3066 + $0x74] sm:$0xf]
        %v3087 = vld [vmem:[%s3066 + $0x78] sm:$0xff]
        %v3088 = vld [vmem:[%s3066 + $0x80] sm:$0xf]
        %v3089 = vld [vmem:[%s3066 + $0x84] sm:$0xff]
        %v3090 = vld [vmem:[%s3066 + $0x8c] sm:$0xf]
        %v3091 = vld [vmem:[%s3066 + $0x90] sm:$0xff]
        %v3092 = vld [vmem:[%s3066 + $0x98] sm:$0xf]
        %v3093 = vld [vmem:[%s3066 + $0x9c] sm:$0xff]
        %v3094 = vld [vmem:[%s3066 + $0xa4] sm:$0xf]
        %v3095 = vld [vmem:[%s3066 + $0xa8] sm:$0xff]
        %v3096 = vld [vmem:[%s3066 + $0xb0] sm:$0xf]
        %v3097 = vld [vmem:[%s3066 + $0xb4] sm:$0xff]
        %v3098 = vld [vmem:[%s3066 + $0xbc] sm:$0xf]
        %v3099 = vld [vmem:[%s3066 + $0xc0] sm:$0xff]
        %v3100 = vld [vmem:[%s3066 + $0xc8] sm:$0xf]
        %v3101 = vld [vmem:[%s3066 + $0xcc] sm:$0xff]
        %v3102 = vld [vmem:[%s3066 + $0xd4] sm:$0xf]
        %v3103 = vld [vmem:[%s3066 + $0xd8] sm:$0xff]
        %v3104 = vld [vmem:[%s3066 + $0xe0] sm:$0xf]
        %v3105 = vld [vmem:[%s3066 + $0xe4] sm:$0xff]
        %v3106 = vld [vmem:[%s3066 + $0xec] sm:$0xf]
        %v3107 = vld [vmem:[%s3066 + $0xf0] sm:$0xff]
        %v3108 = vld [vmem:[%s3066 + $0xf8] sm:$0xf]
        %v3109 = vld [vmem:[%s3066 + $0xfc] sm:$0xff]
        %v3110 = vld [vmem:[%s3066 + $0x104] sm:$0xf]
        %v3111 = vld [vmem:[%s3066 + $0x108] sm:$0xff]
        %v3112 = vld [vmem:[%s3066 + $0x110] sm:$0xf]
        %v3113 = vld [vmem:[%s3066 + $0x114] sm:$0xff]
        %v3114 = vld [vmem:[%s3066 + $0x11c] sm:$0xf]
        %v3115 = vld [vmem:[%s3066 + $0x120] sm:$0xff]
        %v3116 = vld [vmem:[%s3066 + $0x128] sm:$0xf]
        %v3117 = vld [vmem:[%s3066 + $0x12c] sm:$0xff]
        %v3118 = vld [vmem:[%s3066 + $0x134] sm:$0xf]
        %v3119 = vld [vmem:[%s3066 + $0x138] sm:$0xff]
        %v3120 = vld [vmem:[%s3066 + $0x140] sm:$0xf]
        %v3121 = vld [vmem:[%s3066 + $0x144] sm:$0xff]
        %v3122 = vld [vmem:[%s3066 + $0x14c] sm:$0xf]
        %v3123 = vld [vmem:[%s3066 + $0x150] sm:$0xff]
        %v3124 = vld [vmem:[%s3066 + $0x158] sm:$0xf]
        %v3125 = vld [vmem:[%s3066 + $0x15c] sm:$0xff]
        %v3126 = vld [vmem:[%s3066 + $0x164] sm:$0xf]
        %v3127 = vld [vmem:[%s3066 + $0x168] sm:$0xff]
        %v3128 = vld [vmem:[%s3066 + $0x170] sm:$0xf]
        %v3129 = vld [vmem:[%s3066 + $0x174] sm:$0xff]
        %v3130 = vld [vmem:[%s3066 + $0x17c] sm:$0xf]
        %v3131 = vld [vmem:[%s3066 + $0x180] sm:$0xff]
        %v3132 = vld [vmem:[%s3066 + $0x188] sm:$0xf]
        %v3133 = vld [vmem:[%s3066 + $0x18c] sm:$0xff]
        %v3134 = vld [vmem:[%s3066 + $0x194] sm:$0xf]
        %v3135 = vld [vmem:[%s3066 + $0x198] sm:$0xff]
        %v3136 = vld [vmem:[%s3066 + $0x1a0] sm:$0xf]
        %v3137 = vld [vmem:[%s3066 + $0x1a4] sm:$0xff]
        %v3138 = vld [vmem:[%s3066 + $0x1ac] sm:$0xf]
        %v3139 = vld [vmem:[%s3066 + $0x1b0] sm:$0xff]
        %v3140 = vld [vmem:[%s3066 + $0x1b8] sm:$0xf]
        %v3141 = vld [vmem:[%s3066 + $0x1bc] sm:$0xff]
        %v3142 = vld [vmem:[%s3066 + $0x1c4] sm:$0xf]
        %v3143 = vld [vmem:[%s3066 + $0x1c8] sm:$0xff]
        %v3144 = vld [vmem:[%s3066 + $0x1d0] sm:$0xf]
        %v3145 = vld [vmem:[%s3066 + $0x1d4] sm:$0xff]
        %v3146 = vld [vmem:[%s3066 + $0x1dc] sm:$0xf]
        %v3147 = vld [vmem:[%s3066 + $0x1e0] sm:$0xff]
        %v3148 = vld [vmem:[%s3066 + $0x1e8] sm:$0xf]
        %v3149 = vld [vmem:[%s3066 + $0x1ec] sm:$0xff]
        %v3150 = vld [vmem:[%s3066 + $0x1f4] sm:$0xf]
        %v3151 = vld [vmem:[%s3066 + $0x1f8] sm:$0xff]
        %v3152 = vld [vmem:[%s3066 + $0x200] sm:$0xf]
        %v3153 = vld [vmem:[%s3066 + $0x204] sm:$0xff]
        %v3154 = vld [vmem:[%s3066 + $0x20c] sm:$0xf]
        %v3155 = vld [vmem:[%s3066 + $0x210] sm:$0xff]
        %v3156 = vld [vmem:[%s3066 + $0x218] sm:$0xf]
        %v3157 = vld [vmem:[%s3066 + $0x21c] sm:$0xff]
        %v3158 = vld [vmem:[%s3066 + $0x224] sm:$0xf]
        %v3159 = vld [vmem:[%s3066 + $0x228] sm:$0xff]
        %v3160 = vld [vmem:[%s3066 + $0x230] sm:$0xf]
        %v3161 = vld [vmem:[%s3066 + $0x234] sm:$0xff]
        %v3162 = vld [vmem:[%s3066 + $0x23c] sm:$0xf]
        %v3163 = vld [vmem:[%s3066 + $0x240] sm:$0xff]
        %v3164 = vld [vmem:[%s3066 + $0x248] sm:$0xf]
        %v3165 = vld [vmem:[%s3066 + $0x24c] sm:$0xff]
        %v3166 = vld [vmem:[%s3066 + $0x254] sm:$0xf]
        %v3167 = vld [vmem:[%s3066 + $0x258] sm:$0xff]
        %v3168 = vld [vmem:[%s3066 + $0x260] sm:$0xf]
        %v3169 = vld [vmem:[%s3066 + $0x264] sm:$0xff]
        %v3170 = vld [vmem:[%s3066 + $0x26c] sm:$0xf]
        %v3171 = vld [vmem:[%s3066 + $0x270] sm:$0xff]
        %v3172 = vld [vmem:[%s3066 + $0x278] sm:$0xf]
        %v3173 = vld [vmem:[%s3066 + $0x27c] sm:$0xff]
        %v3174 = vld [vmem:[%s3066 + $0x284] sm:$0xf]
        %v3175 = vld [vmem:[%s3066 + $0x288] sm:$0xff]
        %v3176 = vld [vmem:[%s3066 + $0x290] sm:$0xf]
        %v3177 = vld [vmem:[%s3066 + $0x294] sm:$0xff]
        %v3178 = vld [vmem:[%s3066 + $0x29c] sm:$0xf]
        %v3179 = vld [vmem:[%s3066 + $0x2a0] sm:$0xff]
        %v3180 = vld [vmem:[%s3066 + $0x2a8] sm:$0xf]
        %v3181 = vld [vmem:[%s3066 + $0x2ac] sm:$0xff]
        %v3182 = vld [vmem:[%s3066 + $0x2b4] sm:$0xf]
        %v3183 = vld [vmem:[%s3066 + $0x2b8] sm:$0xff]
        %v3184 = vld [vmem:[%s3066 + $0x2c0] sm:$0xf]
        %v3185 = vld [vmem:[%s3066 + $0x2c4] sm:$0xff]
        %v3186 = vld [vmem:[%s3066 + $0x2cc] sm:$0xf]
        %v3187 = vld [vmem:[%s3066 + $0x2d0] sm:$0xff]
        %v3188 = vld [vmem:[%s3066 + $0x2d8] sm:$0xf]
        %v3189 = vld [vmem:[%s3066 + $0x2dc] sm:$0xff]
        %v3190 = vld [vmem:[%s3066 + $0x2e4] sm:$0xf]
        %v3191 = vld [vmem:[%s3066 + $0x2e8] sm:$0xff]
        %v3192 = vld [vmem:[%s3066 + $0x2f0] sm:$0xf]
        %v3193 = vld [vmem:[%s3066 + $0x2f4] sm:$0xff]
        %v3194 = vld [vmem:[%s3066 + $0x2fc] sm:$0xf]
        %v3195 = vld [vmem:[%s3066 + $0x300] sm:$0xff]
        %v3196 = vld [vmem:[%s3066 + $0x308] sm:$0xf]
        %v3197 = vld [vmem:[%s3066 + $0x30c] sm:$0xff]
        %v3198 = vld [vmem:[%s3066 + $0x314] sm:$0xf]
        %v3199 = vld [vmem:[%s3066 + $0x318] sm:$0xff]
        %v3200 = vld [vmem:[%s3066 + $0x320] sm:$0xf]
        %v3201 = vld [vmem:[%s3066 + $0x324] sm:$0xff]
        %v3202 = vld [vmem:[%s3066 + $0x32c] sm:$0xf]
        %v3203 = vld [vmem:[%s3066 + $0x330] sm:$0xff]
        %v3204 = vld [vmem:[%s3066 + $0x338] sm:$0xf]
        %v3205 = vld [vmem:[%s3066 + $0x33c] sm:$0xff]
        %v3206 = vld [vmem:[%s3066 + $0x344] sm:$0xf]
        %v3207 = vld [vmem:[%s3066 + $0x348] sm:$0xff]
        %v3208 = vld [vmem:[%s3066 + $0x350] sm:$0xf]
        %v3209 = vld [vmem:[%s3066 + $0x354] sm:$0xff]
        %v3210 = vld [vmem:[%s3066 + $0x35c] sm:$0xf]
        %v3211 = vld [vmem:[%s3066 + $0x360] sm:$0xff]
        %v3212 = vld [vmem:[%s3066 + $0x368] sm:$0xf]
        %v3213 = vld [vmem:[%s3066 + $0x36c] sm:$0xff]
        %v3214 = vld [vmem:[%s3066 + $0x374] sm:$0xf]
        %v3215 = vld [vmem:[%s3066 + $0x378] sm:$0xff]
        %v3216 = vld [vmem:[%s3066 + $0x380] sm:$0xf]
        %v3217 = vld [vmem:[%s3066 + $0x384] sm:$0xff]
        %v3218 = vld [vmem:[%s3066 + $0x38c] sm:$0xf]
        %v3219 = vld [vmem:[%s3066 + $0x390] sm:$0xff]
        %v3220 = vld [vmem:[%s3066 + $0x398] sm:$0xf]
        %v3221 = vld [vmem:[%s3066 + $0x39c] sm:$0xff]
        %v3222 = vld [vmem:[%s3066 + $0x3a4] sm:$0xf]
        %v3223 = vld [vmem:[%s3066 + $0x3a8] sm:$0xff]
        %v3224 = vld [vmem:[%s3066 + $0x3b0] sm:$0xf]
        %v3225 = vld [vmem:[%s3066 + $0x3b4] sm:$0xff]
        %v3226 = vld [vmem:[%s3066 + $0x3bc] sm:$0xf]
        %v3227 = vld [vmem:[%s3066 + $0x3c0] sm:$0xff]
        %v3228 = vld [vmem:[%s3066 + $0x3c8] sm:$0xf]
        %v3229 = vld [vmem:[%s3066 + $0x3cc] sm:$0xff]
        %v3230 = vld [vmem:[%s3066 + $0x3d4] sm:$0xf]
        %v3231 = vld [vmem:[%s3066 + $0x3d8] sm:$0xff]
        %v3232 = vld [vmem:[%s3066 + $0x3e0] sm:$0xf]
        %v3233 = vld [vmem:[%s3066 + $0x3e4] sm:$0xff]
        %v3234 = vld [vmem:[%s3066 + $0x3ec] sm:$0xf]
        %v3235 = vld [vmem:[%s3066 + $0x3f0] sm:$0xff]
        %v3236 = vld [vmem:[%s3066 + $0x3f8] sm:$0xf]
        %v3237 = vld [vmem:[%s3066 + $0x3fc] sm:$0xff]
        %v3238 = vld [vmem:[%s3066 + $0x404] sm:$0xf]
        %v3239 = vld [vmem:[%s3066 + $0x408] sm:$0xff]
        %v3240 = vld [vmem:[%s3066 + $0x410] sm:$0xf]
        %v3241 = vld [vmem:[%s3066 + $0x414] sm:$0xff]
        %v3242 = vld [vmem:[%s3066 + $0x41c] sm:$0xf]
        %v3243 = vld [vmem:[%s3066 + $0x420] sm:$0xff]
        %v3244 = vld [vmem:[%s3066 + $0x428] sm:$0xf]
        %v3245 = vld [vmem:[%s3066 + $0x42c] sm:$0xff]
        %v3246 = vld [vmem:[%s3066 + $0x434] sm:$0xf]
        %v3247 = vld [vmem:[%s3066 + $0x438] sm:$0xff]
        %v3248 = vld [vmem:[%s3066 + $0x440] sm:$0xf]
        %v3249 = vld [vmem:[%s3066 + $0x444] sm:$0xff]
        %v3250 = vld [vmem:[%s3066 + $0x44c] sm:$0xf]
        %v3251 = vld [vmem:[%s3066 + $0x450] sm:$0xff]
        %v3252 = vld [vmem:[%s3066 + $0x458] sm:$0xf]
        %v3253 = vld [vmem:[%s3066 + $0x45c] sm:$0xff]
        %v3254 = vld [vmem:[%s3066 + $0x464] sm:$0xf]
        %v3255 = vld [vmem:[%s3066 + $0x468] sm:$0xff]
        %v3256 = vld [vmem:[%s3066 + $0x470] sm:$0xf]
        %v3257 = vld [vmem:[%s3066 + $0x474] sm:$0xff]
        %v3258 = vld [vmem:[%s3066 + $0x47c] sm:$0xf]
        %s3259 = scalar_lea.vmem [#allocation10], 3
        %v3260 = vld [vmem:[%s3259] sm:$0x7]
        %v3262 = vlaneseq
        %v3263 = vshrl.u32 %v3262, 7
        %v3264 = vsub.s32 0, %v3263
        %v3265 = vrot.slane %v3260, %v3264
        %v3266 = vlaneseq
        %v3267 = vshrl.u32 %v3266, 7
        %v3268 = vsub.s32 1, %v3267
        %v3269 = vrot.slane %v3260, %v3268
        %v3270 = vlaneseq
        %v3271 = vshrl.u32 %v3270, 7
        %v3272 = vsub.s32 2, %v3271
        %v3273 = vrot.slane %v3260, %v3272
        %v3469 = vunpack.c.l.b16 %v3067
        %v3470 = vunpack.c.h.b16 %v3067
        %v3471 = vunpack.c.l.b16 %v3068
        %v3472 = vunpack.c.l.b16 %v3069
        %v3473 = vunpack.c.h.b16 %v3069
        %v3474 = vunpack.c.l.b16 %v3070
        %v3475 = vunpack.c.l.b16 %v3071
        %v3476 = vunpack.c.h.b16 %v3071
        %v3477 = vunpack.c.l.b16 %v3072
        %v3478 = vunpack.c.l.b16 %v3073
        %v3479 = vunpack.c.h.b16 %v3073
        %v3480 = vunpack.c.l.b16 %v3074
        %v3481 = vunpack.c.l.b16 %v3075
        %v3482 = vunpack.c.h.b16 %v3075
        %v3483 = vunpack.c.l.b16 %v3076
        %v3484 = vunpack.c.l.b16 %v3077
        %v3485 = vunpack.c.h.b16 %v3077
        %v3486 = vunpack.c.l.b16 %v3078
        %v3487 = vunpack.c.l.b16 %v3079
        %v3488 = vunpack.c.h.b16 %v3079
        %v3489 = vunpack.c.l.b16 %v3080
        %v3490 = vunpack.c.l.b16 %v3081
        %v3491 = vunpack.c.h.b16 %v3081
        %v3492 = vunpack.c.l.b16 %v3082
        %v3493 = vunpack.c.l.b16 %v3083
        %v3494 = vunpack.c.h.b16 %v3083
        %v3495 = vunpack.c.l.b16 %v3084
        %v3496 = vunpack.c.l.b16 %v3085
        %v3497 = vunpack.c.h.b16 %v3085
        %v3498 = vunpack.c.l.b16 %v3086
        %v3499 = vunpack.c.l.b16 %v3087
        %v3500 = vunpack.c.h.b16 %v3087
        %v3501 = vunpack.c.l.b16 %v3088
        %v3502 = vunpack.c.l.b16 %v3089
        %v3503 = vunpack.c.h.b16 %v3089
        %v3504 = vunpack.c.l.b16 %v3090
        %v3505 = vunpack.c.l.b16 %v3091
        %v3506 = vunpack.c.h.b16 %v3091
        %v3507 = vunpack.c.l.b16 %v3092
        %v3508 = vunpack.c.l.b16 %v3093
        %v3509 = vunpack.c.h.b16 %v3093
        %v3510 = vunpack.c.l.b16 %v3094
        %v3511 = vunpack.c.l.b16 %v3095
        %v3512 = vunpack.c.h.b16 %v3095
        %v3513 = vunpack.c.l.b16 %v3096
        %v3514 = vunpack.c.l.b16 %v3097
        %v3515 = vunpack.c.h.b16 %v3097
        %v3516 = vunpack.c.l.b16 %v3098
        %v3517 = vunpack.c.l.b16 %v3099
        %v3518 = vunpack.c.h.b16 %v3099
        %v3519 = vunpack.c.l.b16 %v3100
        %v3520 = vunpack.c.l.b16 %v3101
        %v3521 = vunpack.c.h.b16 %v3101
        %v3522 = vunpack.c.l.b16 %v3102
        %v3523 = vunpack.c.l.b16 %v3103
        %v3524 = vunpack.c.h.b16 %v3103
        %v3525 = vunpack.c.l.b16 %v3104
        %v3526 = vunpack.c.l.b16 %v3105
        %v3527 = vunpack.c.h.b16 %v3105
        %v3528 = vunpack.c.l.b16 %v3106
        %v3529 = vunpack.c.l.b16 %v3107
        %v3530 = vunpack.c.h.b16 %v3107
        %v3531 = vunpack.c.l.b16 %v3108
        %v3532 = vunpack.c.l.b16 %v3109
        %v3533 = vunpack.c.h.b16 %v3109
        %v3534 = vunpack.c.l.b16 %v3110
        %v3535 = vunpack.c.l.b16 %v3111
        %v3536 = vunpack.c.h.b16 %v3111
        %v3537 = vunpack.c.l.b16 %v3112
        %v3538 = vunpack.c.l.b16 %v3113
        %v3539 = vunpack.c.h.b16 %v3113
        %v3540 = vunpack.c.l.b16 %v3114
        %v3541 = vunpack.c.l.b16 %v3115
        %v3542 = vunpack.c.h.b16 %v3115
        %v3543 = vunpack.c.l.b16 %v3116
        %v3544 = vunpack.c.l.b16 %v3117
        %v3545 = vunpack.c.h.b16 %v3117
        %v3546 = vunpack.c.l.b16 %v3118
        %v3547 = vunpack.c.l.b16 %v3119
        %v3548 = vunpack.c.h.b16 %v3119
        %v3549 = vunpack.c.l.b16 %v3120
        %v3550 = vunpack.c.l.b16 %v3121
        %v3551 = vunpack.c.h.b16 %v3121
        %v3552 = vunpack.c.l.b16 %v3122
        %v3553 = vunpack.c.l.b16 %v3123
        %v3554 = vunpack.c.h.b16 %v3123
        %v3555 = vunpack.c.l.b16 %v3124
        %v3556 = vunpack.c.l.b16 %v3125
        %v3557 = vunpack.c.h.b16 %v3125
        %v3558 = vunpack.c.l.b16 %v3126
        %v3559 = vunpack.c.l.b16 %v3127
        %v3560 = vunpack.c.h.b16 %v3127
        %v3561 = vunpack.c.l.b16 %v3128
        %v3562 = vunpack.c.l.b16 %v3129
        %v3563 = vunpack.c.h.b16 %v3129
        %v3564 = vunpack.c.l.b16 %v3130
        %v3565 = vunpack.c.l.b16 %v3131
        %v3566 = vunpack.c.h.b16 %v3131
        %v3567 = vunpack.c.l.b16 %v3132
        %v3568 = vunpack.c.l.b16 %v3133
        %v3569 = vunpack.c.h.b16 %v3133
        %v3570 = vunpack.c.l.b16 %v3134
        %v3571 = vunpack.c.l.b16 %v3135
        %v3572 = vunpack.c.h.b16 %v3135
        %v3573 = vunpack.c.l.b16 %v3136
        %v3574 = vunpack.c.l.b16 %v3137
        %v3575 = vunpack.c.h.b16 %v3137
        %v3576 = vunpack.c.l.b16 %v3138
        %v3577 = vunpack.c.l.b16 %v3139
        %v3578 = vunpack.c.h.b16 %v3139
        %v3579 = vunpack.c.l.b16 %v3140
        %v3580 = vunpack.c.l.b16 %v3141
        %v3581 = vunpack.c.h.b16 %v3141
        %v3582 = vunpack.c.l.b16 %v3142
        %v3583 = vunpack.c.l.b16 %v3143
        %v3584 = vunpack.c.h.b16 %v3143
        %v3585 = vunpack.c.l.b16 %v3144
        %v3586 = vunpack.c.l.b16 %v3145
        %v3587 = vunpack.c.h.b16 %v3145
        %v3588 = vunpack.c.l.b16 %v3146
        %v3589 = vunpack.c.l.b16 %v3147
        %v3590 = vunpack.c.h.b16 %v3147
        %v3591 = vunpack.c.l.b16 %v3148
        %v3592 = vunpack.c.l.b16 %v3149
        %v3593 = vunpack.c.h.b16 %v3149
        %v3594 = vunpack.c.l.b16 %v3150
        %v3595 = vunpack.c.l.b16 %v3151
        %v3596 = vunpack.c.h.b16 %v3151
        %v3597 = vunpack.c.l.b16 %v3152
        %v3598 = vunpack.c.l.b16 %v3153
        %v3599 = vunpack.c.h.b16 %v3153
        %v3600 = vunpack.c.l.b16 %v3154
        %v3601 = vunpack.c.l.b16 %v3155
        %v3602 = vunpack.c.h.b16 %v3155
        %v3603 = vunpack.c.l.b16 %v3156
        %v3604 = vunpack.c.l.b16 %v3157
        %v3605 = vunpack.c.h.b16 %v3157
        %v3606 = vunpack.c.l.b16 %v3158
        %v3607 = vunpack.c.l.b16 %v3159
        %v3608 = vunpack.c.h.b16 %v3159
        %v3609 = vunpack.c.l.b16 %v3160
        %v3610 = vunpack.c.l.b16 %v3161
        %v3611 = vunpack.c.h.b16 %v3161
        %v3612 = vunpack.c.l.b16 %v3162
        %v3613 = vunpack.c.l.b16 %v3163
        %v3614 = vunpack.c.h.b16 %v3163
        %v3615 = vunpack.c.l.b16 %v3164
        %v3616 = vunpack.c.l.b16 %v3165
        %v3617 = vunpack.c.h.b16 %v3165
        %v3618 = vunpack.c.l.b16 %v3166
        %v3619 = vunpack.c.l.b16 %v3167
        %v3620 = vunpack.c.h.b16 %v3167
        %v3621 = vunpack.c.l.b16 %v3168
        %v3622 = vunpack.c.l.b16 %v3169
        %v3623 = vunpack.c.h.b16 %v3169
        %v3624 = vunpack.c.l.b16 %v3170
        %v3625 = vunpack.c.l.b16 %v3171
        %v3626 = vunpack.c.h.b16 %v3171
        %v3627 = vunpack.c.l.b16 %v3172
        %v3628 = vunpack.c.l.b16 %v3173
        %v3629 = vunpack.c.h.b16 %v3173
        %v3630 = vunpack.c.l.b16 %v3174
        %v3631 = vunpack.c.l.b16 %v3175
        %v3632 = vunpack.c.h.b16 %v3175
        %v3633 = vunpack.c.l.b16 %v3176
        %v3634 = vunpack.c.l.b16 %v3177
        %v3635 = vunpack.c.h.b16 %v3177
        %v3636 = vunpack.c.l.b16 %v3178
        %v3637 = vunpack.c.l.b16 %v3179
        %v3638 = vunpack.c.h.b16 %v3179
        %v3639 = vunpack.c.l.b16 %v3180
        %v3640 = vunpack.c.l.b16 %v3181
        %v3641 = vunpack.c.h.b16 %v3181
        %v3642 = vunpack.c.l.b16 %v3182
        %v3643 = vunpack.c.l.b16 %v3183
        %v3644 = vunpack.c.h.b16 %v3183
        %v3645 = vunpack.c.l.b16 %v3184
        %v3646 = vunpack.c.l.b16 %v3185
        %v3647 = vunpack.c.h.b16 %v3185
        %v3648 = vunpack.c.l.b16 %v3186
        %v3649 = vunpack.c.l.b16 %v3187
        %v3650 = vunpack.c.h.b16 %v3187
        %v3651 = vunpack.c.l.b16 %v3188
        %v3652 = vunpack.c.l.b16 %v3189
        %v3653 = vunpack.c.h.b16 %v3189
        %v3654 = vunpack.c.l.b16 %v3190
        %v3655 = vunpack.c.l.b16 %v3191
        %v3656 = vunpack.c.h.b16 %v3191
        %v3657 = vunpack.c.l.b16 %v3192
        %v3658 = vunpack.c.l.b16 %v3193
        %v3659 = vunpack.c.h.b16 %v3193
        %v3660 = vunpack.c.l.b16 %v3194
        %v3661 = vunpack.c.l.b16 %v3195
        %v3662 = vunpack.c.h.b16 %v3195
        %v3663 = vunpack.c.l.b16 %v3196
        %v3664 = vunpack.c.l.b16 %v3197
        %v3665 = vunpack.c.h.b16 %v3197
        %v3666 = vunpack.c.l.b16 %v3198
        %v3667 = vunpack.c.l.b16 %v3199
        %v3668 = vunpack.c.h.b16 %v3199
        %v3669 = vunpack.c.l.b16 %v3200
        %v3670 = vunpack.c.l.b16 %v3201
        %v3671 = vunpack.c.h.b16 %v3201
        %v3672 = vunpack.c.l.b16 %v3202
        %v3673 = vunpack.c.l.b16 %v3203
        %v3674 = vunpack.c.h.b16 %v3203
        %v3675 = vunpack.c.l.b16 %v3204
        %v3676 = vunpack.c.l.b16 %v3205
        %v3677 = vunpack.c.h.b16 %v3205
        %v3678 = vunpack.c.l.b16 %v3206
        %v3679 = vunpack.c.l.b16 %v3207
        %v3680 = vunpack.c.h.b16 %v3207
        %v3681 = vunpack.c.l.b16 %v3208
        %v3682 = vunpack.c.l.b16 %v3209
        %v3683 = vunpack.c.h.b16 %v3209
        %v3684 = vunpack.c.l.b16 %v3210
        %v3685 = vunpack.c.l.b16 %v3211
        %v3686 = vunpack.c.h.b16 %v3211
        %v3687 = vunpack.c.l.b16 %v3212
        %v3688 = vunpack.c.l.b16 %v3213
        %v3689 = vunpack.c.h.b16 %v3213
        %v3690 = vunpack.c.l.b16 %v3214
        %v3691 = vunpack.c.l.b16 %v3215
        %v3692 = vunpack.c.h.b16 %v3215
        %v3693 = vunpack.c.l.b16 %v3216
        %v3694 = vunpack.c.l.b16 %v3217
        %v3695 = vunpack.c.h.b16 %v3217
        %v3696 = vunpack.c.l.b16 %v3218
        %v3697 = vunpack.c.l.b16 %v3219
        %v3698 = vunpack.c.h.b16 %v3219
        %v3699 = vunpack.c.l.b16 %v3220
        %v3700 = vunpack.c.l.b16 %v3221
        %v3701 = vunpack.c.h.b16 %v3221
        %v3702 = vunpack.c.l.b16 %v3222
        %v3703 = vunpack.c.l.b16 %v3223
        %v3704 = vunpack.c.h.b16 %v3223
        %v3705 = vunpack.c.l.b16 %v3224
        %v3706 = vunpack.c.l.b16 %v3225
        %v3707 = vunpack.c.h.b16 %v3225
        %v3708 = vunpack.c.l.b16 %v3226
        %v3709 = vunpack.c.l.b16 %v3227
        %v3710 = vunpack.c.h.b16 %v3227
        %v3711 = vunpack.c.l.b16 %v3228
        %v3712 = vunpack.c.l.b16 %v3229
        %v3713 = vunpack.c.h.b16 %v3229
        %v3714 = vunpack.c.l.b16 %v3230
        %v3715 = vunpack.c.l.b16 %v3231
        %v3716 = vunpack.c.h.b16 %v3231
        %v3717 = vunpack.c.l.b16 %v3232
        %v3718 = vunpack.c.l.b16 %v3233
        %v3719 = vunpack.c.h.b16 %v3233
        %v3720 = vunpack.c.l.b16 %v3234
        %v3721 = vunpack.c.l.b16 %v3235
        %v3722 = vunpack.c.h.b16 %v3235
        %v3723 = vunpack.c.l.b16 %v3236
        %v3724 = vunpack.c.l.b16 %v3237
        %v3725 = vunpack.c.h.b16 %v3237
        %v3726 = vunpack.c.l.b16 %v3238
        %v3727 = vunpack.c.l.b16 %v3239
        %v3728 = vunpack.c.h.b16 %v3239
        %v3729 = vunpack.c.l.b16 %v3240
        %v3730 = vunpack.c.l.b16 %v3241
        %v3731 = vunpack.c.h.b16 %v3241
        %v3732 = vunpack.c.l.b16 %v3242
        %v3733 = vunpack.c.l.b16 %v3243
        %v3734 = vunpack.c.h.b16 %v3243
        %v3735 = vunpack.c.l.b16 %v3244
        %v3736 = vunpack.c.l.b16 %v3245
        %v3737 = vunpack.c.h.b16 %v3245
        %v3738 = vunpack.c.l.b16 %v3246
        %v3739 = vunpack.c.l.b16 %v3247
        %v3740 = vunpack.c.h.b16 %v3247
        %v3741 = vunpack.c.l.b16 %v3248
        %v3742 = vunpack.c.l.b16 %v3249
        %v3743 = vunpack.c.h.b16 %v3249
        %v3744 = vunpack.c.l.b16 %v3250
        %v3745 = vunpack.c.l.b16 %v3251
        %v3746 = vunpack.c.h.b16 %v3251
        %v3747 = vunpack.c.l.b16 %v3252
        %v3748 = vunpack.c.l.b16 %v3253
        %v3749 = vunpack.c.h.b16 %v3253
        %v3750 = vunpack.c.l.b16 %v3254
        %v3751 = vunpack.c.l.b16 %v3255
        %v3752 = vunpack.c.h.b16 %v3255
        %v3753 = vunpack.c.l.b16 %v3256
        %v3754 = vunpack.c.l.b16 %v3257
        %v3755 = vunpack.c.h.b16 %v3257
        %v3756 = vunpack.c.l.b16 %v3258
        %v3757 = vpack.c.b16 %v3472, %v3469
        %v3758 = vpack.c.b16 %v3473, %v3470
        %v3759 = vpack.c.b16 %v3474, %v3471
        %v3760 = vpack.c.b16 %v3478, %v3475
        %v3761 = vpack.c.b16 %v3479, %v3476
        %v3762 = vpack.c.b16 %v3480, %v3477
        %v3763 = vpack.c.b16 %v3484, %v3481
        %v3764 = vpack.c.b16 %v3485, %v3482
        %v3765 = vpack.c.b16 %v3486, %v3483
        %v3766 = vpack.c.b16 %v3490, %v3487
        %v3767 = vpack.c.b16 %v3491, %v3488
        %v3768 = vpack.c.b16 %v3492, %v3489
        %v3769 = vpack.c.b16 %v3496, %v3493
        %v3770 = vpack.c.b16 %v3497, %v3494
        %v3771 = vpack.c.b16 %v3498, %v3495
        %v3772 = vpack.c.b16 %v3502, %v3499
        %v3773 = vpack.c.b16 %v3503, %v3500
        %v3774 = vpack.c.b16 %v3504, %v3501
        %v3775 = vpack.c.b16 %v3508, %v3505
        %v3776 = vpack.c.b16 %v3509, %v3506
        %v3777 = vpack.c.b16 %v3510, %v3507
        %v3778 = vpack.c.b16 %v3514, %v3511
        %v3779 = vpack.c.b16 %v3515, %v3512
        %v3780 = vpack.c.b16 %v3516, %v3513
        %v3781 = vpack.c.b16 %v3520, %v3517
        %v3782 = vpack.c.b16 %v3521, %v3518
        %v3783 = vpack.c.b16 %v3522, %v3519
        %v3784 = vpack.c.b16 %v3526, %v3523
        %v3785 = vpack.c.b16 %v3527, %v3524
        %v3786 = vpack.c.b16 %v3528, %v3525
        %v3787 = vpack.c.b16 %v3532, %v3529
        %v3788 = vpack.c.b16 %v3533, %v3530
        %v3789 = vpack.c.b16 %v3534, %v3531
        %v3790 = vpack.c.b16 %v3538, %v3535
        %v3791 = vpack.c.b16 %v3539, %v3536
        %v3792 = vpack.c.b16 %v3540, %v3537
        %v3793 = vpack.c.b16 %v3544, %v3541
        %v3794 = vpack.c.b16 %v3545, %v3542
        %v3795 = vpack.c.b16 %v3546, %v3543
        %v3796 = vpack.c.b16 %v3550, %v3547
        %v3797 = vpack.c.b16 %v3551, %v3548
        %v3798 = vpack.c.b16 %v3552, %v3549
        %v3799 = vpack.c.b16 %v3556, %v3553
        %v3800 = vpack.c.b16 %v3557, %v3554
        %v3801 = vpack.c.b16 %v3558, %v3555
        %v3802 = vpack.c.b16 %v3562, %v3559
        %v3803 = vpack.c.b16 %v3563, %v3560
        %v3804 = vpack.c.b16 %v3564, %v3561
        %v3805 = vpack.c.b16 %v3568, %v3565
        %v3806 = vpack.c.b16 %v3569, %v3566
        %v3807 = vpack.c.b16 %v3570, %v3567
        %v3808 = vpack.c.b16 %v3574, %v3571
        %v3809 = vpack.c.b16 %v3575, %v3572
        %v3810 = vpack.c.b16 %v3576, %v3573
        %v3811 = vpack.c.b16 %v3580, %v3577
        %v3812 = vpack.c.b16 %v3581, %v3578
        %v3813 = vpack.c.b16 %v3582, %v3579
        %v3814 = vpack.c.b16 %v3586, %v3583
        %v3815 = vpack.c.b16 %v3587, %v3584
        %v3816 = vpack.c.b16 %v3588, %v3585
        %v3817 = vpack.c.b16 %v3592, %v3589
        %v3818 = vpack.c.b16 %v3593, %v3590
        %v3819 = vpack.c.b16 %v3594, %v3591
        %v3820 = vpack.c.b16 %v3598, %v3595
        %v3821 = vpack.c.b16 %v3599, %v3596
        %v3822 = vpack.c.b16 %v3600, %v3597
        %v3823 = vpack.c.b16 %v3604, %v3601
        %v3824 = vpack.c.b16 %v3605, %v3602
        %v3825 = vpack.c.b16 %v3606, %v3603
        %v3826 = vpack.c.b16 %v3610, %v3607
        %v3827 = vpack.c.b16 %v3611, %v3608
        %v3828 = vpack.c.b16 %v3612, %v3609
        %v3829 = vpack.c.b16 %v3616, %v3613
        %v3830 = vpack.c.b16 %v3617, %v3614
        %v3831 = vpack.c.b16 %v3618, %v3615
        %v3832 = vpack.c.b16 %v3622, %v3619
        %v3833 = vpack.c.b16 %v3623, %v3620
        %v3834 = vpack.c.b16 %v3624, %v3621
        %v3835 = vpack.c.b16 %v3628, %v3625
        %v3836 = vpack.c.b16 %v3629, %v3626
        %v3837 = vpack.c.b16 %v3630, %v3627
        %v3838 = vpack.c.b16 %v3634, %v3631
        %v3839 = vpack.c.b16 %v3635, %v3632
        %v3840 = vpack.c.b16 %v3636, %v3633
        %v3841 = vpack.c.b16 %v3640, %v3637
        %v3842 = vpack.c.b16 %v3641, %v3638
        %v3843 = vpack.c.b16 %v3642, %v3639
        %v3844 = vpack.c.b16 %v3646, %v3643
        %v3845 = vpack.c.b16 %v3647, %v3644
        %v3846 = vpack.c.b16 %v3648, %v3645
        %v3847 = vpack.c.b16 %v3652, %v3649
        %v3848 = vpack.c.b16 %v3653, %v3650
        %v3849 = vpack.c.b16 %v3654, %v3651
        %v3850 = vpack.c.b16 %v3658, %v3655
        %v3851 = vpack.c.b16 %v3659, %v3656
        %v3852 = vpack.c.b16 %v3660, %v3657
        %v3853 = vpack.c.b16 %v3664, %v3661
        %v3854 = vpack.c.b16 %v3665, %v3662
        %v3855 = vpack.c.b16 %v3666, %v3663
        %v3856 = vpack.c.b16 %v3670, %v3667
        %v3857 = vpack.c.b16 %v3671, %v3668
        %v3858 = vpack.c.b16 %v3672, %v3669
        %v3859 = vpack.c.b16 %v3676, %v3673
        %v3860 = vpack.c.b16 %v3677, %v3674
        %v3861 = vpack.c.b16 %v3678, %v3675
        %v3862 = vpack.c.b16 %v3682, %v3679
        %v3863 = vpack.c.b16 %v3683, %v3680
        %v3864 = vpack.c.b16 %v3684, %v3681
        %v3865 = vpack.c.b16 %v3688, %v3685
        %v3866 = vpack.c.b16 %v3689, %v3686
        %v3867 = vpack.c.b16 %v3690, %v3687
        %v3868 = vpack.c.b16 %v3694, %v3691
        %v3869 = vpack.c.b16 %v3695, %v3692
        %v3870 = vpack.c.b16 %v3696, %v3693
        %v3871 = vpack.c.b16 %v3700, %v3697
        %v3872 = vpack.c.b16 %v3701, %v3698
        %v3873 = vpack.c.b16 %v3702, %v3699
        %v3874 = vpack.c.b16 %v3706, %v3703
        %v3875 = vpack.c.b16 %v3707, %v3704
        %v3876 = vpack.c.b16 %v3708, %v3705
        %v3877 = vpack.c.b16 %v3712, %v3709
        %v3878 = vpack.c.b16 %v3713, %v3710
        %v3879 = vpack.c.b16 %v3714, %v3711
        %v3880 = vpack.c.b16 %v3718, %v3715
        %v3881 = vpack.c.b16 %v3719, %v3716
        %v3882 = vpack.c.b16 %v3720, %v3717
        %v3883 = vpack.c.b16 %v3724, %v3721
        %v3884 = vpack.c.b16 %v3725, %v3722
        %v3885 = vpack.c.b16 %v3726, %v3723
        %v3886 = vpack.c.b16 %v3730, %v3727
        %v3887 = vpack.c.b16 %v3731, %v3728
        %v3888 = vpack.c.b16 %v3732, %v3729
        %v3889 = vpack.c.b16 %v3736, %v3733
        %v3890 = vpack.c.b16 %v3737, %v3734
        %v3891 = vpack.c.b16 %v3738, %v3735
        %v3892 = vpack.c.b16 %v3742, %v3739
        %v3893 = vpack.c.b16 %v3743, %v3740
        %v3894 = vpack.c.b16 %v3744, %v3741
        %v3895 = vpack.c.b16 %v3748, %v3745
        %v3896 = vpack.c.b16 %v3749, %v3746
        %v3897 = vpack.c.b16 %v3750, %v3747
        %v3898 = vpack.c.b16 %v3754, %v3751
        %v3899 = vpack.c.b16 %v3755, %v3752
        %v3900 = vpack.c.b16 %v3756, %v3753
        %4045 = vmatprep.subr.bf16.mxu0 %v3758
        %4046 = vmatpush1.bf16.msra.mxu0 %v3757
        %4047 = vmatprep.subr.bf16.mxu0 %v3761
        %4048 = vmatpush1.bf16.msra.mxu0 %v3760
        %4049 = vmatprep.subr.bf16.mxu0 %v3764
        %4050 = vmatpush1.bf16.msra.mxu0 %v3763
        %4051 = vmatprep.subr.bf16.mxu0 %v3767
        %4052 = vmatpush1.bf16.msra.mxu0 %v3766
        %4053 = vmatprep.subr.bf16.mxu0 %v3770
        %4054 = vmatpush1.bf16.msra.mxu0 %v3769
        %4055 = vmatprep.subr.bf16.mxu0 %v3773
        %4056 = vmatpush1.bf16.msra.mxu0 %v3772
        %4057 = vmatprep.subr.bf16.mxu0 %v3776
        %4058 = vmatpush1.bf16.msra.mxu0 %v3775
        %4059 = vmatprep.subr.bf16.mxu0 %v3779
        %4060 = vmatpush1.bf16.msra.mxu0 %v3778
        %4061 = vmatprep.subr.bf16.mxu0 %v3782
        %4062 = vmatpush1.bf16.msra.mxu0 %v3781
        %4063 = vmatprep.subr.bf16.mxu0 %v3785
        %4064 = vmatpush1.bf16.msra.mxu0 %v3784
        %4065 = vmatprep.subr.bf16.mxu0 %v3788
        %4066 = vmatpush1.bf16.msra.mxu0 %v3787
        %4067 = vmatprep.subr.bf16.mxu0 %v3791
        %4068 = vmatpush1.bf16.msra.mxu0 %v3790
        %4069 = vmatprep.subr.bf16.mxu0 %v3794
        %4070 = vmatpush1.bf16.msra.mxu0 %v3793
        %4071 = vmatprep.subr.bf16.mxu0 %v3797
        %4072 = vmatpush1.bf16.msra.mxu0 %v3796
        %4073 = vmatprep.subr.bf16.mxu0 %v3800
        %4074 = vmatpush1.bf16.msra.mxu0 %v3799
        %4075 = vmatprep.subr.bf16.mxu0 %v3803
        %4076 = vmatpush1.bf16.msra.mxu0 %v3802
        %4077 = vmatprep.mubr.bf16.mxu0 %v3061
        %4078 = vmatmul.mubr.bf16.gmra.mrb[0].mxu0 %v3060
        %v4079 = vpop.f32.mrb[0].mxu0
        %v4080 = vadd.f32 %v3265, %v4079
        %v4081 = vpop.f32.mrb[0].mxu0
        %v4082 = vadd.f32 %v3269, %v4081
        %v4083 = vpop.f32.mrb[0].mxu0
        %v4084 = vpop.f32.mrb[0].mxu0
        %4085 = vdwg.mxu0
        %4086 = vmatprep.subr.bf16.mxu0 %v3806
        %4087 = vmatpush1.bf16.msra.mxu0 %v3805
        %4088 = vmatprep.subr.bf16.mxu0 %v3809
        %4089 = vmatpush1.bf16.msra.mxu0 %v3808
        %4090 = vmatprep.subr.bf16.mxu0 %v3812
        %4091 = vmatpush1.bf16.msra.mxu0 %v3811
        %4092 = vmatprep.subr.bf16.mxu0 %v3815
        %4093 = vmatpush1.bf16.msra.mxu0 %v3814
        %4094 = vmatprep.subr.bf16.mxu0 %v3818
        %4095 = vmatpush1.bf16.msra.mxu0 %v3817
        %4096 = vmatprep.subr.bf16.mxu0 %v3821
        %4097 = vmatpush1.bf16.msra.mxu0 %v3820
        %4098 = vmatprep.subr.bf16.mxu0 %v3824
        %4099 = vmatpush1.bf16.msra.mxu0 %v3823
        %4100 = vmatprep.subr.bf16.mxu0 %v3827
        %4101 = vmatpush1.bf16.msra.mxu0 %v3826
        %4102 = vmatprep.subr.bf16.mxu0 %v3830
        %4103 = vmatpush1.bf16.msra.mxu0 %v3829
        %4104 = vmatprep.subr.bf16.mxu0 %v3833
        %4105 = vmatpush1.bf16.msra.mxu0 %v3832
        %4106 = vmatprep.subr.bf16.mxu0 %v3836
        %4107 = vmatpush1.bf16.msra.mxu0 %v3835
        %4108 = vmatprep.subr.bf16.mxu0 %v3839
        %4109 = vmatpush1.bf16.msra.mxu0 %v3838
        %4110 = vmatprep.subr.bf16.mxu0 %v3842
        %4111 = vmatpush1.bf16.msra.mxu0 %v3841
        %4112 = vmatprep.subr.bf16.mxu0 %v3845
        %4113 = vmatpush1.bf16.msra.mxu0 %v3844
        %4114 = vmatprep.subr.bf16.mxu0 %v3848
        %4115 = vmatpush1.bf16.msra.mxu0 %v3847
        %4116 = vmatprep.subr.bf16.mxu0 %v3851
        %4117 = vmatpush1.bf16.msra.mxu0 %v3850
        %4118 = vmatprep.mubr.bf16.mxu0 %v3063
        %4119 = vmatmul.mubr.bf16.gmra.mrb[0].mxu0 %v3062
        %v4120 = vpop.f32.mrb[0].mxu0
        %v4121 = vadd.f32 %v4080, %v4120
        %v4122 = vpop.f32.mrb[0].mxu0
        %v4123 = vadd.f32 %v4082, %v4122
        %v4124 = vpop.f32.mrb[0].mxu0
        %v4125 = vpop.f32.mrb[0].mxu0
        %4126 = vdwg.mxu0
        %4127 = vmatprep.subr.bf16.mxu0 %v3854
        %4128 = vmatpush1.bf16.msra.mxu0 %v3853
        %4129 = vmatprep.subr.bf16.mxu0 %v3857
        %4130 = vmatpush1.bf16.msra.mxu0 %v3856
        %4131 = vmatprep.subr.bf16.mxu0 %v3860
        %4132 = vmatpush1.bf16.msra.mxu0 %v3859
        %4133 = vmatprep.subr.bf16.mxu0 %v3863
        %4134 = vmatpush1.bf16.msra.mxu0 %v3862
        %4135 = vmatprep.subr.bf16.mxu0 %v3866
        %4136 = vmatpush1.bf16.msra.mxu0 %v3865
        %4137 = vmatprep.subr.bf16.mxu0 %v3869
        %4138 = vmatpush1.bf16.msra.mxu0 %v3868
        %4139 = vmatprep.subr.bf16.mxu0 %v3872
        %4140 = vmatpush1.bf16.msra.mxu0 %v3871
        %4141 = vmatprep.subr.bf16.mxu0 %v3875
        %4142 = vmatpush1.bf16.msra.mxu0 %v3874
        %4143 = vmatprep.subr.bf16.mxu0 %v3878
        %4144 = vmatpush1.bf16.msra.mxu0 %v3877
        %4145 = vmatprep.subr.bf16.mxu0 %v3881
        %4146 = vmatpush1.bf16.msra.mxu0 %v3880
        %4147 = vmatprep.subr.bf16.mxu0 %v3884
        %4148 = vmatpush1.bf16.msra.mxu0 %v3883
        %4149 = vmatprep.subr.bf16.mxu0 %v3887
        %4150 = vmatpush1.bf16.msra.mxu0 %v3886
        %4151 = vmatprep.subr.bf16.mxu0 %v3890
        %4152 = vmatpush1.bf16.msra.mxu0 %v3889
        %4153 = vmatprep.subr.bf16.mxu0 %v3893
        %4154 = vmatpush1.bf16.msra.mxu0 %v3892
        %4155 = vmatprep.subr.bf16.mxu0 %v3896
        %4156 = vmatpush1.bf16.msra.mxu0 %v3895
        %4157 = vmatprep.subr.bf16.mxu0 %v3899
        %4158 = vmatpush1.bf16.msra.mxu0 %v3898
        %4159 = vmatprep.mubr.bf16.mxu0 %v3065
        %4160 = vmatmul.mubr.bf16.gmra.mrb[0].mxu0 %v3064
        %v4161 = vpop.f32.mrb[0].mxu0
        %v4162 = vadd.f32 %v4121, %v4161
        %v4163 = vpop.f32.mrb[0].mxu0
        %v4164 = vadd.f32 %v4123, %v4163
        %v4165 = vpop.f32.mrb[0].mxu0
        %v4166 = vpop.f32.mrb[0].mxu0
        %4167 = vdwg.mxu0
        %4168 = vmatprep.subr.bf16.mxu0 0
        %4169 = vmatpush1.bf16.msra.mxu0 %v3759
        %4170 = vmatprep.subr.bf16.mxu0 0
        %4171 = vmatpush1.bf16.msra.mxu0 %v3762
        %4172 = vmatprep.subr.bf16.mxu0 0
        %4173 = vmatpush1.bf16.msra.mxu0 %v3765
        %4174 = vmatprep.subr.bf16.mxu0 0
        %4175 = vmatpush1.bf16.msra.mxu0 %v3768
        %4176 = vmatprep.subr.bf16.mxu0 0
        %4177 = vmatpush1.bf16.msra.mxu0 %v3771
        %4178 = vmatprep.subr.bf16.mxu0 0
        %4179 = vmatpush1.bf16.msra.mxu0 %v3774
        %4180 = vmatprep.subr.bf16.mxu0 0
        %4181 = vmatpush1.bf16.msra.mxu0 %v3777
        %4182 = vmatprep.subr.bf16.mxu0 0
        %4183 = vmatpush1.bf16.msra.mxu0 %v3780
        %4184 = vmatprep.subr.bf16.mxu0 0
        %4185 = vmatpush1.bf16.msra.mxu0 %v3783
        %4186 = vmatprep.subr.bf16.mxu0 0
        %4187 = vmatpush1.bf16.msra.mxu0 %v3786
        %4188 = vmatprep.subr.bf16.mxu0 0
        %4189 = vmatpush1.bf16.msra.mxu0 %v3789
        %4190 = vmatprep.subr.bf16.mxu0 0
        %4191 = vmatpush1.bf16.msra.mxu0 %v3792
        %4192 = vmatprep.subr.bf16.mxu0 0
        %4193 = vmatpush1.bf16.msra.mxu0 %v3795
        %4194 = vmatprep.subr.bf16.mxu0 0
        %4195 = vmatpush1.bf16.msra.mxu0 %v3798
        %4196 = vmatprep.subr.bf16.mxu0 0
        %4197 = vmatpush1.bf16.msra.mxu0 %v3801
        %4198 = vmatprep.subr.bf16.mxu0 0
        %4199 = vmatpush1.bf16.msra.mxu0 %v3804
        %4200 = vmatprep.mubr.bf16.mxu0 %v3061
        %4201 = vmatmul.mubr.bf16.gmra.mrb[0].mxu0 %v3060
        %v4202 = vpop.f32.mrb[0].mxu0
        %v4203 = vadd.f32 %v3273, %v4202
        %v4204 = vpop.f32.mrb[0].mxu0
        %v4205 = vpop.f32.mrb[0].mxu0
        %v4206 = vpop.f32.mrb[0].mxu0
        %4207 = vdwg.mxu0
        %4208 = vmatprep.subr.bf16.mxu0 0
        %4209 = vmatpush1.bf16.msra.mxu0 %v3807
        %4210 = vmatprep.subr.bf16.mxu0 0
        %4211 = vmatpush1.bf16.msra.mxu0 %v3810
        %4212 = vmatprep.subr.bf16.mxu0 0
        %4213 = vmatpush1.bf16.msra.mxu0 %v3813
        %4214 = vmatprep.subr.bf16.mxu0 0
        %4215 = vmatpush1.bf16.msra.mxu0 %v3816
        %4216 = vmatprep.subr.bf16.mxu0 0
        %4217 = vmatpush1.bf16.msra.mxu0 %v3819
        %4218 = vmatprep.subr.bf16.mxu0 0
        %4219 = vmatpush1.bf16.msra.mxu0 %v3822
        %4220 = vmatprep.subr.bf16.mxu0 0
        %4221 = vmatpush1.bf16.msra.mxu0 %v3825
        %4222 = vmatprep.subr.bf16.mxu0 0
        %4223 = vmatpush1.bf16.msra.mxu0 %v3828
        %4224 = vmatprep.subr.bf16.mxu0 0
        %4225 = vmatpush1.bf16.msra.mxu0 %v3831
        %4226 = vmatprep.subr.bf16.mxu0 0
        %4227 = vmatpush1.bf16.msra.mxu0 %v3834
        %4228 = vmatprep.subr.bf16.mxu0 0
        %4229 = vmatpush1.bf16.msra.mxu0 %v3837
        %4230 = vmatprep.subr.bf16.mxu0 0
        %4231 = vmatpush1.bf16.msra.mxu0 %v3840
        %4232 = vmatprep.subr.bf16.mxu0 0
        %4233 = vmatpush1.bf16.msra.mxu0 %v3843
        %4234 = vmatprep.subr.bf16.mxu0 0
        %4235 = vmatpush1.bf16.msra.mxu0 %v3846
        %4236 = vmatprep.subr.bf16.mxu0 0
        %4237 = vmatpush1.bf16.msra.mxu0 %v3849
        %4238 = vmatprep.subr.bf16.mxu0 0
        %4239 = vmatpush1.bf16.msra.mxu0 %v3852
        %4240 = vmatprep.mubr.bf16.mxu0 %v3063
        %4241 = vmatmul.mubr.bf16.gmra.mrb[0].mxu0 %v3062
        %v4242 = vpop.f32.mrb[0].mxu0
        %v4243 = vadd.f32 %v4203, %v4242
        %v4244 = vpop.f32.mrb[0].mxu0
        %v4245 = vpop.f32.mrb[0].mxu0
        %v4246 = vpop.f32.mrb[0].mxu0
        %4247 = vdwg.mxu0
        %4248 = vmatprep.subr.bf16.mxu0 0
        %4249 = vmatpush1.bf16.msra.mxu0 %v3855
        %4250 = vmatprep.subr.bf16.mxu0 0
        %4251 = vmatpush1.bf16.msra.mxu0 %v3858
        %4252 = vmatprep.subr.bf16.mxu0 0
        %4253 = vmatpush1.bf16.msra.mxu0 %v3861
        %4254 = vmatprep.subr.bf16.mxu0 0
        %4255 = vmatpush1.bf16.msra.mxu0 %v3864
        %4256 = vmatprep.subr.bf16.mxu0 0
        %4257 = vmatpush1.bf16.msra.mxu0 %v3867
        %4258 = vmatprep.subr.bf16.mxu0 0
        %4259 = vmatpush1.bf16.msra.mxu0 %v3870
        %4260 = vmatprep.subr.bf16.mxu0 0
        %4261 = vmatpush1.bf16.msra.mxu0 %v3873
        %4262 = vmatprep.subr.bf16.mxu0 0
        %4263 = vmatpush1.bf16.msra.mxu0 %v3876
        %4264 = vmatprep.subr.bf16.mxu0 0
        %4265 = vmatpush1.bf16.msra.mxu0 %v3879
        %4266 = vmatprep.subr.bf16.mxu0 0
        %4267 = vmatpush1.bf16.msra.mxu0 %v3882
        %4268 = vmatprep.subr.bf16.mxu0 0
        %4269 = vmatpush1.bf16.msra.mxu0 %v3885
        %4270 = vmatprep.subr.bf16.mxu0 0
        %4271 = vmatpush1.bf16.msra.mxu0 %v3888
        %4272 = vmatprep.subr.bf16.mxu0 0
        %4273 = vmatpush1.bf16.msra.mxu0 %v3891
        %4274 = vmatprep.subr.bf16.mxu0 0
        %4275 = vmatpush1.bf16.msra.mxu0 %v3894
        %4276 = vmatprep.subr.bf16.mxu0 0
        %4277 = vmatpush1.bf16.msra.mxu0 %v3897
        %4278 = vmatprep.subr.bf16.mxu0 0
        %4279 = vmatpush1.bf16.msra.mxu0 %v3900
        %4280 = vmatprep.mubr.bf16.mxu0 %v3065
        %4281 = vmatmul.mubr.bf16.gmra.mrb[0].mxu0 %v3064
        %v4282 = vpop.f32.mrb[0].mxu0
        %v4283 = vadd.f32 %v4243, %v4282
        %v4284 = vpop.f32.mrb[0].mxu0
        %v4285 = vpop.f32.mrb[0].mxu0
        %v4286 = vpop.f32.mrb[0].mxu0
        %4287 = vdwg.mxu0
        %s4288 = scalar_lea.vmem %s839, 128 [#allocation2]
        %v4289 = vld [vmem:[%s4288] sm:$0xf]
        %v4290 = vld [vmem:[%s4288 + $0x4] sm:$0xf]
        %v4291 = vld [vmem:[%s4288 + $0x8] sm:$0xf]
        %v4292 = vld [vmem:[%s4288 + $0xc] sm:$0xf]
        %v4293 = vld [vmem:[%s4288 + $0x10] sm:$0xf]
        %v4294 = vld [vmem:[%s4288 + $0x14] sm:$0xf]
        %v4295 = vld [vmem:[%s4288 + $0x18] sm:$0xf]
        %v4296 = vld [vmem:[%s4288 + $0x1c] sm:$0xf]
        %v4297 = vld [vmem:[%s4288 + $0x20] sm:$0xf]
        %v4298 = vld [vmem:[%s4288 + $0x24] sm:$0xf]
        %v4299 = vld [vmem:[%s4288 + $0x28] sm:$0xf]
        %v4300 = vld [vmem:[%s4288 + $0x2c] sm:$0xf]
        %v4301 = vld [vmem:[%s4288 + $0x30] sm:$0xf]
        %v4302 = vld [vmem:[%s4288 + $0x34] sm:$0xf]
        %v4303 = vld [vmem:[%s4288 + $0x38] sm:$0xf]
        %v4304 = vld [vmem:[%s4288 + $0x3c] sm:$0xf]
        %v4305 = vunpack.c.l.bf16 %v4289
        %v4306 = vunpack.c.l.bf16 %v4290
        %v4307 = vunpack.c.l.bf16 %v4291
        %v4308 = vunpack.c.l.bf16 %v4292
        %v4309 = vunpack.c.l.bf16 %v4293
        %v4310 = vunpack.c.l.bf16 %v4294
        %v4311 = vunpack.c.l.bf16 %v4295
        %v4312 = vunpack.c.l.bf16 %v4296
        %v4313 = vunpack.c.l.bf16 %v4297
        %v4314 = vunpack.c.l.bf16 %v4298
        %v4315 = vunpack.c.l.bf16 %v4299
        %v4316 = vunpack.c.l.bf16 %v4300
        %v4317 = vunpack.c.l.bf16 %v4301
        %v4318 = vunpack.c.l.bf16 %v4302
        %v4319 = vunpack.c.l.bf16 %v4303
        %v4320 = vunpack.c.l.bf16 %v4304
        %v4321 = vsel %vm1018, %v4305, 0.0
        %v4322 = vsel %vm1018, %v4306, 0.0
        %v4323 = vadd.f32 %v4321, %v4322
        %v4324 = vrot.slane %v4323, 4
        %v4325 = vadd.f32 %v4323, %v4324
        %v4326 = vrot.slane %v4325, 2
        %v4327 = vadd.f32 %v4325, %v4326
        %v4328 = vrot.slane %v4327, 1
        %v4329 = vadd.f32 %v4327, %v4328
        %v4330 = vsel %vm1018, %v4307, 0.0
        %v4331 = vsel %vm1018, %v4308, 0.0
        %v4332 = vadd.f32 %v4330, %v4331
        %v4333 = vrot.slane %v4332, 4
        %v4334 = vadd.f32 %v4332, %v4333
        %v4335 = vrot.slane %v4334, 2
        %v4336 = vadd.f32 %v4334, %v4335
        %v4337 = vrot.slane %v4336, 1
        %v4338 = vadd.f32 %v4336, %v4337
        %v4339 = vsel %vm1018, %v4309, 0.0
        %v4340 = vsel %vm1018, %v4310, 0.0
        %v4341 = vadd.f32 %v4339, %v4340
        %v4342 = vrot.slane %v4341, 4
        %v4343 = vadd.f32 %v4341, %v4342
        %v4344 = vrot.slane %v4343, 2
        %v4345 = vadd.f32 %v4343, %v4344
        %v4346 = vrot.slane %v4345, 1
        %v4347 = vadd.f32 %v4345, %v4346
        %v4348 = vsel %vm1018, %v4311, 0.0
        %v4349 = vsel %vm1018, %v4312, 0.0
        %v4350 = vadd.f32 %v4348, %v4349
        %v4351 = vrot.slane %v4350, 4
        %v4352 = vadd.f32 %v4350, %v4351
        %v4353 = vrot.slane %v4352, 2
        %v4354 = vadd.f32 %v4352, %v4353
        %v4355 = vrot.slane %v4354, 1
        %v4356 = vadd.f32 %v4354, %v4355
        %v4357 = vsel %vm1018, %v4313, 0.0
        %v4358 = vsel %vm1018, %v4314, 0.0
        %v4359 = vadd.f32 %v4357, %v4358
        %v4360 = vrot.slane %v4359, 4
        %v4361 = vadd.f32 %v4359, %v4360
        %v4362 = vrot.slane %v4361, 2
        %v4363 = vadd.f32 %v4361, %v4362
        %v4364 = vrot.slane %v4363, 1
        %v4365 = vadd.f32 %v4363, %v4364
        %v4366 = vsel %vm1018, %v4315, 0.0
        %v4367 = vsel %vm1018, %v4316, 0.0
        %v4368 = vadd.f32 %v4366, %v4367
        %v4369 = vrot.slane %v4368, 4
        %v4370 = vadd.f32 %v4368, %v4369
        %v4371 = vrot.slane %v4370, 2
        %v4372 = vadd.f32 %v4370, %v4371
        %v4373 = vrot.slane %v4372, 1
        %v4374 = vadd.f32 %v4372, %v4373
        %v4375 = vsel %vm1018, %v4317, 0.0
        %v4376 = vsel %vm1018, %v4318, 0.0
        %v4377 = vadd.f32 %v4375, %v4376
        %v4378 = vrot.slane %v4377, 4
        %v4379 = vadd.f32 %v4377, %v4378
        %v4380 = vrot.slane %v4379, 2
        %v4381 = vadd.f32 %v4379, %v4380
        %v4382 = vrot.slane %v4381, 1
        %v4383 = vadd.f32 %v4381, %v4382
        %v4384 = vsel %vm1018, %v4319, 0.0
        %v4385 = vsel %vm1018, %v4320, 0.0
        %v4386 = vadd.f32 %v4384, %v4385
        %v4387 = vrot.slane %v4386, 4
        %v4388 = vadd.f32 %v4386, %v4387
        %v4389 = vrot.slane %v4388, 2
        %v4390 = vadd.f32 %v4388, %v4389
        %v4391 = vrot.slane %v4390, 1
        %v4392 = vadd.f32 %v4390, %v4391
        %v4393 = vmul.f32 %v4329, %v1091
        %v4394 = vmul.f32 %v4338, %v1091
        %v4395 = vmul.f32 %v4347, %v1091
        %v4396 = vmul.f32 %v4356, %v1091
        %v4397 = vmul.f32 %v4365, %v1091
        %v4398 = vmul.f32 %v4374, %v1091
        %v4399 = vmul.f32 %v4383, %v1091
        %v4400 = vmul.f32 %v4392, %v1091
        %v4401 = vmul.f32 %v4393, 0.003921569
        %v4402 = vmul.f32 %v4394, 0.003921569
        %v4403 = vmul.f32 %v4395, 0.003921569
        %v4404 = vmul.f32 %v4396, 0.003921569
        %v4405 = vmul.f32 %v4397, 0.003921569
        %v4406 = vmul.f32 %v4398, 0.003921569
        %v4407 = vmul.f32 %v4399, 0.003921569
        %v4408 = vmul.f32 %v4400, 0.003921569
        %v4409 = vpack.c.bf16 %v4401, %v4401
        %v4410 = vpack.c.bf16 %v4402, %v4402
        %v4411 = vpack.c.bf16 %v4403, %v4403
        %v4412 = vpack.c.bf16 %v4404, %v4404
        %v4413 = vpack.c.bf16 %v4405, %v4405
        %v4414 = vpack.c.bf16 %v4406, %v4406
        %v4415 = vpack.c.bf16 %v4407, %v4407
        %v4416 = vpack.c.bf16 %v4408, %v4408
        %s4417 = scalar_lea.vmem [#allocation5], 288
        %v4418 = vld [vmem:[%s4417] sm:$0xff]
        %v4419 = vld [vmem:[%s4417 + $0x8] sm:$0xff]
        %v4420 = vld [vmem:[%s4417 + $0x10] sm:$0xff]
        %v4421 = vld [vmem:[%s4417 + $0x18] sm:$0xff]
        %v4422 = vld [vmem:[%s4417 + $0x20] sm:$0xff]
        %v4423 = vld [vmem:[%s4417 + $0x28] sm:$0xff]
        %v4424 = vld [vmem:[%s4417 + $0x30] sm:$0xff]
        %v4425 = vld [vmem:[%s4417 + $0x38] sm:$0xff]
        %v4426 = vld [vmem:[%s4417 + $0x40] sm:$0xff]
        %v4427 = vld [vmem:[%s4417 + $0x48] sm:$0xff]
        %v4428 = vld [vmem:[%s4417 + $0x50] sm:$0xff]
        %v4429 = vld [vmem:[%s4417 + $0x58] sm:$0xff]
        %v4430 = vld [vmem:[%s4417 + $0x60] sm:$0xff]
        %v4431 = vld [vmem:[%s4417 + $0x68] sm:$0xff]
        %v4432 = vld [vmem:[%s4417 + $0x70] sm:$0xff]
        %v4433 = vld [vmem:[%s4417 + $0x78] sm:$0xff]
        %v4434 = vld [vmem:[%s4417 + $0x80] sm:$0xff]
        %v4435 = vld [vmem:[%s4417 + $0x88] sm:$0xff]
        %s4436 = scalar_lea.vmem [#allocation7], 12
        %v4437 = vld [vmem:[%s4436] sm:$0x3f]
        %v4439 = vlaneseq
        %v4440 = vshrl.u32 %v4439, 7
        %v4441 = vsub.s32 0, %v4440
        %v4442 = vrot.slane %v4437, %v4441
        %v4443 = vlaneseq
        %v4444 = vshrl.u32 %v4443, 7
        %v4445 = vsub.s32 1, %v4444
        %v4446 = vrot.slane %v4437, %v4445
        %v4447 = vlaneseq
        %v4448 = vshrl.u32 %v4447, 7
        %v4449 = vsub.s32 2, %v4448
        %v4450 = vrot.slane %v4437, %v4449
        %v4451 = vlaneseq
        %v4452 = vshrl.u32 %v4451, 7
        %v4453 = vsub.s32 3, %v4452
        %v4454 = vrot.slane %v4437, %v4453
        %v4455 = vlaneseq
        %v4456 = vshrl.u32 %v4455, 7
        %v4457 = vsub.s32 4, %v4456
        %v4458 = vrot.slane %v4437, %v4457
        %v4459 = vlaneseq
        %v4460 = vshrl.u32 %v4459, 7
        %v4461 = vsub.s32 5, %v4460
        %v4462 = vrot.slane %v4437, %v4461
        %v4477 = vunpack.c.l.b16 %v4409
        %v4478 = vunpack.c.l.b16 %v4410
        %v4479 = vunpack.c.l.b16 %v4411
        %v4480 = vunpack.c.l.b16 %v4412
        %v4481 = vunpack.c.l.b16 %v4413
        %v4482 = vunpack.c.l.b16 %v4414
        %v4483 = vunpack.c.l.b16 %v4415
        %v4484 = vunpack.c.l.b16 %v4416
        %v4485 = vsel %vm1182, %v4478, %v4477
        %v4486 = vsel %vm1184, %v4479, %v4485
        %v4487 = vsel %vm1186, %v4480, %v4486
        %v4488 = vsel %vm1188, %v4481, %v4487
        %v4489 = vsel %vm1190, %v4482, %v4488
        %v4490 = vsel %vm1192, %v4483, %v4489
        %v4491 = vsel %vm1194, %v4484, %v4490
        %v4492 = vpack.c.b16 %v4491, %v4491
        %v4511 = vunpack.c.l.b16 %v4418
        %v4512 = vunpack.c.h.b16 %v4418
        %v4513 = vunpack.c.l.b16 %v4419
        %v4514 = vunpack.c.h.b16 %v4419
        %v4515 = vunpack.c.l.b16 %v4420
        %v4516 = vunpack.c.h.b16 %v4420
        %v4517 = vunpack.c.l.b16 %v4421
        %v4518 = vunpack.c.h.b16 %v4421
        %v4519 = vunpack.c.l.b16 %v4422
        %v4520 = vunpack.c.h.b16 %v4422
        %v4521 = vunpack.c.l.b16 %v4423
        %v4522 = vunpack.c.h.b16 %v4423
        %v4523 = vunpack.c.l.b16 %v4424
        %v4524 = vunpack.c.h.b16 %v4424
        %v4525 = vunpack.c.l.b16 %v4425
        %v4526 = vunpack.c.h.b16 %v4425
        %v4527 = vunpack.c.l.b16 %v4426
        %v4528 = vunpack.c.h.b16 %v4426
        %v4529 = vunpack.c.l.b16 %v4427
        %v4530 = vunpack.c.h.b16 %v4427
        %v4531 = vunpack.c.l.b16 %v4428
        %v4532 = vunpack.c.h.b16 %v4428
        %v4533 = vunpack.c.l.b16 %v4429
        %v4534 = vunpack.c.h.b16 %v4429
        %v4535 = vunpack.c.l.b16 %v4430
        %v4536 = vunpack.c.h.b16 %v4430
        %v4537 = vunpack.c.l.b16 %v4431
        %v4538 = vunpack.c.h.b16 %v4431
        %v4539 = vunpack.c.l.b16 %v4432
        %v4540 = vunpack.c.h.b16 %v4432
        %v4541 = vunpack.c.l.b16 %v4433
        %v4542 = vunpack.c.h.b16 %v4433
        %v4543 = vunpack.c.l.b16 %v4434
        %v4544 = vunpack.c.h.b16 %v4434
        %v4545 = vunpack.c.l.b16 %v4435
        %v4546 = vunpack.c.h.b16 %v4435
        %v4547 = vpack.c.b16 %v4517, %v4511
        %v4548 = vpack.c.b16 %v4518, %v4512
        %v4549 = vpack.c.b16 %v4519, %v4513
        %v4550 = vpack.c.b16 %v4520, %v4514
        %v4551 = vpack.c.b16 %v4521, %v4515
        %v4552 = vpack.c.b16 %v4522, %v4516
        %v4553 = vpack.c.b16 %v4529, %v4523
        %v4554 = vpack.c.b16 %v4530, %v4524
        %v4555 = vpack.c.b16 %v4531, %v4525
        %v4556 = vpack.c.b16 %v4532, %v4526
        %v4557 = vpack.c.b16 %v4533, %v4527
        %v4558 = vpack.c.b16 %v4534, %v4528
        %v4559 = vpack.c.b16 %v4541, %v4535
        %v4560 = vpack.c.b16 %v4542, %v4536
        %v4561 = vpack.c.b16 %v4543, %v4537
        %v4562 = vpack.c.b16 %v4544, %v4538
        %v4563 = vpack.c.b16 %v4545, %v4539
        %v4564 = vpack.c.b16 %v4546, %v4540
        %v4584 = vsel %vm1018, %v4492, 0
        %4586 = vmatprep.subr.bf16.mxu0 %v4548
        %4587 = vmatpush1.bf16.msra.mxu0 %v4547
        %4588 = vmatprep.subr.bf16.mxu0 %v4554
        %4589 = vmatpush1.bf16.msra.mxu0 %v4553
        %4590 = vmatprep.subr.bf16.mxu0 %v4560
        %4591 = vmatpush1.bf16.msra.mxu0 %v4559
        %4592 = vmatprep.subr.bf16.mxu0 0
        %4593 = vmatpush1.bf16.msra.mxu0 0
        %4594 = vmatprep.subr.bf16.mxu0 0
        %4595 = vmatpush1.bf16.msra.mxu0 0
        %4596 = vmatprep.subr.bf16.mxu0 0
        %4597 = vmatpush1.bf16.msra.mxu0 0
        %4598 = vmatprep.subr.bf16.mxu0 0
        %4599 = vmatpush1.bf16.msra.mxu0 0
        %4600 = vmatprep.subr.bf16.mxu0 0
        %4601 = vmatpush1.bf16.msra.mxu0 0
        %4602 = vmatprep.subr.bf16.mxu0 0
        %4603 = vmatpush1.bf16.msra.mxu0 0
        %4604 = vmatprep.subr.bf16.mxu0 0
        %4605 = vmatpush1.bf16.msra.mxu0 0
        %4606 = vmatprep.subr.bf16.mxu0 0
        %4607 = vmatpush1.bf16.msra.mxu0 0
        %4608 = vmatprep.subr.bf16.mxu0 0
        %4609 = vmatpush1.bf16.msra.mxu0 0
        %4610 = vmatprep.subr.bf16.mxu0 0
        %4611 = vmatpush1.bf16.msra.mxu0 0
        %4612 = vmatprep.subr.bf16.mxu0 0
        %4613 = vmatpush1.bf16.msra.mxu0 0
        %4614 = vmatprep.subr.bf16.mxu0 0
        %4615 = vmatpush1.bf16.msra.mxu0 0
        %4616 = vmatprep.subr.bf16.mxu0 0
        %4617 = vmatpush1.bf16.msra.mxu0 0
        %4618 = vmatprep.mubr.bf16.mxu0 0
        %4619 = vmatmul.mubr.bf16.gmra.mrb[0].mxu0 %v4584
        %v4620 = vpop.f32.mrb[0].mxu0
        %v4621 = vadd.f32 %v4442, %v4620
        %v4622 = vpop.f32.mrb[0].mxu0
        %v4623 = vadd.f32 %v4446, %v4622
        %v4624 = vpop.f32.mrb[0].mxu0
        %v4625 = vpop.f32.mrb[0].mxu0
        %4626 = vdwg.mxu0
        %4627 = vmatprep.subr.bf16.mxu0 %v4550
        %4628 = vmatpush1.bf16.msra.mxu0 %v4549
        %4629 = vmatprep.subr.bf16.mxu0 %v4556
        %4630 = vmatpush1.bf16.msra.mxu0 %v4555
        %4631 = vmatprep.subr.bf16.mxu0 %v4562
        %4632 = vmatpush1.bf16.msra.mxu0 %v4561
        %4633 = vmatprep.subr.bf16.mxu0 0
        %4634 = vmatpush1.bf16.msra.mxu0 0
        %4635 = vmatprep.subr.bf16.mxu0 0
        %4636 = vmatpush1.bf16.msra.mxu0 0
        %4637 = vmatprep.subr.bf16.mxu0 0
        %4638 = vmatpush1.bf16.msra.mxu0 0
        %4639 = vmatprep.subr.bf16.mxu0 0
        %4640 = vmatpush1.bf16.msra.mxu0 0
        %4641 = vmatprep.subr.bf16.mxu0 0
        %4642 = vmatpush1.bf16.msra.mxu0 0
        %4643 = vmatprep.subr.bf16.mxu0 0
        %4644 = vmatpush1.bf16.msra.mxu0 0
        %4645 = vmatprep.subr.bf16.mxu0 0
        %4646 = vmatpush1.bf16.msra.mxu0 0
        %4647 = vmatprep.subr.bf16.mxu0 0
        %4648 = vmatpush1.bf16.msra.mxu0 0
        %4649 = vmatprep.subr.bf16.mxu0 0
        %4650 = vmatpush1.bf16.msra.mxu0 0
        %4651 = vmatprep.subr.bf16.mxu0 0
        %4652 = vmatpush1.bf16.msra.mxu0 0
        %4653 = vmatprep.subr.bf16.mxu0 0
        %4654 = vmatpush1.bf16.msra.mxu0 0
        %4655 = vmatprep.subr.bf16.mxu0 0
        %4656 = vmatpush1.bf16.msra.mxu0 0
        %4657 = vmatprep.subr.bf16.mxu0 0
        %4658 = vmatpush1.bf16.msra.mxu0 0
        %4659 = vmatprep.mubr.bf16.mxu0 0
        %4660 = vmatmul.mubr.bf16.gmra.mrb[0].mxu0 %v4584
        %v4661 = vpop.f32.mrb[0].mxu0
        %v4662 = vadd.f32 %v4450, %v4661
        %v4663 = vpop.f32.mrb[0].mxu0
        %v4664 = vadd.f32 %v4454, %v4663
        %v4665 = vpop.f32.mrb[0].mxu0
        %v4666 = vpop.f32.mrb[0].mxu0
        %4667 = vdwg.mxu0
        %4668 = vmatprep.subr.bf16.mxu0 %v4552
        %4669 = vmatpush1.bf16.msra.mxu0 %v4551
        %4670 = vmatprep.subr.bf16.mxu0 %v4558
        %4671 = vmatpush1.bf16.msra.mxu0 %v4557
        %4672 = vmatprep.subr.bf16.mxu0 %v4564
        %4673 = vmatpush1.bf16.msra.mxu0 %v4563
        %4674 = vmatprep.subr.bf16.mxu0 0
        %4675 = vmatpush1.bf16.msra.mxu0 0
        %4676 = vmatprep.subr.bf16.mxu0 0
        %4677 = vmatpush1.bf16.msra.mxu0 0
        %4678 = vmatprep.subr.bf16.mxu0 0
        %4679 = vmatpush1.bf16.msra.mxu0 0
        %4680 = vmatprep.subr.bf16.mxu0 0
        %4681 = vmatpush1.bf16.msra.mxu0 0
        %4682 = vmatprep.subr.bf16.mxu0 0
        %4683 = vmatpush1.bf16.msra.mxu0 0
        %4684 = vmatprep.subr.bf16.mxu0 0
        %4685 = vmatpush1.bf16.msra.mxu0 0
        %4686 = vmatprep.subr.bf16.mxu0 0
        %4687 = vmatpush1.bf16.msra.mxu0 0
        %4688 = vmatprep.subr.bf16.mxu0 0
        %4689 = vmatpush1.bf16.msra.mxu0 0
        %4690 = vmatprep.subr.bf16.mxu0 0
        %4691 = vmatpush1.bf16.msra.mxu0 0
        %4692 = vmatprep.subr.bf16.mxu0 0
        %4693 = vmatpush1.bf16.msra.mxu0 0
        %4694 = vmatprep.subr.bf16.mxu0 0
        %4695 = vmatpush1.bf16.msra.mxu0 0
        %4696 = vmatprep.subr.bf16.mxu0 0
        %4697 = vmatpush1.bf16.msra.mxu0 0
        %4698 = vmatprep.subr.bf16.mxu0 0
        %4699 = vmatpush1.bf16.msra.mxu0 0
        %4700 = vmatprep.mubr.bf16.mxu0 0
        %4701 = vmatmul.mubr.bf16.gmra.mrb[0].mxu0 %v4584
        %v4702 = vpop.f32.mrb[0].mxu0
        %v4703 = vadd.f32 %v4458, %v4702
        %v4704 = vpop.f32.mrb[0].mxu0
        %v4705 = vadd.f32 %v4462, %v4704
        %v4706 = vpop.f32.mrb[0].mxu0
        %v4707 = vpop.f32.mrb[0].mxu0
        %4708 = vdwg.mxu0
        %v4709 = vpack.c.bf16 %v4621, %v4621
        %v4710 = vpack.c.bf16 %v4623, %v4623
        %v4711 = vpack.c.bf16 %v4662, %v4662
        %v4712 = vpack.c.bf16 %v4664, %v4664
        %v4713 = vpack.c.bf16 %v4703, %v4703
        %v4714 = vpack.c.bf16 %v4705, %v4705
        %s4715 = scalar_lea.vmem [#allocation8], 2304
        %v4716 = vld [vmem:[%s4715] sm:$0xff]
        %v4717 = vld [vmem:[%s4715 + $0x8] sm:$0xf]
        %v4718 = vld [vmem:[%s4715 + $0xc] sm:$0xff]
        %v4719 = vld [vmem:[%s4715 + $0x14] sm:$0xf]
        %v4720 = vld [vmem:[%s4715 + $0x18] sm:$0xff]
        %v4721 = vld [vmem:[%s4715 + $0x20] sm:$0xf]
        %v4722 = vld [vmem:[%s4715 + $0x24] sm:$0xff]
        %v4723 = vld [vmem:[%s4715 + $0x2c] sm:$0xf]
        %v4724 = vld [vmem:[%s4715 + $0x30] sm:$0xff]
        %v4725 = vld [vmem:[%s4715 + $0x38] sm:$0xf]
        %v4726 = vld [vmem:[%s4715 + $0x3c] sm:$0xff]
        %v4727 = vld [vmem:[%s4715 + $0x44] sm:$0xf]
        %v4728 = vld [vmem:[%s4715 + $0x48] sm:$0xff]
        %v4729 = vld [vmem:[%s4715 + $0x50] sm:$0xf]
        %v4730 = vld [vmem:[%s4715 + $0x54] sm:$0xff]
        %v4731 = vld [vmem:[%s4715 + $0x5c] sm:$0xf]
        %v4732 = vld [vmem:[%s4715 + $0x60] sm:$0xff]
        %v4733 = vld [vmem:[%s4715 + $0x68] sm:$0xf]
        %v4734 = vld [vmem:[%s4715 + $0x6c] sm:$0xff]
        %v4735 = vld [vmem:[%s4715 + $0x74] sm:$0xf]
        %v4736 = vld [vmem:[%s4715 + $0x78] sm:$0xff]
        %v4737 = vld [vmem:[%s4715 + $0x80] sm:$0xf]
        %v4738 = vld [vmem:[%s4715 + $0x84] sm:$0xff]
        %v4739 = vld [vmem:[%s4715 + $0x8c] sm:$0xf]
        %v4740 = vld [vmem:[%s4715 + $0x90] sm:$0xff]
        %v4741 = vld [vmem:[%s4715 + $0x98] sm:$0xf]
        %v4742 = vld [vmem:[%s4715 + $0x9c] sm:$0xff]
        %v4743 = vld [vmem:[%s4715 + $0xa4] sm:$0xf]
        %v4744 = vld [vmem:[%s4715 + $0xa8] sm:$0xff]
        %v4745 = vld [vmem:[%s4715 + $0xb0] sm:$0xf]
        %v4746 = vld [vmem:[%s4715 + $0xb4] sm:$0xff]
        %v4747 = vld [vmem:[%s4715 + $0xbc] sm:$0xf]
        %v4748 = vld [vmem:[%s4715 + $0xc0] sm:$0xff]
        %v4749 = vld [vmem:[%s4715 + $0xc8] sm:$0xf]
        %v4750 = vld [vmem:[%s4715 + $0xcc] sm:$0xff]
        %v4751 = vld [vmem:[%s4715 + $0xd4] sm:$0xf]
        %v4752 = vld [vmem:[%s4715 + $0xd8] sm:$0xff]
        %v4753 = vld [vmem:[%s4715 + $0xe0] sm:$0xf]
        %v4754 = vld [vmem:[%s4715 + $0xe4] sm:$0xff]
        %v4755 = vld [vmem:[%s4715 + $0xec] sm:$0xf]
        %v4756 = vld [vmem:[%s4715 + $0xf0] sm:$0xff]
        %v4757 = vld [vmem:[%s4715 + $0xf8] sm:$0xf]
        %v4758 = vld [vmem:[%s4715 + $0xfc] sm:$0xff]
        %v4759 = vld [vmem:[%s4715 + $0x104] sm:$0xf]
        %v4760 = vld [vmem:[%s4715 + $0x108] sm:$0xff]
        %v4761 = vld [vmem:[%s4715 + $0x110] sm:$0xf]
        %v4762 = vld [vmem:[%s4715 + $0x114] sm:$0xff]
        %v4763 = vld [vmem:[%s4715 + $0x11c] sm:$0xf]
        %v4764 = vld [vmem:[%s4715 + $0x120] sm:$0xff]
        %v4765 = vld [vmem:[%s4715 + $0x128] sm:$0xf]
        %v4766 = vld [vmem:[%s4715 + $0x12c] sm:$0xff]
        %v4767 = vld [vmem:[%s4715 + $0x134] sm:$0xf]
        %v4768 = vld [vmem:[%s4715 + $0x138] sm:$0xff]
        %v4769 = vld [vmem:[%s4715 + $0x140] sm:$0xf]
        %v4770 = vld [vmem:[%s4715 + $0x144] sm:$0xff]
        %v4771 = vld [vmem:[%s4715 + $0x14c] sm:$0xf]
        %v4772 = vld [vmem:[%s4715 + $0x150] sm:$0xff]
        %v4773 = vld [vmem:[%s4715 + $0x158] sm:$0xf]
        %v4774 = vld [vmem:[%s4715 + $0x15c] sm:$0xff]
        %v4775 = vld [vmem:[%s4715 + $0x164] sm:$0xf]
        %v4776 = vld [vmem:[%s4715 + $0x168] sm:$0xff]
        %v4777 = vld [vmem:[%s4715 + $0x170] sm:$0xf]
        %v4778 = vld [vmem:[%s4715 + $0x174] sm:$0xff]
        %v4779 = vld [vmem:[%s4715 + $0x17c] sm:$0xf]
        %v4780 = vld [vmem:[%s4715 + $0x180] sm:$0xff]
        %v4781 = vld [vmem:[%s4715 + $0x188] sm:$0xf]
        %v4782 = vld [vmem:[%s4715 + $0x18c] sm:$0xff]
        %v4783 = vld [vmem:[%s4715 + $0x194] sm:$0xf]
        %v4784 = vld [vmem:[%s4715 + $0x198] sm:$0xff]
        %v4785 = vld [vmem:[%s4715 + $0x1a0] sm:$0xf]
        %v4786 = vld [vmem:[%s4715 + $0x1a4] sm:$0xff]
        %v4787 = vld [vmem:[%s4715 + $0x1ac] sm:$0xf]
        %v4788 = vld [vmem:[%s4715 + $0x1b0] sm:$0xff]
        %v4789 = vld [vmem:[%s4715 + $0x1b8] sm:$0xf]
        %v4790 = vld [vmem:[%s4715 + $0x1bc] sm:$0xff]
        %v4791 = vld [vmem:[%s4715 + $0x1c4] sm:$0xf]
        %v4792 = vld [vmem:[%s4715 + $0x1c8] sm:$0xff]
        %v4793 = vld [vmem:[%s4715 + $0x1d0] sm:$0xf]
        %v4794 = vld [vmem:[%s4715 + $0x1d4] sm:$0xff]
        %v4795 = vld [vmem:[%s4715 + $0x1dc] sm:$0xf]
        %v4796 = vld [vmem:[%s4715 + $0x1e0] sm:$0xff]
        %v4797 = vld [vmem:[%s4715 + $0x1e8] sm:$0xf]
        %v4798 = vld [vmem:[%s4715 + $0x1ec] sm:$0xff]
        %v4799 = vld [vmem:[%s4715 + $0x1f4] sm:$0xf]
        %v4800 = vld [vmem:[%s4715 + $0x1f8] sm:$0xff]
        %v4801 = vld [vmem:[%s4715 + $0x200] sm:$0xf]
        %v4802 = vld [vmem:[%s4715 + $0x204] sm:$0xff]
        %v4803 = vld [vmem:[%s4715 + $0x20c] sm:$0xf]
        %v4804 = vld [vmem:[%s4715 + $0x210] sm:$0xff]
        %v4805 = vld [vmem:[%s4715 + $0x218] sm:$0xf]
        %v4806 = vld [vmem:[%s4715 + $0x21c] sm:$0xff]
        %v4807 = vld [vmem:[%s4715 + $0x224] sm:$0xf]
        %v4808 = vld [vmem:[%s4715 + $0x228] sm:$0xff]
        %v4809 = vld [vmem:[%s4715 + $0x230] sm:$0xf]
        %v4810 = vld [vmem:[%s4715 + $0x234] sm:$0xff]
        %v4811 = vld [vmem:[%s4715 + $0x23c] sm:$0xf]
        %v4812 = vld [vmem:[%s4715 + $0x240] sm:$0xff]
        %v4813 = vld [vmem:[%s4715 + $0x248] sm:$0xf]
        %v4814 = vld [vmem:[%s4715 + $0x24c] sm:$0xff]
        %v4815 = vld [vmem:[%s4715 + $0x254] sm:$0xf]
        %v4816 = vld [vmem:[%s4715 + $0x258] sm:$0xff]
        %v4817 = vld [vmem:[%s4715 + $0x260] sm:$0xf]
        %v4818 = vld [vmem:[%s4715 + $0x264] sm:$0xff]
        %v4819 = vld [vmem:[%s4715 + $0x26c] sm:$0xf]
        %v4820 = vld [vmem:[%s4715 + $0x270] sm:$0xff]
        %v4821 = vld [vmem:[%s4715 + $0x278] sm:$0xf]
        %v4822 = vld [vmem:[%s4715 + $0x27c] sm:$0xff]
        %v4823 = vld [vmem:[%s4715 + $0x284] sm:$0xf]
        %v4824 = vld [vmem:[%s4715 + $0x288] sm:$0xff]
        %v4825 = vld [vmem:[%s4715 + $0x290] sm:$0xf]
        %v4826 = vld [vmem:[%s4715 + $0x294] sm:$0xff]
        %v4827 = vld [vmem:[%s4715 + $0x29c] sm:$0xf]
        %v4828 = vld [vmem:[%s4715 + $0x2a0] sm:$0xff]
        %v4829 = vld [vmem:[%s4715 + $0x2a8] sm:$0xf]
        %v4830 = vld [vmem:[%s4715 + $0x2ac] sm:$0xff]
        %v4831 = vld [vmem:[%s4715 + $0x2b4] sm:$0xf]
        %v4832 = vld [vmem:[%s4715 + $0x2b8] sm:$0xff]
        %v4833 = vld [vmem:[%s4715 + $0x2c0] sm:$0xf]
        %v4834 = vld [vmem:[%s4715 + $0x2c4] sm:$0xff]
        %v4835 = vld [vmem:[%s4715 + $0x2cc] sm:$0xf]
        %v4836 = vld [vmem:[%s4715 + $0x2d0] sm:$0xff]
        %v4837 = vld [vmem:[%s4715 + $0x2d8] sm:$0xf]
        %v4838 = vld [vmem:[%s4715 + $0x2dc] sm:$0xff]
        %v4839 = vld [vmem:[%s4715 + $0x2e4] sm:$0xf]
        %v4840 = vld [vmem:[%s4715 + $0x2e8] sm:$0xff]
        %v4841 = vld [vmem:[%s4715 + $0x2f0] sm:$0xf]
        %v4842 = vld [vmem:[%s4715 + $0x2f4] sm:$0xff]
        %v4843 = vld [vmem:[%s4715 + $0x2fc] sm:$0xf]
        %v4844 = vld [vmem:[%s4715 + $0x300] sm:$0xff]
        %v4845 = vld [vmem:[%s4715 + $0x308] sm:$0xf]
        %v4846 = vld [vmem:[%s4715 + $0x30c] sm:$0xff]
        %v4847 = vld [vmem:[%s4715 + $0x314] sm:$0xf]
        %v4848 = vld [vmem:[%s4715 + $0x318] sm:$0xff]
        %v4849 = vld [vmem:[%s4715 + $0x320] sm:$0xf]
        %v4850 = vld [vmem:[%s4715 + $0x324] sm:$0xff]
        %v4851 = vld [vmem:[%s4715 + $0x32c] sm:$0xf]
        %v4852 = vld [vmem:[%s4715 + $0x330] sm:$0xff]
        %v4853 = vld [vmem:[%s4715 + $0x338] sm:$0xf]
        %v4854 = vld [vmem:[%s4715 + $0x33c] sm:$0xff]
        %v4855 = vld [vmem:[%s4715 + $0x344] sm:$0xf]
        %v4856 = vld [vmem:[%s4715 + $0x348] sm:$0xff]
        %v4857 = vld [vmem:[%s4715 + $0x350] sm:$0xf]
        %v4858 = vld [vmem:[%s4715 + $0x354] sm:$0xff]
        %v4859 = vld [vmem:[%s4715 + $0x35c] sm:$0xf]
        %v4860 = vld [vmem:[%s4715 + $0x360] sm:$0xff]
        %v4861 = vld [vmem:[%s4715 + $0x368] sm:$0xf]
        %v4862 = vld [vmem:[%s4715 + $0x36c] sm:$0xff]
        %v4863 = vld [vmem:[%s4715 + $0x374] sm:$0xf]
        %v4864 = vld [vmem:[%s4715 + $0x378] sm:$0xff]
        %v4865 = vld [vmem:[%s4715 + $0x380] sm:$0xf]
        %v4866 = vld [vmem:[%s4715 + $0x384] sm:$0xff]
        %v4867 = vld [vmem:[%s4715 + $0x38c] sm:$0xf]
        %v4868 = vld [vmem:[%s4715 + $0x390] sm:$0xff]
        %v4869 = vld [vmem:[%s4715 + $0x398] sm:$0xf]
        %v4870 = vld [vmem:[%s4715 + $0x39c] sm:$0xff]
        %v4871 = vld [vmem:[%s4715 + $0x3a4] sm:$0xf]
        %v4872 = vld [vmem:[%s4715 + $0x3a8] sm:$0xff]
        %v4873 = vld [vmem:[%s4715 + $0x3b0] sm:$0xf]
        %v4874 = vld [vmem:[%s4715 + $0x3b4] sm:$0xff]
        %v4875 = vld [vmem:[%s4715 + $0x3bc] sm:$0xf]
        %v4876 = vld [vmem:[%s4715 + $0x3c0] sm:$0xff]
        %v4877 = vld [vmem:[%s4715 + $0x3c8] sm:$0xf]
        %v4878 = vld [vmem:[%s4715 + $0x3cc] sm:$0xff]
        %v4879 = vld [vmem:[%s4715 + $0x3d4] sm:$0xf]
        %v4880 = vld [vmem:[%s4715 + $0x3d8] sm:$0xff]
        %v4881 = vld [vmem:[%s4715 + $0x3e0] sm:$0xf]
        %v4882 = vld [vmem:[%s4715 + $0x3e4] sm:$0xff]
        %v4883 = vld [vmem:[%s4715 + $0x3ec] sm:$0xf]
        %v4884 = vld [vmem:[%s4715 + $0x3f0] sm:$0xff]
        %v4885 = vld [vmem:[%s4715 + $0x3f8] sm:$0xf]
        %v4886 = vld [vmem:[%s4715 + $0x3fc] sm:$0xff]
        %v4887 = vld [vmem:[%s4715 + $0x404] sm:$0xf]
        %v4888 = vld [vmem:[%s4715 + $0x408] sm:$0xff]
        %v4889 = vld [vmem:[%s4715 + $0x410] sm:$0xf]
        %v4890 = vld [vmem:[%s4715 + $0x414] sm:$0xff]
        %v4891 = vld [vmem:[%s4715 + $0x41c] sm:$0xf]
        %v4892 = vld [vmem:[%s4715 + $0x420] sm:$0xff]
        %v4893 = vld [vmem:[%s4715 + $0x428] sm:$0xf]
        %v4894 = vld [vmem:[%s4715 + $0x42c] sm:$0xff]
        %v4895 = vld [vmem:[%s4715 + $0x434] sm:$0xf]
        %v4896 = vld [vmem:[%s4715 + $0x438] sm:$0xff]
        %v4897 = vld [vmem:[%s4715 + $0x440] sm:$0xf]
        %v4898 = vld [vmem:[%s4715 + $0x444] sm:$0xff]
        %v4899 = vld [vmem:[%s4715 + $0x44c] sm:$0xf]
        %v4900 = vld [vmem:[%s4715 + $0x450] sm:$0xff]
        %v4901 = vld [vmem:[%s4715 + $0x458] sm:$0xf]
        %v4902 = vld [vmem:[%s4715 + $0x45c] sm:$0xff]
        %v4903 = vld [vmem:[%s4715 + $0x464] sm:$0xf]
        %v4904 = vld [vmem:[%s4715 + $0x468] sm:$0xff]
        %v4905 = vld [vmem:[%s4715 + $0x470] sm:$0xf]
        %v4906 = vld [vmem:[%s4715 + $0x474] sm:$0xff]
        %v4907 = vld [vmem:[%s4715 + $0x47c] sm:$0xf]
        %s4908 = scalar_lea.vmem [#allocation10], 6
        %v4909 = vld [vmem:[%s4908] sm:$0x7]
        %v4911 = vlaneseq
        %v4912 = vshrl.u32 %v4911, 7
        %v4913 = vsub.s32 0, %v4912
        %v4914 = vrot.slane %v4909, %v4913
        %v4915 = vlaneseq
        %v4916 = vshrl.u32 %v4915, 7
        %v4917 = vsub.s32 1, %v4916
        %v4918 = vrot.slane %v4909, %v4917
        %v4919 = vlaneseq
        %v4920 = vshrl.u32 %v4919, 7
        %v4921 = vsub.s32 2, %v4920
        %v4922 = vrot.slane %v4909, %v4921
        %v5118 = vunpack.c.l.b16 %v4716
        %v5119 = vunpack.c.h.b16 %v4716
        %v5120 = vunpack.c.l.b16 %v4717
        %v5121 = vunpack.c.l.b16 %v4718
        %v5122 = vunpack.c.h.b16 %v4718
        %v5123 = vunpack.c.l.b16 %v4719
        %v5124 = vunpack.c.l.b16 %v4720
        %v5125 = vunpack.c.h.b16 %v4720
        %v5126 = vunpack.c.l.b16 %v4721
        %v5127 = vunpack.c.l.b16 %v4722
        %v5128 = vunpack.c.h.b16 %v4722
        %v5129 = vunpack.c.l.b16 %v4723
        %v5130 = vunpack.c.l.b16 %v4724
        %v5131 = vunpack.c.h.b16 %v4724
        %v5132 = vunpack.c.l.b16 %v4725
        %v5133 = vunpack.c.l.b16 %v4726
        %v5134 = vunpack.c.h.b16 %v4726
        %v5135 = vunpack.c.l.b16 %v4727
        %v5136 = vunpack.c.l.b16 %v4728
        %v5137 = vunpack.c.h.b16 %v4728
        %v5138 = vunpack.c.l.b16 %v4729
        %v5139 = vunpack.c.l.b16 %v4730
        %v5140 = vunpack.c.h.b16 %v4730
        %v5141 = vunpack.c.l.b16 %v4731
        %v5142 = vunpack.c.l.b16 %v4732
        %v5143 = vunpack.c.h.b16 %v4732
        %v5144 = vunpack.c.l.b16 %v4733
        %v5145 = vunpack.c.l.b16 %v4734
        %v5146 = vunpack.c.h.b16 %v4734
        %v5147 = vunpack.c.l.b16 %v4735
        %v5148 = vunpack.c.l.b16 %v4736
        %v5149 = vunpack.c.h.b16 %v4736
        %v5150 = vunpack.c.l.b16 %v4737
        %v5151 = vunpack.c.l.b16 %v4738
        %v5152 = vunpack.c.h.b16 %v4738
        %v5153 = vunpack.c.l.b16 %v4739
        %v5154 = vunpack.c.l.b16 %v4740
        %v5155 = vunpack.c.h.b16 %v4740
        %v5156 = vunpack.c.l.b16 %v4741
        %v5157 = vunpack.c.l.b16 %v4742
        %v5158 = vunpack.c.h.b16 %v4742
        %v5159 = vunpack.c.l.b16 %v4743
        %v5160 = vunpack.c.l.b16 %v4744
        %v5161 = vunpack.c.h.b16 %v4744
        %v5162 = vunpack.c.l.b16 %v4745
        %v5163 = vunpack.c.l.b16 %v4746
        %v5164 = vunpack.c.h.b16 %v4746
        %v5165 = vunpack.c.l.b16 %v4747
        %v5166 = vunpack.c.l.b16 %v4748
        %v5167 = vunpack.c.h.b16 %v4748
        %v5168 = vunpack.c.l.b16 %v4749
        %v5169 = vunpack.c.l.b16 %v4750
        %v5170 = vunpack.c.h.b16 %v4750
        %v5171 = vunpack.c.l.b16 %v4751
        %v5172 = vunpack.c.l.b16 %v4752
        %v5173 = vunpack.c.h.b16 %v4752
        %v5174 = vunpack.c.l.b16 %v4753
        %v5175 = vunpack.c.l.b16 %v4754
        %v5176 = vunpack.c.h.b16 %v4754
        %v5177 = vunpack.c.l.b16 %v4755
        %v5178 = vunpack.c.l.b16 %v4756
        %v5179 = vunpack.c.h.b16 %v4756
        %v5180 = vunpack.c.l.b16 %v4757
        %v5181 = vunpack.c.l.b16 %v4758
        %v5182 = vunpack.c.h.b16 %v4758
        %v5183 = vunpack.c.l.b16 %v4759
        %v5184 = vunpack.c.l.b16 %v4760
        %v5185 = vunpack.c.h.b16 %v4760
        %v5186 = vunpack.c.l.b16 %v4761
        %v5187 = vunpack.c.l.b16 %v4762
        %v5188 = vunpack.c.h.b16 %v4762
        %v5189 = vunpack.c.l.b16 %v4763
        %v5190 = vunpack.c.l.b16 %v4764
        %v5191 = vunpack.c.h.b16 %v4764
        %v5192 = vunpack.c.l.b16 %v4765
        %v5193 = vunpack.c.l.b16 %v4766
        %v5194 = vunpack.c.h.b16 %v4766
        %v5195 = vunpack.c.l.b16 %v4767
        %v5196 = vunpack.c.l.b16 %v4768
        %v5197 = vunpack.c.h.b16 %v4768
        %v5198 = vunpack.c.l.b16 %v4769
        %v5199 = vunpack.c.l.b16 %v4770
        %v5200 = vunpack.c.h.b16 %v4770
        %v5201 = vunpack.c.l.b16 %v4771
        %v5202 = vunpack.c.l.b16 %v4772
        %v5203 = vunpack.c.h.b16 %v4772
        %v5204 = vunpack.c.l.b16 %v4773
        %v5205 = vunpack.c.l.b16 %v4774
        %v5206 = vunpack.c.h.b16 %v4774
        %v5207 = vunpack.c.l.b16 %v4775
        %v5208 = vunpack.c.l.b16 %v4776
        %v5209 = vunpack.c.h.b16 %v4776
        %v5210 = vunpack.c.l.b16 %v4777
        %v5211 = vunpack.c.l.b16 %v4778
        %v5212 = vunpack.c.h.b16 %v4778
        %v5213 = vunpack.c.l.b16 %v4779
        %v5214 = vunpack.c.l.b16 %v4780
        %v5215 = vunpack.c.h.b16 %v4780
        %v5216 = vunpack.c.l.b16 %v4781
        %v5217 = vunpack.c.l.b16 %v4782
        %v5218 = vunpack.c.h.b16 %v4782
        %v5219 = vunpack.c.l.b16 %v4783
        %v5220 = vunpack.c.l.b16 %v4784
        %v5221 = vunpack.c.h.b16 %v4784
        %v5222 = vunpack.c.l.b16 %v4785
        %v5223 = vunpack.c.l.b16 %v4786
        %v5224 = vunpack.c.h.b16 %v4786
        %v5225 = vunpack.c.l.b16 %v4787
        %v5226 = vunpack.c.l.b16 %v4788
        %v5227 = vunpack.c.h.b16 %v4788
        %v5228 = vunpack.c.l.b16 %v4789
        %v5229 = vunpack.c.l.b16 %v4790
        %v5230 = vunpack.c.h.b16 %v4790
        %v5231 = vunpack.c.l.b16 %v4791
        %v5232 = vunpack.c.l.b16 %v4792
        %v5233 = vunpack.c.h.b16 %v4792
        %v5234 = vunpack.c.l.b16 %v4793
        %v5235 = vunpack.c.l.b16 %v4794
        %v5236 = vunpack.c.h.b16 %v4794
        %v5237 = vunpack.c.l.b16 %v4795
        %v5238 = vunpack.c.l.b16 %v4796
        %v5239 = vunpack.c.h.b16 %v4796
        %v5240 = vunpack.c.l.b16 %v4797
        %v5241 = vunpack.c.l.b16 %v4798
        %v5242 = vunpack.c.h.b16 %v4798
        %v5243 = vunpack.c.l.b16 %v4799
        %v5244 = vunpack.c.l.b16 %v4800
        %v5245 = vunpack.c.h.b16 %v4800
        %v5246 = vunpack.c.l.b16 %v4801
        %v5247 = vunpack.c.l.b16 %v4802
        %v5248 = vunpack.c.h.b16 %v4802
        %v5249 = vunpack.c.l.b16 %v4803
        %v5250 = vunpack.c.l.b16 %v4804
        %v5251 = vunpack.c.h.b16 %v4804
        %v5252 = vunpack.c.l.b16 %v4805
        %v5253 = vunpack.c.l.b16 %v4806
        %v5254 = vunpack.c.h.b16 %v4806
        %v5255 = vunpack.c.l.b16 %v4807
        %v5256 = vunpack.c.l.b16 %v4808
        %v5257 = vunpack.c.h.b16 %v4808
        %v5258 = vunpack.c.l.b16 %v4809
        %v5259 = vunpack.c.l.b16 %v4810
        %v5260 = vunpack.c.h.b16 %v4810
        %v5261 = vunpack.c.l.b16 %v4811
        %v5262 = vunpack.c.l.b16 %v4812
        %v5263 = vunpack.c.h.b16 %v4812
        %v5264 = vunpack.c.l.b16 %v4813
        %v5265 = vunpack.c.l.b16 %v4814
        %v5266 = vunpack.c.h.b16 %v4814
        %v5267 = vunpack.c.l.b16 %v4815
        %v5268 = vunpack.c.l.b16 %v4816
        %v5269 = vunpack.c.h.b16 %v4816
        %v5270 = vunpack.c.l.b16 %v4817
        %v5271 = vunpack.c.l.b16 %v4818
        %v5272 = vunpack.c.h.b16 %v4818
        %v5273 = vunpack.c.l.b16 %v4819
        %v5274 = vunpack.c.l.b16 %v4820
        %v5275 = vunpack.c.h.b16 %v4820
        %v5276 = vunpack.c.l.b16 %v4821
        %v5277 = vunpack.c.l.b16 %v4822
        %v5278 = vunpack.c.h.b16 %v4822
        %v5279 = vunpack.c.l.b16 %v4823
        %v5280 = vunpack.c.l.b16 %v4824
        %v5281 = vunpack.c.h.b16 %v4824
        %v5282 = vunpack.c.l.b16 %v4825
        %v5283 = vunpack.c.l.b16 %v4826
        %v5284 = vunpack.c.h.b16 %v4826
        %v5285 = vunpack.c.l.b16 %v4827
        %v5286 = vunpack.c.l.b16 %v4828
        %v5287 = vunpack.c.h.b16 %v4828
        %v5288 = vunpack.c.l.b16 %v4829
        %v5289 = vunpack.c.l.b16 %v4830
        %v5290 = vunpack.c.h.b16 %v4830
        %v5291 = vunpack.c.l.b16 %v4831
        %v5292 = vunpack.c.l.b16 %v4832
        %v5293 = vunpack.c.h.b16 %v4832
        %v5294 = vunpack.c.l.b16 %v4833
        %v5295 = vunpack.c.l.b16 %v4834
        %v5296 = vunpack.c.h.b16 %v4834
        %v5297 = vunpack.c.l.b16 %v4835
        %v5298 = vunpack.c.l.b16 %v4836
        %v5299 = vunpack.c.h.b16 %v4836
        %v5300 = vunpack.c.l.b16 %v4837
        %v5301 = vunpack.c.l.b16 %v4838
        %v5302 = vunpack.c.h.b16 %v4838
        %v5303 = vunpack.c.l.b16 %v4839
        %v5304 = vunpack.c.l.b16 %v4840
        %v5305 = vunpack.c.h.b16 %v4840
        %v5306 = vunpack.c.l.b16 %v4841
        %v5307 = vunpack.c.l.b16 %v4842
        %v5308 = vunpack.c.h.b16 %v4842
        %v5309 = vunpack.c.l.b16 %v4843
        %v5310 = vunpack.c.l.b16 %v4844
        %v5311 = vunpack.c.h.b16 %v4844
        %v5312 = vunpack.c.l.b16 %v4845
        %v5313 = vunpack.c.l.b16 %v4846
        %v5314 = vunpack.c.h.b16 %v4846
        %v5315 = vunpack.c.l.b16 %v4847
        %v5316 = vunpack.c.l.b16 %v4848
        %v5317 = vunpack.c.h.b16 %v4848
        %v5318 = vunpack.c.l.b16 %v4849
        %v5319 = vunpack.c.l.b16 %v4850
        %v5320 = vunpack.c.h.b16 %v4850
        %v5321 = vunpack.c.l.b16 %v4851
        %v5322 = vunpack.c.l.b16 %v4852
        %v5323 = vunpack.c.h.b16 %v4852
        %v5324 = vunpack.c.l.b16 %v4853
        %v5325 = vunpack.c.l.b16 %v4854
        %v5326 = vunpack.c.h.b16 %v4854
        %v5327 = vunpack.c.l.b16 %v4855
        %v5328 = vunpack.c.l.b16 %v4856
        %v5329 = vunpack.c.h.b16 %v4856
        %v5330 = vunpack.c.l.b16 %v4857
        %v5331 = vunpack.c.l.b16 %v4858
        %v5332 = vunpack.c.h.b16 %v4858
        %v5333 = vunpack.c.l.b16 %v4859
        %v5334 = vunpack.c.l.b16 %v4860
        %v5335 = vunpack.c.h.b16 %v4860
        %v5336 = vunpack.c.l.b16 %v4861
        %v5337 = vunpack.c.l.b16 %v4862
        %v5338 = vunpack.c.h.b16 %v4862
        %v5339 = vunpack.c.l.b16 %v4863
        %v5340 = vunpack.c.l.b16 %v4864
        %v5341 = vunpack.c.h.b16 %v4864
        %v5342 = vunpack.c.l.b16 %v4865
        %v5343 = vunpack.c.l.b16 %v4866
        %v5344 = vunpack.c.h.b16 %v4866
        %v5345 = vunpack.c.l.b16 %v4867
        %v5346 = vunpack.c.l.b16 %v4868
        %v5347 = vunpack.c.h.b16 %v4868
        %v5348 = vunpack.c.l.b16 %v4869
        %v5349 = vunpack.c.l.b16 %v4870
        %v5350 = vunpack.c.h.b16 %v4870
        %v5351 = vunpack.c.l.b16 %v4871
        %v5352 = vunpack.c.l.b16 %v4872
        %v5353 = vunpack.c.h.b16 %v4872
        %v5354 = vunpack.c.l.b16 %v4873
        %v5355 = vunpack.c.l.b16 %v4874
        %v5356 = vunpack.c.h.b16 %v4874
        %v5357 = vunpack.c.l.b16 %v4875
        %v5358 = vunpack.c.l.b16 %v4876
        %v5359 = vunpack.c.h.b16 %v4876
        %v5360 = vunpack.c.l.b16 %v4877
        %v5361 = vunpack.c.l.b16 %v4878
        %v5362 = vunpack.c.h.b16 %v4878
        %v5363 = vunpack.c.l.b16 %v4879
        %v5364 = vunpack.c.l.b16 %v4880
        %v5365 = vunpack.c.h.b16 %v4880
        %v5366 = vunpack.c.l.b16 %v4881
        %v5367 = vunpack.c.l.b16 %v4882
        %v5368 = vunpack.c.h.b16 %v4882
        %v5369 = vunpack.c.l.b16 %v4883
        %v5370 = vunpack.c.l.b16 %v4884
        %v5371 = vunpack.c.h.b16 %v4884
        %v5372 = vunpack.c.l.b16 %v4885
        %v5373 = vunpack.c.l.b16 %v4886
        %v5374 = vunpack.c.h.b16 %v4886
        %v5375 = vunpack.c.l.b16 %v4887
        %v5376 = vunpack.c.l.b16 %v4888
        %v5377 = vunpack.c.h.b16 %v4888
        %v5378 = vunpack.c.l.b16 %v4889
        %v5379 = vunpack.c.l.b16 %v4890
        %v5380 = vunpack.c.h.b16 %v4890
        %v5381 = vunpack.c.l.b16 %v4891
        %v5382 = vunpack.c.l.b16 %v4892
        %v5383 = vunpack.c.h.b16 %v4892
        %v5384 = vunpack.c.l.b16 %v4893
        %v5385 = vunpack.c.l.b16 %v4894
        %v5386 = vunpack.c.h.b16 %v4894
        %v5387 = vunpack.c.l.b16 %v4895
        %v5388 = vunpack.c.l.b16 %v4896
        %v5389 = vunpack.c.h.b16 %v4896
        %v5390 = vunpack.c.l.b16 %v4897
        %v5391 = vunpack.c.l.b16 %v4898
        %v5392 = vunpack.c.h.b16 %v4898
        %v5393 = vunpack.c.l.b16 %v4899
        %v5394 = vunpack.c.l.b16 %v4900
        %v5395 = vunpack.c.h.b16 %v4900
        %v5396 = vunpack.c.l.b16 %v4901
        %v5397 = vunpack.c.l.b16 %v4902
        %v5398 = vunpack.c.h.b16 %v4902
        %v5399 = vunpack.c.l.b16 %v4903
        %v5400 = vunpack.c.l.b16 %v4904
        %v5401 = vunpack.c.h.b16 %v4904
        %v5402 = vunpack.c.l.b16 %v4905
        %v5403 = vunpack.c.l.b16 %v4906
        %v5404 = vunpack.c.h.b16 %v4906
        %v5405 = vunpack.c.l.b16 %v4907
        %v5406 = vpack.c.b16 %v5121, %v5118
        %v5407 = vpack.c.b16 %v5122, %v5119
        %v5408 = vpack.c.b16 %v5123, %v5120
        %v5409 = vpack.c.b16 %v5127, %v5124
        %v5410 = vpack.c.b16 %v5128, %v5125
        %v5411 = vpack.c.b16 %v5129, %v5126
        %v5412 = vpack.c.b16 %v5133, %v5130
        %v5413 = vpack.c.b16 %v5134, %v5131
        %v5414 = vpack.c.b16 %v5135, %v5132
        %v5415 = vpack.c.b16 %v5139, %v5136
        %v5416 = vpack.c.b16 %v5140, %v5137
        %v5417 = vpack.c.b16 %v5141, %v5138
        %v5418 = vpack.c.b16 %v5145, %v5142
        %v5419 = vpack.c.b16 %v5146, %v5143
        %v5420 = vpack.c.b16 %v5147, %v5144
        %v5421 = vpack.c.b16 %v5151, %v5148
        %v5422 = vpack.c.b16 %v5152, %v5149
        %v5423 = vpack.c.b16 %v5153, %v5150
        %v5424 = vpack.c.b16 %v5157, %v5154
        %v5425 = vpack.c.b16 %v5158, %v5155
        %v5426 = vpack.c.b16 %v5159, %v5156
        %v5427 = vpack.c.b16 %v5163, %v5160
        %v5428 = vpack.c.b16 %v5164, %v5161
        %v5429 = vpack.c.b16 %v5165, %v5162
        %v5430 = vpack.c.b16 %v5169, %v5166
        %v5431 = vpack.c.b16 %v5170, %v5167
        %v5432 = vpack.c.b16 %v5171, %v5168
        %v5433 = vpack.c.b16 %v5175, %v5172
        %v5434 = vpack.c.b16 %v5176, %v5173
        %v5435 = vpack.c.b16 %v5177, %v5174
        %v5436 = vpack.c.b16 %v5181, %v5178
        %v5437 = vpack.c.b16 %v5182, %v5179
        %v5438 = vpack.c.b16 %v5183, %v5180
        %v5439 = vpack.c.b16 %v5187, %v5184
        %v5440 = vpack.c.b16 %v5188, %v5185
        %v5441 = vpack.c.b16 %v5189, %v5186
        %v5442 = vpack.c.b16 %v5193, %v5190
        %v5443 = vpack.c.b16 %v5194, %v5191
        %v5444 = vpack.c.b16 %v5195, %v5192
        %v5445 = vpack.c.b16 %v5199, %v5196
        %v5446 = vpack.c.b16 %v5200, %v5197
        %v5447 = vpack.c.b16 %v5201, %v5198
        %v5448 = vpack.c.b16 %v5205, %v5202
        %v5449 = vpack.c.b16 %v5206, %v5203
        %v5450 = vpack.c.b16 %v5207, %v5204
        %v5451 = vpack.c.b16 %v5211, %v5208
        %v5452 = vpack.c.b16 %v5212, %v5209
        %v5453 = vpack.c.b16 %v5213, %v5210
        %v5454 = vpack.c.b16 %v5217, %v5214
        %v5455 = vpack.c.b16 %v5218, %v5215
        %v5456 = vpack.c.b16 %v5219, %v5216
        %v5457 = vpack.c.b16 %v5223, %v5220
        %v5458 = vpack.c.b16 %v5224, %v5221
        %v5459 = vpack.c.b16 %v5225, %v5222
        %v5460 = vpack.c.b16 %v5229, %v5226
        %v5461 = vpack.c.b16 %v5230, %v5227
        %v5462 = vpack.c.b16 %v5231, %v5228
        %v5463 = vpack.c.b16 %v5235, %v5232
        %v5464 = vpack.c.b16 %v5236, %v5233
        %v5465 = vpack.c.b16 %v5237, %v5234
        %v5466 = vpack.c.b16 %v5241, %v5238
        %v5467 = vpack.c.b16 %v5242, %v5239
        %v5468 = vpack.c.b16 %v5243, %v5240
        %v5469 = vpack.c.b16 %v5247, %v5244
        %v5470 = vpack.c.b16 %v5248, %v5245
        %v5471 = vpack.c.b16 %v5249, %v5246
        %v5472 = vpack.c.b16 %v5253, %v5250
        %v5473 = vpack.c.b16 %v5254, %v5251
        %v5474 = vpack.c.b16 %v5255, %v5252
        %v5475 = vpack.c.b16 %v5259, %v5256
        %v5476 = vpack.c.b16 %v5260, %v5257
        %v5477 = vpack.c.b16 %v5261, %v5258
        %v5478 = vpack.c.b16 %v5265, %v5262
        %v5479 = vpack.c.b16 %v5266, %v5263
        %v5480 = vpack.c.b16 %v5267, %v5264
        %v5481 = vpack.c.b16 %v5271, %v5268
        %v5482 = vpack.c.b16 %v5272, %v5269
        %v5483 = vpack.c.b16 %v5273, %v5270
        %v5484 = vpack.c.b16 %v5277, %v5274
        %v5485 = vpack.c.b16 %v5278, %v5275
        %v5486 = vpack.c.b16 %v5279, %v5276
        %v5487 = vpack.c.b16 %v5283, %v5280
        %v5488 = vpack.c.b16 %v5284, %v5281
        %v5489 = vpack.c.b16 %v5285, %v5282
        %v5490 = vpack.c.b16 %v5289, %v5286
        %v5491 = vpack.c.b16 %v5290, %v5287
        %v5492 = vpack.c.b16 %v5291, %v5288
        %v5493 = vpack.c.b16 %v5295, %v5292
        %v5494 = vpack.c.b16 %v5296, %v5293
        %v5495 = vpack.c.b16 %v5297, %v5294
        %v5496 = vpack.c.b16 %v5301, %v5298
        %v5497 = vpack.c.b16 %v5302, %v5299
        %v5498 = vpack.c.b16 %v5303, %v5300
        %v5499 = vpack.c.b16 %v5307, %v5304
        %v5500 = vpack.c.b16 %v5308, %v5305
        %v5501 = vpack.c.b16 %v5309, %v5306
        %v5502 = vpack.c.b16 %v5313, %v5310
        %v5503 = vpack.c.b16 %v5314, %v5311
        %v5504 = vpack.c.b16 %v5315, %v5312
        %v5505 = vpack.c.b16 %v5319, %v5316
        %v5506 = vpack.c.b16 %v5320, %v5317
        %v5507 = vpack.c.b16 %v5321, %v5318
        %v5508 = vpack.c.b16 %v5325, %v5322
        %v5509 = vpack.c.b16 %v5326, %v5323
        %v5510 = vpack.c.b16 %v5327, %v5324
        %v5511 = vpack.c.b16 %v5331, %v5328
        %v5512 = vpack.c.b16 %v5332, %v5329
        %v5513 = vpack.c.b16 %v5333, %v5330
        %v5514 = vpack.c.b16 %v5337, %v5334
        %v5515 = vpack.c.b16 %v5338, %v5335
        %v5516 = vpack.c.b16 %v5339, %v5336
        %v5517 = vpack.c.b16 %v5343, %v5340
        %v5518 = vpack.c.b16 %v5344, %v5341
        %v5519 = vpack.c.b16 %v5345, %v5342
        %v5520 = vpack.c.b16 %v5349, %v5346
        %v5521 = vpack.c.b16 %v5350, %v5347
        %v5522 = vpack.c.b16 %v5351, %v5348
        %v5523 = vpack.c.b16 %v5355, %v5352
        %v5524 = vpack.c.b16 %v5356, %v5353
        %v5525 = vpack.c.b16 %v5357, %v5354
        %v5526 = vpack.c.b16 %v5361, %v5358
        %v5527 = vpack.c.b16 %v5362, %v5359
        %v5528 = vpack.c.b16 %v5363, %v5360
        %v5529 = vpack.c.b16 %v5367, %v5364
        %v5530 = vpack.c.b16 %v5368, %v5365
        %v5531 = vpack.c.b16 %v5369, %v5366
        %v5532 = vpack.c.b16 %v5373, %v5370
        %v5533 = vpack.c.b16 %v5374, %v5371
        %v5534 = vpack.c.b16 %v5375, %v5372
        %v5535 = vpack.c.b16 %v5379, %v5376
        %v5536 = vpack.c.b16 %v5380, %v5377
        %v5537 = vpack.c.b16 %v5381, %v5378
        %v5538 = vpack.c.b16 %v5385, %v5382
        %v5539 = vpack.c.b16 %v5386, %v5383
        %v5540 = vpack.c.b16 %v5387, %v5384
        %v5541 = vpack.c.b16 %v5391, %v5388
        %v5542 = vpack.c.b16 %v5392, %v5389
        %v5543 = vpack.c.b16 %v5393, %v5390
        %v5544 = vpack.c.b16 %v5397, %v5394
        %v5545 = vpack.c.b16 %v5398, %v5395
        %v5546 = vpack.c.b16 %v5399, %v5396
        %v5547 = vpack.c.b16 %v5403, %v5400
        %v5548 = vpack.c.b16 %v5404, %v5401
        %v5549 = vpack.c.b16 %v5405, %v5402
        %5694 = vmatprep.subr.bf16.mxu0 %v5407
        %5695 = vmatpush1.bf16.msra.mxu0 %v5406
        %5696 = vmatprep.subr.bf16.mxu0 %v5410
        %5697 = vmatpush1.bf16.msra.mxu0 %v5409
        %5698 = vmatprep.subr.bf16.mxu0 %v5413
        %5699 = vmatpush1.bf16.msra.mxu0 %v5412
        %5700 = vmatprep.subr.bf16.mxu0 %v5416
        %5701 = vmatpush1.bf16.msra.mxu0 %v5415
        %5702 = vmatprep.subr.bf16.mxu0 %v5419
        %5703 = vmatpush1.bf16.msra.mxu0 %v5418
        %5704 = vmatprep.subr.bf16.mxu0 %v5422
        %5705 = vmatpush1.bf16.msra.mxu0 %v5421
        %5706 = vmatprep.subr.bf16.mxu0 %v5425
        %5707 = vmatpush1.bf16.msra.mxu0 %v5424
        %5708 = vmatprep.subr.bf16.mxu0 %v5428
        %5709 = vmatpush1.bf16.msra.mxu0 %v5427
        %5710 = vmatprep.subr.bf16.mxu0 %v5431
        %5711 = vmatpush1.bf16.msra.mxu0 %v5430
        %5712 = vmatprep.subr.bf16.mxu0 %v5434
        %5713 = vmatpush1.bf16.msra.mxu0 %v5433
        %5714 = vmatprep.subr.bf16.mxu0 %v5437
        %5715 = vmatpush1.bf16.msra.mxu0 %v5436
        %5716 = vmatprep.subr.bf16.mxu0 %v5440
        %5717 = vmatpush1.bf16.msra.mxu0 %v5439
        %5718 = vmatprep.subr.bf16.mxu0 %v5443
        %5719 = vmatpush1.bf16.msra.mxu0 %v5442
        %5720 = vmatprep.subr.bf16.mxu0 %v5446
        %5721 = vmatpush1.bf16.msra.mxu0 %v5445
        %5722 = vmatprep.subr.bf16.mxu0 %v5449
        %5723 = vmatpush1.bf16.msra.mxu0 %v5448
        %5724 = vmatprep.subr.bf16.mxu0 %v5452
        %5725 = vmatpush1.bf16.msra.mxu0 %v5451
        %5726 = vmatprep.mubr.bf16.mxu0 %v4710
        %5727 = vmatmul.mubr.bf16.gmra.mrb[0].mxu0 %v4709
        %v5728 = vpop.f32.mrb[0].mxu0
        %v5729 = vadd.f32 %v4914, %v5728
        %v5730 = vpop.f32.mrb[0].mxu0
        %v5731 = vadd.f32 %v4918, %v5730
        %v5732 = vpop.f32.mrb[0].mxu0
        %v5733 = vpop.f32.mrb[0].mxu0
        %5734 = vdwg.mxu0
        %5735 = vmatprep.subr.bf16.mxu0 %v5455
        %5736 = vmatpush1.bf16.msra.mxu0 %v5454
        %5737 = vmatprep.subr.bf16.mxu0 %v5458
        %5738 = vmatpush1.bf16.msra.mxu0 %v5457
        %5739 = vmatprep.subr.bf16.mxu0 %v5461
        %5740 = vmatpush1.bf16.msra.mxu0 %v5460
        %5741 = vmatprep.subr.bf16.mxu0 %v5464
        %5742 = vmatpush1.bf16.msra.mxu0 %v5463
        %5743 = vmatprep.subr.bf16.mxu0 %v5467
        %5744 = vmatpush1.bf16.msra.mxu0 %v5466
        %5745 = vmatprep.subr.bf16.mxu0 %v5470
        %5746 = vmatpush1.bf16.msra.mxu0 %v5469
        %5747 = vmatprep.subr.bf16.mxu0 %v5473
        %5748 = vmatpush1.bf16.msra.mxu0 %v5472
        %5749 = vmatprep.subr.bf16.mxu0 %v5476
        %5750 = vmatpush1.bf16.msra.mxu0 %v5475
        %5751 = vmatprep.subr.bf16.mxu0 %v5479
        %5752 = vmatpush1.bf16.msra.mxu0 %v5478
        %5753 = vmatprep.subr.bf16.mxu0 %v5482
        %5754 = vmatpush1.bf16.msra.mxu0 %v5481
        %5755 = vmatprep.subr.bf16.mxu0 %v5485
        %5756 = vmatpush1.bf16.msra.mxu0 %v5484
        %5757 = vmatprep.subr.bf16.mxu0 %v5488
        %5758 = vmatpush1.bf16.msra.mxu0 %v5487
        %5759 = vmatprep.subr.bf16.mxu0 %v5491
        %5760 = vmatpush1.bf16.msra.mxu0 %v5490
        %5761 = vmatprep.subr.bf16.mxu0 %v5494
        %5762 = vmatpush1.bf16.msra.mxu0 %v5493
        %5763 = vmatprep.subr.bf16.mxu0 %v5497
        %5764 = vmatpush1.bf16.msra.mxu0 %v5496
        %5765 = vmatprep.subr.bf16.mxu0 %v5500
        %5766 = vmatpush1.bf16.msra.mxu0 %v5499
        %5767 = vmatprep.mubr.bf16.mxu0 %v4712
        %5768 = vmatmul.mubr.bf16.gmra.mrb[0].mxu0 %v4711
        %v5769 = vpop.f32.mrb[0].mxu0
        %v5770 = vadd.f32 %v5729, %v5769
        %v5771 = vpop.f32.mrb[0].mxu0
        %v5772 = vadd.f32 %v5731, %v5771
        %v5773 = vpop.f32.mrb[0].mxu0
        %v5774 = vpop.f32.mrb[0].mxu0
        %5775 = vdwg.mxu0
        %5776 = vmatprep.subr.bf16.mxu0 %v5503
        %5777 = vmatpush1.bf16.msra.mxu0 %v5502
        %5778 = vmatprep.subr.bf16.mxu0 %v5506
        %5779 = vmatpush1.bf16.msra.mxu0 %v5505
        %5780 = vmatprep.subr.bf16.mxu0 %v5509
        %5781 = vmatpush1.bf16.msra.mxu0 %v5508
        %5782 = vmatprep.subr.bf16.mxu0 %v5512
        %5783 = vmatpush1.bf16.msra.mxu0 %v5511
        %5784 = vmatprep.subr.bf16.mxu0 %v5515
        %5785 = vmatpush1.bf16.msra.mxu0 %v5514
        %5786 = vmatprep.subr.bf16.mxu0 %v5518
        %5787 = vmatpush1.bf16.msra.mxu0 %v5517
        %5788 = vmatprep.subr.bf16.mxu0 %v5521
        %5789 = vmatpush1.bf16.msra.mxu0 %v5520
        %5790 = vmatprep.subr.bf16.mxu0 %v5524
        %5791 = vmatpush1.bf16.msra.mxu0 %v5523
        %5792 = vmatprep.subr.bf16.mxu0 %v5527
        %5793 = vmatpush1.bf16.msra.mxu0 %v5526
        %5794 = vmatprep.subr.bf16.mxu0 %v5530
        %5795 = vmatpush1.bf16.msra.mxu0 %v5529
        %5796 = vmatprep.subr.bf16.mxu0 %v5533
        %5797 = vmatpush1.bf16.msra.mxu0 %v5532
        %5798 = vmatprep.subr.bf16.mxu0 %v5536
        %5799 = vmatpush1.bf16.msra.mxu0 %v5535
        %5800 = vmatprep.subr.bf16.mxu0 %v5539
        %5801 = vmatpush1.bf16.msra.mxu0 %v5538
        %5802 = vmatprep.subr.bf16.mxu0 %v5542
        %5803 = vmatpush1.bf16.msra.mxu0 %v5541
        %5804 = vmatprep.subr.bf16.mxu0 %v5545
        %5805 = vmatpush1.bf16.msra.mxu0 %v5544
        %5806 = vmatprep.subr.bf16.mxu0 %v5548
        %5807 = vmatpush1.bf16.msra.mxu0 %v5547
        %5808 = vmatprep.mubr.bf16.mxu0 %v4714
        %5809 = vmatmul.mubr.bf16.gmra.mrb[0].mxu0 %v4713
        %v5810 = vpop.f32.mrb[0].mxu0
        %v5811 = vadd.f32 %v5770, %v5810
        %v5812 = vpop.f32.mrb[0].mxu0
        %v5813 = vadd.f32 %v5772, %v5812
        %v5814 = vpop.f32.mrb[0].mxu0
        %v5815 = vpop.f32.mrb[0].mxu0
        %5816 = vdwg.mxu0
        %5817 = vmatprep.subr.bf16.mxu0 0
        %5818 = vmatpush1.bf16.msra.mxu0 %v5408
        %5819 = vmatprep.subr.bf16.mxu0 0
        %5820 = vmatpush1.bf16.msra.mxu0 %v5411
        %5821 = vmatprep.subr.bf16.mxu0 0
        %5822 = vmatpush1.bf16.msra.mxu0 %v5414
        %5823 = vmatprep.subr.bf16.mxu0 0
        %5824 = vmatpush1.bf16.msra.mxu0 %v5417
        %5825 = vmatprep.subr.bf16.mxu0 0
        %5826 = vmatpush1.bf16.msra.mxu0 %v5420
        %5827 = vmatprep.subr.bf16.mxu0 0
        %5828 = vmatpush1.bf16.msra.mxu0 %v5423
        %5829 = vmatprep.subr.bf16.mxu0 0
        %5830 = vmatpush1.bf16.msra.mxu0 %v5426
        %5831 = vmatprep.subr.bf16.mxu0 0
        %5832 = vmatpush1.bf16.msra.mxu0 %v5429
        %5833 = vmatprep.subr.bf16.mxu0 0
        %5834 = vmatpush1.bf16.msra.mxu0 %v5432
        %5835 = vmatprep.subr.bf16.mxu0 0
        %5836 = vmatpush1.bf16.msra.mxu0 %v5435
        %5837 = vmatprep.subr.bf16.mxu0 0
        %5838 = vmatpush1.bf16.msra.mxu0 %v5438
        %5839 = vmatprep.subr.bf16.mxu0 0
        %5840 = vmatpush1.bf16.msra.mxu0 %v5441
        %5841 = vmatprep.subr.bf16.mxu0 0
        %5842 = vmatpush1.bf16.msra.mxu0 %v5444
        %5843 = vmatprep.subr.bf16.mxu0 0
        %5844 = vmatpush1.bf16.msra.mxu0 %v5447
        %5845 = vmatprep.subr.bf16.mxu0 0
        %5846 = vmatpush1.bf16.msra.mxu0 %v5450
        %5847 = vmatprep.subr.bf16.mxu0 0
        %5848 = vmatpush1.bf16.msra.mxu0 %v5453
        %5849 = vmatprep.mubr.bf16.mxu0 %v4710
        %5850 = vmatmul.mubr.bf16.gmra.mrb[0].mxu0 %v4709
        %v5851 = vpop.f32.mrb[0].mxu0
        %v5852 = vadd.f32 %v4922, %v5851
        %v5853 = vpop.f32.mrb[0].mxu0
        %v5854 = vpop.f32.mrb[0].mxu0
        %v5855 = vpop.f32.mrb[0].mxu0
        %5856 = vdwg.mxu0
        %5857 = vmatprep.subr.bf16.mxu0 0
        %5858 = vmatpush1.bf16.msra.mxu0 %v5456
        %5859 = vmatprep.subr.bf16.mxu0 0
        %5860 = vmatpush1.bf16.msra.mxu0 %v5459
        %5861 = vmatprep.subr.bf16.mxu0 0
        %5862 = vmatpush1.bf16.msra.mxu0 %v5462
        %5863 = vmatprep.subr.bf16.mxu0 0
        %5864 = vmatpush1.bf16.msra.mxu0 %v5465
        %5865 = vmatprep.subr.bf16.mxu0 0
        %5866 = vmatpush1.bf16.msra.mxu0 %v5468
        %5867 = vmatprep.subr.bf16.mxu0 0
        %5868 = vmatpush1.bf16.msra.mxu0 %v5471
        %5869 = vmatprep.subr.bf16.mxu0 0
        %5870 = vmatpush1.bf16.msra.mxu0 %v5474
        %5871 = vmatprep.subr.bf16.mxu0 0
        %5872 = vmatpush1.bf16.msra.mxu0 %v5477
        %5873 = vmatprep.subr.bf16.mxu0 0
        %5874 = vmatpush1.bf16.msra.mxu0 %v5480
        %5875 = vmatprep.subr.bf16.mxu0 0
        %5876 = vmatpush1.bf16.msra.mxu0 %v5483
        %5877 = vmatprep.subr.bf16.mxu0 0
        %5878 = vmatpush1.bf16.msra.mxu0 %v5486
        %5879 = vmatprep.subr.bf16.mxu0 0
        %5880 = vmatpush1.bf16.msra.mxu0 %v5489
        %5881 = vmatprep.subr.bf16.mxu0 0
        %5882 = vmatpush1.bf16.msra.mxu0 %v5492
        %5883 = vmatprep.subr.bf16.mxu0 0
        %5884 = vmatpush1.bf16.msra.mxu0 %v5495
        %5885 = vmatprep.subr.bf16.mxu0 0
        %5886 = vmatpush1.bf16.msra.mxu0 %v5498
        %5887 = vmatprep.subr.bf16.mxu0 0
        %5888 = vmatpush1.bf16.msra.mxu0 %v5501
        %5889 = vmatprep.mubr.bf16.mxu0 %v4712
        %5890 = vmatmul.mubr.bf16.gmra.mrb[0].mxu0 %v4711
        %v5891 = vpop.f32.mrb[0].mxu0
        %v5892 = vadd.f32 %v5852, %v5891
        %v5893 = vpop.f32.mrb[0].mxu0
        %v5894 = vpop.f32.mrb[0].mxu0
        %v5895 = vpop.f32.mrb[0].mxu0
        %5896 = vdwg.mxu0
        %5897 = vmatprep.subr.bf16.mxu0 0
        %5898 = vmatpush1.bf16.msra.mxu0 %v5504
        %5899 = vmatprep.subr.bf16.mxu0 0
        %5900 = vmatpush1.bf16.msra.mxu0 %v5507
        %5901 = vmatprep.subr.bf16.mxu0 0
        %5902 = vmatpush1.bf16.msra.mxu0 %v5510
        %5903 = vmatprep.subr.bf16.mxu0 0
        %5904 = vmatpush1.bf16.msra.mxu0 %v5513
        %5905 = vmatprep.subr.bf16.mxu0 0
        %5906 = vmatpush1.bf16.msra.mxu0 %v5516
        %5907 = vmatprep.subr.bf16.mxu0 0
        %5908 = vmatpush1.bf16.msra.mxu0 %v5519
        %5909 = vmatprep.subr.bf16.mxu0 0
        %5910 = vmatpush1.bf16.msra.mxu0 %v5522
        %5911 = vmatprep.subr.bf16.mxu0 0
        %5912 = vmatpush1.bf16.msra.mxu0 %v5525
        %5913 = vmatprep.subr.bf16.mxu0 0
        %5914 = vmatpush1.bf16.msra.mxu0 %v5528
        %5915 = vmatprep.subr.bf16.mxu0 0
        %5916 = vmatpush1.bf16.msra.mxu0 %v5531
        %5917 = vmatprep.subr.bf16.mxu0 0
        %5918 = vmatpush1.bf16.msra.mxu0 %v5534
        %5919 = vmatprep.subr.bf16.mxu0 0
        %5920 = vmatpush1.bf16.msra.mxu0 %v5537
        %5921 = vmatprep.subr.bf16.mxu0 0
        %5922 = vmatpush1.bf16.msra.mxu0 %v5540
        %5923 = vmatprep.subr.bf16.mxu0 0
        %5924 = vmatpush1.bf16.msra.mxu0 %v5543
        %5925 = vmatprep.subr.bf16.mxu0 0
        %5926 = vmatpush1.bf16.msra.mxu0 %v5546
        %5927 = vmatprep.subr.bf16.mxu0 0
        %5928 = vmatpush1.bf16.msra.mxu0 %v5549
        %5929 = vmatprep.mubr.bf16.mxu0 %v4714
        %5930 = vmatmul.mubr.bf16.gmra.mrb[0].mxu0 %v4713
        %v5931 = vpop.f32.mrb[0].mxu0
        %v5932 = vadd.f32 %v5892, %v5931
        %v5933 = vpop.f32.mrb[0].mxu0
        %v5934 = vpop.f32.mrb[0].mxu0
        %v5935 = vpop.f32.mrb[0].mxu0
        %5936 = vdwg.mxu0
        %5937 = vst [vmem:[%s977] sm:$0xff] %v2513
        %5938 = vst [vmem:[%s977 + $0x8] sm:$0xff] %v4162
        %5939 = vst [vmem:[%s977 + $0x10] sm:$0xff] %v5811
        %v5940 = vld [vmem:[#allocation11] sm:$0xff]
        %v5941 = vld [vmem:[#allocation11 + $0x8] sm:$0xff]
        %v5942 = vld [vmem:[#allocation11 + $0x10] sm:$0xff]
        %v5943 = vld [vmem:[#allocation11 + $0x18] sm:$0xff]
        %v5944 = vld [vmem:[#allocation11 + $0x20] sm:$0xff]
        %v5945 = vld [vmem:[#allocation11 + $0x28] sm:$0xff]
        %v5946 = vadd.f32 %v2515, %v5940
        %v5947 = vadd.f32 %v2634, %v5941
        %v5948 = vadd.f32 %v4164, %v5942
        %v5949 = vadd.f32 %v4283, %v5943
        %v5950 = vadd.f32 %v5813, %v5944
        %v5951 = vadd.f32 %v5932, %v5945
        %v5952 = vpack.c.bf16 %v5948, %v5946
        %v5953 = vpack.c.bf16 %v5949, %v5947
        %v5954 = vpack.c.bf16 %v5950, %v5950
        %v5955 = vpack.c.bf16 %v5951, %v5951
        %v5956 = vld [vmem:[#allocation13] sm:$0xff]
        %v5957 = vld [vmem:[#allocation13 + $0x8] sm:$0xff]
        %v5958 = vld [vmem:[#allocation13 + $0x10] sm:$0xff]
        %v5959 = vld [vmem:[#allocation13 + $0x18] sm:$0xff]
        %v5960 = vld [vmem:[#allocation13 + $0x20] sm:$0xff]
        %v5961 = vld [vmem:[#allocation13 + $0x28] sm:$0xff]
        %v5962 = vld [vmem:[#allocation13 + $0x30] sm:$0xff]
        %v5963 = vld [vmem:[#allocation13 + $0x38] sm:$0xff]
        %v5964 = vld [vmem:[#allocation13 + $0x40] sm:$0xff]
        %v5965 = vld [vmem:[#allocation13 + $0x48] sm:$0xff]
        %v5966 = vld [vmem:[#allocation13 + $0x50] sm:$0xff]
        %v5967 = vld [vmem:[#allocation13 + $0x58] sm:$0xff]
        %v5968 = vld [vmem:[#allocation13 + $0x60] sm:$0xff]
        %v5969 = vld [vmem:[#allocation13 + $0x68] sm:$0xff]
        %v5970 = vld [vmem:[#allocation13 + $0x70] sm:$0xff]
        %v5971 = vld [vmem:[#allocation13 + $0x78] sm:$0xff]
        %v5972 = vld [vmem:[#allocation13 + $0x80] sm:$0xff]
        %v5973 = vld [vmem:[#allocation13 + $0x88] sm:$0xff]
        %v5974 = vld [vmem:[#allocation13 + $0x90] sm:$0xff]
        %v5975 = vld [vmem:[#allocation13 + $0x98] sm:$0xff]
        %v5976 = vld [vmem:[#allocation13 + $0xa0] sm:$0xff]
        %v5977 = vld [vmem:[#allocation13 + $0xa8] sm:$0xff]
        %v5978 = vld [vmem:[#allocation13 + $0xb0] sm:$0xff]
        %v5979 = vld [vmem:[#allocation13 + $0xb8] sm:$0xff]
        %v5980 = vld [vmem:[#allocation13 + $0xc0] sm:$0xff]
        %v5981 = vld [vmem:[#allocation13 + $0xc8] sm:$0xff]
        %v5982 = vld [vmem:[#allocation13 + $0xd0] sm:$0xff]
        %v5983 = vld [vmem:[#allocation13 + $0xd8] sm:$0xff]
        %v5984 = vld [vmem:[#allocation13 + $0xe0] sm:$0xff]
        %v5985 = vld [vmem:[#allocation13 + $0xe8] sm:$0xff]
        %v5986 = vld [vmem:[#allocation13 + $0xf0] sm:$0xff]
        %v5987 = vld [vmem:[#allocation13 + $0xf8] sm:$0xff]
        %v5988 = vld [vmem:[#allocation13 + $0x100] sm:$0xff]
        %v5989 = vld [vmem:[#allocation13 + $0x108] sm:$0xff]
        %v5990 = vld [vmem:[#allocation13 + $0x110] sm:$0xff]
        %v5991 = vld [vmem:[#allocation13 + $0x118] sm:$0xff]
        %v5992 = vld [vmem:[#allocation13 + $0x120] sm:$0xff]
        %v5993 = vld [vmem:[#allocation13 + $0x128] sm:$0xff]
        %v5994 = vld [vmem:[#allocation13 + $0x130] sm:$0xff]
        %v5995 = vld [vmem:[#allocation13 + $0x138] sm:$0xff]
        %v5996 = vld [vmem:[#allocation13 + $0x140] sm:$0xff]
        %v5997 = vld [vmem:[#allocation13 + $0x148] sm:$0xff]
        %v5998 = vld [vmem:[#allocation13 + $0x150] sm:$0xff]
        %v5999 = vld [vmem:[#allocation13 + $0x158] sm:$0xff]
        %v6000 = vld [vmem:[#allocation13 + $0x160] sm:$0xff]
        %v6001 = vld [vmem:[#allocation13 + $0x168] sm:$0xff]
        %v6002 = vld [vmem:[#allocation13 + $0x170] sm:$0xff]
        %v6003 = vld [vmem:[#allocation13 + $0x178] sm:$0xff]
        %v6004 = vld [vmem:[#allocation13 + $0x180] sm:$0xff]
        %v6005 = vld [vmem:[#allocation13 + $0x188] sm:$0xff]
        %v6006 = vld [vmem:[#allocation13 + $0x190] sm:$0xff]
        %v6007 = vld [vmem:[#allocation13 + $0x198] sm:$0xff]
        %v6008 = vld [vmem:[#allocation13 + $0x1a0] sm:$0xff]
        %v6009 = vld [vmem:[#allocation13 + $0x1a8] sm:$0xff]
        %v6010 = vld [vmem:[#allocation13 + $0x1b0] sm:$0xff]
        %v6011 = vld [vmem:[#allocation13 + $0x1b8] sm:$0xff]
        %v6012 = vld [vmem:[#allocation13 + $0x1c0] sm:$0xff]
        %v6013 = vld [vmem:[#allocation13 + $0x1c8] sm:$0xff]
        %v6014 = vld [vmem:[#allocation13 + $0x1d0] sm:$0xff]
        %v6015 = vld [vmem:[#allocation13 + $0x1d8] sm:$0xff]
        %v6016 = vld [vmem:[#allocation13 + $0x1e0] sm:$0xff]
        %v6017 = vld [vmem:[#allocation13 + $0x1e8] sm:$0xff]
        %v6018 = vld [vmem:[#allocation13 + $0x1f0] sm:$0xff]
        %v6019 = vld [vmem:[#allocation13 + $0x1f8] sm:$0xff]
        %v6020 = vld [vmem:[#allocation13 + $0x200] sm:$0xff]
        %v6021 = vld [vmem:[#allocation13 + $0x208] sm:$0xff]
        %v6022 = vld [vmem:[#allocation13 + $0x210] sm:$0xff]
        %v6023 = vld [vmem:[#allocation13 + $0x218] sm:$0xff]
        %v6024 = vld [vmem:[#allocation13 + $0x220] sm:$0xff]
        %v6025 = vld [vmem:[#allocation13 + $0x228] sm:$0xff]
        %v6026 = vld [vmem:[#allocation13 + $0x230] sm:$0xff]
        %v6027 = vld [vmem:[#allocation13 + $0x238] sm:$0xff]
        %v6028 = vld [vmem:[#allocation13 + $0x240] sm:$0xff]
        %v6029 = vld [vmem:[#allocation13 + $0x248] sm:$0xff]
        %v6030 = vld [vmem:[#allocation13 + $0x250] sm:$0xff]
        %v6031 = vld [vmem:[#allocation13 + $0x258] sm:$0xff]
        %v6032 = vld [vmem:[#allocation13 + $0x260] sm:$0xff]
        %v6033 = vld [vmem:[#allocation13 + $0x268] sm:$0xff]
        %v6034 = vld [vmem:[#allocation13 + $0x270] sm:$0xff]
        %v6035 = vld [vmem:[#allocation13 + $0x278] sm:$0xff]
        %v6036 = vld [vmem:[#allocation13 + $0x280] sm:$0xff]
        %v6037 = vld [vmem:[#allocation13 + $0x288] sm:$0xff]
        %v6038 = vld [vmem:[#allocation13 + $0x290] sm:$0xff]
        %v6039 = vld [vmem:[#allocation13 + $0x298] sm:$0xff]
        %v6040 = vld [vmem:[#allocation13 + $0x2a0] sm:$0xff]
        %v6041 = vld [vmem:[#allocation13 + $0x2a8] sm:$0xff]
        %v6042 = vld [vmem:[#allocation13 + $0x2b0] sm:$0xff]
        %v6043 = vld [vmem:[#allocation13 + $0x2b8] sm:$0xff]
        %v6044 = vld [vmem:[#allocation13 + $0x2c0] sm:$0xff]
        %v6045 = vld [vmem:[#allocation13 + $0x2c8] sm:$0xff]
        %v6046 = vld [vmem:[#allocation13 + $0x2d0] sm:$0xff]
        %v6047 = vld [vmem:[#allocation13 + $0x2d8] sm:$0xff]
        %v6048 = vld [vmem:[#allocation13 + $0x2e0] sm:$0xff]
        %v6049 = vld [vmem:[#allocation13 + $0x2e8] sm:$0xff]
        %v6050 = vld [vmem:[#allocation13 + $0x2f0] sm:$0xff]
        %v6051 = vld [vmem:[#allocation13 + $0x2f8] sm:$0xff]
        %v6052 = vld [vmem:[#allocation14] sm:$0x3f]
        %v6054 = vlaneseq
        %v6055 = vshrl.u32 %v6054, 7
        %v6056 = vsub.s32 0, %v6055
        %v6057 = vrot.slane %v6052, %v6056
        %v6058 = vlaneseq
        %v6059 = vshrl.u32 %v6058, 7
        %v6060 = vsub.s32 1, %v6059
        %v6061 = vrot.slane %v6052, %v6060
        %v6062 = vlaneseq
        %v6063 = vshrl.u32 %v6062, 7
        %v6064 = vsub.s32 2, %v6063
        %v6065 = vrot.slane %v6052, %v6064
        %v6066 = vlaneseq
        %v6067 = vshrl.u32 %v6066, 7
        %v6068 = vsub.s32 3, %v6067
        %v6069 = vrot.slane %v6052, %v6068
        %v6070 = vlaneseq
        %v6071 = vshrl.u32 %v6070, 7
        %v6072 = vsub.s32 4, %v6071
        %v6073 = vrot.slane %v6052, %v6072
        %v6074 = vlaneseq
        %v6075 = vshrl.u32 %v6074, 7
        %v6076 = vsub.s32 5, %v6075
        %v6077 = vrot.slane %v6052, %v6076
        %v6180 = vunpack.c.l.b16 %v5956
        %v6181 = vunpack.c.h.b16 %v5956
        %v6182 = vunpack.c.l.b16 %v5957
        %v6183 = vunpack.c.h.b16 %v5957
        %v6184 = vunpack.c.l.b16 %v5958
        %v6185 = vunpack.c.h.b16 %v5958
        %v6186 = vunpack.c.l.b16 %v5959
        %v6187 = vunpack.c.h.b16 %v5959
        %v6188 = vunpack.c.l.b16 %v5960
        %v6189 = vunpack.c.h.b16 %v5960
        %v6190 = vunpack.c.l.b16 %v5961
        %v6191 = vunpack.c.h.b16 %v5961
        %v6192 = vunpack.c.l.b16 %v5962
        %v6193 = vunpack.c.h.b16 %v5962
        %v6194 = vunpack.c.l.b16 %v5963
        %v6195 = vunpack.c.h.b16 %v5963
        %v6196 = vunpack.c.l.b16 %v5964
        %v6197 = vunpack.c.h.b16 %v5964
        %v6198 = vunpack.c.l.b16 %v5965
        %v6199 = vunpack.c.h.b16 %v5965
        %v6200 = vunpack.c.l.b16 %v5966
        %v6201 = vunpack.c.h.b16 %v5966
        %v6202 = vunpack.c.l.b16 %v5967
        %v6203 = vunpack.c.h.b16 %v5967
        %v6204 = vunpack.c.l.b16 %v5968
        %v6205 = vunpack.c.h.b16 %v5968
        %v6206 = vunpack.c.l.b16 %v5969
        %v6207 = vunpack.c.h.b16 %v5969
        %v6208 = vunpack.c.l.b16 %v5970
        %v6209 = vunpack.c.h.b16 %v5970
        %v6210 = vunpack.c.l.b16 %v5971
        %v6211 = vunpack.c.h.b16 %v5971
        %v6212 = vunpack.c.l.b16 %v5972
        %v6213 = vunpack.c.h.b16 %v5972
        %v6214 = vunpack.c.l.b16 %v5973
        %v6215 = vunpack.c.h.b16 %v5973
        %v6216 = vunpack.c.l.b16 %v5974
        %v6217 = vunpack.c.h.b16 %v5974
        %v6218 = vunpack.c.l.b16 %v5975
        %v6219 = vunpack.c.h.b16 %v5975
        %v6220 = vunpack.c.l.b16 %v5976
        %v6221 = vunpack.c.h.b16 %v5976
        %v6222 = vunpack.c.l.b16 %v5977
        %v6223 = vunpack.c.h.b16 %v5977
        %v6224 = vunpack.c.l.b16 %v5978
        %v6225 = vunpack.c.h.b16 %v5978
        %v6226 = vunpack.c.l.b16 %v5979
        %v6227 = vunpack.c.h.b16 %v5979
        %v6228 = vunpack.c.l.b16 %v5980
        %v6229 = vunpack.c.h.b16 %v5980
        %v6230 = vunpack.c.l.b16 %v5981
        %v6231 = vunpack.c.h.b16 %v5981
        %v6232 = vunpack.c.l.b16 %v5982
        %v6233 = vunpack.c.h.b16 %v5982
        %v6234 = vunpack.c.l.b16 %v5983
        %v6235 = vunpack.c.h.b16 %v5983
        %v6236 = vunpack.c.l.b16 %v5984
        %v6237 = vunpack.c.h.b16 %v5984
        %v6238 = vunpack.c.l.b16 %v5985
        %v6239 = vunpack.c.h.b16 %v5985
        %v6240 = vunpack.c.l.b16 %v5986
        %v6241 = vunpack.c.h.b16 %v5986
        %v6242 = vunpack.c.l.b16 %v5987
        %v6243 = vunpack.c.h.b16 %v5987
        %v6244 = vunpack.c.l.b16 %v5988
        %v6245 = vunpack.c.h.b16 %v5988
        %v6246 = vunpack.c.l.b16 %v5989
        %v6247 = vunpack.c.h.b16 %v5989
        %v6248 = vunpack.c.l.b16 %v5990
        %v6249 = vunpack.c.h.b16 %v5990
        %v6250 = vunpack.c.l.b16 %v5991
        %v6251 = vunpack.c.h.b16 %v5991
        %v6252 = vunpack.c.l.b16 %v5992
        %v6253 = vunpack.c.h.b16 %v5992
        %v6254 = vunpack.c.l.b16 %v5993
        %v6255 = vunpack.c.h.b16 %v5993
        %v6256 = vunpack.c.l.b16 %v5994
        %v6257 = vunpack.c.h.b16 %v5994
        %v6258 = vunpack.c.l.b16 %v5995
        %v6259 = vunpack.c.h.b16 %v5995
        %v6260 = vunpack.c.l.b16 %v5996
        %v6261 = vunpack.c.h.b16 %v5996
        %v6262 = vunpack.c.l.b16 %v5997
        %v6263 = vunpack.c.h.b16 %v5997
        %v6264 = vunpack.c.l.b16 %v5998
        %v6265 = vunpack.c.h.b16 %v5998
        %v6266 = vunpack.c.l.b16 %v5999
        %v6267 = vunpack.c.h.b16 %v5999
        %v6268 = vunpack.c.l.b16 %v6000
        %v6269 = vunpack.c.h.b16 %v6000
        %v6270 = vunpack.c.l.b16 %v6001
        %v6271 = vunpack.c.h.b16 %v6001
        %v6272 = vunpack.c.l.b16 %v6002
        %v6273 = vunpack.c.h.b16 %v6002
        %v6274 = vunpack.c.l.b16 %v6003
        %v6275 = vunpack.c.h.b16 %v6003
        %v6276 = vunpack.c.l.b16 %v6004
        %v6277 = vunpack.c.h.b16 %v6004
        %v6278 = vunpack.c.l.b16 %v6005
        %v6279 = vunpack.c.h.b16 %v6005
        %v6280 = vunpack.c.l.b16 %v6006
        %v6281 = vunpack.c.h.b16 %v6006
        %v6282 = vunpack.c.l.b16 %v6007
        %v6283 = vunpack.c.h.b16 %v6007
        %v6284 = vunpack.c.l.b16 %v6008
        %v6285 = vunpack.c.h.b16 %v6008
        %v6286 = vunpack.c.l.b16 %v6009
        %v6287 = vunpack.c.h.b16 %v6009
        %v6288 = vunpack.c.l.b16 %v6010
        %v6289 = vunpack.c.h.b16 %v6010
        %v6290 = vunpack.c.l.b16 %v6011
        %v6291 = vunpack.c.h.b16 %v6011
        %v6292 = vunpack.c.l.b16 %v6012
        %v6293 = vunpack.c.h.b16 %v6012
        %v6294 = vunpack.c.l.b16 %v6013
        %v6295 = vunpack.c.h.b16 %v6013
        %v6296 = vunpack.c.l.b16 %v6014
        %v6297 = vunpack.c.h.b16 %v6014
        %v6298 = vunpack.c.l.b16 %v6015
        %v6299 = vunpack.c.h.b16 %v6015
        %v6300 = vunpack.c.l.b16 %v6016
        %v6301 = vunpack.c.h.b16 %v6016
        %v6302 = vunpack.c.l.b16 %v6017
        %v6303 = vunpack.c.h.b16 %v6017
        %v6304 = vunpack.c.l.b16 %v6018
        %v6305 = vunpack.c.h.b16 %v6018
        %v6306 = vunpack.c.l.b16 %v6019
        %v6307 = vunpack.c.h.b16 %v6019
        %v6308 = vunpack.c.l.b16 %v6020
        %v6309 = vunpack.c.h.b16 %v6020
        %v6310 = vunpack.c.l.b16 %v6021
        %v6311 = vunpack.c.h.b16 %v6021
        %v6312 = vunpack.c.l.b16 %v6022
        %v6313 = vunpack.c.h.b16 %v6022
        %v6314 = vunpack.c.l.b16 %v6023
        %v6315 = vunpack.c.h.b16 %v6023
        %v6316 = vunpack.c.l.b16 %v6024
        %v6317 = vunpack.c.h.b16 %v6024
        %v6318 = vunpack.c.l.b16 %v6025
        %v6319 = vunpack.c.h.b16 %v6025
        %v6320 = vunpack.c.l.b16 %v6026
        %v6321 = vunpack.c.h.b16 %v6026
        %v6322 = vunpack.c.l.b16 %v6027
        %v6323 = vunpack.c.h.b16 %v6027
        %v6324 = vunpack.c.l.b16 %v6028
        %v6325 = vunpack.c.h.b16 %v6028
        %v6326 = vunpack.c.l.b16 %v6029
        %v6327 = vunpack.c.h.b16 %v6029
        %v6328 = vunpack.c.l.b16 %v6030
        %v6329 = vunpack.c.h.b16 %v6030
        %v6330 = vunpack.c.l.b16 %v6031
        %v6331 = vunpack.c.h.b16 %v6031
        %v6332 = vunpack.c.l.b16 %v6032
        %v6333 = vunpack.c.h.b16 %v6032
        %v6334 = vunpack.c.l.b16 %v6033
        %v6335 = vunpack.c.h.b16 %v6033
        %v6336 = vunpack.c.l.b16 %v6034
        %v6337 = vunpack.c.h.b16 %v6034
        %v6338 = vunpack.c.l.b16 %v6035
        %v6339 = vunpack.c.h.b16 %v6035
        %v6340 = vunpack.c.l.b16 %v6036
        %v6341 = vunpack.c.h.b16 %v6036
        %v6342 = vunpack.c.l.b16 %v6037
        %v6343 = vunpack.c.h.b16 %v6037
        %v6344 = vunpack.c.l.b16 %v6038
        %v6345 = vunpack.c.h.b16 %v6038
        %v6346 = vunpack.c.l.b16 %v6039
        %v6347 = vunpack.c.h.b16 %v6039
        %v6348 = vunpack.c.l.b16 %v6040
        %v6349 = vunpack.c.h.b16 %v6040
        %v6350 = vunpack.c.l.b16 %v6041
        %v6351 = vunpack.c.h.b16 %v6041
        %v6352 = vunpack.c.l.b16 %v6042
        %v6353 = vunpack.c.h.b16 %v6042
        %v6354 = vunpack.c.l.b16 %v6043
        %v6355 = vunpack.c.h.b16 %v6043
        %v6356 = vunpack.c.l.b16 %v6044
        %v6357 = vunpack.c.h.b16 %v6044
        %v6358 = vunpack.c.l.b16 %v6045
        %v6359 = vunpack.c.h.b16 %v6045
        %v6360 = vunpack.c.l.b16 %v6046
        %v6361 = vunpack.c.h.b16 %v6046
        %v6362 = vunpack.c.l.b16 %v6047
        %v6363 = vunpack.c.h.b16 %v6047
        %v6364 = vunpack.c.l.b16 %v6048
        %v6365 = vunpack.c.h.b16 %v6048
        %v6366 = vunpack.c.l.b16 %v6049
        %v6367 = vunpack.c.h.b16 %v6049
        %v6368 = vunpack.c.l.b16 %v6050
        %v6369 = vunpack.c.h.b16 %v6050
        %v6370 = vunpack.c.l.b16 %v6051
        %v6371 = vunpack.c.h.b16 %v6051
        %v6372 = vpack.c.b16 %v6186, %v6180
        %v6373 = vpack.c.b16 %v6187, %v6181
        %v6374 = vpack.c.b16 %v6188, %v6182
        %v6375 = vpack.c.b16 %v6189, %v6183
        %v6376 = vpack.c.b16 %v6190, %v6184
        %v6377 = vpack.c.b16 %v6191, %v6185
        %v6378 = vpack.c.b16 %v6198, %v6192
        %v6379 = vpack.c.b16 %v6199, %v6193
        %v6380 = vpack.c.b16 %v6200, %v6194
        %v6381 = vpack.c.b16 %v6201, %v6195
        %v6382 = vpack.c.b16 %v6202, %v6196
        %v6383 = vpack.c.b16 %v6203, %v6197
        %v6384 = vpack.c.b16 %v6210, %v6204
        %v6385 = vpack.c.b16 %v6211, %v6205
        %v6386 = vpack.c.b16 %v6212, %v6206
        %v6387 = vpack.c.b16 %v6213, %v6207
        %v6388 = vpack.c.b16 %v6214, %v6208
        %v6389 = vpack.c.b16 %v6215, %v6209
        %v6390 = vpack.c.b16 %v6222, %v6216
        %v6391 = vpack.c.b16 %v6223, %v6217
        %v6392 = vpack.c.b16 %v6224, %v6218
        %v6393 = vpack.c.b16 %v6225, %v6219
        %v6394 = vpack.c.b16 %v6226, %v6220
        %v6395 = vpack.c.b16 %v6227, %v6221
        %v6396 = vpack.c.b16 %v6234, %v6228
        %v6397 = vpack.c.b16 %v6235, %v6229
        %v6398 = vpack.c.b16 %v6236, %v6230
        %v6399 = vpack.c.b16 %v6237, %v6231
        %v6400 = vpack.c.b16 %v6238, %v6232
        %v6401 = vpack.c.b16 %v6239, %v6233
        %v6402 = vpack.c.b16 %v6246, %v6240
        %v6403 = vpack.c.b16 %v6247, %v6241
        %v6404 = vpack.c.b16 %v6248, %v6242
        %v6405 = vpack.c.b16 %v6249, %v6243
        %v6406 = vpack.c.b16 %v6250, %v6244
        %v6407 = vpack.c.b16 %v6251, %v6245
        %v6408 = vpack.c.b16 %v6258, %v6252
        %v6409 = vpack.c.b16 %v6259, %v6253
        %v6410 = vpack.c.b16 %v6260, %v6254
        %v6411 = vpack.c.b16 %v6261, %v6255
        %v6412 = vpack.c.b16 %v6262, %v6256
        %v6413 = vpack.c.b16 %v6263, %v6257
        %v6414 = vpack.c.b16 %v6270, %v6264
        %v6415 = vpack.c.b16 %v6271, %v6265
        %v6416 = vpack.c.b16 %v6272, %v6266
        %v6417 = vpack.c.b16 %v6273, %v6267
        %v6418 = vpack.c.b16 %v6274, %v6268
        %v6419 = vpack.c.b16 %v6275, %v6269
        %v6420 = vpack.c.b16 %v6282, %v6276
        %v6421 = vpack.c.b16 %v6283, %v6277
        %v6422 = vpack.c.b16 %v6284, %v6278
        %v6423 = vpack.c.b16 %v6285, %v6279
        %v6424 = vpack.c.b16 %v6286, %v6280
        %v6425 = vpack.c.b16 %v6287, %v6281
        %v6426 = vpack.c.b16 %v6294, %v6288
        %v6427 = vpack.c.b16 %v6295, %v6289
        %v6428 = vpack.c.b16 %v6296, %v6290
        %v6429 = vpack.c.b16 %v6297, %v6291
        %v6430 = vpack.c.b16 %v6298, %v6292
        %v6431 = vpack.c.b16 %v6299, %v6293
        %v6432 = vpack.c.b16 %v6306, %v6300
        %v6433 = vpack.c.b16 %v6307, %v6301
        %v6434 = vpack.c.b16 %v6308, %v6302
        %v6435 = vpack.c.b16 %v6309, %v6303
        %v6436 = vpack.c.b16 %v6310, %v6304
        %v6437 = vpack.c.b16 %v6311, %v6305
        %v6438 = vpack.c.b16 %v6318, %v6312
        %v6439 = vpack.c.b16 %v6319, %v6313
        %v6440 = vpack.c.b16 %v6320, %v6314
        %v6441 = vpack.c.b16 %v6321, %v6315
        %v6442 = vpack.c.b16 %v6322, %v6316
        %v6443 = vpack.c.b16 %v6323, %v6317
        %v6444 = vpack.c.b16 %v6330, %v6324
        %v6445 = vpack.c.b16 %v6331, %v6325
        %v6446 = vpack.c.b16 %v6332, %v6326
        %v6447 = vpack.c.b16 %v6333, %v6327
        %v6448 = vpack.c.b16 %v6334, %v6328
        %v6449 = vpack.c.b16 %v6335, %v6329
        %v6450 = vpack.c.b16 %v6342, %v6336
        %v6451 = vpack.c.b16 %v6343, %v6337
        %v6452 = vpack.c.b16 %v6344, %v6338
        %v6453 = vpack.c.b16 %v6345, %v6339
        %v6454 = vpack.c.b16 %v6346, %v6340
        %v6455 = vpack.c.b16 %v6347, %v6341
        %v6456 = vpack.c.b16 %v6354, %v6348
        %v6457 = vpack.c.b16 %v6355, %v6349
        %v6458 = vpack.c.b16 %v6356, %v6350
        %v6459 = vpack.c.b16 %v6357, %v6351
        %v6460 = vpack.c.b16 %v6358, %v6352
        %v6461 = vpack.c.b16 %v6359, %v6353
        %v6462 = vpack.c.b16 %v6366, %v6360
        %v6463 = vpack.c.b16 %v6367, %v6361
        %v6464 = vpack.c.b16 %v6368, %v6362
        %v6465 = vpack.c.b16 %v6369, %v6363
        %v6466 = vpack.c.b16 %v6370, %v6364
        %v6467 = vpack.c.b16 %v6371, %v6365
        %6564 = vmatprep.subr.bf16.mxu0 %v6373
        %6565 = vmatpush1.bf16.msra.mxu0 %v6372
        %6566 = vmatprep.subr.bf16.mxu0 %v6379
        %6567 = vmatpush1.bf16.msra.mxu0 %v6378
        %6568 = vmatprep.subr.bf16.mxu0 %v6385
        %6569 = vmatpush1.bf16.msra.mxu0 %v6384
        %6570 = vmatprep.subr.bf16.mxu0 %v6391
        %6571 = vmatpush1.bf16.msra.mxu0 %v6390
        %6572 = vmatprep.subr.bf16.mxu0 %v6397
        %6573 = vmatpush1.bf16.msra.mxu0 %v6396
        %6574 = vmatprep.subr.bf16.mxu0 %v6403
        %6575 = vmatpush1.bf16.msra.mxu0 %v6402
        %6576 = vmatprep.subr.bf16.mxu0 %v6409
        %6577 = vmatpush1.bf16.msra.mxu0 %v6408
        %6578 = vmatprep.subr.bf16.mxu0 %v6415
        %6579 = vmatpush1.bf16.msra.mxu0 %v6414
        %6580 = vmatprep.subr.bf16.mxu0 %v6421
        %6581 = vmatpush1.bf16.msra.mxu0 %v6420
        %6582 = vmatprep.subr.bf16.mxu0 %v6427
        %6583 = vmatpush1.bf16.msra.mxu0 %v6426
        %6584 = vmatprep.subr.bf16.mxu0 %v6433
        %6585 = vmatpush1.bf16.msra.mxu0 %v6432
        %6586 = vmatprep.subr.bf16.mxu0 %v6439
        %6587 = vmatpush1.bf16.msra.mxu0 %v6438
        %6588 = vmatprep.subr.bf16.mxu0 %v6445
        %6589 = vmatpush1.bf16.msra.mxu0 %v6444
        %6590 = vmatprep.subr.bf16.mxu0 %v6451
        %6591 = vmatpush1.bf16.msra.mxu0 %v6450
        %6592 = vmatprep.subr.bf16.mxu0 %v6457
        %6593 = vmatpush1.bf16.msra.mxu0 %v6456
        %6594 = vmatprep.subr.bf16.mxu0 %v6463
        %6595 = vmatpush1.bf16.msra.mxu0 %v6462
        %6596 = vmatprep.mubr.bf16.mxu0 %v5953
        %6597 = vmatmul.mubr.bf16.gmra.mrb[0].mxu0 %v5952
        %v6598 = vpop.f32.mrb[0].mxu0
        %v6599 = vadd.f32 %v6057, %v6598
        %v6600 = vpop.f32.mrb[0].mxu0
        %v6601 = vadd.f32 %v6061, %v6600
        %v6602 = vpop.f32.mrb[0].mxu0
        %v6603 = vadd.f32 %v6057, %v6602
        %v6604 = vpop.f32.mrb[0].mxu0
        %v6605 = vadd.f32 %v6061, %v6604
        %6606 = vmatprep.mubr.bf16.mxu0 %v5955
        %6607 = vmatmul.mubr.bf16.gmra.mrb[0].mxu0 %v5954
        %v6608 = vpop.f32.mrb[0].mxu0
        %v6609 = vadd.f32 %v6057, %v6608
        %v6610 = vpop.f32.mrb[0].mxu0
        %v6611 = vadd.f32 %v6061, %v6610
        %v6612 = vpop.f32.mrb[0].mxu0
        %v6613 = vpop.f32.mrb[0].mxu0
        %6614 = vdwg.mxu0
        %6615 = vmatprep.subr.bf16.mxu0 %v6375
        %6616 = vmatpush1.bf16.msra.mxu0 %v6374
        %6617 = vmatprep.subr.bf16.mxu0 %v6381
        %6618 = vmatpush1.bf16.msra.mxu0 %v6380
        %6619 = vmatprep.subr.bf16.mxu0 %v6387
        %6620 = vmatpush1.bf16.msra.mxu0 %v6386
        %6621 = vmatprep.subr.bf16.mxu0 %v6393
        %6622 = vmatpush1.bf16.msra.mxu0 %v6392
        %6623 = vmatprep.subr.bf16.mxu0 %v6399
        %6624 = vmatpush1.bf16.msra.mxu0 %v6398
        %6625 = vmatprep.subr.bf16.mxu0 %v6405
        %6626 = vmatpush1.bf16.msra.mxu0 %v6404
        %6627 = vmatprep.subr.bf16.mxu0 %v6411
        %6628 = vmatpush1.bf16.msra.mxu0 %v6410
        %6629 = vmatprep.subr.bf16.mxu0 %v6417
        %6630 = vmatpush1.bf16.msra.mxu0 %v6416
        %6631 = vmatprep.subr.bf16.mxu0 %v6423
        %6632 = vmatpush1.bf16.msra.mxu0 %v6422
        %6633 = vmatprep.subr.bf16.mxu0 %v6429
        %6634 = vmatpush1.bf16.msra.mxu0 %v6428
        %6635 = vmatprep.subr.bf16.mxu0 %v6435
        %6636 = vmatpush1.bf16.msra.mxu0 %v6434
        %6637 = vmatprep.subr.bf16.mxu0 %v6441
        %6638 = vmatpush1.bf16.msra.mxu0 %v6440
        %6639 = vmatprep.subr.bf16.mxu0 %v6447
        %6640 = vmatpush1.bf16.msra.mxu0 %v6446
        %6641 = vmatprep.subr.bf16.mxu0 %v6453
        %6642 = vmatpush1.bf16.msra.mxu0 %v6452
        %6643 = vmatprep.subr.bf16.mxu0 %v6459
        %6644 = vmatpush1.bf16.msra.mxu0 %v6458
        %6645 = vmatprep.subr.bf16.mxu0 %v6465
        %6646 = vmatpush1.bf16.msra.mxu0 %v6464
        %6647 = vmatprep.mubr.bf16.mxu0 %v5953
        %6648 = vmatmul.mubr.bf16.gmra.mrb[0].mxu0 %v5952
        %v6649 = vpop.f32.mrb[0].mxu0
        %v6650 = vadd.f32 %v6065, %v6649
        %v6651 = vpop.f32.mrb[0].mxu0
        %v6652 = vadd.f32 %v6069, %v6651
        %v6653 = vpop.f32.mrb[0].mxu0
        %v6654 = vadd.f32 %v6065, %v6653
        %v6655 = vpop.f32.mrb[0].mxu0
        %v6656 = vadd.f32 %v6069, %v6655
        %6657 = vmatprep.mubr.bf16.mxu0 %v5955
        %6658 = vmatmul.mubr.bf16.gmra.mrb[0].mxu0 %v5954
        %v6659 = vpop.f32.mrb[0].mxu0
        %v6660 = vadd.f32 %v6065, %v6659
        %v6661 = vpop.f32.mrb[0].mxu0
        %v6662 = vadd.f32 %v6069, %v6661
        %v6663 = vpop.f32.mrb[0].mxu0
        %v6664 = vpop.f32.mrb[0].mxu0
        %6665 = vdwg.mxu0
        %6666 = vmatprep.subr.bf16.mxu0 %v6377
        %6667 = vmatpush1.bf16.msra.mxu0 %v6376
        %6668 = vmatprep.subr.bf16.mxu0 %v6383
        %6669 = vmatpush1.bf16.msra.mxu0 %v6382
        %6670 = vmatprep.subr.bf16.mxu0 %v6389
        %6671 = vmatpush1.bf16.msra.mxu0 %v6388
        %6672 = vmatprep.subr.bf16.mxu0 %v6395
        %6673 = vmatpush1.bf16.msra.mxu0 %v6394
        %6674 = vmatprep.subr.bf16.mxu0 %v6401
        %6675 = vmatpush1.bf16.msra.mxu0 %v6400
        %6676 = vmatprep.subr.bf16.mxu0 %v6407
        %6677 = vmatpush1.bf16.msra.mxu0 %v6406
        %6678 = vmatprep.subr.bf16.mxu0 %v6413
        %6679 = vmatpush1.bf16.msra.mxu0 %v6412
        %6680 = vmatprep.subr.bf16.mxu0 %v6419
        %6681 = vmatpush1.bf16.msra.mxu0 %v6418
        %6682 = vmatprep.subr.bf16.mxu0 %v6425
        %6683 = vmatpush1.bf16.msra.mxu0 %v6424
        %6684 = vmatprep.subr.bf16.mxu0 %v6431
        %6685 = vmatpush1.bf16.msra.mxu0 %v6430
        %6686 = vmatprep.subr.bf16.mxu0 %v6437
        %6687 = vmatpush1.bf16.msra.mxu0 %v6436
        %6688 = vmatprep.subr.bf16.mxu0 %v6443
        %6689 = vmatpush1.bf16.msra.mxu0 %v6442
        %6690 = vmatprep.subr.bf16.mxu0 %v6449
        %6691 = vmatpush1.bf16.msra.mxu0 %v6448
        %6692 = vmatprep.subr.bf16.mxu0 %v6455
        %6693 = vmatpush1.bf16.msra.mxu0 %v6454
        %6694 = vmatprep.subr.bf16.mxu0 %v6461
        %6695 = vmatpush1.bf16.msra.mxu0 %v6460
        %6696 = vmatprep.subr.bf16.mxu0 %v6467
        %6697 = vmatpush1.bf16.msra.mxu0 %v6466
        %6698 = vmatprep.mubr.bf16.mxu0 %v5953
        %6699 = vmatmul.mubr.bf16.gmra.mrb[0].mxu0 %v5952
        %v6700 = vpop.f32.mrb[0].mxu0
        %v6701 = vadd.f32 %v6073, %v6700
        %v6702 = vpop.f32.mrb[0].mxu0
        %v6703 = vadd.f32 %v6077, %v6702
        %v6704 = vpop.f32.mrb[0].mxu0
        %v6705 = vadd.f32 %v6073, %v6704
        %v6706 = vpop.f32.mrb[0].mxu0
        %v6707 = vadd.f32 %v6077, %v6706
        %6708 = vmatprep.mubr.bf16.mxu0 %v5955
        %6709 = vmatmul.mubr.bf16.gmra.mrb[0].mxu0 %v5954
        %v6710 = vpop.f32.mrb[0].mxu0
        %v6711 = vadd.f32 %v6073, %v6710
        %v6712 = vpop.f32.mrb[0].mxu0
        %v6713 = vadd.f32 %v6077, %v6712
        %v6714 = vpop.f32.mrb[0].mxu0
        %v6715 = vpop.f32.mrb[0].mxu0
        %6716 = vdwg.mxu0
        %v6717 = vpack.c.bf16 %v6603, %v6599
        %v6718 = vpack.c.bf16 %v6609, %v6609
        %v6719 = vpack.c.bf16 %v6654, %v6650
        %v6720 = vpack.c.bf16 %v6660, %v6660
        %v6721 = vpack.c.bf16 %v6705, %v6701
        %v6722 = vpack.c.bf16 %v6711, %v6711
        %vm6723 = vcmask 261120
        %v6725 = vsel %vm6723, %v6717, 0
        %v6728 = vsel %vm6723, %v6718, 0
        %v6731 = vsel %vm6723, %v6719, 0
        %v6734 = vsel %vm6723, %v6720, 0
        %6736 = vmatprep.subr.bf16.mxu0 0
        %6737 = vmatpush1.bf16.xpose.msra.mxu0 %v6731
        %6738 = vmatprep.subr.bf16.mxu0 0
        %6739 = vmatpush1.bf16.xpose.msra.mxu0 %v6734
        %6740 = vmatprep.subr.bf16.mxu0 0
        %6741 = vmatpush1.bf16.xpose.msra.mxu0 0
        %6742 = vmatprep.subr.bf16.mxu0 0
        %6743 = vmatpush1.bf16.xpose.msra.mxu0 0
        %6744 = vmatprep.subr.bf16.mxu0 0
        %6745 = vmatpush1.bf16.xpose.msra.mxu0 0
        %6746 = vmatprep.subr.bf16.mxu0 0
        %6747 = vmatpush1.bf16.xpose.msra.mxu0 0
        %6748 = vmatprep.subr.bf16.mxu0 0
        %6749 = vmatpush1.bf16.xpose.msra.mxu0 0
        %6750 = vmatprep.subr.bf16.mxu0 0
        %6751 = vmatpush1.bf16.xpose.msra.mxu0 0
        %6752 = vmatprep.subr.bf16.mxu0 0
        %6753 = vmatpush1.bf16.xpose.msra.mxu0 0
        %6754 = vmatprep.subr.bf16.mxu0 0
        %6755 = vmatpush1.bf16.xpose.msra.mxu0 0
        %6756 = vmatprep.subr.bf16.mxu0 0
        %6757 = vmatpush1.bf16.xpose.msra.mxu0 0
        %6758 = vmatprep.subr.bf16.mxu0 0
        %6759 = vmatpush1.bf16.xpose.msra.mxu0 0
        %6760 = vmatprep.subr.bf16.mxu0 0
        %6761 = vmatpush1.bf16.xpose.msra.mxu0 0
        %6762 = vmatprep.subr.bf16.mxu0 0
        %6763 = vmatpush1.bf16.xpose.msra.mxu0 0
        %6764 = vmatprep.subr.bf16.mxu0 0
        %6765 = vmatpush1.bf16.xpose.msra.mxu0 0
        %6766 = vmatprep.subr.bf16.mxu0 0
        %6767 = vmatpush1.bf16.xpose.msra.mxu0 0
        %6768 = vmatprep.mubr.bf16.mxu0 0
        %6769 = vmatmul.mubr.bf16.gmra.mrb[0].mxu0 %v6725
        %v6770 = vpop.f32.mrb[0].mxu0
        %v6771 = vadd.f32 0.0, %v6770
        %v6772 = vpop.f32.mrb[0].mxu0
        %v6773 = vpop.f32.mrb[0].mxu0
        %v6774 = vadd.f32 0.0, %v6773
        %v6775 = vpop.f32.mrb[0].mxu0
        %6776 = vmatprep.mubr.bf16.mxu0 0
        %6777 = vmatmul.mubr.bf16.gmra.mrb[0].mxu0 %v6728
        %v6778 = vpop.f32.mrb[0].mxu0
        %v6779 = vadd.f32 0.0, %v6778
        %v6780 = vpop.f32.mrb[0].mxu0
        %v6781 = vpop.f32.mrb[0].mxu0
        %v6782 = vpop.f32.mrb[0].mxu0
        %6783 = vdwg.mxu0
        %v6784 = vmul.f32 %v6771, 0.17677669
        %v6785 = vmul.f32 %v6774, 0.17677669
        %v6786 = vmul.f32 %v6779, 0.17677669
        %vm6787 = vcmask 195584
        %v6788 = vsel %vm6787, %v6784, -inf
        %6789 = vmax.xlane.f32.xlu0 %v6788
        %v6790 = vpop.xlane.xlu0 %6789
        %v6791 = vsel %vm6787, %v6785, -inf
        %6792 = vmax.xlane.f32.xlu0 %v6791
        %v6793 = vpop.xlane.xlu0 %6792
        %v6794 = vsel %vm6787, %v6786, -inf
        %6795 = vmax.xlane.f32.xlu0 %v6794
        %v6796 = vpop.xlane.xlu0 %6795
        %v6797 = vsub.f32 %v6784, %v6790
        %v6798 = vsub.f32 %v6785, %v6793
        %v6799 = vsub.f32 %v6786, %v6796
        %v6800 = vmul.f32 %v6797, 1.442695
        %v6801 = vpow.pop %v6800
        %v6802 = vmul.f32 %v6798, 1.442695
        %v6803 = vpow.pop %v6802
        %v6804 = vmul.f32 %v6799, 1.442695
        %v6805 = vpow.pop %v6804
        %v6806 = vsel %vm6787, %v6801, 0.0
        %6807 = vadd.xlane.f32.xlu0 %v6806
        %v6808 = vpop.xlane.xlu0 %6807
        %v6809 = vsel %vm6787, %v6803, 0.0
        %6810 = vadd.xlane.f32.xlu0 %v6809
        %v6811 = vpop.xlane.xlu0 %6810
        %v6812 = vsel %vm6787, %v6805, 0.0
        %6813 = vadd.xlane.f32.xlu0 %v6812
        %v6814 = vpop.xlane.xlu0 %6813
        %v6815 = vrcp.pop %v6808
        %v6816 = vrcp.pop %v6811
        %v6817 = vrcp.pop %v6814
        %v6818 = vmul.f32 %v6801, %v6815
        %v6819 = vmul.f32 %v6803, %v6816
        %v6820 = vmul.f32 %v6805, %v6817
        %v6821 = vpack.c.bf16 %v6819, %v6818
        %v6822 = vpack.c.bf16 %v6820, %v6820
        %v6824 = vsel %vm6787, %v6821, 0
        %v6827 = vsel %vm6787, %v6822, 0
        %vm6829 = vcmask 1043456
        %v6831 = vsel %vm6829, %v6722, 0
        %6833 = vmatprep.subr.bf16.mxu0 0
        %6834 = vmatpush1.bf16.msra.mxu0 %v6721
        %6835 = vmatprep.subr.bf16.mxu0 0
        %6836 = vmatpush1.bf16.msra.mxu0 %v6831
        %6837 = vmatprep.subr.bf16.mxu0 0
        %6838 = vmatpush1.bf16.msra.mxu0 0
        %6839 = vmatprep.subr.bf16.mxu0 0
        %6840 = vmatpush1.bf16.msra.mxu0 0
        %6841 = vmatprep.subr.bf16.mxu0 0
        %6842 = vmatpush1.bf16.msra.mxu0 0
        %6843 = vmatprep.subr.bf16.mxu0 0
        %6844 = vmatpush1.bf16.msra.mxu0 0
        %6845 = vmatprep.subr.bf16.mxu0 0
        %6846 = vmatpush1.bf16.msra.mxu0 0
        %6847 = vmatprep.subr.bf16.mxu0 0
        %6848 = vmatpush1.bf16.msra.mxu0 0
        %6849 = vmatprep.subr.bf16.mxu0 0
        %6850 = vmatpush1.bf16.msra.mxu0 0
        %6851 = vmatprep.subr.bf16.mxu0 0
        %6852 = vmatpush1.bf16.msra.mxu0 0
        %6853 = vmatprep.subr.bf16.mxu0 0
        %6854 = vmatpush1.bf16.msra.mxu0 0
        %6855 = vmatprep.subr.bf16.mxu0 0
        %6856 = vmatpush1.bf16.msra.mxu0 0
        %6857 = vmatprep.subr.bf16.mxu0 0
        %6858 = vmatpush1.bf16.msra.mxu0 0
        %6859 = vmatprep.subr.bf16.mxu0 0
        %6860 = vmatpush1.bf16.msra.mxu0 0
        %6861 = vmatprep.subr.bf16.mxu0 0
        %6862 = vmatpush1.bf16.msra.mxu0 0
        %6863 = vmatprep.subr.bf16.mxu0 0
        %6864 = vmatpush1.bf16.msra.mxu0 0
        %6865 = vmatprep.mubr.bf16.mxu0 0
        %6866 = vmatmul.mubr.bf16.gmra.mrb[0].mxu0 %v6824
        %v6867 = vpop.f32.mrb[0].mxu0
        %v6868 = vadd.f32 0.0, %v6867
        %v6869 = vpop.f32.mrb[0].mxu0
        %v6870 = vpop.f32.mrb[0].mxu0
        %v6871 = vadd.f32 0.0, %v6870
        %v6872 = vpop.f32.mrb[0].mxu0
        %6873 = vmatprep.mubr.bf16.mxu0 0
        %6874 = vmatmul.mubr.bf16.gmra.mrb[0].mxu0 %v6827
        %v6875 = vpop.f32.mrb[0].mxu0
        %v6876 = vadd.f32 0.0, %v6875
        %v6877 = vpop.f32.mrb[0].mxu0
        %v6878 = vpop.f32.mrb[0].mxu0
        %v6879 = vpop.f32.mrb[0].mxu0
        %6880 = vdwg.mxu0
        %6883 = vrot.lane.b32.xlu0 %v6717, 96
        %v6884 = vpop.permute.xlu0 %6883
        %6885 = vrot.lane.b32.xlu0 %v6718, 96
        %v6886 = vpop.permute.xlu0 %6885
        %6889 = vrot.lane.b32.xlu0 %v6719, 96
        %v6890 = vpop.permute.xlu0 %6889
        %6891 = vrot.lane.b32.xlu0 %v6720, 96
        %v6892 = vpop.permute.xlu0 %6891
        %v6894 = vsel %vm6723, %v6884, 0
        %v6897 = vsel %vm6723, %v6886, 0
        %v6900 = vsel %vm6723, %v6890, 0
        %v6903 = vsel %vm6723, %v6892, 0
        %6905 = vmatprep.subr.bf16.mxu0 0
        %6906 = vmatpush1.bf16.xpose.msra.mxu0 %v6900
        %6907 = vmatprep.subr.bf16.mxu0 0
        %6908 = vmatpush1.bf16.xpose.msra.mxu0 %v6903
        %6909 = vmatprep.subr.bf16.mxu0 0
        %6910 = vmatpush1.bf16.xpose.msra.mxu0 0
        %6911 = vmatprep.subr.bf16.mxu0 0
        %6912 = vmatpush1.bf16.xpose.msra.mxu0 0
        %6913 = vmatprep.subr.bf16.mxu0 0
        %6914 = vmatpush1.bf16.xpose.msra.mxu0 0
        %6915 = vmatprep.subr.bf16.mxu0 0
        %6916 = vmatpush1.bf16.xpose.msra.mxu0 0
        %6917 = vmatprep.subr.bf16.mxu0 0
        %6918 = vmatpush1.bf16.xpose.msra.mxu0 0
        %6919 = vmatprep.subr.bf16.mxu0 0
        %6920 = vmatpush1.bf16.xpose.msra.mxu0 0
        %6921 = vmatprep.subr.bf16.mxu0 0
        %6922 = vmatpush1.bf16.xpose.msra.mxu0 0
        %6923 = vmatprep.subr.bf16.mxu0 0
        %6924 = vmatpush1.bf16.xpose.msra.mxu0 0
        %6925 = vmatprep.subr.bf16.mxu0 0
        %6926 = vmatpush1.bf16.xpose.msra.mxu0 0
        %6927 = vmatprep.subr.bf16.mxu0 0
        %6928 = vmatpush1.bf16.xpose.msra.mxu0 0
        %6929 = vmatprep.subr.bf16.mxu0 0
        %6930 = vmatpush1.bf16.xpose.msra.mxu0 0
        %6931 = vmatprep.subr.bf16.mxu0 0
        %6932 = vmatpush1.bf16.xpose.msra.mxu0 0
        %6933 = vmatprep.subr.bf16.mxu0 0
        %6934 = vmatpush1.bf16.xpose.msra.mxu0 0
        %6935 = vmatprep.subr.bf16.mxu0 0
        %6936 = vmatpush1.bf16.xpose.msra.mxu0 0
        %6937 = vmatprep.mubr.bf16.mxu0 0
        %6938 = vmatmul.mubr.bf16.gmra.mrb[0].mxu0 %v6894
        %v6939 = vpop.f32.mrb[0].mxu0
        %v6940 = vadd.f32 0.0, %v6939
        %v6941 = vpop.f32.mrb[0].mxu0
        %v6942 = vpop.f32.mrb[0].mxu0
        %v6943 = vadd.f32 0.0, %v6942
        %v6944 = vpop.f32.mrb[0].mxu0
        %6945 = vmatprep.mubr.bf16.mxu0 0
        %6946 = vmatmul.mubr.bf16.gmra.mrb[0].mxu0 %v6897
        %v6947 = vpop.f32.mrb[0].mxu0
        %v6948 = vadd.f32 0.0, %v6947
        %v6949 = vpop.f32.mrb[0].mxu0
        %v6950 = vpop.f32.mrb[0].mxu0
        %v6951 = vpop.f32.mrb[0].mxu0
        %6952 = vdwg.mxu0
        %v6953 = vmul.f32 %v6940, 0.17677669
        %v6954 = vmul.f32 %v6943, 0.17677669
        %v6955 = vmul.f32 %v6948, 0.17677669
        %v6956 = vsel %vm6787, %v6953, -inf
        %6957 = vmax.xlane.f32.xlu0 %v6956
        %v6958 = vpop.xlane.xlu0 %6957
        %v6959 = vsel %vm6787, %v6954, -inf
        %6960 = vmax.xlane.f32.xlu0 %v6959
        %v6961 = vpop.xlane.xlu0 %6960
        %v6962 = vsel %vm6787, %v6955, -inf
        %6963 = vmax.xlane.f32.xlu0 %v6962
        %v6964 = vpop.xlane.xlu0 %6963
        %v6965 = vsub.f32 %v6953, %v6958
        %v6966 = vsub.f32 %v6954, %v6961
        %v6967 = vsub.f32 %v6955, %v6964
        %v6968 = vmul.f32 %v6965, 1.442695
        %v6969 = vpow.pop %v6968
        %v6970 = vmul.f32 %v6966, 1.442695
        %v6971 = vpow.pop %v6970
        %v6972 = vmul.f32 %v6967, 1.442695
        %v6973 = vpow.pop %v6972
        %v6974 = vsel %vm6787, %v6969, 0.0
        %6975 = vadd.xlane.f32.xlu0 %v6974
        %v6976 = vpop.xlane.xlu0 %6975
        %v6977 = vsel %vm6787, %v6971, 0.0
        %6978 = vadd.xlane.f32.xlu0 %v6977
        %v6979 = vpop.xlane.xlu0 %6978
        %v6980 = vsel %vm6787, %v6973, 0.0
        %6981 = vadd.xlane.f32.xlu0 %v6980
        %v6982 = vpop.xlane.xlu0 %6981
        %v6983 = vrcp.pop %v6976
        %v6984 = vrcp.pop %v6979
        %v6985 = vrcp.pop %v6982
        %v6986 = vmul.f32 %v6969, %v6983
        %v6987 = vmul.f32 %v6971, %v6984
        %v6988 = vmul.f32 %v6973, %v6985
        %v6989 = vpack.c.bf16 %v6987, %v6986
        %v6990 = vpack.c.bf16 %v6988, %v6988
        %6993 = vrot.lane.b32.xlu0 %v6721, 96
        %v6994 = vpop.permute.xlu0 %6993
        %6995 = vrot.lane.b32.xlu0 %v6722, 96
        %v6996 = vpop.permute.xlu0 %6995
        %v6999 = vsel %vm6787, %v6989, 0
        %v7002 = vsel %vm6787, %v6990, 0
        %v7005 = vsel %vm6829, %v6996, 0
        %7007 = vmatprep.subr.bf16.mxu0 0
        %7008 = vmatpush1.bf16.msra.mxu0 %v6994
        %7009 = vmatprep.subr.bf16.mxu0 0
        %7010 = vmatpush1.bf16.msra.mxu0 %v7005
        %7011 = vmatprep.subr.bf16.mxu0 0
        %7012 = vmatpush1.bf16.msra.mxu0 0
        %7013 = vmatprep.subr.bf16.mxu0 0
        %7014 = vmatpush1.bf16.msra.mxu0 0
        %7015 = vmatprep.subr.bf16.mxu0 0
        %7016 = vmatpush1.bf16.msra.mxu0 0
        %7017 = vmatprep.subr.bf16.mxu0 0
        %7018 = vmatpush1.bf16.msra.mxu0 0
        %7019 = vmatprep.subr.bf16.mxu0 0
        %7020 = vmatpush1.bf16.msra.mxu0 0
        %7021 = vmatprep.subr.bf16.mxu0 0
        %7022 = vmatpush1.bf16.msra.mxu0 0
        %7023 = vmatprep.subr.bf16.mxu0 0
        %7024 = vmatpush1.bf16.msra.mxu0 0
        %7025 = vmatprep.subr.bf16.mxu0 0
        %7026 = vmatpush1.bf16.msra.mxu0 0
        %7027 = vmatprep.subr.bf16.mxu0 0
        %7028 = vmatpush1.bf16.msra.mxu0 0
        %7029 = vmatprep.subr.bf16.mxu0 0
        %7030 = vmatpush1.bf16.msra.mxu0 0
        %7031 = vmatprep.subr.bf16.mxu0 0
        %7032 = vmatpush1.bf16.msra.mxu0 0
        %7033 = vmatprep.subr.bf16.mxu0 0
        %7034 = vmatpush1.bf16.msra.mxu0 0
        %7035 = vmatprep.subr.bf16.mxu0 0
        %7036 = vmatpush1.bf16.msra.mxu0 0
        %7037 = vmatprep.subr.bf16.mxu0 0
        %7038 = vmatpush1.bf16.msra.mxu0 0
        %7039 = vmatprep.mubr.bf16.mxu0 0
        %7040 = vmatmul.mubr.bf16.gmra.mrb[0].mxu0 %v6999
        %v7041 = vpop.f32.mrb[0].mxu0
        %v7042 = vadd.f32 0.0, %v7041
        %v7043 = vpop.f32.mrb[0].mxu0
        %v7044 = vpop.f32.mrb[0].mxu0
        %v7045 = vadd.f32 0.0, %v7044
        %v7046 = vpop.f32.mrb[0].mxu0
        %7047 = vmatprep.mubr.bf16.mxu0 0
        %7048 = vmatmul.mubr.bf16.gmra.mrb[0].mxu0 %v7002
        %v7049 = vpop.f32.mrb[0].mxu0
        %v7050 = vadd.f32 0.0, %v7049
        %v7051 = vpop.f32.mrb[0].mxu0
        %v7052 = vpop.f32.mrb[0].mxu0
        %v7053 = vpop.f32.mrb[0].mxu0
        %7054 = vdwg.mxu0
        %7055 = vrot.lane.b32.xlu0 %v6717, 64
        %v7056 = vpop.permute.xlu0 %7055
        %7057 = vrot.lane.b32.xlu0 %v6718, 64
        %v7058 = vpop.permute.xlu0 %7057
        %7059 = vrot.lane.b32.xlu0 %v6719, 64
        %v7060 = vpop.permute.xlu0 %7059
        %7061 = vrot.lane.b32.xlu0 %v6720, 64
        %v7062 = vpop.permute.xlu0 %7061
        %v7064 = vsel %vm6723, %v7056, 0
        %v7067 = vsel %vm6723, %v7058, 0
        %v7070 = vsel %vm6723, %v7060, 0
        %v7073 = vsel %vm6723, %v7062, 0
        %7075 = vmatprep.subr.bf16.mxu0 0
        %7076 = vmatpush1.bf16.xpose.msra.mxu0 %v7070
        %7077 = vmatprep.subr.bf16.mxu0 0
        %7078 = vmatpush1.bf16.xpose.msra.mxu0 %v7073
        %7079 = vmatprep.subr.bf16.mxu0 0
        %7080 = vmatpush1.bf16.xpose.msra.mxu0 0
        %7081 = vmatprep.subr.bf16.mxu0 0
        %7082 = vmatpush1.bf16.xpose.msra.mxu0 0
        %7083 = vmatprep.subr.bf16.mxu0 0
        %7084 = vmatpush1.bf16.xpose.msra.mxu0 0
        %7085 = vmatprep.subr.bf16.mxu0 0
        %7086 = vmatpush1.bf16.xpose.msra.mxu0 0
        %7087 = vmatprep.subr.bf16.mxu0 0
        %7088 = vmatpush1.bf16.xpose.msra.mxu0 0
        %7089 = vmatprep.subr.bf16.mxu0 0
        %7090 = vmatpush1.bf16.xpose.msra.mxu0 0
        %7091 = vmatprep.subr.bf16.mxu0 0
        %7092 = vmatpush1.bf16.xpose.msra.mxu0 0
        %7093 = vmatprep.subr.bf16.mxu0 0
        %7094 = vmatpush1.bf16.xpose.msra.mxu0 0
        %7095 = vmatprep.subr.bf16.mxu0 0
        %7096 = vmatpush1.bf16.xpose.msra.mxu0 0
        %7097 = vmatprep.subr.bf16.mxu0 0
        %7098 = vmatpush1.bf16.xpose.msra.mxu0 0
        %7099 = vmatprep.subr.bf16.mxu0 0
        %7100 = vmatpush1.bf16.xpose.msra.mxu0 0
        %7101 = vmatprep.subr.bf16.mxu0 0
        %7102 = vmatpush1.bf16.xpose.msra.mxu0 0
        %7103 = vmatprep.subr.bf16.mxu0 0
        %7104 = vmatpush1.bf16.xpose.msra.mxu0 0
        %7105 = vmatprep.subr.bf16.mxu0 0
        %7106 = vmatpush1.bf16.xpose.msra.mxu0 0
        %7107 = vmatprep.mubr.bf16.mxu0 0
        %7108 = vmatmul.mubr.bf16.gmra.mrb[0].mxu0 %v7064
        %v7109 = vpop.f32.mrb[0].mxu0
        %v7110 = vadd.f32 0.0, %v7109
        %v7111 = vpop.f32.mrb[0].mxu0
        %v7112 = vpop.f32.mrb[0].mxu0
        %v7113 = vadd.f32 0.0, %v7112
        %v7114 = vpop.f32.mrb[0].mxu0
        %7115 = vmatprep.mubr.bf16.mxu0 0
        %7116 = vmatmul.mubr.bf16.gmra.mrb[0].mxu0 %v7067
        %v7117 = vpop.f32.mrb[0].mxu0
        %v7118 = vadd.f32 0.0, %v7117
        %v7119 = vpop.f32.mrb[0].mxu0
        %v7120 = vpop.f32.mrb[0].mxu0
        %v7121 = vpop.f32.mrb[0].mxu0
        %7122 = vdwg.mxu0
        %v7123 = vmul.f32 %v7110, 0.17677669
        %v7124 = vmul.f32 %v7113, 0.17677669
        %v7125 = vmul.f32 %v7118, 0.17677669
        %v7126 = vsel %vm6787, %v7123, -inf
        %7127 = vmax.xlane.f32.xlu0 %v7126
        %v7128 = vpop.xlane.xlu0 %7127
        %v7129 = vsel %vm6787, %v7124, -inf
        %7130 = vmax.xlane.f32.xlu0 %v7129
        %v7131 = vpop.xlane.xlu0 %7130
        %v7132 = vsel %vm6787, %v7125, -inf
        %7133 = vmax.xlane.f32.xlu0 %v7132
        %v7134 = vpop.xlane.xlu0 %7133
        %v7135 = vsub.f32 %v7123, %v7128
        %v7136 = vsub.f32 %v7124, %v7131
        %v7137 = vsub.f32 %v7125, %v7134
        %v7138 = vmul.f32 %v7135, 1.442695
        %v7139 = vpow.pop %v7138
        %v7140 = vmul.f32 %v7136, 1.442695
        %v7141 = vpow.pop %v7140
        %v7142 = vmul.f32 %v7137, 1.442695
        %v7143 = vpow.pop %v7142
        %v7144 = vsel %vm6787, %v7139, 0.0
        %7145 = vadd.xlane.f32.xlu0 %v7144
        %v7146 = vpop.xlane.xlu0 %7145
        %v7147 = vsel %vm6787, %v7141, 0.0
        %7148 = vadd.xlane.f32.xlu0 %v7147
        %v7149 = vpop.xlane.xlu0 %7148
        %v7150 = vsel %vm6787, %v7143, 0.0
        %7151 = vadd.xlane.f32.xlu0 %v7150
        %v7152 = vpop.xlane.xlu0 %7151
        %v7153 = vrcp.pop %v7146
        %v7154 = vrcp.pop %v7149
        %v7155 = vrcp.pop %v7152
        %v7156 = vmul.f32 %v7139, %v7153
        %v7157 = vmul.f32 %v7141, %v7154
        %v7158 = vmul.f32 %v7143, %v7155
        %v7159 = vpack.c.bf16 %v7157, %v7156
        %v7160 = vpack.c.bf16 %v7158, %v7158
        %7161 = vrot.lane.b32.xlu0 %v6721, 64
        %v7162 = vpop.permute.xlu0 %7161
        %7163 = vrot.lane.b32.xlu0 %v6722, 64
        %v7164 = vpop.permute.xlu0 %7163
        %v7167 = vsel %vm6787, %v7159, 0
        %v7170 = vsel %vm6787, %v7160, 0
        %v7173 = vsel %vm6829, %v7164, 0
        %7175 = vmatprep.subr.bf16.mxu0 0
        %7176 = vmatpush1.bf16.msra.mxu0 %v7162
        %7177 = vmatprep.subr.bf16.mxu0 0
        %7178 = vmatpush1.bf16.msra.mxu0 %v7173
        %7179 = vmatprep.subr.bf16.mxu0 0
        %7180 = vmatpush1.bf16.msra.mxu0 0
        %7181 = vmatprep.subr.bf16.mxu0 0
        %7182 = vmatpush1.bf16.msra.mxu0 0
        %7183 = vmatprep.subr.bf16.mxu0 0
        %7184 = vmatpush1.bf16.msra.mxu0 0
        %7185 = vmatprep.subr.bf16.mxu0 0
        %7186 = vmatpush1.bf16.msra.mxu0 0
        %7187 = vmatprep.subr.bf16.mxu0 0
        %7188 = vmatpush1.bf16.msra.mxu0 0
        %7189 = vmatprep.subr.bf16.mxu0 0
        %7190 = vmatpush1.bf16.msra.mxu0 0
        %7191 = vmatprep.subr.bf16.mxu0 0
        %7192 = vmatpush1.bf16.msra.mxu0 0
        %7193 = vmatprep.subr.bf16.mxu0 0
        %7194 = vmatpush1.bf16.msra.mxu0 0
        %7195 = vmatprep.subr.bf16.mxu0 0
        %7196 = vmatpush1.bf16.msra.mxu0 0
        %7197 = vmatprep.subr.bf16.mxu0 0
        %7198 = vmatpush1.bf16.msra.mxu0 0
        %7199 = vmatprep.subr.bf16.mxu0 0
        %7200 = vmatpush1.bf16.msra.mxu0 0
        %7201 = vmatprep.subr.bf16.mxu0 0
        %7202 = vmatpush1.bf16.msra.mxu0 0
        %7203 = vmatprep.subr.bf16.mxu0 0
        %7204 = vmatpush1.bf16.msra.mxu0 0
        %7205 = vmatprep.subr.bf16.mxu0 0
        %7206 = vmatpush1.bf16.msra.mxu0 0
        %7207 = vmatprep.mubr.bf16.mxu0 0
        %7208 = vmatmul.mubr.bf16.gmra.mrb[0].mxu0 %v7167
        %v7209 = vpop.f32.mrb[0].mxu0
        %v7210 = vadd.f32 0.0, %v7209
        %v7211 = vpop.f32.mrb[0].mxu0
        %v7212 = vpop.f32.mrb[0].mxu0
        %v7213 = vadd.f32 0.0, %v7212
        %v7214 = vpop.f32.mrb[0].mxu0
        %7215 = vmatprep.mubr.bf16.mxu0 0
        %7216 = vmatmul.mubr.bf16.gmra.mrb[0].mxu0 %v7170
        %v7217 = vpop.f32.mrb[0].mxu0
        %v7218 = vadd.f32 0.0, %v7217
        %v7219 = vpop.f32.mrb[0].mxu0
        %v7220 = vpop.f32.mrb[0].mxu0
        %v7221 = vpop.f32.mrb[0].mxu0
        %7222 = vdwg.mxu0
        %7223 = vrot.lane.b32.xlu0 %v6717, 32
        %v7224 = vpop.permute.xlu0 %7223
        %7225 = vrot.lane.b32.xlu0 %v6718, 32
        %v7226 = vpop.permute.xlu0 %7225
        %7227 = vrot.lane.b32.xlu0 %v6719, 32
        %v7228 = vpop.permute.xlu0 %7227
        %7229 = vrot.lane.b32.xlu0 %v6720, 32
        %v7230 = vpop.permute.xlu0 %7229
        %v7232 = vsel %vm6723, %v7224, 0
        %v7235 = vsel %vm6723, %v7226, 0
        %v7238 = vsel %vm6723, %v7228, 0
        %v7241 = vsel %vm6723, %v7230, 0
        %7243 = vmatprep.subr.bf16.mxu0 0
        %7244 = vmatpush1.bf16.xpose.msra.mxu0 %v7238
        %7245 = vmatprep.subr.bf16.mxu0 0
        %7246 = vmatpush1.bf16.xpose.msra.mxu0 %v7241
        %7247 = vmatprep.subr.bf16.mxu0 0
        %7248 = vmatpush1.bf16.xpose.msra.mxu0 0
        %7249 = vmatprep.subr.bf16.mxu0 0
        %7250 = vmatpush1.bf16.xpose.msra.mxu0 0
        %7251 = vmatprep.subr.bf16.mxu0 0
        %7252 = vmatpush1.bf16.xpose.msra.mxu0 0
        %7253 = vmatprep.subr.bf16.mxu0 0
        %7254 = vmatpush1.bf16.xpose.msra.mxu0 0
        %7255 = vmatprep.subr.bf16.mxu0 0
        %7256 = vmatpush1.bf16.xpose.msra.mxu0 0
        %7257 = vmatprep.subr.bf16.mxu0 0
        %7258 = vmatpush1.bf16.xpose.msra.mxu0 0
        %7259 = vmatprep.subr.bf16.mxu0 0
        %7260 = vmatpush1.bf16.xpose.msra.mxu0 0
        %7261 = vmatprep.subr.bf16.mxu0 0
        %7262 = vmatpush1.bf16.xpose.msra.mxu0 0
        %7263 = vmatprep.subr.bf16.mxu0 0
        %7264 = vmatpush1.bf16.xpose.msra.mxu0 0
        %7265 = vmatprep.subr.bf16.mxu0 0
        %7266 = vmatpush1.bf16.xpose.msra.mxu0 0
        %7267 = vmatprep.subr.bf16.mxu0 0
        %7268 = vmatpush1.bf16.xpose.msra.mxu0 0
        %7269 = vmatprep.subr.bf16.mxu0 0
        %7270 = vmatpush1.bf16.xpose.msra.mxu0 0
        %7271 = vmatprep.subr.bf16.mxu0 0
        %7272 = vmatpush1.bf16.xpose.msra.mxu0 0
        %7273 = vmatprep.subr.bf16.mxu0 0
        %7274 = vmatpush1.bf16.xpose.msra.mxu0 0
        %7275 = vmatprep.mubr.bf16.mxu0 0
        %7276 = vmatmul.mubr.bf16.gmra.mrb[0].mxu0 %v7232
        %v7277 = vpop.f32.mrb[0].mxu0
        %v7278 = vadd.f32 0.0, %v7277
        %v7279 = vpop.f32.mrb[0].mxu0
        %v7280 = vpop.f32.mrb[0].mxu0
        %v7281 = vadd.f32 0.0, %v7280
        %v7282 = vpop.f32.mrb[0].mxu0
        %7283 = vmatprep.mubr.bf16.mxu0 0
        %7284 = vmatmul.mubr.bf16.gmra.mrb[0].mxu0 %v7235
        %v7285 = vpop.f32.mrb[0].mxu0
        %v7286 = vadd.f32 0.0, %v7285
        %v7287 = vpop.f32.mrb[0].mxu0
        %v7288 = vpop.f32.mrb[0].mxu0
        %v7289 = vpop.f32.mrb[0].mxu0
        %7290 = vdwg.mxu0
        %v7291 = vmul.f32 %v7278, 0.17677669
        %v7292 = vmul.f32 %v7281, 0.17677669
        %v7293 = vmul.f32 %v7286, 0.17677669
        %v7294 = vsel %vm6787, %v7291, -inf
        %7295 = vmax.xlane.f32.xlu0 %v7294
        %v7296 = vpop.xlane.xlu0 %7295
        %v7297 = vsel %vm6787, %v7292, -inf
        %7298 = vmax.xlane.f32.xlu0 %v7297
        %v7299 = vpop.xlane.xlu0 %7298
        %v7300 = vsel %vm6787, %v7293, -inf
        %7301 = vmax.xlane.f32.xlu0 %v7300
        %v7302 = vpop.xlane.xlu0 %7301
        %v7303 = vsub.f32 %v7291, %v7296
        %v7304 = vsub.f32 %v7292, %v7299
        %v7305 = vsub.f32 %v7293, %v7302
        %v7306 = vmul.f32 %v7303, 1.442695
        %v7307 = vpow.pop %v7306
        %v7308 = vmul.f32 %v7304, 1.442695
        %v7309 = vpow.pop %v7308
        %v7310 = vmul.f32 %v7305, 1.442695
        %v7311 = vpow.pop %v7310
        %v7312 = vsel %vm6787, %v7307, 0.0
        %7313 = vadd.xlane.f32.xlu0 %v7312
        %v7314 = vpop.xlane.xlu0 %7313
        %v7315 = vsel %vm6787, %v7309, 0.0
        %7316 = vadd.xlane.f32.xlu0 %v7315
        %v7317 = vpop.xlane.xlu0 %7316
        %v7318 = vsel %vm6787, %v7311, 0.0
        %7319 = vadd.xlane.f32.xlu0 %v7318
        %v7320 = vpop.xlane.xlu0 %7319
        %v7321 = vrcp.pop %v7314
        %v7322 = vrcp.pop %v7317
        %v7323 = vrcp.pop %v7320
        %v7324 = vmul.f32 %v7307, %v7321
        %v7325 = vmul.f32 %v7309, %v7322
        %v7326 = vmul.f32 %v7311, %v7323
        %v7327 = vpack.c.bf16 %v7325, %v7324
        %v7328 = vpack.c.bf16 %v7326, %v7326
        %7329 = vrot.lane.b32.xlu0 %v6721, 32
        %v7330 = vpop.permute.xlu0 %7329
        %7331 = vrot.lane.b32.xlu0 %v6722, 32
        %v7332 = vpop.permute.xlu0 %7331
        %v7335 = vsel %vm6787, %v7327, 0
        %v7338 = vsel %vm6787, %v7328, 0
        %v7341 = vsel %vm6829, %v7332, 0
        %7343 = vmatprep.subr.bf16.mxu0 0
        %7344 = vmatpush1.bf16.msra.mxu0 %v7330
        %7345 = vmatprep.subr.bf16.mxu0 0
        %7346 = vmatpush1.bf16.msra.mxu0 %v7341
        %7347 = vmatprep.subr.bf16.mxu0 0
        %7348 = vmatpush1.bf16.msra.mxu0 0
        %7349 = vmatprep.subr.bf16.mxu0 0
        %7350 = vmatpush1.bf16.msra.mxu0 0
        %7351 = vmatprep.subr.bf16.mxu0 0
        %7352 = vmatpush1.bf16.msra.mxu0 0
        %7353 = vmatprep.subr.bf16.mxu0 0
        %7354 = vmatpush1.bf16.msra.mxu0 0
        %7355 = vmatprep.subr.bf16.mxu0 0
        %7356 = vmatpush1.bf16.msra.mxu0 0
        %7357 = vmatprep.subr.bf16.mxu0 0
        %7358 = vmatpush1.bf16.msra.mxu0 0
        %7359 = vmatprep.subr.bf16.mxu0 0
        %7360 = vmatpush1.bf16.msra.mxu0 0
        %7361 = vmatprep.subr.bf16.mxu0 0
        %7362 = vmatpush1.bf16.msra.mxu0 0
        %7363 = vmatprep.subr.bf16.mxu0 0
        %7364 = vmatpush1.bf16.msra.mxu0 0
        %7365 = vmatprep.subr.bf16.mxu0 0
        %7366 = vmatpush1.bf16.msra.mxu0 0
        %7367 = vmatprep.subr.bf16.mxu0 0
        %7368 = vmatpush1.bf16.msra.mxu0 0
        %7369 = vmatprep.subr.bf16.mxu0 0
        %7370 = vmatpush1.bf16.msra.mxu0 0
        %7371 = vmatprep.subr.bf16.mxu0 0
        %7372 = vmatpush1.bf16.msra.mxu0 0
        %7373 = vmatprep.subr.bf16.mxu0 0
        %7374 = vmatpush1.bf16.msra.mxu0 0
        %7375 = vmatprep.mubr.bf16.mxu0 0
        %7376 = vmatmul.mubr.bf16.gmra.mrb[0].mxu0 %v7335
        %v7377 = vpop.f32.mrb[0].mxu0
        %v7378 = vadd.f32 0.0, %v7377
        %v7379 = vpop.f32.mrb[0].mxu0
        %v7380 = vpop.f32.mrb[0].mxu0
        %v7381 = vadd.f32 0.0, %v7380
        %v7382 = vpop.f32.mrb[0].mxu0
        %7383 = vmatprep.mubr.bf16.mxu0 0
        %7384 = vmatmul.mubr.bf16.gmra.mrb[0].mxu0 %v7338
        %v7385 = vpop.f32.mrb[0].mxu0
        %v7386 = vadd.f32 0.0, %v7385
        %v7387 = vpop.f32.mrb[0].mxu0
        %v7388 = vpop.f32.mrb[0].mxu0
        %v7389 = vpop.f32.mrb[0].mxu0
        %7390 = vdwg.mxu0
        %v7391 = vpack.c.bf16 %v6605, %v6601
        %v7392 = vpack.c.bf16 %v6611, %v6611
        %v7393 = vpack.c.bf16 %v6656, %v6652
        %v7394 = vpack.c.bf16 %v6662, %v6662
        %v7395 = vpack.c.bf16 %v6707, %v6703
        %v7396 = vpack.c.bf16 %v6713, %v6713
        %v7398 = vsel %vm6723, %v7391, 0
        %v7401 = vsel %vm6723, %v7392, 0
        %v7404 = vsel %vm6723, %v7393, 0
        %v7407 = vsel %vm6723, %v7394, 0
        %7409 = vmatprep.subr.bf16.mxu0 0
        %7410 = vmatpush1.bf16.xpose.msra.mxu0 %v7404
        %7411 = vmatprep.subr.bf16.mxu0 0
        %7412 = vmatpush1.bf16.xpose.msra.mxu0 %v7407
        %7413 = vmatprep.subr.bf16.mxu0 0
        %7414 = vmatpush1.bf16.xpose.msra.mxu0 0
        %7415 = vmatprep.subr.bf16.mxu0 0
        %7416 = vmatpush1.bf16.xpose.msra.mxu0 0
        %7417 = vmatprep.subr.bf16.mxu0 0
        %7418 = vmatpush1.bf16.xpose.msra.mxu0 0
        %7419 = vmatprep.subr.bf16.mxu0 0
        %7420 = vmatpush1.bf16.xpose.msra.mxu0 0
        %7421 = vmatprep.subr.bf16.mxu0 0
        %7422 = vmatpush1.bf16.xpose.msra.mxu0 0
        %7423 = vmatprep.subr.bf16.mxu0 0
        %7424 = vmatpush1.bf16.xpose.msra.mxu0 0
        %7425 = vmatprep.subr.bf16.mxu0 0
        %7426 = vmatpush1.bf16.xpose.msra.mxu0 0
        %7427 = vmatprep.subr.bf16.mxu0 0
        %7428 = vmatpush1.bf16.xpose.msra.mxu0 0
        %7429 = vmatprep.subr.bf16.mxu0 0
        %7430 = vmatpush1.bf16.xpose.msra.mxu0 0
        %7431 = vmatprep.subr.bf16.mxu0 0
        %7432 = vmatpush1.bf16.xpose.msra.mxu0 0
        %7433 = vmatprep.subr.bf16.mxu0 0
        %7434 = vmatpush1.bf16.xpose.msra.mxu0 0
        %7435 = vmatprep.subr.bf16.mxu0 0
        %7436 = vmatpush1.bf16.xpose.msra.mxu0 0
        %7437 = vmatprep.subr.bf16.mxu0 0
        %7438 = vmatpush1.bf16.xpose.msra.mxu0 0
        %7439 = vmatprep.subr.bf16.mxu0 0
        %7440 = vmatpush1.bf16.xpose.msra.mxu0 0
        %7441 = vmatprep.mubr.bf16.mxu0 0
        %7442 = vmatmul.mubr.bf16.gmra.mrb[0].mxu0 %v7398
        %v7443 = vpop.f32.mrb[0].mxu0
        %v7444 = vadd.f32 0.0, %v7443
        %v7445 = vpop.f32.mrb[0].mxu0
        %v7446 = vpop.f32.mrb[0].mxu0
        %v7447 = vadd.f32 0.0, %v7446
        %v7448 = vpop.f32.mrb[0].mxu0
        %7449 = vmatprep.mubr.bf16.mxu0 0
        %7450 = vmatmul.mubr.bf16.gmra.mrb[0].mxu0 %v7401
        %v7451 = vpop.f32.mrb[0].mxu0
        %v7452 = vadd.f32 0.0, %v7451
        %v7453 = vpop.f32.mrb[0].mxu0
        %v7454 = vpop.f32.mrb[0].mxu0
        %v7455 = vpop.f32.mrb[0].mxu0
        %7456 = vdwg.mxu0
        %v7457 = vmul.f32 %v7444, 0.17677669
        %v7458 = vmul.f32 %v7447, 0.17677669
        %v7459 = vmul.f32 %v7452, 0.17677669
        %v7460 = vsel %vm6787, %v7457, -inf
        %7461 = vmax.xlane.f32.xlu0 %v7460
        %v7462 = vpop.xlane.xlu0 %7461
        %v7463 = vsel %vm6787, %v7458, -inf
        %7464 = vmax.xlane.f32.xlu0 %v7463
        %v7465 = vpop.xlane.xlu0 %7464
        %v7466 = vsel %vm6787, %v7459, -inf
        %7467 = vmax.xlane.f32.xlu0 %v7466
        %v7468 = vpop.xlane.xlu0 %7467
        %v7469 = vsub.f32 %v7457, %v7462
        %v7470 = vsub.f32 %v7458, %v7465
        %v7471 = vsub.f32 %v7459, %v7468
        %v7472 = vmul.f32 %v7469, 1.442695
        %v7473 = vpow.pop %v7472
        %v7474 = vmul.f32 %v7470, 1.442695
        %v7475 = vpow.pop %v7474
        %v7476 = vmul.f32 %v7471, 1.442695
        %v7477 = vpow.pop %v7476
        %v7478 = vsel %vm6787, %v7473, 0.0
        %7479 = vadd.xlane.f32.xlu0 %v7478
        %v7480 = vpop.xlane.xlu0 %7479
        %v7481 = vsel %vm6787, %v7475, 0.0
        %7482 = vadd.xlane.f32.xlu0 %v7481
        %v7483 = vpop.xlane.xlu0 %7482
        %v7484 = vsel %vm6787, %v7477, 0.0
        %7485 = vadd.xlane.f32.xlu0 %v7484
        %v7486 = vpop.xlane.xlu0 %7485
        %v7487 = vrcp.pop %v7480
        %v7488 = vrcp.pop %v7483
        %v7489 = vrcp.pop %v7486
        %v7490 = vmul.f32 %v7473, %v7487
        %v7491 = vmul.f32 %v7475, %v7488
        %v7492 = vmul.f32 %v7477, %v7489
        %v7493 = vpack.c.bf16 %v7491, %v7490
        %v7494 = vpack.c.bf16 %v7492, %v7492
        %v7496 = vsel %vm6787, %v7493, 0
        %v7499 = vsel %vm6787, %v7494, 0
        %v7502 = vsel %vm6829, %v7396, 0
        %7504 = vmatprep.subr.bf16.mxu0 0
        %7505 = vmatpush1.bf16.msra.mxu0 %v7395
        %7506 = vmatprep.subr.bf16.mxu0 0
        %7507 = vmatpush1.bf16.msra.mxu0 %v7502
        %7508 = vmatprep.subr.bf16.mxu0 0
        %7509 = vmatpush1.bf16.msra.mxu0 0
        %7510 = vmatprep.subr.bf16.mxu0 0
        %7511 = vmatpush1.bf16.msra.mxu0 0
        %7512 = vmatprep.subr.bf16.mxu0 0
        %7513 = vmatpush1.bf16.msra.mxu0 0
        %7514 = vmatprep.subr.bf16.mxu0 0
        %7515 = vmatpush1.bf16.msra.mxu0 0
        %7516 = vmatprep.subr.bf16.mxu0 0
        %7517 = vmatpush1.bf16.msra.mxu0 0
        %7518 = vmatprep.subr.bf16.mxu0 0
        %7519 = vmatpush1.bf16.msra.mxu0 0
        %7520 = vmatprep.subr.bf16.mxu0 0
        %7521 = vmatpush1.bf16.msra.mxu0 0
        %7522 = vmatprep.subr.bf16.mxu0 0
        %7523 = vmatpush1.bf16.msra.mxu0 0
        %7524 = vmatprep.subr.bf16.mxu0 0
        %7525 = vmatpush1.bf16.msra.mxu0 0
        %7526 = vmatprep.subr.bf16.mxu0 0
        %7527 = vmatpush1.bf16.msra.mxu0 0
        %7528 = vmatprep.subr.bf16.mxu0 0
        %7529 = vmatpush1.bf16.msra.mxu0 0
        %7530 = vmatprep.subr.bf16.mxu0 0
        %7531 = vmatpush1.bf16.msra.mxu0 0
        %7532 = vmatprep.subr.bf16.mxu0 0
        %7533 = vmatpush1.bf16.msra.mxu0 0
        %7534 = vmatprep.subr.bf16.mxu0 0
        %7535 = vmatpush1.bf16.msra.mxu0 0
        %7536 = vmatprep.mubr.bf16.mxu0 0
        %7537 = vmatmul.mubr.bf16.gmra.mrb[0].mxu0 %v7496
        %v7538 = vpop.f32.mrb[0].mxu0
        %v7539 = vadd.f32 0.0, %v7538
        %v7540 = vpop.f32.mrb[0].mxu0
        %v7541 = vpop.f32.mrb[0].mxu0
        %v7542 = vadd.f32 0.0, %v7541
        %v7543 = vpop.f32.mrb[0].mxu0
        %7544 = vmatprep.mubr.bf16.mxu0 0
        %7545 = vmatmul.mubr.bf16.gmra.mrb[0].mxu0 %v7499
        %v7546 = vpop.f32.mrb[0].mxu0
        %v7547 = vadd.f32 0.0, %v7546
        %v7548 = vpop.f32.mrb[0].mxu0
        %v7549 = vpop.f32.mrb[0].mxu0
        %v7550 = vpop.f32.mrb[0].mxu0
        %7551 = vdwg.mxu0
        %7554 = vrot.lane.b32.xlu0 %v7391, 96
        %v7555 = vpop.permute.xlu0 %7554
        %7556 = vrot.lane.b32.xlu0 %v7392, 96
        %v7557 = vpop.permute.xlu0 %7556
        %7560 = vrot.lane.b32.xlu0 %v7393, 96
        %v7561 = vpop.permute.xlu0 %7560
        %7562 = vrot.lane.b32.xlu0 %v7394, 96
        %v7563 = vpop.permute.xlu0 %7562
        %v7565 = vsel %vm6723, %v7555, 0
        %v7568 = vsel %vm6723, %v7557, 0
        %v7571 = vsel %vm6723, %v7561, 0
        %v7574 = vsel %vm6723, %v7563, 0
        %7576 = vmatprep.subr.bf16.mxu0 0
        %7577 = vmatpush1.bf16.xpose.msra.mxu0 %v7571
        %7578 = vmatprep.subr.bf16.mxu0 0
        %7579 = vmatpush1.bf16.xpose.msra.mxu0 %v7574
        %7580 = vmatprep.subr.bf16.mxu0 0
        %7581 = vmatpush1.bf16.xpose.msra.mxu0 0
        %7582 = vmatprep.subr.bf16.mxu0 0
        %7583 = vmatpush1.bf16.xpose.msra.mxu0 0
        %7584 = vmatprep.subr.bf16.mxu0 0
        %7585 = vmatpush1.bf16.xpose.msra.mxu0 0
        %7586 = vmatprep.subr.bf16.mxu0 0
        %7587 = vmatpush1.bf16.xpose.msra.mxu0 0
        %7588 = vmatprep.subr.bf16.mxu0 0
        %7589 = vmatpush1.bf16.xpose.msra.mxu0 0
        %7590 = vmatprep.subr.bf16.mxu0 0
        %7591 = vmatpush1.bf16.xpose.msra.mxu0 0
        %7592 = vmatprep.subr.bf16.mxu0 0
        %7593 = vmatpush1.bf16.xpose.msra.mxu0 0
        %7594 = vmatprep.subr.bf16.mxu0 0
        %7595 = vmatpush1.bf16.xpose.msra.mxu0 0
        %7596 = vmatprep.subr.bf16.mxu0 0
        %7597 = vmatpush1.bf16.xpose.msra.mxu0 0
        %7598 = vmatprep.subr.bf16.mxu0 0
        %7599 = vmatpush1.bf16.xpose.msra.mxu0 0
        %7600 = vmatprep.subr.bf16.mxu0 0
        %7601 = vmatpush1.bf16.xpose.msra.mxu0 0
        %7602 = vmatprep.subr.bf16.mxu0 0
        %7603 = vmatpush1.bf16.xpose.msra.mxu0 0
        %7604 = vmatprep.subr.bf16.mxu0 0
        %7605 = vmatpush1.bf16.xpose.msra.mxu0 0
        %7606 = vmatprep.subr.bf16.mxu0 0
        %7607 = vmatpush1.bf16.xpose.msra.mxu0 0
        %7608 = vmatprep.mubr.bf16.mxu0 0
        %7609 = vmatmul.mubr.bf16.gmra.mrb[0].mxu0 %v7565
        %v7610 = vpop.f32.mrb[0].mxu0
        %v7611 = vadd.f32 0.0, %v7610
        %v7612 = vpop.f32.mrb[0].mxu0
        %v7613 = vpop.f32.mrb[0].mxu0
        %v7614 = vadd.f32 0.0, %v7613
        %v7615 = vpop.f32.mrb[0].mxu0
        %7616 = vmatprep.mubr.bf16.mxu0 0
        %7617 = vmatmul.mubr.bf16.gmra.mrb[0].mxu0 %v7568
        %v7618 = vpop.f32.mrb[0].mxu0
        %v7619 = vadd.f32 0.0, %v7618
        %v7620 = vpop.f32.mrb[0].mxu0
        %v7621 = vpop.f32.mrb[0].mxu0
        %v7622 = vpop.f32.mrb[0].mxu0
        %7623 = vdwg.mxu0
        %v7624 = vmul.f32 %v7611, 0.17677669
        %v7625 = vmul.f32 %v7614, 0.17677669
        %v7626 = vmul.f32 %v7619, 0.17677669
        %v7627 = vsel %vm6787, %v7624, -inf
        %7628 = vmax.xlane.f32.xlu0 %v7627
        %v7629 = vpop.xlane.xlu0 %7628
        %v7630 = vsel %vm6787, %v7625, -inf
        %7631 = vmax.xlane.f32.xlu0 %v7630
        %v7632 = vpop.xlane.xlu0 %7631
        %v7633 = vsel %vm6787, %v7626, -inf
        %7634 = vmax.xlane.f32.xlu0 %v7633
        %v7635 = vpop.xlane.xlu0 %7634
        %v7636 = vsub.f32 %v7624, %v7629
        %v7637 = vsub.f32 %v7625, %v7632
        %v7638 = vsub.f32 %v7626, %v7635
        %v7639 = vmul.f32 %v7636, 1.442695
        %v7640 = vpow.pop %v7639
        %v7641 = vmul.f32 %v7637, 1.442695
        %v7642 = vpow.pop %v7641
        %v7643 = vmul.f32 %v7638, 1.442695
        %v7644 = vpow.pop %v7643
        %v7645 = vsel %vm6787, %v7640, 0.0
        %7646 = vadd.xlane.f32.xlu0 %v7645
        %v7647 = vpop.xlane.xlu0 %7646
        %v7648 = vsel %vm6787, %v7642, 0.0
        %7649 = vadd.xlane.f32.xlu0 %v7648
        %v7650 = vpop.xlane.xlu0 %7649
        %v7651 = vsel %vm6787, %v7644, 0.0
        %7652 = vadd.xlane.f32.xlu0 %v7651
        %v7653 = vpop.xlane.xlu0 %7652
        %v7654 = vrcp.pop %v7647
        %v7655 = vrcp.pop %v7650
        %v7656 = vrcp.pop %v7653
        %v7657 = vmul.f32 %v7640, %v7654
        %v7658 = vmul.f32 %v7642, %v7655
        %v7659 = vmul.f32 %v7644, %v7656
        %v7660 = vpack.c.bf16 %v7658, %v7657
        %v7661 = vpack.c.bf16 %v7659, %v7659
        %7664 = vrot.lane.b32.xlu0 %v7395, 96
        %v7665 = vpop.permute.xlu0 %7664
        %7666 = vrot.lane.b32.xlu0 %v7396, 96
        %v7667 = vpop.permute.xlu0 %7666
        %v7670 = vsel %vm6787, %v7660, 0
        %v7673 = vsel %vm6787, %v7661, 0
        %v7676 = vsel %vm6829, %v7667, 0
        %7678 = vmatprep.subr.bf16.mxu0 0
        %7679 = vmatpush1.bf16.msra.mxu0 %v7665
        %7680 = vmatprep.subr.bf16.mxu0 0
        %7681 = vmatpush1.bf16.msra.mxu0 %v7676
        %7682 = vmatprep.subr.bf16.mxu0 0
        %7683 = vmatpush1.bf16.msra.mxu0 0
        %7684 = vmatprep.subr.bf16.mxu0 0
        %7685 = vmatpush1.bf16.msra.mxu0 0
        %7686 = vmatprep.subr.bf16.mxu0 0
        %7687 = vmatpush1.bf16.msra.mxu0 0
        %7688 = vmatprep.subr.bf16.mxu0 0
        %7689 = vmatpush1.bf16.msra.mxu0 0
        %7690 = vmatprep.subr.bf16.mxu0 0
        %7691 = vmatpush1.bf16.msra.mxu0 0
        %7692 = vmatprep.subr.bf16.mxu0 0
        %7693 = vmatpush1.bf16.msra.mxu0 0
        %7694 = vmatprep.subr.bf16.mxu0 0
        %7695 = vmatpush1.bf16.msra.mxu0 0
        %7696 = vmatprep.subr.bf16.mxu0 0
        %7697 = vmatpush1.bf16.msra.mxu0 0
        %7698 = vmatprep.subr.bf16.mxu0 0
        %7699 = vmatpush1.bf16.msra.mxu0 0
        %7700 = vmatprep.subr.bf16.mxu0 0
        %7701 = vmatpush1.bf16.msra.mxu0 0
        %7702 = vmatprep.subr.bf16.mxu0 0
        %7703 = vmatpush1.bf16.msra.mxu0 0
        %7704 = vmatprep.subr.bf16.mxu0 0
        %7705 = vmatpush1.bf16.msra.mxu0 0
        %7706 = vmatprep.subr.bf16.mxu0 0
        %7707 = vmatpush1.bf16.msra.mxu0 0
        %7708 = vmatprep.subr.bf16.mxu0 0
        %7709 = vmatpush1.bf16.msra.mxu0 0
        %7710 = vmatprep.mubr.bf16.mxu0 0
        %7711 = vmatmul.mubr.bf16.gmra.mrb[0].mxu0 %v7670
        %v7712 = vpop.f32.mrb[0].mxu0
        %v7713 = vadd.f32 0.0, %v7712
        %v7714 = vpop.f32.mrb[0].mxu0
        %v7715 = vpop.f32.mrb[0].mxu0
        %v7716 = vadd.f32 0.0, %v7715
        %v7717 = vpop.f32.mrb[0].mxu0
        %7718 = vmatprep.mubr.bf16.mxu0 0
        %7719 = vmatmul.mubr.bf16.gmra.mrb[0].mxu0 %v7673
        %v7720 = vpop.f32.mrb[0].mxu0
        %v7721 = vadd.f32 0.0, %v7720
        %v7722 = vpop.f32.mrb[0].mxu0
        %v7723 = vpop.f32.mrb[0].mxu0
        %v7724 = vpop.f32.mrb[0].mxu0
        %7725 = vdwg.mxu0
        %7726 = vrot.lane.b32.xlu0 %v7391, 64
        %v7727 = vpop.permute.xlu0 %7726
        %7728 = vrot.lane.b32.xlu0 %v7392, 64
        %v7729 = vpop.permute.xlu0 %7728
        %7730 = vrot.lane.b32.xlu0 %v7393, 64
        %v7731 = vpop.permute.xlu0 %7730
        %7732 = vrot.lane.b32.xlu0 %v7394, 64
        %v7733 = vpop.permute.xlu0 %7732
        %v7735 = vsel %vm6723, %v7727, 0
        %v7738 = vsel %vm6723, %v7729, 0
        %v7741 = vsel %vm6723, %v7731, 0
        %v7744 = vsel %vm6723, %v7733, 0
        %7746 = vmatprep.subr.bf16.mxu0 0
        %7747 = vmatpush1.bf16.xpose.msra.mxu0 %v7741
        %7748 = vmatprep.subr.bf16.mxu0 0
        %7749 = vmatpush1.bf16.xpose.msra.mxu0 %v7744
        %7750 = vmatprep.subr.bf16.mxu0 0
        %7751 = vmatpush1.bf16.xpose.msra.mxu0 0
        %7752 = vmatprep.subr.bf16.mxu0 0
        %7753 = vmatpush1.bf16.xpose.msra.mxu0 0
        %7754 = vmatprep.subr.bf16.mxu0 0
        %7755 = vmatpush1.bf16.xpose.msra.mxu0 0
        %7756 = vmatprep.subr.bf16.mxu0 0
        %7757 = vmatpush1.bf16.xpose.msra.mxu0 0
        %7758 = vmatprep.subr.bf16.mxu0 0
        %7759 = vmatpush1.bf16.xpose.msra.mxu0 0
        %7760 = vmatprep.subr.bf16.mxu0 0
        %7761 = vmatpush1.bf16.xpose.msra.mxu0 0
        %7762 = vmatprep.subr.bf16.mxu0 0
        %7763 = vmatpush1.bf16.xpose.msra.mxu0 0
        %7764 = vmatprep.subr.bf16.mxu0 0
        %7765 = vmatpush1.bf16.xpose.msra.mxu0 0
        %7766 = vmatprep.subr.bf16.mxu0 0
        %7767 = vmatpush1.bf16.xpose.msra.mxu0 0
        %7768 = vmatprep.subr.bf16.mxu0 0
        %7769 = vmatpush1.bf16.xpose.msra.mxu0 0
        %7770 = vmatprep.subr.bf16.mxu0 0
        %7771 = vmatpush1.bf16.xpose.msra.mxu0 0
        %7772 = vmatprep.subr.bf16.mxu0 0
        %7773 = vmatpush1.bf16.xpose.msra.mxu0 0
        %7774 = vmatprep.subr.bf16.mxu0 0
        %7775 = vmatpush1.bf16.xpose.msra.mxu0 0
        %7776 = vmatprep.subr.bf16.mxu0 0
        %7777 = vmatpush1.bf16.xpose.msra.mxu0 0
        %7778 = vmatprep.mubr.bf16.mxu0 0
        %7779 = vmatmul.mubr.bf16.gmra.mrb[0].mxu0 %v7735
        %v7780 = vpop.f32.mrb[0].mxu0
        %v7781 = vadd.f32 0.0, %v7780
        %v7782 = vpop.f32.mrb[0].mxu0
        %v7783 = vpop.f32.mrb[0].mxu0
        %v7784 = vadd.f32 0.0, %v7783
        %v7785 = vpop.f32.mrb[0].mxu0
        %7786 = vmatprep.mubr.bf16.mxu0 0
        %7787 = vmatmul.mubr.bf16.gmra.mrb[0].mxu0 %v7738
        %v7788 = vpop.f32.mrb[0].mxu0
        %v7789 = vadd.f32 0.0, %v7788
        %v7790 = vpop.f32.mrb[0].mxu0
        %v7791 = vpop.f32.mrb[0].mxu0
        %v7792 = vpop.f32.mrb[0].mxu0
        %7793 = vdwg.mxu0
        %v7794 = vmul.f32 %v7781, 0.17677669
        %v7795 = vmul.f32 %v7784, 0.17677669
        %v7796 = vmul.f32 %v7789, 0.17677669
        %v7797 = vsel %vm6787, %v7794, -inf
        %7798 = vmax.xlane.f32.xlu0 %v7797
        %v7799 = vpop.xlane.xlu0 %7798
        %v7800 = vsel %vm6787, %v7795, -inf
        %7801 = vmax.xlane.f32.xlu0 %v7800
        %v7802 = vpop.xlane.xlu0 %7801
        %v7803 = vsel %vm6787, %v7796, -inf
        %7804 = vmax.xlane.f32.xlu0 %v7803
        %v7805 = vpop.xlane.xlu0 %7804
        %v7806 = vsub.f32 %v7794, %v7799
        %v7807 = vsub.f32 %v7795, %v7802
        %v7808 = vsub.f32 %v7796, %v7805
        %v7809 = vmul.f32 %v7806, 1.442695
        %v7810 = vpow.pop %v7809
        %v7811 = vmul.f32 %v7807, 1.442695
        %v7812 = vpow.pop %v7811
        %v7813 = vmul.f32 %v7808, 1.442695
        %v7814 = vpow.pop %v7813
        %v7815 = vsel %vm6787, %v7810, 0.0
        %7816 = vadd.xlane.f32.xlu0 %v7815
        %v7817 = vpop.xlane.xlu0 %7816
        %v7818 = vsel %vm6787, %v7812, 0.0
        %7819 = vadd.xlane.f32.xlu0 %v7818
        %v7820 = vpop.xlane.xlu0 %7819
        %v7821 = vsel %vm6787, %v7814, 0.0
        %7822 = vadd.xlane.f32.xlu0 %v7821
        %v7823 = vpop.xlane.xlu0 %7822
        %v7824 = vrcp.pop %v7817
        %v7825 = vrcp.pop %v7820
        %v7826 = vrcp.pop %v7823
        %v7827 = vmul.f32 %v7810, %v7824
        %v7828 = vmul.f32 %v7812, %v7825
        %v7829 = vmul.f32 %v7814, %v7826
        %v7830 = vpack.c.bf16 %v7828, %v7827
        %v7831 = vpack.c.bf16 %v7829, %v7829
        %7832 = vrot.lane.b32.xlu0 %v7395, 64
        %v7833 = vpop.permute.xlu0 %7832
        %7834 = vrot.lane.b32.xlu0 %v7396, 64
        %v7835 = vpop.permute.xlu0 %7834
        %v7838 = vsel %vm6787, %v7830, 0
        %v7841 = vsel %vm6787, %v7831, 0
        %v7844 = vsel %vm6829, %v7835, 0
        %7846 = vmatprep.subr.bf16.mxu0 0
        %7847 = vmatpush1.bf16.msra.mxu0 %v7833
        %7848 = vmatprep.subr.bf16.mxu0 0
        %7849 = vmatpush1.bf16.msra.mxu0 %v7844
        %7850 = vmatprep.subr.bf16.mxu0 0
        %7851 = vmatpush1.bf16.msra.mxu0 0
        %7852 = vmatprep.subr.bf16.mxu0 0
        %7853 = vmatpush1.bf16.msra.mxu0 0
        %7854 = vmatprep.subr.bf16.mxu0 0
        %7855 = vmatpush1.bf16.msra.mxu0 0
        %7856 = vmatprep.subr.bf16.mxu0 0
        %7857 = vmatpush1.bf16.msra.mxu0 0
        %7858 = vmatprep.subr.bf16.mxu0 0
        %7859 = vmatpush1.bf16.msra.mxu0 0
        %7860 = vmatprep.subr.bf16.mxu0 0
        %7861 = vmatpush1.bf16.msra.mxu0 0
        %7862 = vmatprep.subr.bf16.mxu0 0
        %7863 = vmatpush1.bf16.msra.mxu0 0
        %7864 = vmatprep.subr.bf16.mxu0 0
        %7865 = vmatpush1.bf16.msra.mxu0 0
        %7866 = vmatprep.subr.bf16.mxu0 0
        %7867 = vmatpush1.bf16.msra.mxu0 0
        %7868 = vmatprep.subr.bf16.mxu0 0
        %7869 = vmatpush1.bf16.msra.mxu0 0
        %7870 = vmatprep.subr.bf16.mxu0 0
        %7871 = vmatpush1.bf16.msra.mxu0 0
        %7872 = vmatprep.subr.bf16.mxu0 0
        %7873 = vmatpush1.bf16.msra.mxu0 0
        %7874 = vmatprep.subr.bf16.mxu0 0
        %7875 = vmatpush1.bf16.msra.mxu0 0
        %7876 = vmatprep.subr.bf16.mxu0 0
        %7877 = vmatpush1.bf16.msra.mxu0 0
        %7878 = vmatprep.mubr.bf16.mxu0 0
        %7879 = vmatmul.mubr.bf16.gmra.mrb[0].mxu0 %v7838
        %v7880 = vpop.f32.mrb[0].mxu0
        %v7881 = vadd.f32 0.0, %v7880
        %v7882 = vpop.f32.mrb[0].mxu0
        %v7883 = vpop.f32.mrb[0].mxu0
        %v7884 = vadd.f32 0.0, %v7883
        %v7885 = vpop.f32.mrb[0].mxu0
        %7886 = vmatprep.mubr.bf16.mxu0 0
        %7887 = vmatmul.mubr.bf16.gmra.mrb[0].mxu0 %v7841
        %v7888 = vpop.f32.mrb[0].mxu0
        %v7889 = vadd.f32 0.0, %v7888
        %v7890 = vpop.f32.mrb[0].mxu0
        %v7891 = vpop.f32.mrb[0].mxu0
        %v7892 = vpop.f32.mrb[0].mxu0
        %7893 = vdwg.mxu0
        %7894 = vrot.lane.b32.xlu0 %v7391, 32
        %v7895 = vpop.permute.xlu0 %7894
        %7896 = vrot.lane.b32.xlu0 %v7392, 32
        %v7897 = vpop.permute.xlu0 %7896
        %7898 = vrot.lane.b32.xlu0 %v7393, 32
        %v7899 = vpop.permute.xlu0 %7898
        %7900 = vrot.lane.b32.xlu0 %v7394, 32
        %v7901 = vpop.permute.xlu0 %7900
        %v7903 = vsel %vm6723, %v7895, 0
        %v7906 = vsel %vm6723, %v7897, 0
        %v7909 = vsel %vm6723, %v7899, 0
        %v7912 = vsel %vm6723, %v7901, 0
        %7914 = vmatprep.subr.bf16.mxu0 0
        %7915 = vmatpush1.bf16.xpose.msra.mxu0 %v7909
        %7916 = vmatprep.subr.bf16.mxu0 0
        %7917 = vmatpush1.bf16.xpose.msra.mxu0 %v7912
        %7918 = vmatprep.subr.bf16.mxu0 0
        %7919 = vmatpush1.bf16.xpose.msra.mxu0 0
        %7920 = vmatprep.subr.bf16.mxu0 0
        %7921 = vmatpush1.bf16.xpose.msra.mxu0 0
        %7922 = vmatprep.subr.bf16.mxu0 0
        %7923 = vmatpush1.bf16.xpose.msra.mxu0 0
        %7924 = vmatprep.subr.bf16.mxu0 0
        %7925 = vmatpush1.bf16.xpose.msra.mxu0 0
        %7926 = vmatprep.subr.bf16.mxu0 0
        %7927 = vmatpush1.bf16.xpose.msra.mxu0 0
        %7928 = vmatprep.subr.bf16.mxu0 0
        %7929 = vmatpush1.bf16.xpose.msra.mxu0 0
        %7930 = vmatprep.subr.bf16.mxu0 0
        %7931 = vmatpush1.bf16.xpose.msra.mxu0 0
        %7932 = vmatprep.subr.bf16.mxu0 0
        %7933 = vmatpush1.bf16.xpose.msra.mxu0 0
        %7934 = vmatprep.subr.bf16.mxu0 0
        %7935 = vmatpush1.bf16.xpose.msra.mxu0 0
        %7936 = vmatprep.subr.bf16.mxu0 0
        %7937 = vmatpush1.bf16.xpose.msra.mxu0 0
        %7938 = vmatprep.subr.bf16.mxu0 0
        %7939 = vmatpush1.bf16.xpose.msra.mxu0 0
        %7940 = vmatprep.subr.bf16.mxu0 0
        %7941 = vmatpush1.bf16.xpose.msra.mxu0 0
        %7942 = vmatprep.subr.bf16.mxu0 0
        %7943 = vmatpush1.bf16.xpose.msra.mxu0 0
        %7944 = vmatprep.subr.bf16.mxu0 0
        %7945 = vmatpush1.bf16.xpose.msra.mxu0 0
        %7946 = vmatprep.mubr.bf16.mxu0 0
        %7947 = vmatmul.mubr.bf16.gmra.mrb[0].mxu0 %v7903
        %v7948 = vpop.f32.mrb[0].mxu0
        %v7949 = vadd.f32 0.0, %v7948
        %v7950 = vpop.f32.mrb[0].mxu0
        %v7951 = vpop.f32.mrb[0].mxu0
        %v7952 = vadd.f32 0.0, %v7951
        %v7953 = vpop.f32.mrb[0].mxu0
        %7954 = vmatprep.mubr.bf16.mxu0 0
        %7955 = vmatmul.mubr.bf16.gmra.mrb[0].mxu0 %v7906
        %v7956 = vpop.f32.mrb[0].mxu0
        %v7957 = vadd.f32 0.0, %v7956
        %v7958 = vpop.f32.mrb[0].mxu0
        %v7959 = vpop.f32.mrb[0].mxu0
        %v7960 = vpop.f32.mrb[0].mxu0
        %7961 = vdwg.mxu0
        %v7962 = vmul.f32 %v7949, 0.17677669
        %v7963 = vmul.f32 %v7952, 0.17677669
        %v7964 = vmul.f32 %v7957, 0.17677669
        %v7965 = vsel %vm6787, %v7962, -inf
        %7966 = vmax.xlane.f32.xlu0 %v7965
        %v7967 = vpop.xlane.xlu0 %7966
        %v7968 = vsel %vm6787, %v7963, -inf
        %7969 = vmax.xlane.f32.xlu0 %v7968
        %v7970 = vpop.xlane.xlu0 %7969
        %v7971 = vsel %vm6787, %v7964, -inf
        %7972 = vmax.xlane.f32.xlu0 %v7971
        %v7973 = vpop.xlane.xlu0 %7972
        %v7974 = vsub.f32 %v7962, %v7967
        %v7975 = vsub.f32 %v7963, %v7970
        %v7976 = vsub.f32 %v7964, %v7973
        %v7977 = vmul.f32 %v7974, 1.442695
        %v7978 = vpow.pop %v7977
        %v7979 = vmul.f32 %v7975, 1.442695
        %v7980 = vpow.pop %v7979
        %v7981 = vmul.f32 %v7976, 1.442695
        %v7982 = vpow.pop %v7981
        %v7983 = vsel %vm6787, %v7978, 0.0
        %7984 = vadd.xlane.f32.xlu0 %v7983
        %v7985 = vpop.xlane.xlu0 %7984
        %v7986 = vsel %vm6787, %v7980, 0.0
        %7987 = vadd.xlane.f32.xlu0 %v7986
        %v7988 = vpop.xlane.xlu0 %7987
        %v7989 = vsel %vm6787, %v7982, 0.0
        %7990 = vadd.xlane.f32.xlu0 %v7989
        %v7991 = vpop.xlane.xlu0 %7990
        %v7992 = vrcp.pop %v7985
        %v7993 = vrcp.pop %v7988
        %v7994 = vrcp.pop %v7991
        %v7995 = vmul.f32 %v7978, %v7992
        %v7996 = vmul.f32 %v7980, %v7993
        %v7997 = vmul.f32 %v7982, %v7994
        %v7998 = vpack.c.bf16 %v7996, %v7995
        %v7999 = vpack.c.bf16 %v7997, %v7997
        %8000 = vrot.lane.b32.xlu0 %v7395, 32
        %v8001 = vpop.permute.xlu0 %8000
        %8002 = vrot.lane.b32.xlu0 %v7396, 32
        %v8003 = vpop.permute.xlu0 %8002
        %v8006 = vsel %vm6787, %v7998, 0
        %v8009 = vsel %vm6787, %v7999, 0
        %v8012 = vsel %vm6829, %v8003, 0
        %8014 = vmatprep.subr.bf16.mxu0 0
        %8015 = vmatpush1.bf16.msra.mxu0 %v8001
        %8016 = vmatprep.subr.bf16.mxu0 0
        %8017 = vmatpush1.bf16.msra.mxu0 %v8012
        %8018 = vmatprep.subr.bf16.mxu0 0
        %8019 = vmatpush1.bf16.msra.mxu0 0
        %8020 = vmatprep.subr.bf16.mxu0 0
        %8021 = vmatpush1.bf16.msra.mxu0 0
        %8022 = vmatprep.subr.bf16.mxu0 0
        %8023 = vmatpush1.bf16.msra.mxu0 0
        %8024 = vmatprep.subr.bf16.mxu0 0
        %8025 = vmatpush1.bf16.msra.mxu0 0
        %8026 = vmatprep.subr.bf16.mxu0 0
        %8027 = vmatpush1.bf16.msra.mxu0 0
        %8028 = vmatprep.subr.bf16.mxu0 0
        %8029 = vmatpush1.bf16.msra.mxu0 0
        %8030 = vmatprep.subr.bf16.mxu0 0
        %8031 = vmatpush1.bf16.msra.mxu0 0
        %8032 = vmatprep.subr.bf16.mxu0 0
        %8033 = vmatpush1.bf16.msra.mxu0 0
        %8034 = vmatprep.subr.bf16.mxu0 0
        %8035 = vmatpush1.bf16.msra.mxu0 0
        %8036 = vmatprep.subr.bf16.mxu0 0
        %8037 = vmatpush1.bf16.msra.mxu0 0
        %8038 = vmatprep.subr.bf16.mxu0 0
        %8039 = vmatpush1.bf16.msra.mxu0 0
        %8040 = vmatprep.subr.bf16.mxu0 0
        %8041 = vmatpush1.bf16.msra.mxu0 0
        %8042 = vmatprep.subr.bf16.mxu0 0
        %8043 = vmatpush1.bf16.msra.mxu0 0
        %8044 = vmatprep.subr.bf16.mxu0 0
        %8045 = vmatpush1.bf16.msra.mxu0 0
        %8046 = vmatprep.mubr.bf16.mxu0 0
        %8047 = vmatmul.mubr.bf16.gmra.mrb[0].mxu0 %v8006
        %v8048 = vpop.f32.mrb[0].mxu0
        %v8049 = vadd.f32 0.0, %v8048
        %v8050 = vpop.f32.mrb[0].mxu0
        %v8051 = vpop.f32.mrb[0].mxu0
        %v8052 = vadd.f32 0.0, %v8051
        %v8053 = vpop.f32.mrb[0].mxu0
        %8054 = vmatprep.mubr.bf16.mxu0 0
        %8055 = vmatmul.mubr.bf16.gmra.mrb[0].mxu0 %v8009
        %v8056 = vpop.f32.mrb[0].mxu0
        %v8057 = vadd.f32 0.0, %v8056
        %v8058 = vpop.f32.mrb[0].mxu0
        %v8059 = vpop.f32.mrb[0].mxu0
        %v8060 = vpop.f32.mrb[0].mxu0
        %8061 = vdwg.mxu0
        %8065 = vrot.lane.b32.xlu0 %v7042, 32
        %v8066 = vpop.permute.xlu0 %8065
        %8067 = vrot.lane.b32.xlu0 %v7045, 32
        %v8068 = vpop.permute.xlu0 %8067
        %8069 = vrot.lane.b32.xlu0 %v7050, 32
        %v8070 = vpop.permute.xlu0 %8069
        %8077 = vrot.lane.b32.xlu0 %v7210, 64
        %v8078 = vpop.permute.xlu0 %8077
        %8079 = vrot.lane.b32.xlu0 %v7213, 64
        %v8080 = vpop.permute.xlu0 %8079
        %8081 = vrot.lane.b32.xlu0 %v7218, 64
        %v8082 = vpop.permute.xlu0 %8081
        %8089 = vrot.lane.b32.xlu0 %v7378, 96
        %v8090 = vpop.permute.xlu0 %8089
        %8091 = vrot.lane.b32.xlu0 %v7381, 96
        %v8092 = vpop.permute.xlu0 %8091
        %8093 = vrot.lane.b32.xlu0 %v7386, 96
        %v8094 = vpop.permute.xlu0 %8093
        %8101 = vrot.lane.b32.xlu0 %v7713, 32
        %v8102 = vpop.permute.xlu0 %8101
        %8103 = vrot.lane.b32.xlu0 %v7716, 32
        %v8104 = vpop.permute.xlu0 %8103
        %8105 = vrot.lane.b32.xlu0 %v7721, 32
        %v8106 = vpop.permute.xlu0 %8105
        %8113 = vrot.lane.b32.xlu0 %v7881, 64
        %v8114 = vpop.permute.xlu0 %8113
        %8115 = vrot.lane.b32.xlu0 %v7884, 64
        %v8116 = vpop.permute.xlu0 %8115
        %8117 = vrot.lane.b32.xlu0 %v7889, 64
        %v8118 = vpop.permute.xlu0 %8117
        %8125 = vrot.lane.b32.xlu0 %v8049, 96
        %v8126 = vpop.permute.xlu0 %8125
        %8127 = vrot.lane.b32.xlu0 %v8052, 96
        %v8128 = vpop.permute.xlu0 %8127
        %8129 = vrot.lane.b32.xlu0 %v8057, 96
        %v8130 = vpop.permute.xlu0 %8129
        %v8134 = vsel %vm6723, %v6868, %v8066
        %v8135 = vsel %vm6723, %v6871, %v8068
        %v8136 = vsel %vm6723, %v6876, %v8070
        %vm8137 = vcmask 523264
        %v8138 = vsel %vm8137, %v8134, %v8078
        %v8139 = vsel %vm8137, %v8135, %v8080
        %v8140 = vsel %vm8137, %v8136, %v8082
        %vm8141 = vcmask 785408
        %v8142 = vsel %vm8141, %v8138, %v8090
        %v8143 = vsel %vm8141, %v8139, %v8092
        %v8144 = vsel %vm8141, %v8140, %v8094
        %v8145 = vsel %vm6723, %v7539, %v8102
        %v8146 = vsel %vm6723, %v7542, %v8104
        %v8147 = vsel %vm6723, %v7547, %v8106
        %v8148 = vsel %vm8137, %v8145, %v8114
        %v8149 = vsel %vm8137, %v8146, %v8116
        %v8150 = vsel %vm8137, %v8147, %v8118
        %v8151 = vsel %vm8141, %v8148, %v8126
        %v8152 = vsel %vm8141, %v8149, %v8128
        %v8153 = vsel %vm8141, %v8150, %v8130
        %v8154 = vpack.c.bf16 %v8143, %v8142
        %v8155 = vpack.c.bf16 %v8152, %v8151
        %v8156 = vpack.c.bf16 %v8144, %v8144
        %v8157 = vpack.c.bf16 %v8153, %v8153
        %v8158 = vld [vmem:[#allocation16] sm:$0xff]
        %v8159 = vld [vmem:[#allocation16 + $0x8] sm:$0xff]
        %v8160 = vld [vmem:[#allocation16 + $0x10] sm:$0xff]
        %v8161 = vld [vmem:[#allocation16 + $0x18] sm:$0xff]
        %v8162 = vld [vmem:[#allocation16 + $0x20] sm:$0xff]
        %v8163 = vld [vmem:[#allocation16 + $0x28] sm:$0xff]
        %v8164 = vld [vmem:[#allocation16 + $0x30] sm:$0xff]
        %v8165 = vld [vmem:[#allocation16 + $0x38] sm:$0xff]
        %v8166 = vld [vmem:[#allocation16 + $0x40] sm:$0xff]
        %v8167 = vld [vmem:[#allocation16 + $0x48] sm:$0xff]
        %v8168 = vld [vmem:[#allocation16 + $0x50] sm:$0xff]
        %v8169 = vld [vmem:[#allocation16 + $0x58] sm:$0xff]
        %v8170 = vld [vmem:[#allocation16 + $0x60] sm:$0xff]
        %v8171 = vld [vmem:[#allocation16 + $0x68] sm:$0xff]
        %v8172 = vld [vmem:[#allocation16 + $0x70] sm:$0xff]
        %v8173 = vld [vmem:[#allocation16 + $0x78] sm:$0xff]
        %v8174 = vld [vmem:[#allocation16 + $0x80] sm:$0xff]
        %v8175 = vld [vmem:[#allocation16 + $0x88] sm:$0xff]
        %v8176 = vld [vmem:[#allocation16 + $0x90] sm:$0xff]
        %v8177 = vld [vmem:[#allocation16 + $0x98] sm:$0xff]
        %v8178 = vld [vmem:[#allocation16 + $0xa0] sm:$0xff]
        %v8179 = vld [vmem:[#allocation16 + $0xa8] sm:$0xff]
        %v8180 = vld [vmem:[#allocation16 + $0xb0] sm:$0xff]
        %v8181 = vld [vmem:[#allocation16 + $0xb8] sm:$0xff]
        %v8182 = vld [vmem:[#allocation16 + $0xc0] sm:$0xff]
        %v8183 = vld [vmem:[#allocation16 + $0xc8] sm:$0xff]
        %v8184 = vld [vmem:[#allocation16 + $0xd0] sm:$0xff]
        %v8185 = vld [vmem:[#allocation16 + $0xd8] sm:$0xff]
        %v8186 = vld [vmem:[#allocation16 + $0xe0] sm:$0xff]
        %v8187 = vld [vmem:[#allocation16 + $0xe8] sm:$0xff]
        %v8188 = vld [vmem:[#allocation16 + $0xf0] sm:$0xff]
        %v8189 = vld [vmem:[#allocation16 + $0xf8] sm:$0xff]
        %v8190 = vld [vmem:[#allocation17] sm:$0x3]
        %v8192 = vlaneseq
        %v8193 = vshrl.u32 %v8192, 7
        %v8194 = vsub.s32 0, %v8193
        %v8195 = vrot.slane %v8190, %v8194
        %v8196 = vlaneseq
        %v8197 = vshrl.u32 %v8196, 7
        %v8198 = vsub.s32 1, %v8197
        %v8199 = vrot.slane %v8190, %v8198
        %v8234 = vunpack.c.l.b16 %v8158
        %v8235 = vunpack.c.h.b16 %v8158
        %v8236 = vunpack.c.l.b16 %v8159
        %v8237 = vunpack.c.h.b16 %v8159
        %v8238 = vunpack.c.l.b16 %v8160
        %v8239 = vunpack.c.h.b16 %v8160
        %v8240 = vunpack.c.l.b16 %v8161
        %v8241 = vunpack.c.h.b16 %v8161
        %v8242 = vunpack.c.l.b16 %v8162
        %v8243 = vunpack.c.h.b16 %v8162
        %v8244 = vunpack.c.l.b16 %v8163
        %v8245 = vunpack.c.h.b16 %v8163
        %v8246 = vunpack.c.l.b16 %v8164
        %v8247 = vunpack.c.h.b16 %v8164
        %v8248 = vunpack.c.l.b16 %v8165
        %v8249 = vunpack.c.h.b16 %v8165
        %v8250 = vunpack.c.l.b16 %v8166
        %v8251 = vunpack.c.h.b16 %v8166
        %v8252 = vunpack.c.l.b16 %v8167
        %v8253 = vunpack.c.h.b16 %v8167
        %v8254 = vunpack.c.l.b16 %v8168
        %v8255 = vunpack.c.h.b16 %v8168
        %v8256 = vunpack.c.l.b16 %v8169
        %v8257 = vunpack.c.h.b16 %v8169
        %v8258 = vunpack.c.l.b16 %v8170
        %v8259 = vunpack.c.h.b16 %v8170
        %v8260 = vunpack.c.l.b16 %v8171
        %v8261 = vunpack.c.h.b16 %v8171
        %v8262 = vunpack.c.l.b16 %v8172
        %v8263 = vunpack.c.h.b16 %v8172
        %v8264 = vunpack.c.l.b16 %v8173
        %v8265 = vunpack.c.h.b16 %v8173
        %v8266 = vunpack.c.l.b16 %v8174
        %v8267 = vunpack.c.h.b16 %v8174
        %v8268 = vunpack.c.l.b16 %v8175
        %v8269 = vunpack.c.h.b16 %v8175
        %v8270 = vunpack.c.l.b16 %v8176
        %v8271 = vunpack.c.h.b16 %v8176
        %v8272 = vunpack.c.l.b16 %v8177
        %v8273 = vunpack.c.h.b16 %v8177
        %v8274 = vunpack.c.l.b16 %v8178
        %v8275 = vunpack.c.h.b16 %v8178
        %v8276 = vunpack.c.l.b16 %v8179
        %v8277 = vunpack.c.h.b16 %v8179
        %v8278 = vunpack.c.l.b16 %v8180
        %v8279 = vunpack.c.h.b16 %v8180
        %v8280 = vunpack.c.l.b16 %v8181
        %v8281 = vunpack.c.h.b16 %v8181
        %v8282 = vunpack.c.l.b16 %v8182
        %v8283 = vunpack.c.h.b16 %v8182
        %v8284 = vunpack.c.l.b16 %v8183
        %v8285 = vunpack.c.h.b16 %v8183
        %v8286 = vunpack.c.l.b16 %v8184
        %v8287 = vunpack.c.h.b16 %v8184
        %v8288 = vunpack.c.l.b16 %v8185
        %v8289 = vunpack.c.h.b16 %v8185
        %v8290 = vunpack.c.l.b16 %v8186
        %v8291 = vunpack.c.h.b16 %v8186
        %v8292 = vunpack.c.l.b16 %v8187
        %v8293 = vunpack.c.h.b16 %v8187
        %v8294 = vunpack.c.l.b16 %v8188
        %v8295 = vunpack.c.h.b16 %v8188
        %v8296 = vunpack.c.l.b16 %v8189
        %v8297 = vunpack.c.h.b16 %v8189
        %v8298 = vpack.c.b16 %v8236, %v8234
        %v8299 = vpack.c.b16 %v8237, %v8235
        %v8300 = vpack.c.b16 %v8240, %v8238
        %v8301 = vpack.c.b16 %v8241, %v8239
        %v8302 = vpack.c.b16 %v8244, %v8242
        %v8303 = vpack.c.b16 %v8245, %v8243
        %v8304 = vpack.c.b16 %v8248, %v8246
        %v8305 = vpack.c.b16 %v8249, %v8247
        %v8306 = vpack.c.b16 %v8252, %v8250
        %v8307 = vpack.c.b16 %v8253, %v8251
        %v8308 = vpack.c.b16 %v8256, %v8254
        %v8309 = vpack.c.b16 %v8257, %v8255
        %v8310 = vpack.c.b16 %v8260, %v8258
        %v8311 = vpack.c.b16 %v8261, %v8259
        %v8312 = vpack.c.b16 %v8264, %v8262
        %v8313 = vpack.c.b16 %v8265, %v8263
        %v8314 = vpack.c.b16 %v8268, %v8266
        %v8315 = vpack.c.b16 %v8269, %v8267
        %v8316 = vpack.c.b16 %v8272, %v8270
        %v8317 = vpack.c.b16 %v8273, %v8271
        %v8318 = vpack.c.b16 %v8276, %v8274
        %v8319 = vpack.c.b16 %v8277, %v8275
        %v8320 = vpack.c.b16 %v8280, %v8278
        %v8321 = vpack.c.b16 %v8281, %v8279
        %v8322 = vpack.c.b16 %v8284, %v8282
        %v8323 = vpack.c.b16 %v8285, %v8283
        %v8324 = vpack.c.b16 %v8288, %v8286
        %v8325 = vpack.c.b16 %v8289, %v8287
        %v8326 = vpack.c.b16 %v8292, %v8290
        %v8327 = vpack.c.b16 %v8293, %v8291
        %v8328 = vpack.c.b16 %v8296, %v8294
        %v8329 = vpack.c.b16 %v8297, %v8295
        %8362 = vmatprep.subr.bf16.mxu0 %v8299
        %8363 = vmatpush1.bf16.msra.mxu0 %v8298
        %8364 = vmatprep.subr.bf16.mxu0 %v8301
        %8365 = vmatpush1.bf16.msra.mxu0 %v8300
        %8366 = vmatprep.subr.bf16.mxu0 %v8303
        %8367 = vmatpush1.bf16.msra.mxu0 %v8302
        %8368 = vmatprep.subr.bf16.mxu0 %v8305
        %8369 = vmatpush1.bf16.msra.mxu0 %v8304
        %8370 = vmatprep.subr.bf16.mxu0 %v8307
        %8371 = vmatpush1.bf16.msra.mxu0 %v8306
        %8372 = vmatprep.subr.bf16.mxu0 %v8309
        %8373 = vmatpush1.bf16.msra.mxu0 %v8308
        %8374 = vmatprep.subr.bf16.mxu0 %v8311
        %8375 = vmatpush1.bf16.msra.mxu0 %v8310
        %8376 = vmatprep.subr.bf16.mxu0 %v8313
        %8377 = vmatpush1.bf16.msra.mxu0 %v8312
        %8378 = vmatprep.subr.bf16.mxu0 %v8315
        %8379 = vmatpush1.bf16.msra.mxu0 %v8314
        %8380 = vmatprep.subr.bf16.mxu0 %v8317
        %8381 = vmatpush1.bf16.msra.mxu0 %v8316
        %8382 = vmatprep.subr.bf16.mxu0 %v8319
        %8383 = vmatpush1.bf16.msra.mxu0 %v8318
        %8384 = vmatprep.subr.bf16.mxu0 %v8321
        %8385 = vmatpush1.bf16.msra.mxu0 %v8320
        %8386 = vmatprep.subr.bf16.mxu0 %v8323
        %8387 = vmatpush1.bf16.msra.mxu0 %v8322
        %8388 = vmatprep.subr.bf16.mxu0 %v8325
        %8389 = vmatpush1.bf16.msra.mxu0 %v8324
        %8390 = vmatprep.subr.bf16.mxu0 %v8327
        %8391 = vmatpush1.bf16.msra.mxu0 %v8326
        %8392 = vmatprep.subr.bf16.mxu0 %v8329
        %8393 = vmatpush1.bf16.msra.mxu0 %v8328
        %8394 = vmatprep.mubr.bf16.mxu0 %v8155
        %8395 = vmatmul.mubr.bf16.gmra.mrb[0].mxu0 %v8154
        %v8396 = vpop.f32.mrb[0].mxu0
        %v8397 = vadd.f32 %v8195, %v8396
        %v8398 = vpop.f32.mrb[0].mxu0
        %v8399 = vadd.f32 %v8199, %v8398
        %v8400 = vpop.f32.mrb[0].mxu0
        %v8401 = vadd.f32 %v8195, %v8400
        %v8402 = vpop.f32.mrb[0].mxu0
        %v8403 = vadd.f32 %v8199, %v8402
        %8404 = vmatprep.mubr.bf16.mxu0 %v8157
        %8405 = vmatmul.mubr.bf16.gmra.mrb[0].mxu0 %v8156
        %v8406 = vpop.f32.mrb[0].mxu0
        %v8407 = vadd.f32 %v8195, %v8406
        %v8408 = vpop.f32.mrb[0].mxu0
        %v8409 = vadd.f32 %v8199, %v8408
        %v8410 = vpop.f32.mrb[0].mxu0
        %v8411 = vpop.f32.mrb[0].mxu0
        %8412 = vdwg.mxu0
        %v8413 = vadd.f32 %v5946, %v8397
        %v8414 = vadd.f32 %v5947, %v8399
        %v8415 = vadd.f32 %v5948, %v8401
        %v8416 = vadd.f32 %v5949, %v8403
        %v8417 = vadd.f32 %v5950, %v8407
        %v8418 = vadd.f32 %v5951, %v8409
        %v8419 = vld [vmem:[#allocation19] sm:$0x3]
        %v8420 = vld [vmem:[#allocation20] sm:$0x3]
        %v8421 = vadd.f32 %v8413, %v8414
        %8422 = vadd.xlane.f32.xlu0 %v8421
        %v8423 = vpop.xlane.xlu0 %8422
        %v8424 = vadd.f32 %v8415, %v8416
        %8425 = vadd.xlane.f32.xlu0 %v8424
        %v8426 = vpop.xlane.xlu0 %8425
        %v8427 = vadd.f32 %v8417, %v8418
        %8428 = vadd.xlane.f32.xlu0 %v8427
        %v8429 = vpop.xlane.xlu0 %8428
        %v8430 = vrcp.pop 256.0
        %v8431 = vmul.f32 %v8423, %v8430
        %v8432 = vmul.f32 %v8426, %v8430
        %v8433 = vmul.f32 %v8429, %v8430
        %v8434 = vsub.f32 %v8413, %v8431
        %v8435 = vsub.f32 %v8414, %v8431
        %v8436 = vsub.f32 %v8415, %v8432
        %v8437 = vsub.f32 %v8416, %v8432
        %v8438 = vsub.f32 %v8417, %v8433
        %v8439 = vsub.f32 %v8418, %v8433
        %v8440 = vmul.f32 %v8434, %v8434
        %v8441 = vmul.f32 %v8435, %v8435
        %v8442 = vmul.f32 %v8436, %v8436
        %v8443 = vmul.f32 %v8437, %v8437
        %v8444 = vmul.f32 %v8438, %v8438
        %v8445 = vmul.f32 %v8439, %v8439
        %v8446 = vadd.f32 %v8440, %v8441
        %8447 = vadd.xlane.f32.xlu0 %v8446
        %v8448 = vpop.xlane.xlu0 %8447
        %v8449 = vadd.f32 %v8442, %v8443
        %8450 = vadd.xlane.f32.xlu0 %v8449
        %v8451 = vpop.xlane.xlu0 %8450
        %v8452 = vadd.f32 %v8444, %v8445
        %8453 = vadd.xlane.f32.xlu0 %v8452
        %v8454 = vpop.xlane.xlu0 %8453
        %v8455 = vmul.f32 %v8448, %v8430
        %v8456 = vmul.f32 %v8451, %v8430
        %v8457 = vmul.f32 %v8454, %v8430
        %v8458 = vadd.f32 %v8455, 1e-05
        %v8459 = vadd.f32 %v8456, 1e-05
        %v8460 = vadd.f32 %v8457, 1e-05
        %v8461 = vrsqrt.pop %v8458
        %v8462 = vrsqrt.pop %v8459
        %v8463 = vrsqrt.pop %v8460
        %v8464 = vmul.f32 %v8434, %v8461
        %v8465 = vmul.f32 %v8435, %v8461
        %v8466 = vmul.f32 %v8436, %v8462
        %v8467 = vmul.f32 %v8437, %v8462
        %v8468 = vmul.f32 %v8438, %v8463
        %v8469 = vmul.f32 %v8439, %v8463
        %v8471 = vlaneseq
        %v8472 = vshrl.u32 %v8471, 7
        %v8473 = vsub.s32 0, %v8472
        %v8474 = vrot.slane %v8419, %v8473
        %v8475 = vlaneseq
        %v8476 = vshrl.u32 %v8475, 7
        %v8477 = vsub.s32 1, %v8476
        %v8478 = vrot.slane %v8419, %v8477
        %v8481 = vmul.f32 %v8464, %v8474
        %v8482 = vmul.f32 %v8465, %v8478
        %v8483 = vmul.f32 %v8466, %v8474
        %v8484 = vmul.f32 %v8467, %v8478
        %v8485 = vmul.f32 %v8468, %v8474
        %v8486 = vmul.f32 %v8469, %v8478
        %v8488 = vlaneseq
        %v8489 = vshrl.u32 %v8488, 7
        %v8490 = vsub.s32 0, %v8489
        %v8491 = vrot.slane %v8420, %v8490
        %v8492 = vlaneseq
        %v8493 = vshrl.u32 %v8492, 7
        %v8494 = vsub.s32 1, %v8493
        %v8495 = vrot.slane %v8420, %v8494
        %v8498 = vadd.f32 %v8481, %v8491
        %v8499 = vadd.f32 %v8482, %v8495
        %v8500 = vadd.f32 %v8483, %v8491
        %v8501 = vadd.f32 %v8484, %v8495
        %v8502 = vadd.f32 %v8485, %v8491
        %v8503 = vadd.f32 %v8486, %v8495
        %v8504 = vpack.c.bf16 %v8500, %v8498
        %v8505 = vpack.c.bf16 %v8501, %v8499
        %v8506 = vpack.c.bf16 %v8502, %v8502
        %v8507 = vpack.c.bf16 %v8503, %v8503
        %v8508 = vld [vmem:[#allocation22] sm:$0xff]
        %v8509 = vld [vmem:[#allocation22 + $0x8] sm:$0xff]
        %v8510 = vld [vmem:[#allocation22 + $0x10] sm:$0xff]
        %v8511 = vld [vmem:[#allocation22 + $0x18] sm:$0xff]
        %v8512 = vld [vmem:[#allocation22 + $0x20] sm:$0xff]
        %v8513 = vld [vmem:[#allocation22 + $0x28] sm:$0xff]
        %v8514 = vld [vmem:[#allocation22 + $0x30] sm:$0xff]
        %v8515 = vld [vmem:[#allocation22 + $0x38] sm:$0xff]
        %v8516 = vld [vmem:[#allocation22 + $0x40] sm:$0xff]
        %v8517 = vld [vmem:[#allocation22 + $0x48] sm:$0xff]
        %v8518 = vld [vmem:[#allocation22 + $0x50] sm:$0xff]
        %v8519 = vld [vmem:[#allocation22 + $0x58] sm:$0xff]
        %v8520 = vld [vmem:[#allocation22 + $0x60] sm:$0xff]
        %v8521 = vld [vmem:[#allocation22 + $0x68] sm:$0xff]
        %v8522 = vld [vmem:[#allocation22 + $0x70] sm:$0xff]
        %v8523 = vld [vmem:[#allocation22 + $0x78] sm:$0xff]
        %v8524 = vld [vmem:[#allocation22 + $0x80] sm:$0xff]
        %v8525 = vld [vmem:[#allocation22 + $0x88] sm:$0xff]
        %v8526 = vld [vmem:[#allocation22 + $0x90] sm:$0xff]
        %v8527 = vld [vmem:[#allocation22 + $0x98] sm:$0xff]
        %v8528 = vld [vmem:[#allocation22 + $0xa0] sm:$0xff]
        %v8529 = vld [vmem:[#allocation22 + $0xa8] sm:$0xff]
        %v8530 = vld [vmem:[#allocation22 + $0xb0] sm:$0xff]
        %v8531 = vld [vmem:[#allocation22 + $0xb8] sm:$0xff]
        %v8532 = vld [vmem:[#allocation22 + $0xc0] sm:$0xff]
        %v8533 = vld [vmem:[#allocation22 + $0xc8] sm:$0xff]
        %v8534 = vld [vmem:[#allocation22 + $0xd0] sm:$0xff]
        %v8535 = vld [vmem:[#allocation22 + $0xd8] sm:$0xff]
        %v8536 = vld [vmem:[#allocation22 + $0xe0] sm:$0xff]
        %v8537 = vld [vmem:[#allocation22 + $0xe8] sm:$0xff]
        %v8538 = vld [vmem:[#allocation22 + $0xf0] sm:$0xff]
        %v8539 = vld [vmem:[#allocation22 + $0xf8] sm:$0xff]
        %v8540 = vld [vmem:[#allocation22 + $0x100] sm:$0xff]
        %v8541 = vld [vmem:[#allocation22 + $0x108] sm:$0xff]
        %v8542 = vld [vmem:[#allocation22 + $0x110] sm:$0xff]
        %v8543 = vld [vmem:[#allocation22 + $0x118] sm:$0xff]
        %v8544 = vld [vmem:[#allocation22 + $0x120] sm:$0xff]
        %v8545 = vld [vmem:[#allocation22 + $0x128] sm:$0xff]
        %v8546 = vld [vmem:[#allocation22 + $0x130] sm:$0xff]
        %v8547 = vld [vmem:[#allocation22 + $0x138] sm:$0xff]
        %v8548 = vld [vmem:[#allocation22 + $0x140] sm:$0xff]
        %v8549 = vld [vmem:[#allocation22 + $0x148] sm:$0xff]
        %v8550 = vld [vmem:[#allocation22 + $0x150] sm:$0xff]
        %v8551 = vld [vmem:[#allocation22 + $0x158] sm:$0xff]
        %v8552 = vld [vmem:[#allocation22 + $0x160] sm:$0xff]
        %v8553 = vld [vmem:[#allocation22 + $0x168] sm:$0xff]
        %v8554 = vld [vmem:[#allocation22 + $0x170] sm:$0xff]
        %v8555 = vld [vmem:[#allocation22 + $0x178] sm:$0xff]
        %v8556 = vld [vmem:[#allocation22 + $0x180] sm:$0xff]
        %v8557 = vld [vmem:[#allocation22 + $0x188] sm:$0xff]
        %v8558 = vld [vmem:[#allocation22 + $0x190] sm:$0xff]
        %v8559 = vld [vmem:[#allocation22 + $0x198] sm:$0xff]
        %v8560 = vld [vmem:[#allocation22 + $0x1a0] sm:$0xff]
        %v8561 = vld [vmem:[#allocation22 + $0x1a8] sm:$0xff]
        %v8562 = vld [vmem:[#allocation22 + $0x1b0] sm:$0xff]
        %v8563 = vld [vmem:[#allocation22 + $0x1b8] sm:$0xff]
        %v8564 = vld [vmem:[#allocation22 + $0x1c0] sm:$0xff]
        %v8565 = vld [vmem:[#allocation22 + $0x1c8] sm:$0xff]
        %v8566 = vld [vmem:[#allocation22 + $0x1d0] sm:$0xff]
        %v8567 = vld [vmem:[#allocation22 + $0x1d8] sm:$0xff]
        %v8568 = vld [vmem:[#allocation22 + $0x1e0] sm:$0xff]
        %v8569 = vld [vmem:[#allocation22 + $0x1e8] sm:$0xff]
        %v8570 = vld [vmem:[#allocation22 + $0x1f0] sm:$0xff]
        %v8571 = vld [vmem:[#allocation22 + $0x1f8] sm:$0xff]
        %v8572 = vld [vmem:[#allocation23] sm:$0xf]
        %v8574 = vlaneseq
        %v8575 = vshrl.u32 %v8574, 7
        %v8576 = vsub.s32 0, %v8575
        %v8577 = vrot.slane %v8572, %v8576
        %v8578 = vlaneseq
        %v8579 = vshrl.u32 %v8578, 7
        %v8580 = vsub.s32 1, %v8579
        %v8581 = vrot.slane %v8572, %v8580
        %v8582 = vlaneseq
        %v8583 = vshrl.u32 %v8582, 7
        %v8584 = vsub.s32 2, %v8583
        %v8585 = vrot.slane %v8572, %v8584
        %v8586 = vlaneseq
        %v8587 = vshrl.u32 %v8586, 7
        %v8588 = vsub.s32 3, %v8587
        %v8589 = vrot.slane %v8572, %v8588
        %v8658 = vunpack.c.l.b16 %v8508
        %v8659 = vunpack.c.h.b16 %v8508
        %v8660 = vunpack.c.l.b16 %v8509
        %v8661 = vunpack.c.h.b16 %v8509
        %v8662 = vunpack.c.l.b16 %v8510
        %v8663 = vunpack.c.h.b16 %v8510
        %v8664 = vunpack.c.l.b16 %v8511
        %v8665 = vunpack.c.h.b16 %v8511
        %v8666 = vunpack.c.l.b16 %v8512
        %v8667 = vunpack.c.h.b16 %v8512
        %v8668 = vunpack.c.l.b16 %v8513
        %v8669 = vunpack.c.h.b16 %v8513
        %v8670 = vunpack.c.l.b16 %v8514
        %v8671 = vunpack.c.h.b16 %v8514
        %v8672 = vunpack.c.l.b16 %v8515
        %v8673 = vunpack.c.h.b16 %v8515
        %v8674 = vunpack.c.l.b16 %v8516
        %v8675 = vunpack.c.h.b16 %v8516
        %v8676 = vunpack.c.l.b16 %v8517
        %v8677 = vunpack.c.h.b16 %v8517
        %v8678 = vunpack.c.l.b16 %v8518
        %v8679 = vunpack.c.h.b16 %v8518
        %v8680 = vunpack.c.l.b16 %v8519
        %v8681 = vunpack.c.h.b16 %v8519
        %v8682 = vunpack.c.l.b16 %v8520
        %v8683 = vunpack.c.h.b16 %v8520
        %v8684 = vunpack.c.l.b16 %v8521
        %v8685 = vunpack.c.h.b16 %v8521
        %v8686 = vunpack.c.l.b16 %v8522
        %v8687 = vunpack.c.h.b16 %v8522
        %v8688 = vunpack.c.l.b16 %v8523
        %v8689 = vunpack.c.h.b16 %v8523
        %v8690 = vunpack.c.l.b16 %v8524
        %v8691 = vunpack.c.h.b16 %v8524
        %v8692 = vunpack.c.l.b16 %v8525
        %v8693 = vunpack.c.h.b16 %v8525
        %v8694 = vunpack.c.l.b16 %v8526
        %v8695 = vunpack.c.h.b16 %v8526
        %v8696 = vunpack.c.l.b16 %v8527
        %v8697 = vunpack.c.h.b16 %v8527
        %v8698 = vunpack.c.l.b16 %v8528
        %v8699 = vunpack.c.h.b16 %v8528
        %v8700 = vunpack.c.l.b16 %v8529
        %v8701 = vunpack.c.h.b16 %v8529
        %v8702 = vunpack.c.l.b16 %v8530
        %v8703 = vunpack.c.h.b16 %v8530
        %v8704 = vunpack.c.l.b16 %v8531
        %v8705 = vunpack.c.h.b16 %v8531
        %v8706 = vunpack.c.l.b16 %v8532
        %v8707 = vunpack.c.h.b16 %v8532
        %v8708 = vunpack.c.l.b16 %v8533
        %v8709 = vunpack.c.h.b16 %v8533
        %v8710 = vunpack.c.l.b16 %v8534
        %v8711 = vunpack.c.h.b16 %v8534
        %v8712 = vunpack.c.l.b16 %v8535
        %v8713 = vunpack.c.h.b16 %v8535
        %v8714 = vunpack.c.l.b16 %v8536
        %v8715 = vunpack.c.h.b16 %v8536
        %v8716 = vunpack.c.l.b16 %v8537
        %v8717 = vunpack.c.h.b16 %v8537
        %v8718 = vunpack.c.l.b16 %v8538
        %v8719 = vunpack.c.h.b16 %v8538
        %v8720 = vunpack.c.l.b16 %v8539
        %v8721 = vunpack.c.h.b16 %v8539
        %v8722 = vunpack.c.l.b16 %v8540
        %v8723 = vunpack.c.h.b16 %v8540
        %v8724 = vunpack.c.l.b16 %v8541
        %v8725 = vunpack.c.h.b16 %v8541
        %v8726 = vunpack.c.l.b16 %v8542
        %v8727 = vunpack.c.h.b16 %v8542
        %v8728 = vunpack.c.l.b16 %v8543
        %v8729 = vunpack.c.h.b16 %v8543
        %v8730 = vunpack.c.l.b16 %v8544
        %v8731 = vunpack.c.h.b16 %v8544
        %v8732 = vunpack.c.l.b16 %v8545
        %v8733 = vunpack.c.h.b16 %v8545
        %v8734 = vunpack.c.l.b16 %v8546
        %v8735 = vunpack.c.h.b16 %v8546
        %v8736 = vunpack.c.l.b16 %v8547
        %v8737 = vunpack.c.h.b16 %v8547
        %v8738 = vunpack.c.l.b16 %v8548
        %v8739 = vunpack.c.h.b16 %v8548
        %v8740 = vunpack.c.l.b16 %v8549
        %v8741 = vunpack.c.h.b16 %v8549
        %v8742 = vunpack.c.l.b16 %v8550
        %v8743 = vunpack.c.h.b16 %v8550
        %v8744 = vunpack.c.l.b16 %v8551
        %v8745 = vunpack.c.h.b16 %v8551
        %v8746 = vunpack.c.l.b16 %v8552
        %v8747 = vunpack.c.h.b16 %v8552
        %v8748 = vunpack.c.l.b16 %v8553
        %v8749 = vunpack.c.h.b16 %v8553
        %v8750 = vunpack.c.l.b16 %v8554
        %v8751 = vunpack.c.h.b16 %v8554
        %v8752 = vunpack.c.l.b16 %v8555
        %v8753 = vunpack.c.h.b16 %v8555
        %v8754 = vunpack.c.l.b16 %v8556
        %v8755 = vunpack.c.h.b16 %v8556
        %v8756 = vunpack.c.l.b16 %v8557
        %v8757 = vunpack.c.h.b16 %v8557
        %v8758 = vunpack.c.l.b16 %v8558
        %v8759 = vunpack.c.h.b16 %v8558
        %v8760 = vunpack.c.l.b16 %v8559
        %v8761 = vunpack.c.h.b16 %v8559
        %v8762 = vunpack.c.l.b16 %v8560
        %v8763 = vunpack.c.h.b16 %v8560
        %v8764 = vunpack.c.l.b16 %v8561
        %v8765 = vunpack.c.h.b16 %v8561
        %v8766 = vunpack.c.l.b16 %v8562
        %v8767 = vunpack.c.h.b16 %v8562
        %v8768 = vunpack.c.l.b16 %v8563
        %v8769 = vunpack.c.h.b16 %v8563
        %v8770 = vunpack.c.l.b16 %v8564
        %v8771 = vunpack.c.h.b16 %v8564
        %v8772 = vunpack.c.l.b16 %v8565
        %v8773 = vunpack.c.h.b16 %v8565
        %v8774 = vunpack.c.l.b16 %v8566
        %v8775 = vunpack.c.h.b16 %v8566
        %v8776 = vunpack.c.l.b16 %v8567
        %v8777 = vunpack.c.h.b16 %v8567
        %v8778 = vunpack.c.l.b16 %v8568
        %v8779 = vunpack.c.h.b16 %v8568
        %v8780 = vunpack.c.l.b16 %v8569
        %v8781 = vunpack.c.h.b16 %v8569
        %v8782 = vunpack.c.l.b16 %v8570
        %v8783 = vunpack.c.h.b16 %v8570
        %v8784 = vunpack.c.l.b16 %v8571
        %v8785 = vunpack.c.h.b16 %v8571
        %v8786 = vpack.c.b16 %v8662, %v8658
        %v8787 = vpack.c.b16 %v8663, %v8659
        %v8788 = vpack.c.b16 %v8664, %v8660
        %v8789 = vpack.c.b16 %v8665, %v8661
        %v8790 = vpack.c.b16 %v8670, %v8666
        %v8791 = vpack.c.b16 %v8671, %v8667
        %v8792 = vpack.c.b16 %v8672, %v8668
        %v8793 = vpack.c.b16 %v8673, %v8669
        %v8794 = vpack.c.b16 %v8678, %v8674
        %v8795 = vpack.c.b16 %v8679, %v8675
        %v8796 = vpack.c.b16 %v8680, %v8676
        %v8797 = vpack.c.b16 %v8681, %v8677
        %v8798 = vpack.c.b16 %v8686, %v8682
        %v8799 = vpack.c.b16 %v8687, %v8683
        %v8800 = vpack.c.b16 %v8688, %v8684
        %v8801 = vpack.c.b16 %v8689, %v8685
        %v8802 = vpack.c.b16 %v8694, %v8690
        %v8803 = vpack.c.b16 %v8695, %v8691
        %v8804 = vpack.c.b16 %v8696, %v8692
        %v8805 = vpack.c.b16 %v8697, %v8693
        %v8806 = vpack.c.b16 %v8702, %v8698
        %v8807 = vpack.c.b16 %v8703, %v8699
        %v8808 = vpack.c.b16 %v8704, %v8700
        %v8809 = vpack.c.b16 %v8705, %v8701
        %v8810 = vpack.c.b16 %v8710, %v8706
        %v8811 = vpack.c.b16 %v8711, %v8707
        %v8812 = vpack.c.b16 %v8712, %v8708
        %v8813 = vpack.c.b16 %v8713, %v8709
        %v8814 = vpack.c.b16 %v8718, %v8714
        %v8815 = vpack.c.b16 %v8719, %v8715
        %v8816 = vpack.c.b16 %v8720, %v8716
        %v8817 = vpack.c.b16 %v8721, %v8717
        %v8818 = vpack.c.b16 %v8726, %v8722
        %v8819 = vpack.c.b16 %v8727, %v8723
        %v8820 = vpack.c.b16 %v8728, %v8724
        %v8821 = vpack.c.b16 %v8729, %v8725
        %v8822 = vpack.c.b16 %v8734, %v8730
        %v8823 = vpack.c.b16 %v8735, %v8731
        %v8824 = vpack.c.b16 %v8736, %v8732
        %v8825 = vpack.c.b16 %v8737, %v8733
        %v8826 = vpack.c.b16 %v8742, %v8738
        %v8827 = vpack.c.b16 %v8743, %v8739
        %v8828 = vpack.c.b16 %v8744, %v8740
        %v8829 = vpack.c.b16 %v8745, %v8741
        %v8830 = vpack.c.b16 %v8750, %v8746
        %v8831 = vpack.c.b16 %v8751, %v8747
        %v8832 = vpack.c.b16 %v8752, %v8748
        %v8833 = vpack.c.b16 %v8753, %v8749
        %v8834 = vpack.c.b16 %v8758, %v8754
        %v8835 = vpack.c.b16 %v8759, %v8755
        %v8836 = vpack.c.b16 %v8760, %v8756
        %v8837 = vpack.c.b16 %v8761, %v8757
        %v8838 = vpack.c.b16 %v8766, %v8762
        %v8839 = vpack.c.b16 %v8767, %v8763
        %v8840 = vpack.c.b16 %v8768, %v8764
        %v8841 = vpack.c.b16 %v8769, %v8765
        %v8842 = vpack.c.b16 %v8774, %v8770
        %v8843 = vpack.c.b16 %v8775, %v8771
        %v8844 = vpack.c.b16 %v8776, %v8772
        %v8845 = vpack.c.b16 %v8777, %v8773
        %v8846 = vpack.c.b16 %v8782, %v8778
        %v8847 = vpack.c.b16 %v8783, %v8779
        %v8848 = vpack.c.b16 %v8784, %v8780
        %v8849 = vpack.c.b16 %v8785, %v8781
        %8914 = vmatprep.subr.bf16.mxu0 %v8787
        %8915 = vmatpush1.bf16.msra.mxu0 %v8786
        %8916 = vmatprep.subr.bf16.mxu0 %v8791
        %8917 = vmatpush1.bf16.msra.mxu0 %v8790
        %8918 = vmatprep.subr.bf16.mxu0 %v8795
        %8919 = vmatpush1.bf16.msra.mxu0 %v8794
        %8920 = vmatprep.subr.bf16.mxu0 %v8799
        %8921 = vmatpush1.bf16.msra.mxu0 %v8798
        %8922 = vmatprep.subr.bf16.mxu0 %v8803
        %8923 = vmatpush1.bf16.msra.mxu0 %v8802
        %8924 = vmatprep.subr.bf16.mxu0 %v8807
        %8925 = vmatpush1.bf16.msra.mxu0 %v8806
        %8926 = vmatprep.subr.bf16.mxu0 %v8811
        %8927 = vmatpush1.bf16.msra.mxu0 %v8810
        %8928 = vmatprep.subr.bf16.mxu0 %v8815
        %8929 = vmatpush1.bf16.msra.mxu0 %v8814
        %8930 = vmatprep.subr.bf16.mxu0 %v8819
        %8931 = vmatpush1.bf16.msra.mxu0 %v8818
        %8932 = vmatprep.subr.bf16.mxu0 %v8823
        %8933 = vmatpush1.bf16.msra.mxu0 %v8822
        %8934 = vmatprep.subr.bf16.mxu0 %v8827
        %8935 = vmatpush1.bf16.msra.mxu0 %v8826
        %8936 = vmatprep.subr.bf16.mxu0 %v8831
        %8937 = vmatpush1.bf16.msra.mxu0 %v8830
        %8938 = vmatprep.subr.bf16.mxu0 %v8835
        %8939 = vmatpush1.bf16.msra.mxu0 %v8834
        %8940 = vmatprep.subr.bf16.mxu0 %v8839
        %8941 = vmatpush1.bf16.msra.mxu0 %v8838
        %8942 = vmatprep.subr.bf16.mxu0 %v8843
        %8943 = vmatpush1.bf16.msra.mxu0 %v8842
        %8944 = vmatprep.subr.bf16.mxu0 %v8847
        %8945 = vmatpush1.bf16.msra.mxu0 %v8846
        %8946 = vmatprep.mubr.bf16.mxu0 %v8505
        %8947 = vmatmul.mubr.bf16.gmra.mrb[0].mxu0 %v8504
        %v8948 = vpop.f32.mrb[0].mxu0
        %v8949 = vadd.f32 %v8577, %v8948
        %v8950 = vpop.f32.mrb[0].mxu0
        %v8951 = vadd.f32 %v8581, %v8950
        %v8952 = vpop.f32.mrb[0].mxu0
        %v8953 = vadd.f32 %v8577, %v8952
        %v8954 = vpop.f32.mrb[0].mxu0
        %v8955 = vadd.f32 %v8581, %v8954
        %8956 = vmatprep.mubr.bf16.mxu0 %v8507
        %8957 = vmatmul.mubr.bf16.gmra.mrb[0].mxu0 %v8506
        %v8958 = vpop.f32.mrb[0].mxu0
        %v8959 = vadd.f32 %v8577, %v8958
        %v8960 = vpop.f32.mrb[0].mxu0
        %v8961 = vadd.f32 %v8581, %v8960
        %v8962 = vpop.f32.mrb[0].mxu0
        %v8963 = vpop.f32.mrb[0].mxu0
        %8964 = vdwg.mxu0
        %8965 = vmatprep.subr.bf16.mxu0 %v8789
        %8966 = vmatpush1.bf16.msra.mxu0 %v8788
        %8967 = vmatprep.subr.bf16.mxu0 %v8793
        %8968 = vmatpush1.bf16.msra.mxu0 %v8792
        %8969 = vmatprep.subr.bf16.mxu0 %v8797
        %8970 = vmatpush1.bf16.msra.mxu0 %v8796
        %8971 = vmatprep.subr.bf16.mxu0 %v8801
        %8972 = vmatpush1.bf16.msra.mxu0 %v8800
        %8973 = vmatprep.subr.bf16.mxu0 %v8805
        %8974 = vmatpush1.bf16.msra.mxu0 %v8804
        %8975 = vmatprep.subr.bf16.mxu0 %v8809
        %8976 = vmatpush1.bf16.msra.mxu0 %v8808
        %8977 = vmatprep.subr.bf16.mxu0 %v8813
        %8978 = vmatpush1.bf16.msra.mxu0 %v8812
        %8979 = vmatprep.subr.bf16.mxu0 %v8817
        %8980 = vmatpush1.bf16.msra.mxu0 %v8816
        %8981 = vmatprep.subr.bf16.mxu0 %v8821
        %8982 = vmatpush1.bf16.msra.mxu0 %v8820
        %8983 = vmatprep.subr.bf16.mxu0 %v8825
        %8984 = vmatpush1.bf16.msra.mxu0 %v8824
        %8985 = vmatprep.subr.bf16.mxu0 %v8829
        %8986 = vmatpush1.bf16.msra.mxu0 %v8828
        %8987 = vmatprep.subr.bf16.mxu0 %v8833
        %8988 = vmatpush1.bf16.msra.mxu0 %v8832
        %8989 = vmatprep.subr.bf16.mxu0 %v8837
        %8990 = vmatpush1.bf16.msra.mxu0 %v8836
        %8991 = vmatprep.subr.bf16.mxu0 %v8841
        %8992 = vmatpush1.bf16.msra.mxu0 %v8840
        %8993 = vmatprep.subr.bf16.mxu0 %v8845
        %8994 = vmatpush1.bf16.msra.mxu0 %v8844
        %8995 = vmatprep.subr.bf16.mxu0 %v8849
        %8996 = vmatpush1.bf16.msra.mxu0 %v8848
        %8997 = vmatprep.mubr.bf16.mxu0 %v8505
        %8998 = vmatmul.mubr.bf16.gmra.mrb[0].mxu0 %v8504
        %v8999 = vpop.f32.mrb[0].mxu0
        %v9000 = vadd.f32 %v8585, %v8999
        %v9001 = vpop.f32.mrb[0].mxu0
        %v9002 = vadd.f32 %v8589, %v9001
        %v9003 = vpop.f32.mrb[0].mxu0
        %v9004 = vadd.f32 %v8585, %v9003
        %v9005 = vpop.f32.mrb[0].mxu0
        %v9006 = vadd.f32 %v8589, %v9005
        %9007 = vmatprep.mubr.bf16.mxu0 %v8507
        %9008 = vmatmul.mubr.bf16.gmra.mrb[0].mxu0 %v8506
        %v9009 = vpop.f32.mrb[0].mxu0
        %v9010 = vadd.f32 %v8585, %v9009
        %v9011 = vpop.f32.mrb[0].mxu0
        %v9012 = vadd.f32 %v8589, %v9011
        %v9013 = vpop.f32.mrb[0].mxu0
        %v9014 = vpop.f32.mrb[0].mxu0
        %9015 = vdwg.mxu0
        %v9016 = vmax.f32 %v8949, 0.0
        %v9017 = vmax.f32 %v8951, 0.0
        %v9018 = vmax.f32 %v9000, 0.0
        %v9019 = vmax.f32 %v9002, 0.0
        %v9020 = vmax.f32 %v8953, 0.0
        %v9021 = vmax.f32 %v8955, 0.0
        %v9022 = vmax.f32 %v9004, 0.0
        %v9023 = vmax.f32 %v9006, 0.0
        %v9024 = vmax.f32 %v8959, 0.0
        %v9025 = vmax.f32 %v8961, 0.0
        %v9026 = vmax.f32 %v9010, 0.0
        %v9027 = vmax.f32 %v9012, 0.0
        %v9028 = vpack.c.bf16 %v9020, %v9016
        %v9029 = vpack.c.bf16 %v9021, %v9017
        %v9030 = vpack.c.bf16 %v9022, %v9018
        %v9031 = vpack.c.bf16 %v9023, %v9019
        %v9032 = vpack.c.bf16 %v9024, %v9024
        %v9033 = vpack.c.bf16 %v9025, %v9025
        %v9034 = vpack.c.bf16 %v9026, %v9026
        %v9035 = vpack.c.bf16 %v9027, %v9027
        %v9036 = vld [vmem:[#allocation25] sm:$0xff]
        %v9037 = vld [vmem:[#allocation25 + $0x8] sm:$0xff]
        %v9038 = vld [vmem:[#allocation25 + $0x10] sm:$0xff]
        %v9039 = vld [vmem:[#allocation25 + $0x18] sm:$0xff]
        %v9040 = vld [vmem:[#allocation25 + $0x20] sm:$0xff]
        %v9041 = vld [vmem:[#allocation25 + $0x28] sm:$0xff]
        %v9042 = vld [vmem:[#allocation25 + $0x30] sm:$0xff]
        %v9043 = vld [vmem:[#allocation25 + $0x38] sm:$0xff]
        %v9044 = vld [vmem:[#allocation25 + $0x40] sm:$0xff]
        %v9045 = vld [vmem:[#allocation25 + $0x48] sm:$0xff]
        %v9046 = vld [vmem:[#allocation25 + $0x50] sm:$0xff]
        %v9047 = vld [vmem:[#allocation25 + $0x58] sm:$0xff]
        %v9048 = vld [vmem:[#allocation25 + $0x60] sm:$0xff]
        %v9049 = vld [vmem:[#allocation25 + $0x68] sm:$0xff]
        %v9050 = vld [vmem:[#allocation25 + $0x70] sm:$0xff]
        %v9051 = vld [vmem:[#allocation25 + $0x78] sm:$0xff]
        %v9052 = vld [vmem:[#allocation25 + $0x80] sm:$0xff]
        %v9053 = vld [vmem:[#allocation25 + $0x88] sm:$0xff]
        %v9054 = vld [vmem:[#allocation25 + $0x90] sm:$0xff]
        %v9055 = vld [vmem:[#allocation25 + $0x98] sm:$0xff]
        %v9056 = vld [vmem:[#allocation25 + $0xa0] sm:$0xff]
        %v9057 = vld [vmem:[#allocation25 + $0xa8] sm:$0xff]
        %v9058 = vld [vmem:[#allocation25 + $0xb0] sm:$0xff]
        %v9059 = vld [vmem:[#allocation25 + $0xb8] sm:$0xff]
        %v9060 = vld [vmem:[#allocation25 + $0xc0] sm:$0xff]
        %v9061 = vld [vmem:[#allocation25 + $0xc8] sm:$0xff]
        %v9062 = vld [vmem:[#allocation25 + $0xd0] sm:$0xff]
        %v9063 = vld [vmem:[#allocation25 + $0xd8] sm:$0xff]
        %v9064 = vld [vmem:[#allocation25 + $0xe0] sm:$0xff]
        %v9065 = vld [vmem:[#allocation25 + $0xe8] sm:$0xff]
        %v9066 = vld [vmem:[#allocation25 + $0xf0] sm:$0xff]
        %v9067 = vld [vmem:[#allocation25 + $0xf8] sm:$0xff]
        %v9068 = vld [vmem:[#allocation25 + $0x100] sm:$0xff]
        %v9069 = vld [vmem:[#allocation25 + $0x108] sm:$0xff]
        %v9070 = vld [vmem:[#allocation25 + $0x110] sm:$0xff]
        %v9071 = vld [vmem:[#allocation25 + $0x118] sm:$0xff]
        %v9072 = vld [vmem:[#allocation25 + $0x120] sm:$0xff]
        %v9073 = vld [vmem:[#allocation25 + $0x128] sm:$0xff]
        %v9074 = vld [vmem:[#allocation25 + $0x130] sm:$0xff]
        %v9075 = vld [vmem:[#allocation25 + $0x138] sm:$0xff]
        %v9076 = vld [vmem:[#allocation25 + $0x140] sm:$0xff]
        %v9077 = vld [vmem:[#allocation25 + $0x148] sm:$0xff]
        %v9078 = vld [vmem:[#allocation25 + $0x150] sm:$0xff]
        %v9079 = vld [vmem:[#allocation25 + $0x158] sm:$0xff]
        %v9080 = vld [vmem:[#allocation25 + $0x160] sm:$0xff]
        %v9081 = vld [vmem:[#allocation25 + $0x168] sm:$0xff]
        %v9082 = vld [vmem:[#allocation25 + $0x170] sm:$0xff]
        %v9083 = vld [vmem:[#allocation25 + $0x178] sm:$0xff]
        %v9084 = vld [vmem:[#allocation25 + $0x180] sm:$0xff]
        %v9085 = vld [vmem:[#allocation25 + $0x188] sm:$0xff]
        %v9086 = vld [vmem:[#allocation25 + $0x190] sm:$0xff]
        %v9087 = vld [vmem:[#allocation25 + $0x198] sm:$0xff]
        %v9088 = vld [vmem:[#allocation25 + $0x1a0] sm:$0xff]
        %v9089 = vld [vmem:[#allocation25 + $0x1a8] sm:$0xff]
        %v9090 = vld [vmem:[#allocation25 + $0x1b0] sm:$0xff]
        %v9091 = vld [vmem:[#allocation25 + $0x1b8] sm:$0xff]
        %v9092 = vld [vmem:[#allocation25 + $0x1c0] sm:$0xff]
        %v9093 = vld [vmem:[#allocation25 + $0x1c8] sm:$0xff]
        %v9094 = vld [vmem:[#allocation25 + $0x1d0] sm:$0xff]
        %v9095 = vld [vmem:[#allocation25 + $0x1d8] sm:$0xff]
        %v9096 = vld [vmem:[#allocation25 + $0x1e0] sm:$0xff]
        %v9097 = vld [vmem:[#allocation25 + $0x1e8] sm:$0xff]
        %v9098 = vld [vmem:[#allocation25 + $0x1f0] sm:$0xff]
        %v9099 = vld [vmem:[#allocation25 + $0x1f8] sm:$0xff]
        %v9100 = vld [vmem:[#allocation26] sm:$0x3]
        %v9102 = vlaneseq
        %v9103 = vshrl.u32 %v9102, 7
        %v9104 = vsub.s32 0, %v9103
        %v9105 = vrot.slane %v9100, %v9104
        %v9106 = vlaneseq
        %v9107 = vshrl.u32 %v9106, 7
        %v9108 = vsub.s32 1, %v9107
        %v9109 = vrot.slane %v9100, %v9108
        %v9176 = vunpack.c.l.b16 %v9036
        %v9177 = vunpack.c.h.b16 %v9036
        %v9178 = vunpack.c.l.b16 %v9037
        %v9179 = vunpack.c.h.b16 %v9037
        %v9180 = vunpack.c.l.b16 %v9038
        %v9181 = vunpack.c.h.b16 %v9038
        %v9182 = vunpack.c.l.b16 %v9039
        %v9183 = vunpack.c.h.b16 %v9039
        %v9184 = vunpack.c.l.b16 %v9040
        %v9185 = vunpack.c.h.b16 %v9040
        %v9186 = vunpack.c.l.b16 %v9041
        %v9187 = vunpack.c.h.b16 %v9041
        %v9188 = vunpack.c.l.b16 %v9042
        %v9189 = vunpack.c.h.b16 %v9042
        %v9190 = vunpack.c.l.b16 %v9043
        %v9191 = vunpack.c.h.b16 %v9043
        %v9192 = vunpack.c.l.b16 %v9044
        %v9193 = vunpack.c.h.b16 %v9044
        %v9194 = vunpack.c.l.b16 %v9045
        %v9195 = vunpack.c.h.b16 %v9045
        %v9196 = vunpack.c.l.b16 %v9046
        %v9197 = vunpack.c.h.b16 %v9046
        %v9198 = vunpack.c.l.b16 %v9047
        %v9199 = vunpack.c.h.b16 %v9047
        %v9200 = vunpack.c.l.b16 %v9048
        %v9201 = vunpack.c.h.b16 %v9048
        %v9202 = vunpack.c.l.b16 %v9049
        %v9203 = vunpack.c.h.b16 %v9049
        %v9204 = vunpack.c.l.b16 %v9050
        %v9205 = vunpack.c.h.b16 %v9050
        %v9206 = vunpack.c.l.b16 %v9051
        %v9207 = vunpack.c.h.b16 %v9051
        %v9208 = vunpack.c.l.b16 %v9052
        %v9209 = vunpack.c.h.b16 %v9052
        %v9210 = vunpack.c.l.b16 %v9053
        %v9211 = vunpack.c.h.b16 %v9053
        %v9212 = vunpack.c.l.b16 %v9054
        %v9213 = vunpack.c.h.b16 %v9054
        %v9214 = vunpack.c.l.b16 %v9055
        %v9215 = vunpack.c.h.b16 %v9055
        %v9216 = vunpack.c.l.b16 %v9056
        %v9217 = vunpack.c.h.b16 %v9056
        %v9218 = vunpack.c.l.b16 %v9057
        %v9219 = vunpack.c.h.b16 %v9057
        %v9220 = vunpack.c.l.b16 %v9058
        %v9221 = vunpack.c.h.b16 %v9058
        %v9222 = vunpack.c.l.b16 %v9059
        %v9223 = vunpack.c.h.b16 %v9059
        %v9224 = vunpack.c.l.b16 %v9060
        %v9225 = vunpack.c.h.b16 %v9060
        %v9226 = vunpack.c.l.b16 %v9061
        %v9227 = vunpack.c.h.b16 %v9061
        %v9228 = vunpack.c.l.b16 %v9062
        %v9229 = vunpack.c.h.b16 %v9062
        %v9230 = vunpack.c.l.b16 %v9063
        %v9231 = vunpack.c.h.b16 %v9063
        %v9232 = vunpack.c.l.b16 %v9064
        %v9233 = vunpack.c.h.b16 %v9064
        %v9234 = vunpack.c.l.b16 %v9065
        %v9235 = vunpack.c.h.b16 %v9065
        %v9236 = vunpack.c.l.b16 %v9066
        %v9237 = vunpack.c.h.b16 %v9066
        %v9238 = vunpack.c.l.b16 %v9067
        %v9239 = vunpack.c.h.b16 %v9067
        %v9240 = vunpack.c.l.b16 %v9068
        %v9241 = vunpack.c.h.b16 %v9068
        %v9242 = vunpack.c.l.b16 %v9069
        %v9243 = vunpack.c.h.b16 %v9069
        %v9244 = vunpack.c.l.b16 %v9070
        %v9245 = vunpack.c.h.b16 %v9070
        %v9246 = vunpack.c.l.b16 %v9071
        %v9247 = vunpack.c.h.b16 %v9071
        %v9248 = vunpack.c.l.b16 %v9072
        %v9249 = vunpack.c.h.b16 %v9072
        %v9250 = vunpack.c.l.b16 %v9073
        %v9251 = vunpack.c.h.b16 %v9073
        %v9252 = vunpack.c.l.b16 %v9074
        %v9253 = vunpack.c.h.b16 %v9074
        %v9254 = vunpack.c.l.b16 %v9075
        %v9255 = vunpack.c.h.b16 %v9075
        %v9256 = vunpack.c.l.b16 %v9076
        %v9257 = vunpack.c.h.b16 %v9076
        %v9258 = vunpack.c.l.b16 %v9077
        %v9259 = vunpack.c.h.b16 %v9077
        %v9260 = vunpack.c.l.b16 %v9078
        %v9261 = vunpack.c.h.b16 %v9078
        %v9262 = vunpack.c.l.b16 %v9079
        %v9263 = vunpack.c.h.b16 %v9079
        %v9264 = vunpack.c.l.b16 %v9080
        %v9265 = vunpack.c.h.b16 %v9080
        %v9266 = vunpack.c.l.b16 %v9081
        %v9267 = vunpack.c.h.b16 %v9081
        %v9268 = vunpack.c.l.b16 %v9082
        %v9269 = vunpack.c.h.b16 %v9082
        %v9270 = vunpack.c.l.b16 %v9083
        %v9271 = vunpack.c.h.b16 %v9083
        %v9272 = vunpack.c.l.b16 %v9084
        %v9273 = vunpack.c.h.b16 %v9084
        %v9274 = vunpack.c.l.b16 %v9085
        %v9275 = vunpack.c.h.b16 %v9085
        %v9276 = vunpack.c.l.b16 %v9086
        %v9277 = vunpack.c.h.b16 %v9086
        %v9278 = vunpack.c.l.b16 %v9087
        %v9279 = vunpack.c.h.b16 %v9087
        %v9280 = vunpack.c.l.b16 %v9088
        %v9281 = vunpack.c.h.b16 %v9088
        %v9282 = vunpack.c.l.b16 %v9089
        %v9283 = vunpack.c.h.b16 %v9089
        %v9284 = vunpack.c.l.b16 %v9090
        %v9285 = vunpack.c.h.b16 %v9090
        %v9286 = vunpack.c.l.b16 %v9091
        %v9287 = vunpack.c.h.b16 %v9091
        %v9288 = vunpack.c.l.b16 %v9092
        %v9289 = vunpack.c.h.b16 %v9092
        %v9290 = vunpack.c.l.b16 %v9093
        %v9291 = vunpack.c.h.b16 %v9093
        %v9292 = vunpack.c.l.b16 %v9094
        %v9293 = vunpack.c.h.b16 %v9094
        %v9294 = vunpack.c.l.b16 %v9095
        %v9295 = vunpack.c.h.b16 %v9095
        %v9296 = vunpack.c.l.b16 %v9096
        %v9297 = vunpack.c.h.b16 %v9096
        %v9298 = vunpack.c.l.b16 %v9097
        %v9299 = vunpack.c.h.b16 %v9097
        %v9300 = vunpack.c.l.b16 %v9098
        %v9301 = vunpack.c.h.b16 %v9098
        %v9302 = vunpack.c.l.b16 %v9099
        %v9303 = vunpack.c.h.b16 %v9099
        %v9304 = vpack.c.b16 %v9178, %v9176
        %v9305 = vpack.c.b16 %v9179, %v9177
        %v9306 = vpack.c.b16 %v9182, %v9180
        %v9307 = vpack.c.b16 %v9183, %v9181
        %v9308 = vpack.c.b16 %v9186, %v9184
        %v9309 = vpack.c.b16 %v9187, %v9185
        %v9310 = vpack.c.b16 %v9190, %v9188
        %v9311 = vpack.c.b16 %v9191, %v9189
        %v9312 = vpack.c.b16 %v9194, %v9192
        %v9313 = vpack.c.b16 %v9195, %v9193
        %v9314 = vpack.c.b16 %v9198, %v9196
        %v9315 = vpack.c.b16 %v9199, %v9197
        %v9316 = vpack.c.b16 %v9202, %v9200
        %v9317 = vpack.c.b16 %v9203, %v9201
        %v9318 = vpack.c.b16 %v9206, %v9204
        %v9319 = vpack.c.b16 %v9207, %v9205
        %v9320 = vpack.c.b16 %v9210, %v9208
        %v9321 = vpack.c.b16 %v9211, %v9209
        %v9322 = vpack.c.b16 %v9214, %v9212
        %v9323 = vpack.c.b16 %v9215, %v9213
        %v9324 = vpack.c.b16 %v9218, %v9216
        %v9325 = vpack.c.b16 %v9219, %v9217
        %v9326 = vpack.c.b16 %v9222, %v9220
        %v9327 = vpack.c.b16 %v9223, %v9221
        %v9328 = vpack.c.b16 %v9226, %v9224
        %v9329 = vpack.c.b16 %v9227, %v9225
        %v9330 = vpack.c.b16 %v9230, %v9228
        %v9331 = vpack.c.b16 %v9231, %v9229
        %v9332 = vpack.c.b16 %v9234, %v9232
        %v9333 = vpack.c.b16 %v9235, %v9233
        %v9334 = vpack.c.b16 %v9238, %v9236
        %v9335 = vpack.c.b16 %v9239, %v9237
        %v9336 = vpack.c.b16 %v9242, %v9240
        %v9337 = vpack.c.b16 %v9243, %v9241
        %v9338 = vpack.c.b16 %v9246, %v9244
        %v9339 = vpack.c.b16 %v9247, %v9245
        %v9340 = vpack.c.b16 %v9250, %v9248
        %v9341 = vpack.c.b16 %v9251, %v9249
        %v9342 = vpack.c.b16 %v9254, %v9252
        %v9343 = vpack.c.b16 %v9255, %v9253
        %v9344 = vpack.c.b16 %v9258, %v9256
        %v9345 = vpack.c.b16 %v9259, %v9257
        %v9346 = vpack.c.b16 %v9262, %v9260
        %v9347 = vpack.c.b16 %v9263, %v9261
        %v9348 = vpack.c.b16 %v9266, %v9264
        %v9349 = vpack.c.b16 %v9267, %v9265
        %v9350 = vpack.c.b16 %v9270, %v9268
        %v9351 = vpack.c.b16 %v9271, %v9269
        %v9352 = vpack.c.b16 %v9274, %v9272
        %v9353 = vpack.c.b16 %v9275, %v9273
        %v9354 = vpack.c.b16 %v9278, %v9276
        %v9355 = vpack.c.b16 %v9279, %v9277
        %v9356 = vpack.c.b16 %v9282, %v9280
        %v9357 = vpack.c.b16 %v9283, %v9281
        %v9358 = vpack.c.b16 %v9286, %v9284
        %v9359 = vpack.c.b16 %v9287, %v9285
        %v9360 = vpack.c.b16 %v9290, %v9288
        %v9361 = vpack.c.b16 %v9291, %v9289
        %v9362 = vpack.c.b16 %v9294, %v9292
        %v9363 = vpack.c.b16 %v9295, %v9293
        %v9364 = vpack.c.b16 %v9298, %v9296
        %v9365 = vpack.c.b16 %v9299, %v9297
        %v9366 = vpack.c.b16 %v9302, %v9300
        %v9367 = vpack.c.b16 %v9303, %v9301
        %9432 = vmatprep.subr.bf16.mxu0 %v9305
        %9433 = vmatpush1.bf16.msra.mxu0 %v9304
        %9434 = vmatprep.subr.bf16.mxu0 %v9307
        %9435 = vmatpush1.bf16.msra.mxu0 %v9306
        %9436 = vmatprep.subr.bf16.mxu0 %v9309
        %9437 = vmatpush1.bf16.msra.mxu0 %v9308
        %9438 = vmatprep.subr.bf16.mxu0 %v9311
        %9439 = vmatpush1.bf16.msra.mxu0 %v9310
        %9440 = vmatprep.subr.bf16.mxu0 %v9313
        %9441 = vmatpush1.bf16.msra.mxu0 %v9312
        %9442 = vmatprep.subr.bf16.mxu0 %v9315
        %9443 = vmatpush1.bf16.msra.mxu0 %v9314
        %9444 = vmatprep.subr.bf16.mxu0 %v9317
        %9445 = vmatpush1.bf16.msra.mxu0 %v9316
        %9446 = vmatprep.subr.bf16.mxu0 %v9319
        %9447 = vmatpush1.bf16.msra.mxu0 %v9318
        %9448 = vmatprep.subr.bf16.mxu0 %v9321
        %9449 = vmatpush1.bf16.msra.mxu0 %v9320
        %9450 = vmatprep.subr.bf16.mxu0 %v9323
        %9451 = vmatpush1.bf16.msra.mxu0 %v9322
        %9452 = vmatprep.subr.bf16.mxu0 %v9325
        %9453 = vmatpush1.bf16.msra.mxu0 %v9324
        %9454 = vmatprep.subr.bf16.mxu0 %v9327
        %9455 = vmatpush1.bf16.msra.mxu0 %v9326
        %9456 = vmatprep.subr.bf16.mxu0 %v9329
        %9457 = vmatpush1.bf16.msra.mxu0 %v9328
        %9458 = vmatprep.subr.bf16.mxu0 %v9331
        %9459 = vmatpush1.bf16.msra.mxu0 %v9330
        %9460 = vmatprep.subr.bf16.mxu0 %v9333
        %9461 = vmatpush1.bf16.msra.mxu0 %v9332
        %9462 = vmatprep.subr.bf16.mxu0 %v9335
        %9463 = vmatpush1.bf16.msra.mxu0 %v9334
        %9464 = vmatprep.mubr.bf16.mxu0 %v9029
        %9465 = vmatmul.mubr.bf16.gmra.mrb[0].mxu0 %v9028
        %v9466 = vpop.f32.mrb[0].mxu0
        %v9467 = vadd.f32 %v9105, %v9466
        %v9468 = vpop.f32.mrb[0].mxu0
        %v9469 = vadd.f32 %v9109, %v9468
        %v9470 = vpop.f32.mrb[0].mxu0
        %v9471 = vadd.f32 %v9105, %v9470
        %v9472 = vpop.f32.mrb[0].mxu0
        %v9473 = vadd.f32 %v9109, %v9472
        %9474 = vmatprep.mubr.bf16.mxu0 %v9033
        %9475 = vmatmul.mubr.bf16.gmra.mrb[0].mxu0 %v9032
        %v9476 = vpop.f32.mrb[0].mxu0
        %v9477 = vadd.f32 %v9105, %v9476
        %v9478 = vpop.f32.mrb[0].mxu0
        %v9479 = vadd.f32 %v9109, %v9478
        %v9480 = vpop.f32.mrb[0].mxu0
        %v9481 = vpop.f32.mrb[0].mxu0
        %9482 = vdwg.mxu0
        %9483 = vmatprep.subr.bf16.mxu0 %v9337
        %9484 = vmatpush1.bf16.msra.mxu0 %v9336
        %9485 = vmatprep.subr.bf16.mxu0 %v9339
        %9486 = vmatpush1.bf16.msra.mxu0 %v9338
        %9487 = vmatprep.subr.bf16.mxu0 %v9341
        %9488 = vmatpush1.bf16.msra.mxu0 %v9340
        %9489 = vmatprep.subr.bf16.mxu0 %v9343
        %9490 = vmatpush1.bf16.msra.mxu0 %v9342
        %9491 = vmatprep.subr.bf16.mxu0 %v9345
        %9492 = vmatpush1.bf16.msra.mxu0 %v9344
        %9493 = vmatprep.subr.bf16.mxu0 %v9347
        %9494 = vmatpush1.bf16.msra.mxu0 %v9346
        %9495 = vmatprep.subr.bf16.mxu0 %v9349
        %9496 = vmatpush1.bf16.msra.mxu0 %v9348
        %9497 = vmatprep.subr.bf16.mxu0 %v9351
        %9498 = vmatpush1.bf16.msra.mxu0 %v9350
        %9499 = vmatprep.subr.bf16.mxu0 %v9353
        %9500 = vmatpush1.bf16.msra.mxu0 %v9352
        %9501 = vmatprep.subr.bf16.mxu0 %v9355
        %9502 = vmatpush1.bf16.msra.mxu0 %v9354
        %9503 = vmatprep.subr.bf16.mxu0 %v9357
        %9504 = vmatpush1.bf16.msra.mxu0 %v9356
        %9505 = vmatprep.subr.bf16.mxu0 %v9359
        %9506 = vmatpush1.bf16.msra.mxu0 %v9358
        %9507 = vmatprep.subr.bf16.mxu0 %v9361
        %9508 = vmatpush1.bf16.msra.mxu0 %v9360
        %9509 = vmatprep.subr.bf16.mxu0 %v9363
        %9510 = vmatpush1.bf16.msra.mxu0 %v9362
        %9511 = vmatprep.subr.bf16.mxu0 %v9365
        %9512 = vmatpush1.bf16.msra.mxu0 %v9364
        %9513 = vmatprep.subr.bf16.mxu0 %v9367
        %9514 = vmatpush1.bf16.msra.mxu0 %v9366
        %9515 = vmatprep.mubr.bf16.mxu0 %v9031
        %9516 = vmatmul.mubr.bf16.gmra.mrb[0].mxu0 %v9030
        %v9517 = vpop.f32.mrb[0].mxu0
        %v9518 = vadd.f32 %v9467, %v9517
        %v9519 = vpop.f32.mrb[0].mxu0
        %v9520 = vadd.f32 %v9469, %v9519
        %v9521 = vpop.f32.mrb[0].mxu0
        %v9522 = vadd.f32 %v9471, %v9521
        %v9523 = vpop.f32.mrb[0].mxu0
        %v9524 = vadd.f32 %v9473, %v9523
        %9525 = vmatprep.mubr.bf16.mxu0 %v9035
        %9526 = vmatmul.mubr.bf16.gmra.mrb[0].mxu0 %v9034
        %v9527 = vpop.f32.mrb[0].mxu0
        %v9528 = vadd.f32 %v9477, %v9527
        %v9529 = vpop.f32.mrb[0].mxu0
        %v9530 = vadd.f32 %v9479, %v9529
        %v9531 = vpop.f32.mrb[0].mxu0
        %v9532 = vpop.f32.mrb[0].mxu0
        %9533 = vdwg.mxu0
        %v9534 = vadd.f32 %v8498, %v9518
        %v9535 = vadd.f32 %v8499, %v9520
        %v9536 = vadd.f32 %v8500, %v9522
        %v9537 = vadd.f32 %v8501, %v9524
        %v9538 = vadd.f32 %v8502, %v9528
        %v9539 = vadd.f32 %v8503, %v9530
        %v9540 = vld [vmem:[#allocation28] sm:$0x3]
        %v9541 = vld [vmem:[#allocation29] sm:$0x3]
        %v9542 = vadd.f32 %v9534, %v9535
        %9543 = vadd.xlane.f32.xlu0 %v9542
        %v9544 = vpop.xlane.xlu0 %9543
        %v9545 = vadd.f32 %v9536, %v9537
        %9546 = vadd.xlane.f32.xlu0 %v9545
        %v9547 = vpop.xlane.xlu0 %9546
        %v9548 = vadd.f32 %v9538, %v9539
        %9549 = vadd.xlane.f32.xlu0 %v9548
        %v9550 = vpop.xlane.xlu0 %9549
        %v9551 = vmul.f32 %v9544, %v8430
        %v9552 = vmul.f32 %v9547, %v8430
        %v9553 = vmul.f32 %v9550, %v8430
        %v9554 = vsub.f32 %v9534, %v9551
        %v9555 = vsub.f32 %v9535, %v9551
        %v9556 = vsub.f32 %v9536, %v9552
        %v9557 = vsub.f32 %v9537, %v9552
        %v9558 = vsub.f32 %v9538, %v9553
        %v9559 = vsub.f32 %v9539, %v9553
        %v9560 = vmul.f32 %v9554, %v9554
        %v9561 = vmul.f32 %v9555, %v9555
        %v9562 = vmul.f32 %v9556, %v9556
        %v9563 = vmul.f32 %v9557, %v9557
        %v9564 = vmul.f32 %v9558, %v9558
        %v9565 = vmul.f32 %v9559, %v9559
        %v9566 = vadd.f32 %v9560, %v9561
        %9567 = vadd.xlane.f32.xlu0 %v9566
        %v9568 = vpop.xlane.xlu0 %9567
        %v9569 = vadd.f32 %v9562, %v9563
        %9570 = vadd.xlane.f32.xlu0 %v9569
        %v9571 = vpop.xlane.xlu0 %9570
        %v9572 = vadd.f32 %v9564, %v9565
        %9573 = vadd.xlane.f32.xlu0 %v9572
        %v9574 = vpop.xlane.xlu0 %9573
        %v9575 = vmul.f32 %v9568, %v8430
        %v9576 = vmul.f32 %v9571, %v8430
        %v9577 = vmul.f32 %v9574, %v8430
        %v9578 = vadd.f32 %v9575, 1e-05
        %v9579 = vadd.f32 %v9576, 1e-05
        %v9580 = vadd.f32 %v9577, 1e-05
        %v9581 = vrsqrt.pop %v9578
        %v9582 = vrsqrt.pop %v9579
        %v9583 = vrsqrt.pop %v9580
        %v9584 = vmul.f32 %v9554, %v9581
        %v9585 = vmul.f32 %v9555, %v9581
        %v9586 = vmul.f32 %v9556, %v9582
        %v9587 = vmul.f32 %v9557, %v9582
        %v9588 = vmul.f32 %v9558, %v9583
        %v9589 = vmul.f32 %v9559, %v9583
        %v9591 = vlaneseq
        %v9592 = vshrl.u32 %v9591, 7
        %v9593 = vsub.s32 0, %v9592
        %v9594 = vrot.slane %v9540, %v9593
        %v9595 = vlaneseq
        %v9596 = vshrl.u32 %v9595, 7
        %v9597 = vsub.s32 1, %v9596
        %v9598 = vrot.slane %v9540, %v9597
        %v9601 = vmul.f32 %v9584, %v9594
        %v9602 = vmul.f32 %v9585, %v9598
        %v9603 = vmul.f32 %v9586, %v9594
        %v9604 = vmul.f32 %v9587, %v9598
        %v9605 = vmul.f32 %v9588, %v9594
        %v9606 = vmul.f32 %v9589, %v9598
        %v9608 = vlaneseq
        %v9609 = vshrl.u32 %v9608, 7
        %v9610 = vsub.s32 0, %v9609
        %v9611 = vrot.slane %v9541, %v9610
        %v9612 = vlaneseq
        %v9613 = vshrl.u32 %v9612, 7
        %v9614 = vsub.s32 1, %v9613
        %v9615 = vrot.slane %v9541, %v9614
        %v9618 = vadd.f32 %v9601, %v9611
        %v9619 = vadd.f32 %v9602, %v9615
        %v9620 = vadd.f32 %v9603, %v9611
        %v9621 = vadd.f32 %v9604, %v9615
        %v9622 = vadd.f32 %v9605, %v9611
        %v9623 = vadd.f32 %v9606, %v9615
        %v9624 = vpack.c.bf16 %v9620, %v9618
        %v9625 = vpack.c.bf16 %v9621, %v9619
        %v9626 = vpack.c.bf16 %v9622, %v9622
        %v9627 = vpack.c.bf16 %v9623, %v9623
        %v9628 = vld [vmem:[#allocation31] sm:$0xf]
        %v9629 = vld [vmem:[#allocation31 + $0x4] sm:$0xf]
        %v9630 = vld [vmem:[#allocation31 + $0x8] sm:$0xf]
        %v9631 = vld [vmem:[#allocation31 + $0xc] sm:$0xf]
        %v9632 = vld [vmem:[#allocation31 + $0x10] sm:$0xf]
        %v9633 = vld [vmem:[#allocation31 + $0x14] sm:$0xf]
        %v9634 = vld [vmem:[#allocation31 + $0x18] sm:$0xf]
        %v9635 = vld [vmem:[#allocation31 + $0x1c] sm:$0xf]
        %v9636 = vld [vmem:[#allocation31 + $0x20] sm:$0xf]
        %v9637 = vld [vmem:[#allocation31 + $0x24] sm:$0xf]
        %v9638 = vld [vmem:[#allocation31 + $0x28] sm:$0xf]
        %v9639 = vld [vmem:[#allocation31 + $0x2c] sm:$0xf]
        %v9640 = vld [vmem:[#allocation31 + $0x30] sm:$0xf]
        %v9641 = vld [vmem:[#allocation31 + $0x34] sm:$0xf]
        %v9642 = vld [vmem:[#allocation31 + $0x38] sm:$0xf]
        %v9643 = vld [vmem:[#allocation31 + $0x3c] sm:$0xf]
        %v9644 = vld [vmem:[#allocation31 + $0x40] sm:$0xf]
        %v9645 = vld [vmem:[#allocation31 + $0x44] sm:$0xf]
        %v9646 = vld [vmem:[#allocation31 + $0x48] sm:$0xf]
        %v9647 = vld [vmem:[#allocation31 + $0x4c] sm:$0xf]
        %v9648 = vld [vmem:[#allocation31 + $0x50] sm:$0xf]
        %v9649 = vld [vmem:[#allocation31 + $0x54] sm:$0xf]
        %v9650 = vld [vmem:[#allocation31 + $0x58] sm:$0xf]
        %v9651 = vld [vmem:[#allocation31 + $0x5c] sm:$0xf]
        %v9652 = vld [vmem:[#allocation31 + $0x60] sm:$0xf]
        %v9653 = vld [vmem:[#allocation31 + $0x64] sm:$0xf]
        %v9654 = vld [vmem:[#allocation31 + $0x68] sm:$0xf]
        %v9655 = vld [vmem:[#allocation31 + $0x6c] sm:$0xf]
        %v9656 = vld [vmem:[#allocation31 + $0x70] sm:$0xf]
        %v9657 = vld [vmem:[#allocation31 + $0x74] sm:$0xf]
        %v9658 = vld [vmem:[#allocation31 + $0x78] sm:$0xf]
        %v9659 = vld [vmem:[#allocation31 + $0x7c] sm:$0xf]
        %v9692 = vunpack.c.l.b16 %v9628
        %v9693 = vunpack.c.l.b16 %v9629
        %v9694 = vunpack.c.l.b16 %v9630
        %v9695 = vunpack.c.l.b16 %v9631
        %v9696 = vunpack.c.l.b16 %v9632
        %v9697 = vunpack.c.l.b16 %v9633
        %v9698 = vunpack.c.l.b16 %v9634
        %v9699 = vunpack.c.l.b16 %v9635
        %v9700 = vunpack.c.l.b16 %v9636
        %v9701 = vunpack.c.l.b16 %v9637
        %v9702 = vunpack.c.l.b16 %v9638
        %v9703 = vunpack.c.l.b16 %v9639
        %v9704 = vunpack.c.l.b16 %v9640
        %v9705 = vunpack.c.l.b16 %v9641
        %v9706 = vunpack.c.l.b16 %v9642
        %v9707 = vunpack.c.l.b16 %v9643
        %v9708 = vunpack.c.l.b16 %v9644
        %v9709 = vunpack.c.l.b16 %v9645
        %v9710 = vunpack.c.l.b16 %v9646
        %v9711 = vunpack.c.l.b16 %v9647
        %v9712 = vunpack.c.l.b16 %v9648
        %v9713 = vunpack.c.l.b16 %v9649
        %v9714 = vunpack.c.l.b16 %v9650
        %v9715 = vunpack.c.l.b16 %v9651
        %v9716 = vunpack.c.l.b16 %v9652
        %v9717 = vunpack.c.l.b16 %v9653
        %v9718 = vunpack.c.l.b16 %v9654
        %v9719 = vunpack.c.l.b16 %v9655
        %v9720 = vunpack.c.l.b16 %v9656
        %v9721 = vunpack.c.l.b16 %v9657
        %v9722 = vunpack.c.l.b16 %v9658
        %v9723 = vunpack.c.l.b16 %v9659
        %v9724 = vpack.c.b16 %v9693, %v9692
        %v9725 = vpack.c.b16 %v9695, %v9694
        %v9726 = vpack.c.b16 %v9697, %v9696
        %v9727 = vpack.c.b16 %v9699, %v9698
        %v9728 = vpack.c.b16 %v9701, %v9700
        %v9729 = vpack.c.b16 %v9703, %v9702
        %v9730 = vpack.c.b16 %v9705, %v9704
        %v9731 = vpack.c.b16 %v9707, %v9706
        %v9732 = vpack.c.b16 %v9709, %v9708
        %v9733 = vpack.c.b16 %v9711, %v9710
        %v9734 = vpack.c.b16 %v9713, %v9712
        %v9735 = vpack.c.b16 %v9715, %v9714
        %v9736 = vpack.c.b16 %v9717, %v9716
        %v9737 = vpack.c.b16 %v9719, %v9718
        %v9738 = vpack.c.b16 %v9721, %v9720
        %v9739 = vpack.c.b16 %v9723, %v9722
        %9756 = vmatprep.subr.bf16.mxu0 0
        %9757 = vmatpush1.bf16.msra.mxu0 %v9724
        %9758 = vmatprep.subr.bf16.mxu0 0
        %9759 = vmatpush1.bf16.msra.mxu0 %v9725
        %9760 = vmatprep.subr.bf16.mxu0 0
        %9761 = vmatpush1.bf16.msra.mxu0 %v9726
        %9762 = vmatprep.subr.bf16.mxu0 0
        %9763 = vmatpush1.bf16.msra.mxu0 %v9727
        %9764 = vmatprep.subr.bf16.mxu0 0
        %9765 = vmatpush1.bf16.msra.mxu0 %v9728
        %9766 = vmatprep.subr.bf16.mxu0 0
        %9767 = vmatpush1.bf16.msra.mxu0 %v9729
        %9768 = vmatprep.subr.bf16.mxu0 0
        %9769 = vmatpush1.bf16.msra.mxu0 %v9730
        %9770 = vmatprep.subr.bf16.mxu0 0
        %9771 = vmatpush1.bf16.msra.mxu0 %v9731
        %9772 = vmatprep.subr.bf16.mxu0 0
        %9773 = vmatpush1.bf16.msra.mxu0 %v9732
        %9774 = vmatprep.subr.bf16.mxu0 0
        %9775 = vmatpush1.bf16.msra.mxu0 %v9733
        %9776 = vmatprep.subr.bf16.mxu0 0
        %9777 = vmatpush1.bf16.msra.mxu0 %v9734
        %9778 = vmatprep.subr.bf16.mxu0 0
        %9779 = vmatpush1.bf16.msra.mxu0 %v9735
        %9780 = vmatprep.subr.bf16.mxu0 0
        %9781 = vmatpush1.bf16.msra.mxu0 %v9736
        %9782 = vmatprep.subr.bf16.mxu0 0
        %9783 = vmatpush1.bf16.msra.mxu0 %v9737
        %9784 = vmatprep.subr.bf16.mxu0 0
        %9785 = vmatpush1.bf16.msra.mxu0 %v9738
        %9786 = vmatprep.subr.bf16.mxu0 0
        %9787 = vmatpush1.bf16.msra.mxu0 %v9739
        %9788 = vmatprep.mubr.bf16.mxu0 %v9625
        %9789 = vmatmul.mubr.bf16.gmra.mrb[0].mxu0 %v9624
        %v9790 = vpop.f32.mrb[0].mxu0
        %v9791 = vadd.f32 0.0, %v9790
        %v9792 = vpop.f32.mrb[0].mxu0
        %v9793 = vpop.f32.mrb[0].mxu0
        %v9794 = vadd.f32 0.0, %v9793
        %v9795 = vpop.f32.mrb[0].mxu0
        %9796 = vmatprep.mubr.bf16.mxu0 %v9627
        %9797 = vmatmul.mubr.bf16.gmra.mrb[0].mxu0 %v9626
        %v9798 = vpop.f32.mrb[0].mxu0
        %v9799 = vadd.f32 0.0, %v9798
        %v9800 = vpop.f32.mrb[0].mxu0
        %v9801 = vpop.f32.mrb[0].mxu0
        %v9802 = vpop.f32.mrb[0].mxu0
        %9803 = vdwg.mxu0
        %vm9804 = vcmask 203776
        %v9805 = vsel %vm9804, %v9791, -inf
        %v9806 = vsel %vm9804, %v9794, -inf
        %v9807 = vsel %vm9804, %v9799, -inf
        %v9808 = vmax.f32 %v9805, %v9806
        %v9809 = vmax.f32 %v9808, %v9807
        %v9810 = vrot.slane %v9809, 4
        %v9811 = vmax.f32 %v9809, %v9810
        %v9812 = vrot.slane %v9811, 2
        %v9813 = vmax.f32 %v9811, %v9812
        %v9814 = vrot.slane %v9813, 1
        %v9815 = vmax.f32 %v9813, %v9814
        %v9816 = vsub.f32 %v9791, %v9815
        %v9817 = vsub.f32 %v9794, %v9815
        %v9818 = vsub.f32 %v9799, %v9815
        %v9819 = vmul.f32 %v9816, 1.442695
        %v9820 = vpow.pop %v9819
        %v9821 = vmul.f32 %v9817, 1.442695
        %v9822 = vpow.pop %v9821
        %v9823 = vmul.f32 %v9818, 1.442695
        %v9824 = vpow.pop %v9823
        %v9825 = vsel %vm9804, %v9820, 0.0
        %v9826 = vsel %vm9804, %v9822, 0.0
        %v9827 = vadd.f32 %v9825, %v9826
        %v9828 = vsel %vm9804, %v9824, 0.0
        %v9829 = vadd.f32 %v9827, %v9828
        %v9830 = vrot.slane %v9829, 4
        %v9831 = vadd.f32 %v9829, %v9830
        %v9832 = vrot.slane %v9831, 2
        %v9833 = vadd.f32 %v9831, %v9832
        %v9834 = vrot.slane %v9833, 1
        %v9835 = vadd.f32 %v9833, %v9834
        %v9836 = vrcp.pop %v9835
        %v9837 = vmul.f32 %v9820, %v9836
        %v9838 = vmul.f32 %v9822, %v9836
        %v9839 = vmul.f32 %v9824, %v9836
        %v9840 = vpack.c.bf16 %v9838, %v9837
        %v9841 = vpack.c.bf16 %v9839, %v9839
        %9842 = vxpose.xlu0.c.b16.start [1/8] %v9840, 128
        %9843 = vxpose.xlu0.c.b16.cont [2/8] %v9841, 128
        %9844 = vxpose.xlu0.c.b16.cont [3/8] 0, 128
        %9845 = vxpose.xlu0.c.b16.cont [4/8] 0, 128
        %9846 = vxpose.xlu0.c.b16.cont [5/8] 0, 128
        %9847 = vxpose.xlu0.c.b16.cont [6/8] 0, 128
        %9848 = vxpose.xlu0.c.b16.cont [7/8] 0, 128
        %9849 = vxpose.xlu0.c.b16.end [8/8] 0, 128
        %v9850 = vpop.trf.xlu0
        %v9851 = vpop.trf.xlu0
        %v9852 = vpop.trf.xlu0
        %v9853 = vpop.trf.xlu0
        %v9854 = vpop.trf.xlu0
        %v9855 = vpop.trf.xlu0
        %v9856 = vpop.trf.xlu0
        %v9857 = vpop.trf.xlu0
        %v9859 = vsel %vm6787, %v9850, 0
        %v9862 = vsel %vm6787, %v9851, 0
        %v9865 = vsel %vm6829, %v9626, 0
        %v9868 = vsel %vm6829, %v9627, 0
        %9870 = vmatprep.subr.bf16.mxu0 %v9625
        %9871 = vmatpush1.bf16.msra.mxu0 %v9624
        %9872 = vmatprep.subr.bf16.mxu0 %v9868
        %9873 = vmatpush1.bf16.msra.mxu0 %v9865
        %9874 = vmatprep.subr.bf16.mxu0 0
        %9875 = vmatpush1.bf16.msra.mxu0 0
        %9876 = vmatprep.subr.bf16.mxu0 0
        %9877 = vmatpush1.bf16.msra.mxu0 0
        %9878 = vmatprep.subr.bf16.mxu0 0
        %9879 = vmatpush1.bf16.msra.mxu0 0
        %9880 = vmatprep.subr.bf16.mxu0 0
        %9881 = vmatpush1.bf16.msra.mxu0 0
        %9882 = vmatprep.subr.bf16.mxu0 0
        %9883 = vmatpush1.bf16.msra.mxu0 0
        %9884 = vmatprep.subr.bf16.mxu0 0
        %9885 = vmatpush1.bf16.msra.mxu0 0
        %9886 = vmatprep.subr.bf16.mxu0 0
        %9887 = vmatpush1.bf16.msra.mxu0 0
        %9888 = vmatprep.subr.bf16.mxu0 0
        %9889 = vmatpush1.bf16.msra.mxu0 0
        %9890 = vmatprep.subr.bf16.mxu0 0
        %9891 = vmatpush1.bf16.msra.mxu0 0
        %9892 = vmatprep.subr.bf16.mxu0 0
        %9893 = vmatpush1.bf16.msra.mxu0 0
        %9894 = vmatprep.subr.bf16.mxu0 0
        %9895 = vmatpush1.bf16.msra.mxu0 0
        %9896 = vmatprep.subr.bf16.mxu0 0
        %9897 = vmatpush1.bf16.msra.mxu0 0
        %9898 = vmatprep.subr.bf16.mxu0 0
        %9899 = vmatpush1.bf16.msra.mxu0 0
        %9900 = vmatprep.subr.bf16.mxu0 0
        %9901 = vmatpush1.bf16.msra.mxu0 0
        %9902 = vmatprep.mubr.bf16.mxu0 0
        %9903 = vmatmul.mubr.bf16.gmra.mrb[0].mxu0 %v9859
        %v9904 = vpop.f32.mrb[0].mxu0
        %v9905 = vadd.f32 0.0, %v9904
        %v9906 = vpop.f32.mrb[0].mxu0
        %v9907 = vadd.f32 0.0, %v9906
        %v9908 = vpop.f32.mrb[0].mxu0
        %v9909 = vadd.f32 0.0, %v9908
        %v9910 = vpop.f32.mrb[0].mxu0
        %v9911 = vadd.f32 0.0, %v9910
        %9912 = vmatprep.mubr.bf16.mxu0 0
        %9913 = vmatmul.mubr.bf16.gmra.mrb[0].mxu0 %v9862
        %v9914 = vpop.f32.mrb[0].mxu0
        %v9915 = vadd.f32 0.0, %v9914
        %v9916 = vpop.f32.mrb[0].mxu0
        %v9917 = vadd.f32 0.0, %v9916
        %v9918 = vpop.f32.mrb[0].mxu0
        %v9919 = vadd.f32 0.0, %v9918
        %v9920 = vpop.f32.mrb[0].mxu0
        %v9921 = vadd.f32 0.0, %v9920
        %9922 = vdwg.mxu0
        %v9923 = vpack.c.bf16 %v9909, %v9905
        %v9924 = vpack.c.bf16 %v9911, %v9907
        %v9925 = vpack.c.bf16 %v9919, %v9915
        %v9926 = vpack.c.bf16 %v9921, %v9917
        %v9927 = vld [vmem:[#allocation32] sm:$0xf]
        %v9928 = vld [vmem:[#allocation32 + $0x4] sm:$0xf]
        %v9929 = vld [vmem:[#allocation32 + $0x8] sm:$0xf]
        %v9930 = vld [vmem:[#allocation32 + $0xc] sm:$0xf]
        %v9931 = vld [vmem:[#allocation32 + $0x10] sm:$0xf]
        %v9932 = vld [vmem:[#allocation32 + $0x14] sm:$0xf]
        %v9933 = vld [vmem:[#allocation32 + $0x18] sm:$0xf]
        %v9934 = vld [vmem:[#allocation32 + $0x1c] sm:$0xf]
        %v9935 = vld [vmem:[#allocation32 + $0x20] sm:$0xf]
        %v9936 = vld [vmem:[#allocation32 + $0x24] sm:$0xf]
        %v9937 = vld [vmem:[#allocation32 + $0x28] sm:$0xf]
        %v9938 = vld [vmem:[#allocation32 + $0x2c] sm:$0xf]
        %v9939 = vld [vmem:[#allocation32 + $0x30] sm:$0xf]
        %v9940 = vld [vmem:[#allocation32 + $0x34] sm:$0xf]
        %v9941 = vld [vmem:[#allocation32 + $0x38] sm:$0xf]
        %v9942 = vld [vmem:[#allocation32 + $0x3c] sm:$0xf]
        %v9943 = vld [vmem:[#allocation32 + $0x40] sm:$0xf]
        %v9944 = vld [vmem:[#allocation32 + $0x44] sm:$0xf]
        %v9945 = vld [vmem:[#allocation32 + $0x48] sm:$0xf]
        %v9946 = vld [vmem:[#allocation32 + $0x4c] sm:$0xf]
        %v9947 = vld [vmem:[#allocation32 + $0x50] sm:$0xf]
        %v9948 = vld [vmem:[#allocation32 + $0x54] sm:$0xf]
        %v9949 = vld [vmem:[#allocation32 + $0x58] sm:$0xf]
        %v9950 = vld [vmem:[#allocation32 + $0x5c] sm:$0xf]
        %v9951 = vld [vmem:[#allocation32 + $0x60] sm:$0xf]
        %v9952 = vld [vmem:[#allocation32 + $0x64] sm:$0xf]
        %v9953 = vld [vmem:[#allocation32 + $0x68] sm:$0xf]
        %v9954 = vld [vmem:[#allocation32 + $0x6c] sm:$0xf]
        %v9955 = vld [vmem:[#allocation32 + $0x70] sm:$0xf]
        %v9956 = vld [vmem:[#allocation32 + $0x74] sm:$0xf]
        %v9957 = vld [vmem:[#allocation32 + $0x78] sm:$0xf]
        %v9958 = vld [vmem:[#allocation32 + $0x7c] sm:$0xf]
        %v9991 = vunpack.c.l.b16 %v9927
        %v9992 = vunpack.c.l.b16 %v9928
        %v9993 = vunpack.c.l.b16 %v9929
        %v9994 = vunpack.c.l.b16 %v9930
        %v9995 = vunpack.c.l.b16 %v9931
        %v9996 = vunpack.c.l.b16 %v9932
        %v9997 = vunpack.c.l.b16 %v9933
        %v9998 = vunpack.c.l.b16 %v9934
        %v9999 = vunpack.c.l.b16 %v9935
        %v10000 = vunpack.c.l.b16 %v9936
        %v10001 = vunpack.c.l.b16 %v9937
        %v10002 = vunpack.c.l.b16 %v9938
        %v10003 = vunpack.c.l.b16 %v9939
        %v10004 = vunpack.c.l.b16 %v9940
        %v10005 = vunpack.c.l.b16 %v9941
        %v10006 = vunpack.c.l.b16 %v9942
        %v10007 = vunpack.c.l.b16 %v9943
        %v10008 = vunpack.c.l.b16 %v9944
        %v10009 = vunpack.c.l.b16 %v9945
        %v10010 = vunpack.c.l.b16 %v9946
        %v10011 = vunpack.c.l.b16 %v9947
        %v10012 = vunpack.c.l.b16 %v9948
        %v10013 = vunpack.c.l.b16 %v9949
        %v10014 = vunpack.c.l.b16 %v9950
        %v10015 = vunpack.c.l.b16 %v9951
        %v10016 = vunpack.c.l.b16 %v9952
        %v10017 = vunpack.c.l.b16 %v9953
        %v10018 = vunpack.c.l.b16 %v9954
        %v10019 = vunpack.c.l.b16 %v9955
        %v10020 = vunpack.c.l.b16 %v9956
        %v10021 = vunpack.c.l.b16 %v9957
        %v10022 = vunpack.c.l.b16 %v9958
        %v10023 = vpack.c.b16 %v9992, %v9991
        %v10024 = vpack.c.b16 %v9994, %v9993
        %v10025 = vpack.c.b16 %v9996, %v9995
        %v10026 = vpack.c.b16 %v9998, %v9997
        %v10027 = vpack.c.b16 %v10000, %v9999
        %v10028 = vpack.c.b16 %v10002, %v10001
        %v10029 = vpack.c.b16 %v10004, %v10003
        %v10030 = vpack.c.b16 %v10006, %v10005
        %v10031 = vpack.c.b16 %v10008, %v10007
        %v10032 = vpack.c.b16 %v10010, %v10009
        %v10033 = vpack.c.b16 %v10012, %v10011
        %v10034 = vpack.c.b16 %v10014, %v10013
        %v10035 = vpack.c.b16 %v10016, %v10015
        %v10036 = vpack.c.b16 %v10018, %v10017
        %v10037 = vpack.c.b16 %v10020, %v10019
        %v10038 = vpack.c.b16 %v10022, %v10021
        %10055 = vmatprep.subr.bf16.mxu0 0
        %10056 = vmatpush1.bf16.msra.mxu0 %v10023
        %10057 = vmatprep.subr.bf16.mxu0 0
        %10058 = vmatpush1.bf16.msra.mxu0 %v10024
        %10059 = vmatprep.subr.bf16.mxu0 0
        %10060 = vmatpush1.bf16.msra.mxu0 %v10025
        %10061 = vmatprep.subr.bf16.mxu0 0
        %10062 = vmatpush1.bf16.msra.mxu0 %v10026
        %10063 = vmatprep.subr.bf16.mxu0 0
        %10064 = vmatpush1.bf16.msra.mxu0 %v10027
        %10065 = vmatprep.subr.bf16.mxu0 0
        %10066 = vmatpush1.bf16.msra.mxu0 %v10028
        %10067 = vmatprep.subr.bf16.mxu0 0
        %10068 = vmatpush1.bf16.msra.mxu0 %v10029
        %10069 = vmatprep.subr.bf16.mxu0 0
        %10070 = vmatpush1.bf16.msra.mxu0 %v10030
        %10071 = vmatprep.subr.bf16.mxu0 0
        %10072 = vmatpush1.bf16.msra.mxu0 %v10031
        %10073 = vmatprep.subr.bf16.mxu0 0
        %10074 = vmatpush1.bf16.msra.mxu0 %v10032
        %10075 = vmatprep.subr.bf16.mxu0 0
        %10076 = vmatpush1.bf16.msra.mxu0 %v10033
        %10077 = vmatprep.subr.bf16.mxu0 0
        %10078 = vmatpush1.bf16.msra.mxu0 %v10034
        %10079 = vmatprep.subr.bf16.mxu0 0
        %10080 = vmatpush1.bf16.msra.mxu0 %v10035
        %10081 = vmatprep.subr.bf16.mxu0 0
        %10082 = vmatpush1.bf16.msra.mxu0 %v10036
        %10083 = vmatprep.subr.bf16.mxu0 0
        %10084 = vmatpush1.bf16.msra.mxu0 %v10037
        %10085 = vmatprep.subr.bf16.mxu0 0
        %10086 = vmatpush1.bf16.msra.mxu0 %v10038
        %10087 = vmatprep.mubr.bf16.mxu0 %v9924
        %10088 = vmatmul.mubr.bf16.gmra.mrb[0].mxu0 %v9923
        %v10089 = vpop.f32.mrb[0].mxu0
        %v10090 = vadd.f32 0.0, %v10089
        %v10091 = vpop.f32.mrb[0].mxu0
        %v10092 = vpop.f32.mrb[0].mxu0
        %v10093 = vadd.f32 0.0, %v10092
        %v10094 = vpop.f32.mrb[0].mxu0
        %10095 = vmatprep.mubr.bf16.mxu0 %v9926
        %10096 = vmatmul.mubr.bf16.gmra.mrb[0].mxu0 %v9925
        %v10097 = vpop.f32.mrb[0].mxu0
        %v10098 = vadd.f32 0.0, %v10097
        %v10099 = vpop.f32.mrb[0].mxu0
        %v10100 = vpop.f32.mrb[0].mxu0
        %v10101 = vadd.f32 0.0, %v10100
        %v10102 = vpop.f32.mrb[0].mxu0
        %10103 = vdwg.mxu0
        %v10104 = vlaneseq
        %v10105 = vshrl.u32 %v10104, 7
        %v10106 = vadd.s32 %v10105, 8
        %v10107 = vadd.s32 %v10105, 16
        %v10108 = vadd.s32 %v10105, 24
        %v10109 = vlaneseq
        %v10110 = vand.u32 %v10109, 127
        %v10111 = vmul.u32 %v10105, 3
        %v10112 = vmul.u32 %v10106, 3
        %v10113 = vmul.u32 %v10107, 3
        %v10114 = vmul.u32 %v10108, 3
        %vm10115 = vcmp.ge.s32.totalorder %v10110, %v10111
        %vm10116 = vcmp.ge.s32.totalorder %v10110, %v10112
        %vm10117 = vcmp.ge.s32.totalorder %v10110, %v10113
        %vm10118 = vcmp.ge.s32.totalorder %v10110, %v10114
        %v10119 = vadd.s32 %v10111, 3
        %v10120 = vadd.s32 %v10112, 3
        %v10121 = vadd.s32 %v10113, 3
        %v10122 = vadd.s32 %v10114, 3
        %vm10123 = vcmp.lt.s32.totalorder %v10110, %v10119
        %vm10124 = vcmp.lt.s32.totalorder %v10110, %v10120
        %vm10125 = vcmp.lt.s32.totalorder %v10110, %v10121
        %vm10126 = vcmp.lt.s32.totalorder %v10110, %v10122
        %vm10127 = vmand %vm10115, %vm10123
        %vm10128 = vmand %vm10116, %vm10124
        %vm10129 = vmand %vm10117, %vm10125
        %vm10130 = vmand %vm10118, %vm10126
        %v10131 = vsel %vm10127, %v10090, 0.0
        %v10132 = vsel %vm10128, %v10093, 0.0
        %v10133 = vsel %vm10129, %v10098, 0.0
        %v10134 = vsel %vm10130, %v10101, 0.0
        %v10135 = vadd.f32 %v10131, %v10132
        %v10136 = vadd.f32 %v10135, %v10133
        %vm10137 = vcmask 1040384
        %v10138 = vsel %vm10137, %v10134, 0.0
        %v10139 = vadd.f32 %v10136, %v10138
        %v10140 = vrot.slane %v10139, 4
        %v10141 = vadd.f32 %v10139, %v10140
        %v10142 = vrot.slane %v10141, 2
        %v10143 = vadd.f32 %v10141, %v10142
        %v10144 = vrot.slane %v10143, 1
        %v10145 = vadd.f32 %v10143, %v10144
        %v10146 = vld [vmem:[#allocation34] sm:$0x1]
        %v10147 = vadd.f32 %v10145, %v10146
        %v10148 = vlaneseq
        %v10149 = vshrl.u32 %v10148, 7
        %v10150 = vsub.s32 0, %v10149
        %v10151 = vrot.slane %v10147, %v10150
        %10152 = vst [vmem:[%s984] sm:$0xff] %v10151
        %s10153 = sand.u32 %s507, 1
        %s10154 = scalar_lea.sflag [#allocation4], %s10153
        %s10155 = sand.u32 %s507, 1
        %s10156 = smul.addr %s10155, 24
        %s10157 = scalar_lea.vmem [#allocation35], %s10156
        %s10158 = sand.u32 %s533, 1
        %s10159 = scalar_lea.sflag [#allocation37], %s10158
        %s10160 = sand.u32 %s533, 1
        %s10161 = smul.addr %s10160, 8
        %s10162 = scalar_lea.vmem [#allocation36], %s10161
        // Predicated region
        $region189: #{forward.1} parent=103 // pred_check
          %p10163 = pneg %p517
        $region190: #{forward.1} parent=103 // pred_check_branch
          %10165 = sbr.rel (%p10163) target = $region192
        $region191: #{forward.1} parent=103 // pred_region
          %s10167 = ssub.s32 384, 384
          %10168 = vsyncadd %s10154, %s10167
          %s10169 = smul.addr %s53, 3
          %s10170 = smul.addr %s10169, 128
          %s10171 = scalar_lea.hbm %s21, %s10170
          %s10172 = sshll.u32 %s10157, 4
          %s10173 = int_to_ptr.vmem [resolvable:$true] %s10172
          %10178 = dma.vmem_to_hbm [thread:$0]  %s10173, 384, %s10171, %s10154, 128, 128, 8
        $region192: #{forward.1} parent=103 // pred_fallthru
          _
        // Predicated region
        $region193: #{forward.1} parent=103 // pred_check
          %p10179 = pneg %p543
        $region194: #{forward.1} parent=103 // pred_check_branch
          %10181 = sbr.rel (%p10179) target = $region196
        $region195: #{forward.1} parent=103 // pred_region
          %s10183 = ssub.s32 128, 128
          %10184 = vsyncadd %s10159, %s10183
          %s10185 = smul.addr %s53, 128
          %s10186 = scalar_lea.hbm %s22, %s10185
          %s10188 = sshll.u32 %s10162, 4
          %s10189 = int_to_ptr.vmem [resolvable:$true] %s10188
          %10191 = dma.vmem_to_hbm [thread:$0]  %s10189, 128, %s10186, %s10159
        $region196: #{forward.1} parent=103 // pred_fallthru
          _
      $region104: #{forward.1} parent=5 // pred_fallthru
        _
      %p10192 = scmp.le.s32.totalorder 2, %s48
      // Predicated region
      $region197: #{forward.1} parent=5 // pred_check
        %p10193 = pneg %p10192
      $region198: #{forward.1} parent=5 // pred_check_branch
        %10195 = sbr.rel (%p10193) target = $region200
      $region199: #{forward.1} parent=5 // pred_region
        %s10196 = ssub.s32 %s48, 2
        // Predicated region
        $region201: #{forward.1} parent=199 // pred_check
          %p10197 = pneg %p523
        $region202: #{forward.1} parent=199 // pred_check_branch
          %10199 = sbr.rel (%p10197) target = $region204
        $region203: #{forward.1} parent=199 // pred_region
          %s10200 = sand.u32 %s508, 1
          %s10201 = scalar_lea.sflag [#allocation4], %s10200
          %s10202 = sand.u32 %s508, 1
          %s10203 = smul.addr %s10202, 24
          %s10204 = scalar_lea.vmem [#allocation35], %s10203
          %10205 = dma.done %s10201, 384
        $region204: #{forward.1} parent=199 // pred_fallthru
          _
        // Predicated region
        $region205: #{forward.1} parent=199 // pred_check
          %p10206 = pneg %p549
        $region206: #{forward.1} parent=199 // pred_check_branch
          %10208 = sbr.rel (%p10206) target = $region208
        $region207: #{forward.1} parent=199 // pred_region
          %s10209 = sand.u32 %s534, 1
          %s10210 = scalar_lea.sflag [#allocation37], %s10209
          %s10211 = sand.u32 %s534, 1
          %s10212 = smul.addr %s10211, 8
          %s10213 = scalar_lea.vmem [#allocation36], %s10212
          %10214 = dma.done %s10210, 128
        $region208: #{forward.1} parent=199 // pred_fallthru
          _
      $region200: #{forward.1} parent=5 // pred_fallthru
        _
    $region6: #{forward.1} parent=1 // loop_footer
      %s52 = sadd.s32 1, %s48
    $region7: #{forward.1} parent=1 // loop_footer_branch
      %47 = sbr.rel target = $region3
    $region8: #{forward.1} parent=1 // loop_exit
      _
    %10215 = vsyncpa [#allocation3], 1
    %s10216 = scalar_lea.sflag [#allocation3], 1
    %10217 = vsyncpa %s10216, 1
    %10218 = vsyncpa [#allocation6], 1
    %10219 = vsyncpa [#allocation9], 1
    %10220 = vsyncpa [#allocation12], 1
    %10221 = vsyncpa [#allocation15], 1
    %10222 = vsyncpa [#allocation18], 1
    %10223 = vsyncpa [#allocation21], 1
    %10224 = vsyncpa [#allocation24], 1
    %10225 = vsyncpa [#allocation27], 1
    %10226 = vsyncpa [#allocation30], 1
    %10227 = vsyncpa [#allocation33], 1
    %10228 = vsyncpa [#allocation4], 1
    %s10229 = scalar_lea.sflag [#allocation4], 1
    %10230 = vsyncpa %s10229, 1
    %10231 = vsyncpa [#allocation37], 1
    %s10232 = scalar_lea.sflag [#allocation37], 1
    %10233 = vsyncpa %s10232, 1

</llo_original>
